<compile_context>
chip_gen: v6e
topology: v6e:2x2x1
jax: 0.10.0
libtpu: 0.0.40
codegen_flags: <defaults>
</compile_context>

<pallas_src>
import functools

import jax
import jax.numpy as jnp
from jax.experimental import pallas as pl
from jax.experimental.pallas import tpu as pltpu


def _pick_row_tile(m, target=256):
    """Largest multiple-of-8 row tile <= target dividing m (else the whole m)."""
    if m <= target:
        return m
    for t in range(target, 7, -8):
        if m % t == 0:
            return t
    return m


# ---------------------------------------------------------------------------
# Kernel 1: implicit-GEMM 3x3 conv (stride 1, input already halo-padded) with
# the per-image BatchNorm partial statistics fused into the epilogue.
# ---------------------------------------------------------------------------
def _conv3x3_stats_kernel(x_ref, w_ref, y_ref, stats_ref, *, ho, wo, cin, cout):
    # x_ref:     (1, ho+2, wo+2, cin)  padded NHWC image (auto-DMA'd to VMEM)
    # w_ref:     (9, cin, cout)        bf16, tap-major (di*3 + dj), VMEM-resident
    # y_ref:     (ho*wo, cout)         f32 pre-BN conv rows for this image
    # stats_ref: (1, 2, cout)          per-image [sum, sumsq] over ho*wo rows
    acc = jnp.zeros((ho * wo, cout), jnp.float32)
    for di in range(3):
        for dj in range(3):
            lhs = x_ref[0, di:di + ho, dj:dj + wo, :]            # (ho, wo, cin)
            lhs = lhs.reshape(ho * wo, cin).astype(jnp.bfloat16)  # bf16 MXU lhs
            acc = acc + jnp.dot(lhs, w_ref[di * 3 + dj],
                                preferred_element_type=jnp.float32)
    y_ref[...] = acc
    s = jnp.sum(acc, axis=0, keepdims=True)
    sq = jnp.sum(acc * acc, axis=0, keepdims=True)
    stats_ref[0] = jnp.concatenate([s, sq], axis=0)


def conv3x3_stats(x_padded, w_packed):
    """x_padded: (N, H+2, W+2, Cin) NHWC; w_packed: (9, Cin, Cout) bf16.

    Returns (y2d, stats, (N, Ho, Wo)) with
      y2d   : (N*Ho*Wo, Cout) f32 pre-BN conv output rows,
      stats : (N, 2, Cout)    per-image [sum, sumsq] partials.

    TODO(synk): for large H*W, add a row-tile grid axis with a manual
    make_async_copy halo fetch instead of whole-image blocks.
    """
    n, hp, wp, cin = x_padded.shape
    ho, wo = hp - 2, wp - 2
    kk, cin_w, cout = w_packed.shape
    assert kk == 9 and cin_w == cin
    y2d, stats = pl.pallas_call(
        functools.partial(_conv3x3_stats_kernel,
                          ho=ho, wo=wo, cin=cin, cout=cout),
        grid=(n,),
        in_specs=[
            pl.BlockSpec((1, hp, wp, cin), lambda i: (i, 0, 0, 0)),
            pl.BlockSpec((9, cin, cout), lambda i: (0, 0, 0)),  # stays resident
        ],
        out_specs=[
            pl.BlockSpec((ho * wo, cout), lambda i: (i, 0)),
            pl.BlockSpec((1, 2, cout), lambda i: (i, 0, 0)),
        ],
        out_shape=[
            jax.ShapeDtypeStruct((n * ho * wo, cout), jnp.float32),
            jax.ShapeDtypeStruct((n, 2, cout), jnp.float32),
        ],
        compiler_params=pltpu.CompilerParams(
            dimension_semantics=("parallel",)),
    )(x_padded, w_packed)
    return y2d, stats, (n, ho, wo)


# ---------------------------------------------------------------------------
# Kernel 2/3: fused BatchNorm-apply (+ optional residual add) + ReLU,
# row-tiled over (tm, C) blocks.
# ---------------------------------------------------------------------------
def _bn_relu_kernel(y_ref, s_ref, b_ref, o_ref):
    v = jnp.maximum(y_ref[...] * s_ref[...] + b_ref[...], 0.0)   # f32 epilogue
    o_ref[...] = v.astype(o_ref.dtype)


def _bn_add_relu_kernel(y_ref, r_ref, s_ref, b_ref, o_ref):
    v = y_ref[...] * s_ref[...] + b_ref[...] + r_ref[...].astype(jnp.float32)
    o_ref[...] = jnp.maximum(v, 0.0).astype(o_ref.dtype)


def _rowwise_call(kernel, row_inputs, vec_inputs, out_dtype):
    m, c = row_inputs[0].shape
    tm = _pick_row_tile(m)
    in_specs = ([pl.BlockSpec((tm, c), lambda i: (i, 0)) for _ in row_inputs] +
                [pl.BlockSpec((1, c), lambda i: (0, 0)) for _ in vec_inputs])
    return pl.pallas_call(
        kernel,
        grid=(m // tm,),
        in_specs=in_specs,
        out_specs=pl.BlockSpec((tm, c), lambda i: (i, 0)),
        out_shape=jax.ShapeDtypeStruct((m, c), out_dtype),
        compiler_params=pltpu.CompilerParams(
            dimension_semantics=("parallel",)),
    )(*row_inputs, *vec_inputs)


def bn_relu(y2d, scale, shift, out_dtype=jnp.bfloat16):
    return _rowwise_call(_bn_relu_kernel, [y2d], [scale, shift], out_dtype)


def bn_add_relu(y2d, residual2d, scale, shift):
    return _rowwise_call(_bn_add_relu_kernel, [y2d, residual2d],
                         [scale, shift], jnp.float32)


def bn_affine(stats, gamma, beta, count, eps=1e-5):
    """Fold training-mode BatchNorm (batch stats, biased variance) into a
    per-channel scale/shift: y_norm = y * scale + shift.  Tiny (C,) math."""
    s = jnp.sum(stats, axis=0)                  # (2, C) global over the batch
    mean = s[0] / count
    var = s[1] / count - mean * mean            # biased variance (PyTorch fwd)
    scale = gamma * jax.lax.rsqrt(var + eps)
    shift = beta - mean * scale
    return scale.reshape(1, -1), shift.reshape(1, -1)


# ---------------------------------------------------------------------------
# RestNetBasicBlock forward
# ---------------------------------------------------------------------------
def pack_conv_weight(w):
    """(Cout, Cin, 3, 3) PyTorch conv weight -> (9, Cin, Cout) bf16, tap-major.

    Done once at init so the forward path carries no per-call weight
    re-layout / pad / cast."""
    cout, cin, kh, kw = w.shape
    assert kh == 3 and kw == 3
    return (jnp.transpose(w, (2, 3, 1, 0))
            .reshape(kh * kw, cin, cout)
            .astype(jnp.bfloat16))


def restnet_basic_block_forward(x_nchw, params):
    """RestNetBasicBlock forward with training-mode BatchNorm semantics.

    Note: nn.Conv2d's default bias adds a per-channel constant that cancels
    exactly in the batch-statistics BatchNorm that follows, so it is omitted.
    The residual add requires stride == 1 and in_channels == out_channels
    (any other config is shape-invalid in the reference module too).
    """
    x = jnp.transpose(x_nchw, (0, 2, 3, 1)).astype(jnp.float32)   # NCHW -> NHWC
    n, h, w, c = x.shape

    # --- conv1 (implicit GEMM) + fused partial BN stats ---------------------
    xp = jnp.pad(x, ((0, 0), (1, 1), (1, 1), (0, 0)))
    y1, st1, (n, ho, wo) = conv3x3_stats(xp, params['w1'])
    count = n * ho * wo
    sc1, sh1 = bn_affine(st1, params['gamma1'], params['beta1'], count)
    h1 = bn_relu(y1, sc1, sh1, out_dtype=jnp.bfloat16)            # (M, C) bf16

    # --- conv2 (implicit GEMM) + fused partial BN stats ---------------------
    # TODO(synk): fuse this halo pad into the bn_relu store (write into a
    # pre-zeroed padded slab) to drop one small bf16 HBM round-trip.
    h1p = jnp.pad(h1.reshape(n, ho, wo, c), ((0, 0), (1, 1), (1, 1), (0, 0)))
    y2, st2, _ = conv3x3_stats(h1p, params['w2'])
    sc2, sh2 = bn_affine(st2, params['gamma2'], params['beta2'], count)

    # --- BN2 + residual add + ReLU in one fused pass ------------------------
    out2d = bn_add_relu(y2, x.reshape(n * h * w, c), sc2, sh2)
    out = out2d.reshape(n, ho, wo, c)
    return jnp.transpose(out, (0, 3, 1, 2))                       # NHWC -> NCHW


# ---------------------------------------------------------------------------
# Deterministic parameter init (in_channels == out_channels, stride == 1).
# ---------------------------------------------------------------------------
def init_params(key, channels):
    ks = jax.random.split(key, 6)

    def conv_w(k, cout, cin):
        w = 0.1 * jax.random.normal(k, (cout, cin, 3, 3), jnp.float32)
        return pack_conv_weight(w)

    return {
        'w1': conv_w(ks[0], channels, channels),
        'gamma1': 1.0 + 0.1 * jax.random.normal(ks[1], (channels,), jnp.float32),
        'beta1': 0.1 * jax.random.normal(ks[2], (channels,), jnp.float32),
        'w2': conv_w(ks[3], channels, channels),
        'gamma2': 1.0 + 0.1 * jax.random.normal(ks[4], (channels,), jnp.float32),
        'beta2': 0.1 * jax.random.normal(ks[5], (channels,), jnp.float32),
    }


if __name__ == "__main__":
    key = jax.random.PRNGKey(0)
    pkey, xkey = jax.random.split(key)
    N, C, H, W = 2, 64, 16, 16          # stride=1, in_channels == out_channels
    params = init_params(pkey, channels=C)
    x = jax.random.normal(xkey, (N, C, H, W), jnp.float32)

    fwd = jax.jit(restnet_basic_block_forward)
    out = jax.block_until_ready(fwd(x, params))

    assert out.shape == (N, C, H, W), out.shape
    assert bool(jnp.all(jnp.isfinite(out)))
    print("KERNEL_OK")
</pallas_src>

<mosaic_0001>
module attributes {stable_mosaic.version = 11 : i64} {
  func.func @_conv3x3_stats_kernel(%arg0: i32, %arg1: memref<1x18x18x64xf32, #tpu.memory_space<vmem>>, %arg2: memref<9x64x64xbf16, #tpu.memory_space<vmem>>, %arg3: memref<256x64xf32, #tpu.memory_space<vmem>>, %arg4: memref<1x2x64xf32, #tpu.memory_space<vmem>>) attributes {dimension_semantics = [#tpu.dimension_semantics<parallel>], iteration_bounds = array<i64: 2>, scalar_prefetch = 0 : i64, scratch_operands = 0 : i64, tpu.core_type = #tpu.core_type<tc>, window_params = [{transform_indices = @transform_0, window_bounds = array<i64: 1, 18, 18, 64>}, {pipeline_mode = #tpu.pipeline_mode<synchronous>, transform_indices = @transform_1, window_bounds = array<i64: 9, 64, 64>}, {transform_indices = @transform_2, window_bounds = array<i64: 256, 64>}, {transform_indices = @transform_3, window_bounds = array<i64: 1, 2, 64>}]} {
    %cst = arith.constant 0.000000e+00 : f32
    %0 = vector.broadcast %cst : f32 to vector<256x64xf32>
    %c0 = arith.constant 0 : index
    %c0_0 = arith.constant 0 : index
    %c0_1 = arith.constant 0 : index
    %c0_2 = arith.constant 0 : index
    %1 = vector.load %arg1[%c0, %c0_0, %c0_1, %c0_2] : memref<1x18x18x64xf32, #tpu.memory_space<vmem>>, vector<1x16x16x64xf32>
    %2 = vector.shape_cast %1 : vector<1x16x16x64xf32> to vector<16x16x64xf32>
    %3 = vector.shape_cast %2 : vector<16x16x64xf32> to vector<256x64xf32>
    %4 = arith.truncf %3 : vector<256x64xf32> to vector<256x64xbf16>
    %c0_3 = arith.constant 0 : index
    %c0_4 = arith.constant 0 : index
    %c0_5 = arith.constant 0 : index
    %5 = vector.load %arg2[%c0_3, %c0_4, %c0_5] : memref<9x64x64xbf16, #tpu.memory_space<vmem>>, vector<1x64x64xbf16>
    %6 = vector.shape_cast %5 : vector<1x64x64xbf16> to vector<64x64xbf16>
    %cst_6 = arith.constant dense<0.000000e+00> : vector<256x64xf32>
    %7 = tpu.matmul %4, %6, %cst_6 {dimension_numbers = #tpu.dot_dimension_numbers<[1], [0], [0], [1], [0, 0, 1, 1], [], []>} : vector<256x64xbf16>, vector<64x64xbf16>, vector<256x64xf32> -> vector<256x64xf32>
    %8 = arith.addf %0, %7 : vector<256x64xf32>
    %c0_7 = arith.constant 0 : index
    %c0_8 = arith.constant 0 : index
    %c1 = arith.constant 1 : index
    %c0_9 = arith.constant 0 : index
    %9 = vector.load %arg1[%c0_7, %c0_8, %c1, %c0_9] : memref<1x18x18x64xf32, #tpu.memory_space<vmem>>, vector<1x16x16x64xf32>
    %10 = vector.shape_cast %9 : vector<1x16x16x64xf32> to vector<16x16x64xf32>
    %11 = vector.shape_cast %10 : vector<16x16x64xf32> to vector<256x64xf32>
    %12 = arith.truncf %11 : vector<256x64xf32> to vector<256x64xbf16>
    %c1_10 = arith.constant 1 : index
    %c0_11 = arith.constant 0 : index
    %c0_12 = arith.constant 0 : index
    %13 = vector.load %arg2[%c1_10, %c0_11, %c0_12] : memref<9x64x64xbf16, #tpu.memory_space<vmem>>, vector<1x64x64xbf16>
    %14 = vector.shape_cast %13 : vector<1x64x64xbf16> to vector<64x64xbf16>
    %cst_13 = arith.constant dense<0.000000e+00> : vector<256x64xf32>
    %15 = tpu.matmul %12, %14, %cst_13 {dimension_numbers = #tpu.dot_dimension_numbers<[1], [0], [0], [1], [0, 0, 1, 1], [], []>} : vector<256x64xbf16>, vector<64x64xbf16>, vector<256x64xf32> -> vector<256x64xf32>
    %16 = arith.addf %8, %15 : vector<256x64xf32>
    %c0_14 = arith.constant 0 : index
    %c0_15 = arith.constant 0 : index
    %c2 = arith.constant 2 : index
    %c0_16 = arith.constant 0 : index
    %17 = vector.load %arg1[%c0_14, %c0_15, %c2, %c0_16] : memref<1x18x18x64xf32, #tpu.memory_space<vmem>>, vector<1x16x16x64xf32>
    %18 = vector.shape_cast %17 : vector<1x16x16x64xf32> to vector<16x16x64xf32>
    %19 = vector.shape_cast %18 : vector<16x16x64xf32> to vector<256x64xf32>
    %20 = arith.truncf %19 : vector<256x64xf32> to vector<256x64xbf16>
    %c2_17 = arith.constant 2 : index
    %c0_18 = arith.constant 0 : index
    %c0_19 = arith.constant 0 : index
    %21 = vector.load %arg2[%c2_17, %c0_18, %c0_19] : memref<9x64x64xbf16, #tpu.memory_space<vmem>>, vector<1x64x64xbf16>
    %22 = vector.shape_cast %21 : vector<1x64x64xbf16> to vector<64x64xbf16>
    %cst_20 = arith.constant dense<0.000000e+00> : vector<256x64xf32>
    %23 = tpu.matmul %20, %22, %cst_20 {dimension_numbers = #tpu.dot_dimension_numbers<[1], [0], [0], [1], [0, 0, 1, 1], [], []>} : vector<256x64xbf16>, vector<64x64xbf16>, vector<256x64xf32> -> vector<256x64xf32>
    %24 = arith.addf %16, %23 : vector<256x64xf32>
    %c0_21 = arith.constant 0 : index
    %c1_22 = arith.constant 1 : index
    %c0_23 = arith.constant 0 : index
    %c0_24 = arith.constant 0 : index
    %25 = vector.load %arg1[%c0_21, %c1_22, %c0_23, %c0_24] : memref<1x18x18x64xf32, #tpu.memory_space<vmem>>, vector<1x16x16x64xf32>
    %26 = vector.shape_cast %25 : vector<1x16x16x64xf32> to vector<16x16x64xf32>
    %27 = vector.shape_cast %26 : vector<16x16x64xf32> to vector<256x64xf32>
    %28 = arith.truncf %27 : vector<256x64xf32> to vector<256x64xbf16>
    %c3 = arith.constant 3 : index
    %c0_25 = arith.constant 0 : index
    %c0_26 = arith.constant 0 : index
    %29 = vector.load %arg2[%c3, %c0_25, %c0_26] : memref<9x64x64xbf16, #tpu.memory_space<vmem>>, vector<1x64x64xbf16>
    %30 = vector.shape_cast %29 : vector<1x64x64xbf16> to vector<64x64xbf16>
    %cst_27 = arith.constant dense<0.000000e+00> : vector<256x64xf32>
    %31 = tpu.matmul %28, %30, %cst_27 {dimension_numbers = #tpu.dot_dimension_numbers<[1], [0], [0], [1], [0, 0, 1, 1], [], []>} : vector<256x64xbf16>, vector<64x64xbf16>, vector<256x64xf32> -> vector<256x64xf32>
    %32 = arith.addf %24, %31 : vector<256x64xf32>
    %c0_28 = arith.constant 0 : index
    %c1_29 = arith.constant 1 : index
    %c1_30 = arith.constant 1 : index
    %c0_31 = arith.constant 0 : index
    %33 = vector.load %arg1[%c0_28, %c1_29, %c1_30, %c0_31] : memref<1x18x18x64xf32, #tpu.memory_space<vmem>>, vector<1x16x16x64xf32>
    %34 = vector.shape_cast %33 : vector<1x16x16x64xf32> to vector<16x16x64xf32>
    %35 = vector.shape_cast %34 : vector<16x16x64xf32> to vector<256x64xf32>
    %36 = arith.truncf %35 : vector<256x64xf32> to vector<256x64xbf16>
    %c4 = arith.constant 4 : index
    %c0_32 = arith.constant 0 : index
    %c0_33 = arith.constant 0 : index
    %37 = vector.load %arg2[%c4, %c0_32, %c0_33] : memref<9x64x64xbf16, #tpu.memory_space<vmem>>, vector<1x64x64xbf16>
    %38 = vector.shape_cast %37 : vector<1x64x64xbf16> to vector<64x64xbf16>
    %cst_34 = arith.constant dense<0.000000e+00> : vector<256x64xf32>
    %39 = tpu.matmul %36, %38, %cst_34 {dimension_numbers = #tpu.dot_dimension_numbers<[1], [0], [0], [1], [0, 0, 1, 1], [], []>} : vector<256x64xbf16>, vector<64x64xbf16>, vector<256x64xf32> -> vector<256x64xf32>
    %40 = arith.addf %32, %39 : vector<256x64xf32>
    %c0_35 = arith.constant 0 : index
    %c1_36 = arith.constant 1 : index
    %c2_37 = arith.constant 2 : index
    %c0_38 = arith.constant 0 : index
    %41 = vector.load %arg1[%c0_35, %c1_36, %c2_37, %c0_38] : memref<1x18x18x64xf32, #tpu.memory_space<vmem>>, vector<1x16x16x64xf32>
    %42 = vector.shape_cast %41 : vector<1x16x16x64xf32> to vector<16x16x64xf32>
    %43 = vector.shape_cast %42 : vector<16x16x64xf32> to vector<256x64xf32>
    %44 = arith.truncf %43 : vector<256x64xf32> to vector<256x64xbf16>
    %c5 = arith.constant 5 : index
    %c0_39 = arith.constant 0 : index
    %c0_40 = arith.constant 0 : index
    %45 = vector.load %arg2[%c5, %c0_39, %c0_40] : memref<9x64x64xbf16, #tpu.memory_space<vmem>>, vector<1x64x64xbf16>
    %46 = vector.shape_cast %45 : vector<1x64x64xbf16> to vector<64x64xbf16>
    %cst_41 = arith.constant dense<0.000000e+00> : vector<256x64xf32>
    %47 = tpu.matmul %44, %46, %cst_41 {dimension_numbers = #tpu.dot_dimension_numbers<[1], [0], [0], [1], [0, 0, 1, 1], [], []>} : vector<256x64xbf16>, vector<64x64xbf16>, vector<256x64xf32> -> vector<256x64xf32>
    %48 = arith.addf %40, %47 : vector<256x64xf32>
    %c0_42 = arith.constant 0 : index
    %c2_43 = arith.constant 2 : index
    %c0_44 = arith.constant 0 : index
    %c0_45 = arith.constant 0 : index
    %49 = vector.load %arg1[%c0_42, %c2_43, %c0_44, %c0_45] : memref<1x18x18x64xf32, #tpu.memory_space<vmem>>, vector<1x16x16x64xf32>
    %50 = vector.shape_cast %49 : vector<1x16x16x64xf32> to vector<16x16x64xf32>
    %51 = vector.shape_cast %50 : vector<16x16x64xf32> to vector<256x64xf32>
    %52 = arith.truncf %51 : vector<256x64xf32> to vector<256x64xbf16>
    %c6 = arith.constant 6 : index
    %c0_46 = arith.constant 0 : index
    %c0_47 = arith.constant 0 : index
    %53 = vector.load %arg2[%c6, %c0_46, %c0_47] : memref<9x64x64xbf16, #tpu.memory_space<vmem>>, vector<1x64x64xbf16>
    %54 = vector.shape_cast %53 : vector<1x64x64xbf16> to vector<64x64xbf16>
    %cst_48 = arith.constant dense<0.000000e+00> : vector<256x64xf32>
    %55 = tpu.matmul %52, %54, %cst_48 {dimension_numbers = #tpu.dot_dimension_numbers<[1], [0], [0], [1], [0, 0, 1, 1], [], []>} : vector<256x64xbf16>, vector<64x64xbf16>, vector<256x64xf32> -> vector<256x64xf32>
    %56 = arith.addf %48, %55 : vector<256x64xf32>
    %c0_49 = arith.constant 0 : index
    %c2_50 = arith.constant 2 : index
    %c1_51 = arith.constant 1 : index
    %c0_52 = arith.constant 0 : index
    %57 = vector.load %arg1[%c0_49, %c2_50, %c1_51, %c0_52] : memref<1x18x18x64xf32, #tpu.memory_space<vmem>>, vector<1x16x16x64xf32>
    %58 = vector.shape_cast %57 : vector<1x16x16x64xf32> to vector<16x16x64xf32>
    %59 = vector.shape_cast %58 : vector<16x16x64xf32> to vector<256x64xf32>
    %60 = arith.truncf %59 : vector<256x64xf32> to vector<256x64xbf16>
    %c7 = arith.constant 7 : index
    %c0_53 = arith.constant 0 : index
    %c0_54 = arith.constant 0 : index
    %61 = vector.load %arg2[%c7, %c0_53, %c0_54] : memref<9x64x64xbf16, #tpu.memory_space<vmem>>, vector<1x64x64xbf16>
    %62 = vector.shape_cast %61 : vector<1x64x64xbf16> to vector<64x64xbf16>
    %cst_55 = arith.constant dense<0.000000e+00> : vector<256x64xf32>
    %63 = tpu.matmul %60, %62, %cst_55 {dimension_numbers = #tpu.dot_dimension_numbers<[1], [0], [0], [1], [0, 0, 1, 1], [], []>} : vector<256x64xbf16>, vector<64x64xbf16>, vector<256x64xf32> -> vector<256x64xf32>
    %64 = arith.addf %56, %63 : vector<256x64xf32>
    %c0_56 = arith.constant 0 : index
    %c2_57 = arith.constant 2 : index
    %c2_58 = arith.constant 2 : index
    %c0_59 = arith.constant 0 : index
    %65 = vector.load %arg1[%c0_56, %c2_57, %c2_58, %c0_59] : memref<1x18x18x64xf32, #tpu.memory_space<vmem>>, vector<1x16x16x64xf32>
    %66 = vector.shape_cast %65 : vector<1x16x16x64xf32> to vector<16x16x64xf32>
    %67 = vector.shape_cast %66 : vector<16x16x64xf32> to vector<256x64xf32>
    %68 = arith.truncf %67 : vector<256x64xf32> to vector<256x64xbf16>
    %c8 = arith.constant 8 : index
    %c0_60 = arith.constant 0 : index
    %c0_61 = arith.constant 0 : index
    %69 = vector.load %arg2[%c8, %c0_60, %c0_61] : memref<9x64x64xbf16, #tpu.memory_space<vmem>>, vector<1x64x64xbf16>
    %70 = vector.shape_cast %69 : vector<1x64x64xbf16> to vector<64x64xbf16>
    %cst_62 = arith.constant dense<0.000000e+00> : vector<256x64xf32>
    %71 = tpu.matmul %68, %70, %cst_62 {dimension_numbers = #tpu.dot_dimension_numbers<[1], [0], [0], [1], [0, 0, 1, 1], [], []>} : vector<256x64xbf16>, vector<64x64xbf16>, vector<256x64xf32> -> vector<256x64xf32>
    %72 = arith.addf %64, %71 : vector<256x64xf32>
    %c0_63 = arith.constant 0 : index
    %c0_64 = arith.constant 0 : index
    %73 = vector.load %arg3[%c0_63, %c0_64] : memref<256x64xf32, #tpu.memory_space<vmem>>, vector<256x64xf32>
    tpu.vector_store %arg3[%c0_63, %c0_64], %72 {strides = array<i32>} : memref<256x64xf32, #tpu.memory_space<vmem>>, vector<256x64xf32>,
    %cst_65 = arith.constant dense<0.000000e+00> : vector<64xf32>
    %74 = vector.multi_reduction <add>, %72, %cst_65 [0] : vector<256x64xf32> to vector<64xf32>
    %75 = vector.shape_cast %74 : vector<64xf32> to vector<1x64xf32>
    %76 = arith.mulf %72, %72 : vector<256x64xf32>
    %cst_66 = arith.constant dense<0.000000e+00> : vector<64xf32>
    %77 = vector.multi_reduction <add>, %76, %cst_66 [0] : vector<256x64xf32> to vector<64xf32>
    %78 = vector.shape_cast %77 : vector<64xf32> to vector<1x64xf32>
    %79 = tpu.concatenate %75, %78 in 0 : vector<1x64xf32>, vector<1x64xf32> -> vector<2x64xf32>
    %c0_67 = arith.constant 0 : index
    %c0_68 = arith.constant 0 : index
    %c0_69 = arith.constant 0 : index
    %80 = vector.load %arg4[%c0_67, %c0_68, %c0_69] : memref<1x2x64xf32, #tpu.memory_space<vmem>>, vector<1x2x64xf32>
    %81 = vector.shape_cast %80 : vector<1x2x64xf32> to vector<2x64xf32>
    %82 = vector.shape_cast %79 : vector<2x64xf32> to vector<1x2x64xf32>
    tpu.vector_store %arg4[%c0_67, %c0_68, %c0_69], %82 {strides = array<i32>} : memref<1x2x64xf32, #tpu.memory_space<vmem>>, vector<1x2x64xf32>,
    return
  }
  func.func @transform_0(%arg0: i32) -> (i32, i32, i32, i32) {
    %c0_i32 = arith.constant 0 : i32
    %c0_i32_0 = arith.constant 0 : i32
    %c0_i32_1 = arith.constant 0 : i32
    %c0_i32_2 = arith.constant 0 : i32
    return %arg0, %c0_i32, %c0_i32_0, %c0_i32_1 : i32, i32, i32, i32
  }
  func.func @transform_1(%arg0: i32) -> (i32, i32, i32) {
    %c0_i32 = arith.constant 0 : i32
    %c0_i32_0 = arith.constant 0 : i32
    %c0_i32_1 = arith.constant 0 : i32
    %c0_i32_2 = arith.constant 0 : i32
    return %c0_i32, %c0_i32_0, %c0_i32_1 : i32, i32, i32
  }
  func.func @transform_2(%arg0: i32) -> (i32, i32) {
    %c0_i32 = arith.constant 0 : i32
    %c0_i32_0 = arith.constant 0 : i32
    return %arg0, %c0_i32 : i32, i32
  }
  func.func @transform_3(%arg0: i32) -> (i32, i32, i32) {
    %c0_i32 = arith.constant 0 : i32
    %c0_i32_0 = arith.constant 0 : i32
    %c0_i32_1 = arith.constant 0 : i32
    return %arg0, %c0_i32, %c0_i32_0 : i32, i32, i32
  }
}

module attributes {stable_mosaic.version = 11 : i64} {
  func.func @_bn_relu_kernel(%arg0: i32, %arg1: memref<256x64xf32, #tpu.memory_space<vmem>>, %arg2: memref<1x64xf32, #tpu.memory_space<vmem>>, %arg3: memref<1x64xf32, #tpu.memory_space<vmem>>, %arg4: memref<256x64xbf16, #tpu.memory_space<vmem>>) attributes {dimension_semantics = [#tpu.dimension_semantics<parallel>], iteration_bounds = array<i64: 2>, scalar_prefetch = 0 : i64, scratch_operands = 0 : i64, tpu.core_type = #tpu.core_type<tc>, window_params = [{transform_indices = @transform_0, window_bounds = array<i64: 256, 64>}, {pipeline_mode = #tpu.pipeline_mode<synchronous>, transform_indices = @transform_1, window_bounds = array<i64: 1, 64>}, {pipeline_mode = #tpu.pipeline_mode<synchronous>, transform_indices = @transform_2, window_bounds = array<i64: 1, 64>}, {transform_indices = @transform_3, window_bounds = array<i64: 256, 64>}]} {
    %c0 = arith.constant 0 : index
    %c0_0 = arith.constant 0 : index
    %0 = vector.load %arg1[%c0, %c0_0] : memref<256x64xf32, #tpu.memory_space<vmem>>, vector<256x64xf32>
    %c0_1 = arith.constant 0 : index
    %c0_2 = arith.constant 0 : index
    %1 = vector.load %arg2[%c0_1, %c0_2] : memref<1x64xf32, #tpu.memory_space<vmem>>, vector<1x64xf32>
    %2 = vector.broadcast %1 : vector<1x64xf32> to vector<256x64xf32>
    %3 = arith.mulf %0, %2 : vector<256x64xf32>
    %c0_3 = arith.constant 0 : index
    %c0_4 = arith.constant 0 : index
    %4 = vector.load %arg3[%c0_3, %c0_4] : memref<1x64xf32, #tpu.memory_space<vmem>>, vector<1x64xf32>
    %5 = vector.broadcast %4 : vector<1x64xf32> to vector<256x64xf32>
    %6 = arith.addf %3, %5 : vector<256x64xf32>
    %cst = arith.constant 0.000000e+00 : f32
    %7 = vector.broadcast %cst : f32 to vector<256x64xf32>
    %8 = arith.maximumf %6, %7 : vector<256x64xf32>
    %9 = arith.truncf %8 : vector<256x64xf32> to vector<256x64xbf16>
    %c0_5 = arith.constant 0 : index
    %c0_6 = arith.constant 0 : index
    %10 = vector.load %arg4[%c0_5, %c0_6] : memref<256x64xbf16, #tpu.memory_space<vmem>>, vector<256x64xbf16>
    tpu.vector_store %arg4[%c0_5, %c0_6], %9 {strides = array<i32>} : memref<256x64xbf16, #tpu.memory_space<vmem>>, vector<256x64xbf16>,
    return
  }
  func.func @transform_0(%arg0: i32) -> (i32, i32) {
    %c0_i32 = arith.constant 0 : i32
    %c0_i32_0 = arith.constant 0 : i32
    return %arg0, %c0_i32 : i32, i32
  }
  func.func @transform_1(%arg0: i32) -> (i32, i32) {
    %c0_i32 = arith.constant 0 : i32
    %c0_i32_0 = arith.constant 0 : i32
    %c0_i32_1 = arith.constant 0 : i32
    return %c0_i32, %c0_i32_0 : i32, i32
  }
  func.func @transform_2(%arg0: i32) -> (i32, i32) {
    %c0_i32 = arith.constant 0 : i32
    %c0_i32_0 = arith.constant 0 : i32
    %c0_i32_1 = arith.constant 0 : i32
    return %c0_i32, %c0_i32_0 : i32, i32
  }
  func.func @transform_3(%arg0: i32) -> (i32, i32) {
    %c0_i32 = arith.constant 0 : i32
    %c0_i32_0 = arith.constant 0 : i32
    return %arg0, %c0_i32 : i32, i32
  }
}

module attributes {stable_mosaic.version = 11 : i64} {
  func.func @_conv3x3_stats_kernel(%arg0: i32, %arg1: memref<1x18x18x64xbf16, #tpu.memory_space<vmem>>, %arg2: memref<9x64x64xbf16, #tpu.memory_space<vmem>>, %arg3: memref<256x64xf32, #tpu.memory_space<vmem>>, %arg4: memref<1x2x64xf32, #tpu.memory_space<vmem>>) attributes {dimension_semantics = [#tpu.dimension_semantics<parallel>], iteration_bounds = array<i64: 2>, scalar_prefetch = 0 : i64, scratch_operands = 0 : i64, tpu.core_type = #tpu.core_type<tc>, window_params = [{transform_indices = @transform_0, window_bounds = array<i64: 1, 18, 18, 64>}, {pipeline_mode = #tpu.pipeline_mode<synchronous>, transform_indices = @transform_1, window_bounds = array<i64: 9, 64, 64>}, {transform_indices = @transform_2, window_bounds = array<i64: 256, 64>}, {transform_indices = @transform_3, window_bounds = array<i64: 1, 2, 64>}]} {
    %cst = arith.constant 0.000000e+00 : f32
    %0 = vector.broadcast %cst : f32 to vector<256x64xf32>
    %c0 = arith.constant 0 : index
    %c0_0 = arith.constant 0 : index
    %c0_1 = arith.constant 0 : index
    %c0_2 = arith.constant 0 : index
    %1 = vector.load %arg1[%c0, %c0_0, %c0_1, %c0_2] : memref<1x18x18x64xbf16, #tpu.memory_space<vmem>>, vector<1x16x16x64xbf16>
    %2 = vector.shape_cast %1 : vector<1x16x16x64xbf16> to vector<16x16x64xbf16>
    %3 = vector.shape_cast %2 : vector<16x16x64xbf16> to vector<256x64xbf16>
    %c0_3 = arith.constant 0 : index
    %c0_4 = arith.constant 0 : index
    %c0_5 = arith.constant 0 : index
    %4 = vector.load %arg2[%c0_3, %c0_4, %c0_5] : memref<9x64x64xbf16, #tpu.memory_space<vmem>>, vector<1x64x64xbf16>
    %5 = vector.shape_cast %4 : vector<1x64x64xbf16> to vector<64x64xbf16>
    %cst_6 = arith.constant dense<0.000000e+00> : vector<256x64xf32>
    %6 = tpu.matmul %3, %5, %cst_6 {dimension_numbers = #tpu.dot_dimension_numbers<[1], [0], [0], [1], [0, 0, 1, 1], [], []>} : vector<256x64xbf16>, vector<64x64xbf16>, vector<256x64xf32> -> vector<256x64xf32>
    %7 = arith.addf %0, %6 : vector<256x64xf32>
    %c0_7 = arith.constant 0 : index
    %c0_8 = arith.constant 0 : index
    %c1 = arith.constant 1 : index
    %c0_9 = arith.constant 0 : index
    %8 = vector.load %arg1[%c0_7, %c0_8, %c1, %c0_9] : memref<1x18x18x64xbf16, #tpu.memory_space<vmem>>, vector<1x16x16x64xbf16>
    %9 = vector.shape_cast %8 : vector<1x16x16x64xbf16> to vector<16x16x64xbf16>
    %10 = vector.shape_cast %9 : vector<16x16x64xbf16> to vector<256x64xbf16>
    %c1_10 = arith.constant 1 : index
    %c0_11 = arith.constant 0 : index
    %c0_12 = arith.constant 0 : index
    %11 = vector.load %arg2[%c1_10, %c0_11, %c0_12] : memref<9x64x64xbf16, #tpu.memory_space<vmem>>, vector<1x64x64xbf16>
    %12 = vector.shape_cast %11 : vector<1x64x64xbf16> to vector<64x64xbf16>
    %cst_13 = arith.constant dense<0.000000e+00> : vector<256x64xf32>
    %13 = tpu.matmul %10, %12, %cst_13 {dimension_numbers = #tpu.dot_dimension_numbers<[1], [0], [0], [1], [0, 0, 1, 1], [], []>} : vector<256x64xbf16>, vector<64x64xbf16>, vector<256x64xf32> -> vector<256x64xf32>
    %14 = arith.addf %7, %13 : vector<256x64xf32>
    %c0_14 = arith.constant 0 : index
    %c0_15 = arith.constant 0 : index
    %c2 = arith.constant 2 : index
    %c0_16 = arith.constant 0 : index
    %15 = vector.load %arg1[%c0_14, %c0_15, %c2, %c0_16] : memref<1x18x18x64xbf16, #tpu.memory_space<vmem>>, vector<1x16x16x64xbf16>
    %16 = vector.shape_cast %15 : vector<1x16x16x64xbf16> to vector<16x16x64xbf16>
    %17 = vector.shape_cast %16 : vector<16x16x64xbf16> to vector<256x64xbf16>
    %c2_17 = arith.constant 2 : index
    %c0_18 = arith.constant 0 : index
    %c0_19 = arith.constant 0 : index
    %18 = vector.load %arg2[%c2_17, %c0_18, %c0_19] : memref<9x64x64xbf16, #tpu.memory_space<vmem>>, vector<1x64x64xbf16>
    %19 = vector.shape_cast %18 : vector<1x64x64xbf16> to vector<64x64xbf16>
    %cst_20 = arith.constant dense<0.000000e+00> : vector<256x64xf32>
    %20 = tpu.matmul %17, %19, %cst_20 {dimension_numbers = #tpu.dot_dimension_numbers<[1], [0], [0], [1], [0, 0, 1, 1], [], []>} : vector<256x64xbf16>, vector<64x64xbf16>, vector<256x64xf32> -> vector<256x64xf32>
    %21 = arith.addf %14, %20 : vector<256x64xf32>
    %c0_21 = arith.constant 0 : index
    %c1_22 = arith.constant 1 : index
    %c0_23 = arith.constant 0 : index
    %c0_24 = arith.constant 0 : index
    %22 = vector.load %arg1[%c0_21, %c1_22, %c0_23, %c0_24] : memref<1x18x18x64xbf16, #tpu.memory_space<vmem>>, vector<1x16x16x64xbf16>
    %23 = vector.shape_cast %22 : vector<1x16x16x64xbf16> to vector<16x16x64xbf16>
    %24 = vector.shape_cast %23 : vector<16x16x64xbf16> to vector<256x64xbf16>
    %c3 = arith.constant 3 : index
    %c0_25 = arith.constant 0 : index
    %c0_26 = arith.constant 0 : index
    %25 = vector.load %arg2[%c3, %c0_25, %c0_26] : memref<9x64x64xbf16, #tpu.memory_space<vmem>>, vector<1x64x64xbf16>
    %26 = vector.shape_cast %25 : vector<1x64x64xbf16> to vector<64x64xbf16>
    %cst_27 = arith.constant dense<0.000000e+00> : vector<256x64xf32>
    %27 = tpu.matmul %24, %26, %cst_27 {dimension_numbers = #tpu.dot_dimension_numbers<[1], [0], [0], [1], [0, 0, 1, 1], [], []>} : vector<256x64xbf16>, vector<64x64xbf16>, vector<256x64xf32> -> vector<256x64xf32>
    %28 = arith.addf %21, %27 : vector<256x64xf32>
    %c0_28 = arith.constant 0 : index
    %c1_29 = arith.constant 1 : index
    %c1_30 = arith.constant 1 : index
    %c0_31 = arith.constant 0 : index
    %29 = vector.load %arg1[%c0_28, %c1_29, %c1_30, %c0_31] : memref<1x18x18x64xbf16, #tpu.memory_space<vmem>>, vector<1x16x16x64xbf16>
    %30 = vector.shape_cast %29 : vector<1x16x16x64xbf16> to vector<16x16x64xbf16>
    %31 = vector.shape_cast %30 : vector<16x16x64xbf16> to vector<256x64xbf16>
    %c4 = arith.constant 4 : index
    %c0_32 = arith.constant 0 : index
    %c0_33 = arith.constant 0 : index
    %32 = vector.load %arg2[%c4, %c0_32, %c0_33] : memref<9x64x64xbf16, #tpu.memory_space<vmem>>, vector<1x64x64xbf16>
    %33 = vector.shape_cast %32 : vector<1x64x64xbf16> to vector<64x64xbf16>
    %cst_34 = arith.constant dense<0.000000e+00> : vector<256x64xf32>
    %34 = tpu.matmul %31, %33, %cst_34 {dimension_numbers = #tpu.dot_dimension_numbers<[1], [0], [0], [1], [0, 0, 1, 1], [], []>} : vector<256x64xbf16>, vector<64x64xbf16>, vector<256x64xf32> -> vector<256x64xf32>
    %35 = arith.addf %28, %34 : vector<256x64xf32>
    %c0_35 = arith.constant 0 : index
    %c1_36 = arith.constant 1 : index
    %c2_37 = arith.constant 2 : index
    %c0_38 = arith.constant 0 : index
    %36 = vector.load %arg1[%c0_35, %c1_36, %c2_37, %c0_38] : memref<1x18x18x64xbf16, #tpu.memory_space<vmem>>, vector<1x16x16x64xbf16>
    %37 = vector.shape_cast %36 : vector<1x16x16x64xbf16> to vector<16x16x64xbf16>
    %38 = vector.shape_cast %37 : vector<16x16x64xbf16> to vector<256x64xbf16>
    %c5 = arith.constant 5 : index
    %c0_39 = arith.constant 0 : index
    %c0_40 = arith.constant 0 : index
    %39 = vector.load %arg2[%c5, %c0_39, %c0_40] : memref<9x64x64xbf16, #tpu.memory_space<vmem>>, vector<1x64x64xbf16>
    %40 = vector.shape_cast %39 : vector<1x64x64xbf16> to vector<64x64xbf16>
    %cst_41 = arith.constant dense<0.000000e+00> : vector<256x64xf32>
    %41 = tpu.matmul %38, %40, %cst_41 {dimension_numbers = #tpu.dot_dimension_numbers<[1], [0], [0], [1], [0, 0, 1, 1], [], []>} : vector<256x64xbf16>, vector<64x64xbf16>, vector<256x64xf32> -> vector<256x64xf32>
    %42 = arith.addf %35, %41 : vector<256x64xf32>
    %c0_42 = arith.constant 0 : index
    %c2_43 = arith.constant 2 : index
    %c0_44 = arith.constant 0 : index
    %c0_45 = arith.constant 0 : index
    %43 = vector.load %arg1[%c0_42, %c2_43, %c0_44, %c0_45] : memref<1x18x18x64xbf16, #tpu.memory_space<vmem>>, vector<1x16x16x64xbf16>
    %44 = vector.shape_cast %43 : vector<1x16x16x64xbf16> to vector<16x16x64xbf16>
    %45 = vector.shape_cast %44 : vector<16x16x64xbf16> to vector<256x64xbf16>
    %c6 = arith.constant 6 : index
    %c0_46 = arith.constant 0 : index
    %c0_47 = arith.constant 0 : index
    %46 = vector.load %arg2[%c6, %c0_46, %c0_47] : memref<9x64x64xbf16, #tpu.memory_space<vmem>>, vector<1x64x64xbf16>
    %47 = vector.shape_cast %46 : vector<1x64x64xbf16> to vector<64x64xbf16>
    %cst_48 = arith.constant dense<0.000000e+00> : vector<256x64xf32>
    %48 = tpu.matmul %45, %47, %cst_48 {dimension_numbers = #tpu.dot_dimension_numbers<[1], [0], [0], [1], [0, 0, 1, 1], [], []>} : vector<256x64xbf16>, vector<64x64xbf16>, vector<256x64xf32> -> vector<256x64xf32>
    %49 = arith.addf %42, %48 : vector<256x64xf32>
    %c0_49 = arith.constant 0 : index
    %c2_50 = arith.constant 2 : index
    %c1_51 = arith.constant 1 : index
    %c0_52 = arith.constant 0 : index
    %50 = vector.load %arg1[%c0_49, %c2_50, %c1_51, %c0_52] : memref<1x18x18x64xbf16, #tpu.memory_space<vmem>>, vector<1x16x16x64xbf16>
    %51 = vector.shape_cast %50 : vector<1x16x16x64xbf16> to vector<16x16x64xbf16>
    %52 = vector.shape_cast %51 : vector<16x16x64xbf16> to vector<256x64xbf16>
    %c7 = arith.constant 7 : index
    %c0_53 = arith.constant 0 : index
    %c0_54 = arith.constant 0 : index
    %53 = vector.load %arg2[%c7, %c0_53, %c0_54] : memref<9x64x64xbf16, #tpu.memory_space<vmem>>, vector<1x64x64xbf16>
    %54 = vector.shape_cast %53 : vector<1x64x64xbf16> to vector<64x64xbf16>
    %cst_55 = arith.constant dense<0.000000e+00> : vector<256x64xf32>
    %55 = tpu.matmul %52, %54, %cst_55 {dimension_numbers = #tpu.dot_dimension_numbers<[1], [0], [0], [1], [0, 0, 1, 1], [], []>} : vector<256x64xbf16>, vector<64x64xbf16>, vector<256x64xf32> -> vector<256x64xf32>
    %56 = arith.addf %49, %55 : vector<256x64xf32>
    %c0_56 = arith.constant 0 : index
    %c2_57 = arith.constant 2 : index
    %c2_58 = arith.constant 2 : index
    %c0_59 = arith.constant 0 : index
    %57 = vector.load %arg1[%c0_56, %c2_57, %c2_58, %c0_59] : memref<1x18x18x64xbf16, #tpu.memory_space<vmem>>, vector<1x16x16x64xbf16>
    %58 = vector.shape_cast %57 : vector<1x16x16x64xbf16> to vector<16x16x64xbf16>
    %59 = vector.shape_cast %58 : vector<16x16x64xbf16> to vector<256x64xbf16>
    %c8 = arith.constant 8 : index
    %c0_60 = arith.constant 0 : index
    %c0_61 = arith.constant 0 : index
    %60 = vector.load %arg2[%c8, %c0_60, %c0_61] : memref<9x64x64xbf16, #tpu.memory_space<vmem>>, vector<1x64x64xbf16>
    %61 = vector.shape_cast %60 : vector<1x64x64xbf16> to vector<64x64xbf16>
    %cst_62 = arith.constant dense<0.000000e+00> : vector<256x64xf32>
    %62 = tpu.matmul %59, %61, %cst_62 {dimension_numbers = #tpu.dot_dimension_numbers<[1], [0], [0], [1], [0, 0, 1, 1], [], []>} : vector<256x64xbf16>, vector<64x64xbf16>, vector<256x64xf32> -> vector<256x64xf32>
    %63 = arith.addf %56, %62 : vector<256x64xf32>
    %c0_63 = arith.constant 0 : index
    %c0_64 = arith.constant 0 : index
    %64 = vector.load %arg3[%c0_63, %c0_64] : memref<256x64xf32, #tpu.memory_space<vmem>>, vector<256x64xf32>
    tpu.vector_store %arg3[%c0_63, %c0_64], %63 {strides = array<i32>} : memref<256x64xf32, #tpu.memory_space<vmem>>, vector<256x64xf32>,
    %cst_65 = arith.constant dense<0.000000e+00> : vector<64xf32>
    %65 = vector.multi_reduction <add>, %63, %cst_65 [0] : vector<256x64xf32> to vector<64xf32>
    %66 = vector.shape_cast %65 : vector<64xf32> to vector<1x64xf32>
    %67 = arith.mulf %63, %63 : vector<256x64xf32>
    %cst_66 = arith.constant dense<0.000000e+00> : vector<64xf32>
    %68 = vector.multi_reduction <add>, %67, %cst_66 [0] : vector<256x64xf32> to vector<64xf32>
    %69 = vector.shape_cast %68 : vector<64xf32> to vector<1x64xf32>
    %70 = tpu.concatenate %66, %69 in 0 : vector<1x64xf32>, vector<1x64xf32> -> vector<2x64xf32>
    %c0_67 = arith.constant 0 : index
    %c0_68 = arith.constant 0 : index
    %c0_69 = arith.constant 0 : index
    %71 = vector.load %arg4[%c0_67, %c0_68, %c0_69] : memref<1x2x64xf32, #tpu.memory_space<vmem>>, vector<1x2x64xf32>
    %72 = vector.shape_cast %71 : vector<1x2x64xf32> to vector<2x64xf32>
    %73 = vector.shape_cast %70 : vector<2x64xf32> to vector<1x2x64xf32>
    tpu.vector_store %arg4[%c0_67, %c0_68, %c0_69], %73 {strides = array<i32>} : memref<1x2x64xf32, #tpu.memory_space<vmem>>, vector<1x2x64xf32>,
    return
  }
  func.func @transform_0(%arg0: i32) -> (i32, i32, i32, i32) {
    %c0_i32 = arith.constant 0 : i32
    %c0_i32_0 = arith.constant 0 : i32
    %c0_i32_1 = arith.constant 0 : i32
    %c0_i32_2 = arith.constant 0 : i32
    return %arg0, %c0_i32, %c0_i32_0, %c0_i32_1 : i32, i32, i32, i32
  }
  func.func @transform_1(%arg0: i32) -> (i32, i32, i32) {
    %c0_i32 = arith.constant 0 : i32
    %c0_i32_0 = arith.constant 0 : i32
    %c0_i32_1 = arith.constant 0 : i32
    %c0_i32_2 = arith.constant 0 : i32
    return %c0_i32, %c0_i32_0, %c0_i32_1 : i32, i32, i32
  }
  func.func @transform_2(%arg0: i32) -> (i32, i32) {
    %c0_i32 = arith.constant 0 : i32
    %c0_i32_0 = arith.constant 0 : i32
    return %arg0, %c0_i32 : i32, i32
  }
  func.func @transform_3(%arg0: i32) -> (i32, i32, i32) {
    %c0_i32 = arith.constant 0 : i32
    %c0_i32_0 = arith.constant 0 : i32
    %c0_i32_1 = arith.constant 0 : i32
    return %arg0, %c0_i32, %c0_i32_0 : i32, i32, i32
  }
}

module attributes {stable_mosaic.version = 11 : i64} {
  func.func @_bn_add_relu_kernel(%arg0: i32, %arg1: memref<256x64xf32, #tpu.memory_space<vmem>>, %arg2: memref<256x64xf32, #tpu.memory_space<vmem>>, %arg3: memref<1x64xf32, #tpu.memory_space<vmem>>, %arg4: memref<1x64xf32, #tpu.memory_space<vmem>>, %arg5: memref<256x64xf32, #tpu.memory_space<vmem>>) attributes {dimension_semantics = [#tpu.dimension_semantics<parallel>], iteration_bounds = array<i64: 2>, scalar_prefetch = 0 : i64, scratch_operands = 0 : i64, tpu.core_type = #tpu.core_type<tc>, window_params = [{transform_indices = @transform_0, window_bounds = array<i64: 256, 64>}, {transform_indices = @transform_1, window_bounds = array<i64: 256, 64>}, {pipeline_mode = #tpu.pipeline_mode<synchronous>, transform_indices = @transform_2, window_bounds = array<i64: 1, 64>}, {pipeline_mode = #tpu.pipeline_mode<synchronous>, transform_indices = @transform_3, window_bounds = array<i64: 1, 64>}, {transform_indices = @transform_4, window_bounds = array<i64: 256, 64>}]} {
    %c0 = arith.constant 0 : index
    %c0_0 = arith.constant 0 : index
    %0 = vector.load %arg1[%c0, %c0_0] : memref<256x64xf32, #tpu.memory_space<vmem>>, vector<256x64xf32>
    %c0_1 = arith.constant 0 : index
    %c0_2 = arith.constant 0 : index
    %1 = vector.load %arg3[%c0_1, %c0_2] : memref<1x64xf32, #tpu.memory_space<vmem>>, vector<1x64xf32>
    %2 = vector.broadcast %1 : vector<1x64xf32> to vector<256x64xf32>
    %3 = arith.mulf %0, %2 : vector<256x64xf32>
    %c0_3 = arith.constant 0 : index
    %c0_4 = arith.constant 0 : index
    %4 = vector.load %arg4[%c0_3, %c0_4] : memref<1x64xf32, #tpu.memory_space<vmem>>, vector<1x64xf32>
    %5 = vector.broadcast %4 : vector<1x64xf32> to vector<256x64xf32>
    %6 = arith.addf %3, %5 : vector<256x64xf32>
    %c0_5 = arith.constant 0 : index
    %c0_6 = arith.constant 0 : index
    %7 = vector.load %arg2[%c0_5, %c0_6] : memref<256x64xf32, #tpu.memory_space<vmem>>, vector<256x64xf32>
    %8 = arith.addf %6, %7 : vector<256x64xf32>
    %cst = arith.constant 0.000000e+00 : f32
    %9 = vector.broadcast %cst : f32 to vector<256x64xf32>
    %10 = arith.maximumf %8, %9 : vector<256x64xf32>
    %c0_7 = arith.constant 0 : index
    %c0_8 = arith.constant 0 : index
    %11 = vector.load %arg5[%c0_7, %c0_8] : memref<256x64xf32, #tpu.memory_space<vmem>>, vector<256x64xf32>
    tpu.vector_store %arg5[%c0_7, %c0_8], %10 {strides = array<i32>} : memref<256x64xf32, #tpu.memory_space<vmem>>, vector<256x64xf32>,
    return
  }
  func.func @transform_0(%arg0: i32) -> (i32, i32) {
    %c0_i32 = arith.constant 0 : i32
    %c0_i32_0 = arith.constant 0 : i32
    return %arg0, %c0_i32 : i32, i32
  }
  func.func @transform_1(%arg0: i32) -> (i32, i32) {
    %c0_i32 = arith.constant 0 : i32
    %c0_i32_0 = arith.constant 0 : i32
    return %arg0, %c0_i32 : i32, i32
  }
  func.func @transform_2(%arg0: i32) -> (i32, i32) {
    %c0_i32 = arith.constant 0 : i32
    %c0_i32_0 = arith.constant 0 : i32
    %c0_i32_1 = arith.constant 0 : i32
    return %c0_i32, %c0_i32_0 : i32, i32
  }
  func.func @transform_3(%arg0: i32) -> (i32, i32) {
    %c0_i32 = arith.constant 0 : i32
    %c0_i32_0 = arith.constant 0 : i32
    %c0_i32_1 = arith.constant 0 : i32
    return %c0_i32, %c0_i32_0 : i32, i32
  }
  func.func @transform_4(%arg0: i32) -> (i32, i32) {
    %c0_i32 = arith.constant 0 : i32
    %c0_i32_0 = arith.constant 0 : i32
    return %arg0, %c0_i32 : i32, i32
  }
}

</mosaic_0001>

<llo_original>
// kernel: restnet_basic_block_forward.5
$region0: #{restnet_basic_block_forward.5}
  #allocation0 [shape = 'u32[]', space=smem, size = 0x4, offset = 0x4, fixed_abs, tag = 'smem constant byte address 0x4 - core index']
  #allocation1 [shape = 'u32[144,128]{1,0:T(1,128)}', space=vmem, size = 0x12000, scoped, tag = 'internal scratch']
  %s0 = inlined_call_operand.vmem [shape: f32[512,64], index: 0, kind: input, shape index: {}]
  %s1 = inlined_call_operand.vmem [shape: f32[1,64], index: 1, kind: input, shape index: {}]
  %s2 = inlined_call_operand.vmem [shape: f32[1,64], index: 2, kind: input, shape index: {}]
  %s3 = inlined_call_operand.vmem [shape: bf16[512,64], index: 3, kind: output, shape index: {}]
  %s4 = sld [smem:[#allocation0]]
  $region45: #{restnet_basic_block_forward.5} parent=0
    _
  %s6 = ssub.s32 1, %s4
  %s7 = scalar_select 0, %s6, %s4
  loop: start=0, step=1, limit=4
  $region2: #{restnet_basic_block_forward.5} parent=0 // loop_pre_header
    _
  $region3: #{restnet_basic_block_forward.5} parent=0 // loop_header
    %s9 = sphi 0, %s13
    %p10 = scmp.ge.s32.totalorder %s9, 4
    %s19 = sphi 0, %s21
    %s22 = sphi 0, %s19
    %s23 = sphi 0, %s22
    %s39 = sphi 0, %s23
    %s43 = sphi 0, %s43
    %s45 = sphi 0, %s43
    %s46 = sphi 0, %s45
    %s60 = sphi 0, %s46
    %s64 = sphi 0, %s64
    %s66 = sphi 0, %s64
    %s67 = sphi 0, %s66
    %s81 = sphi 0, %s67
    %s87 = sphi 0, %s89
    %s90 = sphi 0, %s87
    %s91 = sphi 0, %s90
    %s107 = sphi 0, %s91
  $region4: #{restnet_basic_block_forward.5} parent=0 // loop_header_branch
    %12 = sbr.rel (%p10) target = $region8
  $region5: #{restnet_basic_block_forward.5} parent=0 // loop_body
    %s14 = ssub.s32 %s9, 1
    %s15 = ssub.s32 %s9, 2
    %s16 = sadd.s32 %s9, 1
    %s17 = ssub.s32 %s9, %s16
    %p18 = scmp.eq.s32.totalorder %s17, 0
    %s20 = sadd.s32 %s19, 1
    %s21 = scalar_select %p18, %s19, %s20
    %p24 = pneg %p18
    %p25 = scmp.eq.s32.totalorder %s9, 1
    %p26 = por %p24, %p25
    %p27 = scmp.ne.s32.totalorder %s19, %s22
    %p28 = scmp.eq.s32.totalorder %s9, 0
    %p29 = por %p27, %p28
    %p30 = scmp.ne.s32.totalorder %s19, %s22
    %p31 = scmp.eq.s32.totalorder %s14, 1
    %p32 = por %p30, %p31
    %p33 = scmp.ne.s32.totalorder %s22, %s23
    %p34 = scmp.eq.s32.totalorder %s14, 0
    %p35 = por %p33, %p34
    %p36 = scmp.ne.s32.totalorder %s22, %s23
    %p37 = scmp.eq.s32.totalorder %s15, 1
    %p38 = por %p36, %p37
    %p40 = scmp.ne.s32.totalorder %s23, %s39
    %p41 = scmp.eq.s32.totalorder %s15, 0
    %p42 = por %p40, %p41
    %s44 = sadd.s32 %s43, 1
    %p47 = scmp.eq.s32.totalorder %s9, 1
    %p48 = scmp.ne.s32.totalorder %s43, %s45
    %p49 = scmp.eq.s32.totalorder %s9, 0
    %p50 = por %p48, %p49
    %p51 = scmp.ne.s32.totalorder %s43, %s45
    %p52 = scmp.eq.s32.totalorder %s14, 1
    %p53 = por %p51, %p52
    %p54 = scmp.ne.s32.totalorder %s45, %s46
    %p55 = scmp.eq.s32.totalorder %s14, 0
    %p56 = por %p54, %p55
    %p57 = scmp.ne.s32.totalorder %s45, %s46
    %p58 = scmp.eq.s32.totalorder %s15, 1
    %p59 = por %p57, %p58
    %p61 = scmp.ne.s32.totalorder %s46, %s60
    %p62 = scmp.eq.s32.totalorder %s15, 0
    %p63 = por %p61, %p62
    %s65 = sadd.s32 %s64, 1
    %p68 = scmp.eq.s32.totalorder %s9, 1
    %p69 = scmp.ne.s32.totalorder %s64, %s66
    %p70 = scmp.eq.s32.totalorder %s9, 0
    %p71 = por %p69, %p70
    %p72 = scmp.ne.s32.totalorder %s64, %s66
    %p73 = scmp.eq.s32.totalorder %s14, 1
    %p74 = por %p72, %p73
    %p75 = scmp.ne.s32.totalorder %s66, %s67
    %p76 = scmp.eq.s32.totalorder %s14, 0
    %p77 = por %p75, %p76
    %p78 = scmp.ne.s32.totalorder %s66, %s67
    %p79 = scmp.eq.s32.totalorder %s15, 1
    %p80 = por %p78, %p79
    %p82 = scmp.ne.s32.totalorder %s67, %s81
    %p83 = scmp.eq.s32.totalorder %s15, 0
    %p84 = por %p82, %p83
    %s85 = ssub.s32 %s9, %s16
    %p86 = scmp.eq.s32.totalorder %s85, 0
    %s88 = sadd.s32 %s87, 1
    %s89 = scalar_select %p86, %s87, %s88
    %p92 = pneg %p86
    %p93 = scmp.eq.s32.totalorder %s9, 1
    %p94 = por %p92, %p93
    %p95 = scmp.ne.s32.totalorder %s87, %s90
    %p96 = scmp.eq.s32.totalorder %s9, 0
    %p97 = por %p95, %p96
    %p98 = scmp.ne.s32.totalorder %s87, %s90
    %p99 = scmp.eq.s32.totalorder %s14, 1
    %p100 = por %p98, %p99
    %p101 = scmp.ne.s32.totalorder %s90, %s91
    %p102 = scmp.eq.s32.totalorder %s14, 0
    %p103 = por %p101, %p102
    %p104 = scmp.ne.s32.totalorder %s90, %s91
    %p105 = scmp.eq.s32.totalorder %s15, 1
    %p106 = por %p104, %p105
    %p108 = scmp.ne.s32.totalorder %s91, %s107
    %p109 = scmp.eq.s32.totalorder %s15, 0
    %p110 = por %p108, %p109
    %p111 = scmp.le.s32.totalorder 1, %s9
    %p112 = scmp.lt.s32.totalorder %s9, 3
    %p113 = pnand %p111, %p112
    %p114 = pneg %p113
    // Predicated region
    $region9: #{restnet_basic_block_forward.5} parent=5 // pred_check
      _
    $region10: #{restnet_basic_block_forward.5} parent=5 // pred_check_branch
      %116 = sbr.rel (%p113) target = $region12
    $region11: #{restnet_basic_block_forward.5} parent=5 // pred_region
      %s117 = ssub.s32 %s9, 1
      // Predicated region
      $region13: #{restnet_basic_block_forward.5} parent=11 // pred_check
        %p118 = pneg %p56
      $region14: #{restnet_basic_block_forward.5} parent=11 // pred_check_branch
        %120 = sbr.rel (%p118) target = $region16
      $region15: #{restnet_basic_block_forward.5} parent=11 // pred_region
        _
      $region16: #{restnet_basic_block_forward.5} parent=11 // pred_fallthru
        _
      // Predicated region
      $region17: #{restnet_basic_block_forward.5} parent=11 // pred_check
        %p121 = pneg %p77
      $region18: #{restnet_basic_block_forward.5} parent=11 // pred_check_branch
        %123 = sbr.rel (%p121) target = $region20
      $region19: #{restnet_basic_block_forward.5} parent=11 // pred_region
        _
      $region20: #{restnet_basic_block_forward.5} parent=11 // pred_fallthru
        _
    $region12: #{restnet_basic_block_forward.5} parent=5 // pred_fallthru
      _
    %p124 = scmp.lt.s32.totalorder %s9, 2
    // Predicated region
    $region21: #{restnet_basic_block_forward.5} parent=5 // pred_check
      %p125 = pneg %p124
    $region22: #{restnet_basic_block_forward.5} parent=5 // pred_check_branch
      %127 = sbr.rel (%p125) target = $region24
    $region23: #{restnet_basic_block_forward.5} parent=5 // pred_region
      // Predicated region
      $region25: #{restnet_basic_block_forward.5} parent=23 // pred_check
        %p128 = pneg %p29
      $region26: #{restnet_basic_block_forward.5} parent=23 // pred_check_branch
        %130 = sbr.rel (%p128) target = $region28
      $region27: #{restnet_basic_block_forward.5} parent=23 // pred_region
        %s131 = smul.u32 32, %s9
        %p132 = scmp.lt.s32.totalorder %s131, 63
        %s133 = scalar_select %p132, %s131, 63
        %s134 = smul.addr %s133, 8
        %s135 = scalar_lea.vmem %s0, %s134
        %s136 = smul.u32 32, %s9
      $region28: #{restnet_basic_block_forward.5} parent=23 // pred_fallthru
        _
    $region24: #{restnet_basic_block_forward.5} parent=5 // pred_fallthru
      _
    %p137 = scmp.le.s32.totalorder 1, %s9
    %p138 = scmp.lt.s32.totalorder %s9, 3
    %p139 = pnand %p137, %p138
    %p140 = pneg %p139
    // Predicated region
    $region29: #{restnet_basic_block_forward.5} parent=5 // pred_check
      _
    $region30: #{restnet_basic_block_forward.5} parent=5 // pred_check_branch
      %142 = sbr.rel (%p139) target = $region32
    $region31: #{restnet_basic_block_forward.5} parent=5 // pred_region
      %s143 = ssub.s32 %s9, 1
      %s144 = smul.u32 32, %s14
      %p145 = scmp.lt.s32.totalorder %s144, 63
      %s146 = scalar_select %p145, %s144, 63
      %s147 = smul.addr %s146, 8
      %s148 = scalar_lea.vmem %s0, %s147
      %p149 = pneg %p35
      %p150 = pneg %p32
      %p151 = pneg %p56
      %p152 = pneg %p53
      %p153 = pneg %p77
      %p154 = pneg %p74
      %p155 = pneg %p103
      %p156 = pneg %p100
      %s157 = smul.u32 32, %s14
      %p158 = scmp.lt.s32.totalorder %s157, 63
      %s159 = scalar_select %p158, %s157, 63
      %s160 = smul.addr %s159, 4
      %s161 = scalar_lea.vmem %s3, %s160
      %s162 = smul.u32 32, %s14
      %p163 = scmp.lt.s32.totalorder %s162, 63
      %s164 = scalar_select %p163, %s162, 63
      %s165 = smul.addr %s164, 8
      %s166 = scalar_lea.vmem %s0, %s165
      %s167 = smul.u32 32, %s14
      %s168 = smul.u32 32, %s14
      %p169 = scmp.lt.s32.totalorder %s168, 63
      %s170 = scalar_select %p169, %s168, 63
      %s171 = smul.addr %s170, 4
      %s172 = scalar_lea.vmem %s3, %s171
      %s173 = smul.u32 32, %s14
      %v174 = vld [vmem:[%s166] sm:$0xff]
      %v175 = vld [vmem:[%s166 + $0x8] sm:$0xff]
      %v176 = vld [vmem:[%s166 + $0x10] sm:$0xff]
      %v177 = vld [vmem:[%s166 + $0x18] sm:$0xff]
      %v178 = vld [vmem:[%s166 + $0x20] sm:$0xff]
      %v179 = vld [vmem:[%s166 + $0x28] sm:$0xff]
      %v180 = vld [vmem:[%s166 + $0x30] sm:$0xff]
      %v181 = vld [vmem:[%s166 + $0x38] sm:$0xff]
      %v182 = vld [vmem:[%s166 + $0x40] sm:$0xff]
      %v183 = vld [vmem:[%s166 + $0x48] sm:$0xff]
      %v184 = vld [vmem:[%s166 + $0x50] sm:$0xff]
      %v185 = vld [vmem:[%s166 + $0x58] sm:$0xff]
      %v186 = vld [vmem:[%s166 + $0x60] sm:$0xff]
      %v187 = vld [vmem:[%s166 + $0x68] sm:$0xff]
      %v188 = vld [vmem:[%s166 + $0x70] sm:$0xff]
      %v189 = vld [vmem:[%s166 + $0x78] sm:$0xff]
      %v190 = vld [vmem:[%s166 + $0x80] sm:$0xff]
      %v191 = vld [vmem:[%s166 + $0x88] sm:$0xff]
      %v192 = vld [vmem:[%s166 + $0x90] sm:$0xff]
      %v193 = vld [vmem:[%s166 + $0x98] sm:$0xff]
      %v194 = vld [vmem:[%s166 + $0xa0] sm:$0xff]
      %v195 = vld [vmem:[%s166 + $0xa8] sm:$0xff]
      %v196 = vld [vmem:[%s166 + $0xb0] sm:$0xff]
      %v197 = vld [vmem:[%s166 + $0xb8] sm:$0xff]
      %v198 = vld [vmem:[%s166 + $0xc0] sm:$0xff]
      %v199 = vld [vmem:[%s166 + $0xc8] sm:$0xff]
      %v200 = vld [vmem:[%s166 + $0xd0] sm:$0xff]
      %v201 = vld [vmem:[%s166 + $0xd8] sm:$0xff]
      %v202 = vld [vmem:[%s166 + $0xe0] sm:$0xff]
      %v203 = vld [vmem:[%s166 + $0xe8] sm:$0xff]
      %v204 = vld [vmem:[%s166 + $0xf0] sm:$0xff]
      %v205 = vld [vmem:[%s166 + $0xf8] sm:$0xff]
      %v206 = vld [vmem:[%s1] sm:$0x1]
      %v208 = vlaneseq
      %v209 = vshrl.u32 %v208, 7
      %v210 = vsub.s32 0, %v209
      %v211 = vrot.slane %v206, %v210
      %v213 = vmul.f32 %v174, %v211
      %v214 = vmul.f32 %v175, %v211
      %v215 = vmul.f32 %v176, %v211
      %v216 = vmul.f32 %v177, %v211
      %v217 = vmul.f32 %v178, %v211
      %v218 = vmul.f32 %v179, %v211
      %v219 = vmul.f32 %v180, %v211
      %v220 = vmul.f32 %v181, %v211
      %v221 = vmul.f32 %v182, %v211
      %v222 = vmul.f32 %v183, %v211
      %v223 = vmul.f32 %v184, %v211
      %v224 = vmul.f32 %v185, %v211
      %v225 = vmul.f32 %v186, %v211
      %v226 = vmul.f32 %v187, %v211
      %v227 = vmul.f32 %v188, %v211
      %v228 = vmul.f32 %v189, %v211
      %v229 = vmul.f32 %v190, %v211
      %v230 = vmul.f32 %v191, %v211
      %v231 = vmul.f32 %v192, %v211
      %v232 = vmul.f32 %v193, %v211
      %v233 = vmul.f32 %v194, %v211
      %v234 = vmul.f32 %v195, %v211
      %v235 = vmul.f32 %v196, %v211
      %v236 = vmul.f32 %v197, %v211
      %v237 = vmul.f32 %v198, %v211
      %v238 = vmul.f32 %v199, %v211
      %v239 = vmul.f32 %v200, %v211
      %v240 = vmul.f32 %v201, %v211
      %v241 = vmul.f32 %v202, %v211
      %v242 = vmul.f32 %v203, %v211
      %v243 = vmul.f32 %v204, %v211
      %v244 = vmul.f32 %v205, %v211
      %v245 = vld [vmem:[%s2] sm:$0x1]
      %v247 = vlaneseq
      %v248 = vshrl.u32 %v247, 7
      %v249 = vsub.s32 0, %v248
      %v250 = vrot.slane %v245, %v249
      %v252 = vadd.f32 %v213, %v250
      %v253 = vadd.f32 %v214, %v250
      %v254 = vadd.f32 %v215, %v250
      %v255 = vadd.f32 %v216, %v250
      %v256 = vadd.f32 %v217, %v250
      %v257 = vadd.f32 %v218, %v250
      %v258 = vadd.f32 %v219, %v250
      %v259 = vadd.f32 %v220, %v250
      %v260 = vadd.f32 %v221, %v250
      %v261 = vadd.f32 %v222, %v250
      %v262 = vadd.f32 %v223, %v250
      %v263 = vadd.f32 %v224, %v250
      %v264 = vadd.f32 %v225, %v250
      %v265 = vadd.f32 %v226, %v250
      %v266 = vadd.f32 %v227, %v250
      %v267 = vadd.f32 %v228, %v250
      %v268 = vadd.f32 %v229, %v250
      %v269 = vadd.f32 %v230, %v250
      %v270 = vadd.f32 %v231, %v250
      %v271 = vadd.f32 %v232, %v250
      %v272 = vadd.f32 %v233, %v250
      %v273 = vadd.f32 %v234, %v250
      %v274 = vadd.f32 %v235, %v250
      %v275 = vadd.f32 %v236, %v250
      %v276 = vadd.f32 %v237, %v250
      %v277 = vadd.f32 %v238, %v250
      %v278 = vadd.f32 %v239, %v250
      %v279 = vadd.f32 %v240, %v250
      %v280 = vadd.f32 %v241, %v250
      %v281 = vadd.f32 %v242, %v250
      %v282 = vadd.f32 %v243, %v250
      %v283 = vadd.f32 %v244, %v250
      %v284 = vmax.f32 %v252, 0.0
      %v285 = vmax.f32 %v253, 0.0
      %v286 = vmax.f32 %v254, 0.0
      %v287 = vmax.f32 %v255, 0.0
      %v288 = vmax.f32 %v256, 0.0
      %v289 = vmax.f32 %v257, 0.0
      %v290 = vmax.f32 %v258, 0.0
      %v291 = vmax.f32 %v259, 0.0
      %v292 = vmax.f32 %v260, 0.0
      %v293 = vmax.f32 %v261, 0.0
      %v294 = vmax.f32 %v262, 0.0
      %v295 = vmax.f32 %v263, 0.0
      %v296 = vmax.f32 %v264, 0.0
      %v297 = vmax.f32 %v265, 0.0
      %v298 = vmax.f32 %v266, 0.0
      %v299 = vmax.f32 %v267, 0.0
      %v300 = vmax.f32 %v268, 0.0
      %v301 = vmax.f32 %v269, 0.0
      %v302 = vmax.f32 %v270, 0.0
      %v303 = vmax.f32 %v271, 0.0
      %v304 = vmax.f32 %v272, 0.0
      %v305 = vmax.f32 %v273, 0.0
      %v306 = vmax.f32 %v274, 0.0
      %v307 = vmax.f32 %v275, 0.0
      %v308 = vmax.f32 %v276, 0.0
      %v309 = vmax.f32 %v277, 0.0
      %v310 = vmax.f32 %v278, 0.0
      %v311 = vmax.f32 %v279, 0.0
      %v312 = vmax.f32 %v280, 0.0
      %v313 = vmax.f32 %v281, 0.0
      %v314 = vmax.f32 %v282, 0.0
      %v315 = vmax.f32 %v283, 0.0
      %v316 = vpack.c.bf16 %v285, %v284
      %v317 = vpack.c.bf16 %v287, %v286
      %v318 = vpack.c.bf16 %v289, %v288
      %v319 = vpack.c.bf16 %v291, %v290
      %v320 = vpack.c.bf16 %v293, %v292
      %v321 = vpack.c.bf16 %v295, %v294
      %v322 = vpack.c.bf16 %v297, %v296
      %v323 = vpack.c.bf16 %v299, %v298
      %v324 = vpack.c.bf16 %v301, %v300
      %v325 = vpack.c.bf16 %v303, %v302
      %v326 = vpack.c.bf16 %v305, %v304
      %v327 = vpack.c.bf16 %v307, %v306
      %v328 = vpack.c.bf16 %v309, %v308
      %v329 = vpack.c.bf16 %v311, %v310
      %v330 = vpack.c.bf16 %v313, %v312
      %v331 = vpack.c.bf16 %v315, %v314
      %v348 = vunpack.c.l.b16 %v316
      %v349 = vunpack.c.h.b16 %v316
      %v350 = vunpack.c.l.b16 %v317
      %v351 = vunpack.c.h.b16 %v317
      %v352 = vunpack.c.l.b16 %v318
      %v353 = vunpack.c.h.b16 %v318
      %v354 = vunpack.c.l.b16 %v319
      %v355 = vunpack.c.h.b16 %v319
      %v356 = vunpack.c.l.b16 %v320
      %v357 = vunpack.c.h.b16 %v320
      %v358 = vunpack.c.l.b16 %v321
      %v359 = vunpack.c.h.b16 %v321
      %v360 = vunpack.c.l.b16 %v322
      %v361 = vunpack.c.h.b16 %v322
      %v362 = vunpack.c.l.b16 %v323
      %v363 = vunpack.c.h.b16 %v323
      %v364 = vunpack.c.l.b16 %v324
      %v365 = vunpack.c.h.b16 %v324
      %v366 = vunpack.c.l.b16 %v325
      %v367 = vunpack.c.h.b16 %v325
      %v368 = vunpack.c.l.b16 %v326
      %v369 = vunpack.c.h.b16 %v326
      %v370 = vunpack.c.l.b16 %v327
      %v371 = vunpack.c.h.b16 %v327
      %v372 = vunpack.c.l.b16 %v328
      %v373 = vunpack.c.h.b16 %v328
      %v374 = vunpack.c.l.b16 %v329
      %v375 = vunpack.c.h.b16 %v329
      %v376 = vunpack.c.l.b16 %v330
      %v377 = vunpack.c.h.b16 %v330
      %v378 = vunpack.c.l.b16 %v331
      %v379 = vunpack.c.h.b16 %v331
      %v380 = vpack.c.b16 %v348, %v348
      %v381 = vpack.c.b16 %v349, %v349
      %v382 = vpack.c.b16 %v350, %v350
      %v383 = vpack.c.b16 %v351, %v351
      %v384 = vpack.c.b16 %v352, %v352
      %v385 = vpack.c.b16 %v353, %v353
      %v386 = vpack.c.b16 %v354, %v354
      %v387 = vpack.c.b16 %v355, %v355
      %v388 = vpack.c.b16 %v356, %v356
      %v389 = vpack.c.b16 %v357, %v357
      %v390 = vpack.c.b16 %v358, %v358
      %v391 = vpack.c.b16 %v359, %v359
      %v392 = vpack.c.b16 %v360, %v360
      %v393 = vpack.c.b16 %v361, %v361
      %v394 = vpack.c.b16 %v362, %v362
      %v395 = vpack.c.b16 %v363, %v363
      %v396 = vpack.c.b16 %v364, %v364
      %v397 = vpack.c.b16 %v365, %v365
      %v398 = vpack.c.b16 %v366, %v366
      %v399 = vpack.c.b16 %v367, %v367
      %v400 = vpack.c.b16 %v368, %v368
      %v401 = vpack.c.b16 %v369, %v369
      %v402 = vpack.c.b16 %v370, %v370
      %v403 = vpack.c.b16 %v371, %v371
      %v404 = vpack.c.b16 %v372, %v372
      %v405 = vpack.c.b16 %v373, %v373
      %v406 = vpack.c.b16 %v374, %v374
      %v407 = vpack.c.b16 %v375, %v375
      %v408 = vpack.c.b16 %v376, %v376
      %v409 = vpack.c.b16 %v377, %v377
      %v410 = vpack.c.b16 %v378, %v378
      %v411 = vpack.c.b16 %v379, %v379
      %vm444 = vcmask 519168
      %445 = vst.msk [vmem:[%s172] sm:$0xf] %vm444, %v380
      %446 = vst.msk [vmem:[%s172 + $0x4] sm:$0xf] %vm444, %v381
      %447 = vst.msk [vmem:[%s172 + $0x8] sm:$0xf] %vm444, %v382
      %448 = vst.msk [vmem:[%s172 + $0xc] sm:$0xf] %vm444, %v383
      %449 = vst.msk [vmem:[%s172 + $0x10] sm:$0xf] %vm444, %v384
      %450 = vst.msk [vmem:[%s172 + $0x14] sm:$0xf] %vm444, %v385
      %451 = vst.msk [vmem:[%s172 + $0x18] sm:$0xf] %vm444, %v386
      %452 = vst.msk [vmem:[%s172 + $0x1c] sm:$0xf] %vm444, %v387
      %453 = vst.msk [vmem:[%s172 + $0x20] sm:$0xf] %vm444, %v388
      %454 = vst.msk [vmem:[%s172 + $0x24] sm:$0xf] %vm444, %v389
      %455 = vst.msk [vmem:[%s172 + $0x28] sm:$0xf] %vm444, %v390
      %456 = vst.msk [vmem:[%s172 + $0x2c] sm:$0xf] %vm444, %v391
      %457 = vst.msk [vmem:[%s172 + $0x30] sm:$0xf] %vm444, %v392
      %458 = vst.msk [vmem:[%s172 + $0x34] sm:$0xf] %vm444, %v393
      %459 = vst.msk [vmem:[%s172 + $0x38] sm:$0xf] %vm444, %v394
      %460 = vst.msk [vmem:[%s172 + $0x3c] sm:$0xf] %vm444, %v395
      %461 = vst.msk [vmem:[%s172 + $0x40] sm:$0xf] %vm444, %v396
      %462 = vst.msk [vmem:[%s172 + $0x44] sm:$0xf] %vm444, %v397
      %463 = vst.msk [vmem:[%s172 + $0x48] sm:$0xf] %vm444, %v398
      %464 = vst.msk [vmem:[%s172 + $0x4c] sm:$0xf] %vm444, %v399
      %465 = vst.msk [vmem:[%s172 + $0x50] sm:$0xf] %vm444, %v400
      %466 = vst.msk [vmem:[%s172 + $0x54] sm:$0xf] %vm444, %v401
      %467 = vst.msk [vmem:[%s172 + $0x58] sm:$0xf] %vm444, %v402
      %468 = vst.msk [vmem:[%s172 + $0x5c] sm:$0xf] %vm444, %v403
      %469 = vst.msk [vmem:[%s172 + $0x60] sm:$0xf] %vm444, %v404
      %470 = vst.msk [vmem:[%s172 + $0x64] sm:$0xf] %vm444, %v405
      %471 = vst.msk [vmem:[%s172 + $0x68] sm:$0xf] %vm444, %v406
      %472 = vst.msk [vmem:[%s172 + $0x6c] sm:$0xf] %vm444, %v407
      %473 = vst.msk [vmem:[%s172 + $0x70] sm:$0xf] %vm444, %v408
      %474 = vst.msk [vmem:[%s172 + $0x74] sm:$0xf] %vm444, %v409
      %475 = vst.msk [vmem:[%s172 + $0x78] sm:$0xf] %vm444, %v410
      %476 = vst.msk [vmem:[%s172 + $0x7c] sm:$0xf] %vm444, %v411
      %s477 = smul.u32 32, %s14
      %p478 = scmp.lt.s32.totalorder %s477, 63
      %s479 = scalar_select %p478, %s477, 63
      %s480 = smul.addr %s479, 4
      %s481 = scalar_lea.vmem %s3, %s480
      // Predicated region
      $region33: #{restnet_basic_block_forward.5} parent=31 // pred_check
        %p482 = pneg %p100
      $region34: #{restnet_basic_block_forward.5} parent=31 // pred_check_branch
        %484 = sbr.rel (%p482) target = $region36
      $region35: #{restnet_basic_block_forward.5} parent=31 // pred_region
        %s485 = smul.u32 32, %s14
      $region36: #{restnet_basic_block_forward.5} parent=31 // pred_fallthru
        _
    $region32: #{restnet_basic_block_forward.5} parent=5 // pred_fallthru
      _
    %p486 = scmp.le.s32.totalorder 2, %s9
    // Predicated region
    $region37: #{restnet_basic_block_forward.5} parent=5 // pred_check
      %p487 = pneg %p486
    $region38: #{restnet_basic_block_forward.5} parent=5 // pred_check_branch
      %489 = sbr.rel (%p487) target = $region40
    $region39: #{restnet_basic_block_forward.5} parent=5 // pred_region
      %s490 = ssub.s32 %s9, 2
      // Predicated region
      $region41: #{restnet_basic_block_forward.5} parent=39 // pred_check
        %p491 = pneg %p106
      $region42: #{restnet_basic_block_forward.5} parent=39 // pred_check_branch
        %493 = sbr.rel (%p491) target = $region44
      $region43: #{restnet_basic_block_forward.5} parent=39 // pred_region
        %s494 = smul.u32 32, %s15
        %p495 = scmp.lt.s32.totalorder %s494, 63
        %s496 = scalar_select %p495, %s494, 63
        %s497 = smul.addr %s496, 4
        %s498 = scalar_lea.vmem %s3, %s497
      $region44: #{restnet_basic_block_forward.5} parent=39 // pred_fallthru
        _
    $region40: #{restnet_basic_block_forward.5} parent=5 // pred_fallthru
      _
  $region6: #{restnet_basic_block_forward.5} parent=0 // loop_footer
    %s13 = sadd.s32 1, %s9
  $region7: #{restnet_basic_block_forward.5} parent=0 // loop_footer_branch
    %8 = sbr.rel target = $region3
  $region8: #{restnet_basic_block_forward.5} parent=0 // loop_exit
    _

// kernel: restnet_basic_block_forward.7
$region0: #{restnet_basic_block_forward.7}
  #allocation0 [shape = 'u32[]', space=smem, size = 0x4, offset = 0x4, fixed_abs, tag = 'smem constant byte address 0x4 - core index']
  #allocation1 [shape = 'u32[144,128]{1,0:T(1,128)}', space=vmem, size = 0x12000, scoped, tag = 'internal scratch']
  %s0 = inlined_call_operand.vmem [shape: f32[512,64], index: 0, kind: input, shape index: {}]
  %s1 = inlined_call_operand.vmem [shape: f32[512,64], index: 1, kind: input, shape index: {}]
  %s2 = inlined_call_operand.vmem [shape: f32[1,64], index: 2, kind: input, shape index: {}]
  %s3 = inlined_call_operand.vmem [shape: f32[1,64], index: 3, kind: input, shape index: {}]
  %s4 = inlined_call_operand.hbm [shape: f32[512,64], index: 4, kind: output, shape index: {}]
  %s5 = sld [smem:[#allocation0]]
  $region49: #{restnet_basic_block_forward.7} parent=0
    _
  %s7 = ssub.s32 1, %s5
  %s8 = scalar_select 0, %s7, %s5
  $region1: #{restnet_basic_block_forward.7} parent=0
    #allocation2 [shape = 'u8[262144]{0}', space=vmem, size = 0x40000, scoped, tag = 'output window, operand 0']
    #allocation3 [shape = 's32[2]{0}', space=sflag, size = 0x8, scoped, tag = 'scoped memory for restnet_basic_block_forward.7']
    %9 = vsyncpa [#allocation3], 0
    %s10 = scalar_lea.sflag [#allocation3], 1
    %11 = vsyncpa %s10, 0
    loop: start=0, step=1, limit=4
    $region2: #{restnet_basic_block_forward.7} parent=1 // loop_pre_header
      _
    $region3: #{restnet_basic_block_forward.7} parent=1 // loop_header
      %s13 = sphi 0, %s17
      %p14 = scmp.ge.s32.totalorder %s13, 4
      %s23 = sphi 0, %s25
      %s26 = sphi 0, %s23
      %s27 = sphi 0, %s26
      %s43 = sphi 0, %s27
      %s49 = sphi 0, %s51
      %s52 = sphi 0, %s49
      %s53 = sphi 0, %s52
      %s69 = sphi 0, %s53
      %s73 = sphi 0, %s73
      %s75 = sphi 0, %s73
      %s76 = sphi 0, %s75
      %s90 = sphi 0, %s76
      %s94 = sphi 0, %s94
      %s96 = sphi 0, %s94
      %s97 = sphi 0, %s96
      %s111 = sphi 0, %s97
      %s117 = sphi 0, %s119
      %s120 = sphi 0, %s117
      %s121 = sphi 0, %s120
      %s137 = sphi 0, %s121
    $region4: #{restnet_basic_block_forward.7} parent=1 // loop_header_branch
      %16 = sbr.rel (%p14) target = $region8
    $region5: #{restnet_basic_block_forward.7} parent=1 // loop_body
      %s18 = ssub.s32 %s13, 1
      %s19 = ssub.s32 %s13, 2
      %s20 = sadd.s32 %s13, 1
      %s21 = ssub.s32 %s13, %s20
      %p22 = scmp.eq.s32.totalorder %s21, 0
      %s24 = sadd.s32 %s23, 1
      %s25 = scalar_select %p22, %s23, %s24
      %p28 = pneg %p22
      %p29 = scmp.eq.s32.totalorder %s13, 1
      %p30 = por %p28, %p29
      %p31 = scmp.ne.s32.totalorder %s23, %s26
      %p32 = scmp.eq.s32.totalorder %s13, 0
      %p33 = por %p31, %p32
      %p34 = scmp.ne.s32.totalorder %s23, %s26
      %p35 = scmp.eq.s32.totalorder %s18, 1
      %p36 = por %p34, %p35
      %p37 = scmp.ne.s32.totalorder %s26, %s27
      %p38 = scmp.eq.s32.totalorder %s18, 0
      %p39 = por %p37, %p38
      %p40 = scmp.ne.s32.totalorder %s26, %s27
      %p41 = scmp.eq.s32.totalorder %s19, 1
      %p42 = por %p40, %p41
      %p44 = scmp.ne.s32.totalorder %s27, %s43
      %p45 = scmp.eq.s32.totalorder %s19, 0
      %p46 = por %p44, %p45
      %s47 = ssub.s32 %s13, %s20
      %p48 = scmp.eq.s32.totalorder %s47, 0
      %s50 = sadd.s32 %s49, 1
      %s51 = scalar_select %p48, %s49, %s50
      %p54 = pneg %p48
      %p55 = scmp.eq.s32.totalorder %s13, 1
      %p56 = por %p54, %p55
      %p57 = scmp.ne.s32.totalorder %s49, %s52
      %p58 = scmp.eq.s32.totalorder %s13, 0
      %p59 = por %p57, %p58
      %p60 = scmp.ne.s32.totalorder %s49, %s52
      %p61 = scmp.eq.s32.totalorder %s18, 1
      %p62 = por %p60, %p61
      %p63 = scmp.ne.s32.totalorder %s52, %s53
      %p64 = scmp.eq.s32.totalorder %s18, 0
      %p65 = por %p63, %p64
      %p66 = scmp.ne.s32.totalorder %s52, %s53
      %p67 = scmp.eq.s32.totalorder %s19, 1
      %p68 = por %p66, %p67
      %p70 = scmp.ne.s32.totalorder %s53, %s69
      %p71 = scmp.eq.s32.totalorder %s19, 0
      %p72 = por %p70, %p71
      %s74 = sadd.s32 %s73, 1
      %p77 = scmp.eq.s32.totalorder %s13, 1
      %p78 = scmp.ne.s32.totalorder %s73, %s75
      %p79 = scmp.eq.s32.totalorder %s13, 0
      %p80 = por %p78, %p79
      %p81 = scmp.ne.s32.totalorder %s73, %s75
      %p82 = scmp.eq.s32.totalorder %s18, 1
      %p83 = por %p81, %p82
      %p84 = scmp.ne.s32.totalorder %s75, %s76
      %p85 = scmp.eq.s32.totalorder %s18, 0
      %p86 = por %p84, %p85
      %p87 = scmp.ne.s32.totalorder %s75, %s76
      %p88 = scmp.eq.s32.totalorder %s19, 1
      %p89 = por %p87, %p88
      %p91 = scmp.ne.s32.totalorder %s76, %s90
      %p92 = scmp.eq.s32.totalorder %s19, 0
      %p93 = por %p91, %p92
      %s95 = sadd.s32 %s94, 1
      %p98 = scmp.eq.s32.totalorder %s13, 1
      %p99 = scmp.ne.s32.totalorder %s94, %s96
      %p100 = scmp.eq.s32.totalorder %s13, 0
      %p101 = por %p99, %p100
      %p102 = scmp.ne.s32.totalorder %s94, %s96
      %p103 = scmp.eq.s32.totalorder %s18, 1
      %p104 = por %p102, %p103
      %p105 = scmp.ne.s32.totalorder %s96, %s97
      %p106 = scmp.eq.s32.totalorder %s18, 0
      %p107 = por %p105, %p106
      %p108 = scmp.ne.s32.totalorder %s96, %s97
      %p109 = scmp.eq.s32.totalorder %s19, 1
      %p110 = por %p108, %p109
      %p112 = scmp.ne.s32.totalorder %s97, %s111
      %p113 = scmp.eq.s32.totalorder %s19, 0
      %p114 = por %p112, %p113
      %s115 = ssub.s32 %s13, %s20
      %p116 = scmp.eq.s32.totalorder %s115, 0
      %s118 = sadd.s32 %s117, 1
      %s119 = scalar_select %p116, %s117, %s118
      %p122 = pneg %p116
      %p123 = scmp.eq.s32.totalorder %s13, 1
      %p124 = por %p122, %p123
      %p125 = scmp.ne.s32.totalorder %s117, %s120
      %p126 = scmp.eq.s32.totalorder %s13, 0
      %p127 = por %p125, %p126
      %p128 = scmp.ne.s32.totalorder %s117, %s120
      %p129 = scmp.eq.s32.totalorder %s18, 1
      %p130 = por %p128, %p129
      %p131 = scmp.ne.s32.totalorder %s120, %s121
      %p132 = scmp.eq.s32.totalorder %s18, 0
      %p133 = por %p131, %p132
      %p134 = scmp.ne.s32.totalorder %s120, %s121
      %p135 = scmp.eq.s32.totalorder %s19, 1
      %p136 = por %p134, %p135
      %p138 = scmp.ne.s32.totalorder %s121, %s137
      %p139 = scmp.eq.s32.totalorder %s19, 0
      %p140 = por %p138, %p139
      %p141 = scmp.le.s32.totalorder 1, %s13
      %p142 = scmp.lt.s32.totalorder %s13, 3
      %p143 = pnand %p141, %p142
      %p144 = pneg %p143
      // Predicated region
      $region9: #{restnet_basic_block_forward.7} parent=5 // pred_check
        _
      $region10: #{restnet_basic_block_forward.7} parent=5 // pred_check_branch
        %146 = sbr.rel (%p143) target = $region12
      $region11: #{restnet_basic_block_forward.7} parent=5 // pred_region
        %s147 = ssub.s32 %s13, 1
        // Predicated region
        $region13: #{restnet_basic_block_forward.7} parent=11 // pred_check
          %p148 = pneg %p86
        $region14: #{restnet_basic_block_forward.7} parent=11 // pred_check_branch
          %150 = sbr.rel (%p148) target = $region16
        $region15: #{restnet_basic_block_forward.7} parent=11 // pred_region
          _
        $region16: #{restnet_basic_block_forward.7} parent=11 // pred_fallthru
          _
        // Predicated region
        $region17: #{restnet_basic_block_forward.7} parent=11 // pred_check
          %p151 = pneg %p107
        $region18: #{restnet_basic_block_forward.7} parent=11 // pred_check_branch
          %153 = sbr.rel (%p151) target = $region20
        $region19: #{restnet_basic_block_forward.7} parent=11 // pred_region
          _
        $region20: #{restnet_basic_block_forward.7} parent=11 // pred_fallthru
          _
      $region12: #{restnet_basic_block_forward.7} parent=5 // pred_fallthru
        _
      %p154 = scmp.lt.s32.totalorder %s13, 2
      // Predicated region
      $region21: #{restnet_basic_block_forward.7} parent=5 // pred_check
        %p155 = pneg %p154
      $region22: #{restnet_basic_block_forward.7} parent=5 // pred_check_branch
        %157 = sbr.rel (%p155) target = $region24
      $region23: #{restnet_basic_block_forward.7} parent=5 // pred_region
        // Predicated region
        $region25: #{restnet_basic_block_forward.7} parent=23 // pred_check
          %p158 = pneg %p33
        $region26: #{restnet_basic_block_forward.7} parent=23 // pred_check_branch
          %160 = sbr.rel (%p158) target = $region28
        $region27: #{restnet_basic_block_forward.7} parent=23 // pred_region
          %s161 = smul.u32 32, %s13
          %p162 = scmp.lt.s32.totalorder %s161, 63
          %s163 = scalar_select %p162, %s161, 63
          %s164 = smul.addr %s163, 8
          %s165 = scalar_lea.vmem %s0, %s164
          %s166 = smul.u32 32, %s13
        $region28: #{restnet_basic_block_forward.7} parent=23 // pred_fallthru
          _
        // Predicated region
        $region29: #{restnet_basic_block_forward.7} parent=23 // pred_check
          %p167 = pneg %p59
        $region30: #{restnet_basic_block_forward.7} parent=23 // pred_check_branch
          %169 = sbr.rel (%p167) target = $region32
        $region31: #{restnet_basic_block_forward.7} parent=23 // pred_region
          %s170 = smul.u32 32, %s13
          %p171 = scmp.lt.s32.totalorder %s170, 63
          %s172 = scalar_select %p171, %s170, 63
          %s173 = smul.addr %s172, 8
          %s174 = scalar_lea.vmem %s1, %s173
          %s175 = smul.u32 32, %s13
        $region32: #{restnet_basic_block_forward.7} parent=23 // pred_fallthru
          _
      $region24: #{restnet_basic_block_forward.7} parent=5 // pred_fallthru
        _
      %p176 = scmp.le.s32.totalorder 1, %s13
      %p177 = scmp.lt.s32.totalorder %s13, 3
      %p178 = pnand %p176, %p177
      %p179 = pneg %p178
      // Predicated region
      $region33: #{restnet_basic_block_forward.7} parent=5 // pred_check
        _
      $region34: #{restnet_basic_block_forward.7} parent=5 // pred_check_branch
        %181 = sbr.rel (%p178) target = $region36
      $region35: #{restnet_basic_block_forward.7} parent=5 // pred_region
        %s182 = ssub.s32 %s13, 1
        %s183 = smul.u32 32, %s18
        %p184 = scmp.lt.s32.totalorder %s183, 63
        %s185 = scalar_select %p184, %s183, 63
        %s186 = smul.addr %s185, 8
        %s187 = scalar_lea.vmem %s0, %s186
        %p188 = pneg %p39
        %p189 = pneg %p36
        %s190 = smul.u32 32, %s18
        %p191 = scmp.lt.s32.totalorder %s190, 63
        %s192 = scalar_select %p191, %s190, 63
        %s193 = smul.addr %s192, 8
        %s194 = scalar_lea.vmem %s1, %s193
        %p195 = pneg %p65
        %p196 = pneg %p62
        %p197 = pneg %p86
        %p198 = pneg %p83
        %p199 = pneg %p107
        %p200 = pneg %p104
        %p201 = pneg %p133
        %p202 = pneg %p130
        %s203 = sand.u32 %s120, 1
        %s204 = scalar_lea.sflag [#allocation3], %s203
        %s205 = sand.u32 %s120, 1
        %s206 = smul.addr %s205, 256
        %s207 = scalar_lea.vmem [#allocation2], %s206
        %s208 = smul.u32 32, %s18
        %p209 = scmp.lt.s32.totalorder %s208, 63
        %s210 = scalar_select %p209, %s208, 63
        %s211 = smul.addr %s210, 8
        %s212 = scalar_lea.vmem %s0, %s211
        %s213 = smul.u32 32, %s18
        %s214 = smul.u32 32, %s18
        %p215 = scmp.lt.s32.totalorder %s214, 63
        %s216 = scalar_select %p215, %s214, 63
        %s217 = smul.addr %s216, 8
        %s218 = scalar_lea.vmem %s1, %s217
        %s219 = smul.u32 32, %s18
        %s220 = smul.u32 32, %s18
        %v221 = vld [vmem:[%s212] sm:$0xff]
        %v222 = vld [vmem:[%s212 + $0x8] sm:$0xff]
        %v223 = vld [vmem:[%s212 + $0x10] sm:$0xff]
        %v224 = vld [vmem:[%s212 + $0x18] sm:$0xff]
        %v225 = vld [vmem:[%s212 + $0x20] sm:$0xff]
        %v226 = vld [vmem:[%s212 + $0x28] sm:$0xff]
        %v227 = vld [vmem:[%s212 + $0x30] sm:$0xff]
        %v228 = vld [vmem:[%s212 + $0x38] sm:$0xff]
        %v229 = vld [vmem:[%s212 + $0x40] sm:$0xff]
        %v230 = vld [vmem:[%s212 + $0x48] sm:$0xff]
        %v231 = vld [vmem:[%s212 + $0x50] sm:$0xff]
        %v232 = vld [vmem:[%s212 + $0x58] sm:$0xff]
        %v233 = vld [vmem:[%s212 + $0x60] sm:$0xff]
        %v234 = vld [vmem:[%s212 + $0x68] sm:$0xff]
        %v235 = vld [vmem:[%s212 + $0x70] sm:$0xff]
        %v236 = vld [vmem:[%s212 + $0x78] sm:$0xff]
        %v237 = vld [vmem:[%s212 + $0x80] sm:$0xff]
        %v238 = vld [vmem:[%s212 + $0x88] sm:$0xff]
        %v239 = vld [vmem:[%s212 + $0x90] sm:$0xff]
        %v240 = vld [vmem:[%s212 + $0x98] sm:$0xff]
        %v241 = vld [vmem:[%s212 + $0xa0] sm:$0xff]
        %v242 = vld [vmem:[%s212 + $0xa8] sm:$0xff]
        %v243 = vld [vmem:[%s212 + $0xb0] sm:$0xff]
        %v244 = vld [vmem:[%s212 + $0xb8] sm:$0xff]
        %v245 = vld [vmem:[%s212 + $0xc0] sm:$0xff]
        %v246 = vld [vmem:[%s212 + $0xc8] sm:$0xff]
        %v247 = vld [vmem:[%s212 + $0xd0] sm:$0xff]
        %v248 = vld [vmem:[%s212 + $0xd8] sm:$0xff]
        %v249 = vld [vmem:[%s212 + $0xe0] sm:$0xff]
        %v250 = vld [vmem:[%s212 + $0xe8] sm:$0xff]
        %v251 = vld [vmem:[%s212 + $0xf0] sm:$0xff]
        %v252 = vld [vmem:[%s212 + $0xf8] sm:$0xff]
        %v253 = vld [vmem:[%s2] sm:$0x1]
        %v255 = vlaneseq
        %v256 = vshrl.u32 %v255, 7
        %v257 = vsub.s32 0, %v256
        %v258 = vrot.slane %v253, %v257
        %v260 = vmul.f32 %v221, %v258
        %v261 = vmul.f32 %v222, %v258
        %v262 = vmul.f32 %v223, %v258
        %v263 = vmul.f32 %v224, %v258
        %v264 = vmul.f32 %v225, %v258
        %v265 = vmul.f32 %v226, %v258
        %v266 = vmul.f32 %v227, %v258
        %v267 = vmul.f32 %v228, %v258
        %v268 = vmul.f32 %v229, %v258
        %v269 = vmul.f32 %v230, %v258
        %v270 = vmul.f32 %v231, %v258
        %v271 = vmul.f32 %v232, %v258
        %v272 = vmul.f32 %v233, %v258
        %v273 = vmul.f32 %v234, %v258
        %v274 = vmul.f32 %v235, %v258
        %v275 = vmul.f32 %v236, %v258
        %v276 = vmul.f32 %v237, %v258
        %v277 = vmul.f32 %v238, %v258
        %v278 = vmul.f32 %v239, %v258
        %v279 = vmul.f32 %v240, %v258
        %v280 = vmul.f32 %v241, %v258
        %v281 = vmul.f32 %v242, %v258
        %v282 = vmul.f32 %v243, %v258
        %v283 = vmul.f32 %v244, %v258
        %v284 = vmul.f32 %v245, %v258
        %v285 = vmul.f32 %v246, %v258
        %v286 = vmul.f32 %v247, %v258
        %v287 = vmul.f32 %v248, %v258
        %v288 = vmul.f32 %v249, %v258
        %v289 = vmul.f32 %v250, %v258
        %v290 = vmul.f32 %v251, %v258
        %v291 = vmul.f32 %v252, %v258
        %v292 = vld [vmem:[%s3] sm:$0x1]
        %v294 = vlaneseq
        %v295 = vshrl.u32 %v294, 7
        %v296 = vsub.s32 0, %v295
        %v297 = vrot.slane %v292, %v296
        %v299 = vadd.f32 %v260, %v297
        %v300 = vadd.f32 %v261, %v297
        %v301 = vadd.f32 %v262, %v297
        %v302 = vadd.f32 %v263, %v297
        %v303 = vadd.f32 %v264, %v297
        %v304 = vadd.f32 %v265, %v297
        %v305 = vadd.f32 %v266, %v297
        %v306 = vadd.f32 %v267, %v297
        %v307 = vadd.f32 %v268, %v297
        %v308 = vadd.f32 %v269, %v297
        %v309 = vadd.f32 %v270, %v297
        %v310 = vadd.f32 %v271, %v297
        %v311 = vadd.f32 %v272, %v297
        %v312 = vadd.f32 %v273, %v297
        %v313 = vadd.f32 %v274, %v297
        %v314 = vadd.f32 %v275, %v297
        %v315 = vadd.f32 %v276, %v297
        %v316 = vadd.f32 %v277, %v297
        %v317 = vadd.f32 %v278, %v297
        %v318 = vadd.f32 %v279, %v297
        %v319 = vadd.f32 %v280, %v297
        %v320 = vadd.f32 %v281, %v297
        %v321 = vadd.f32 %v282, %v297
        %v322 = vadd.f32 %v283, %v297
        %v323 = vadd.f32 %v284, %v297
        %v324 = vadd.f32 %v285, %v297
        %v325 = vadd.f32 %v286, %v297
        %v326 = vadd.f32 %v287, %v297
        %v327 = vadd.f32 %v288, %v297
        %v328 = vadd.f32 %v289, %v297
        %v329 = vadd.f32 %v290, %v297
        %v330 = vadd.f32 %v291, %v297
        %v331 = vld [vmem:[%s218] sm:$0xff]
        %v332 = vld [vmem:[%s218 + $0x8] sm:$0xff]
        %v333 = vld [vmem:[%s218 + $0x10] sm:$0xff]
        %v334 = vld [vmem:[%s218 + $0x18] sm:$0xff]
        %v335 = vld [vmem:[%s218 + $0x20] sm:$0xff]
        %v336 = vld [vmem:[%s218 + $0x28] sm:$0xff]
        %v337 = vld [vmem:[%s218 + $0x30] sm:$0xff]
        %v338 = vld [vmem:[%s218 + $0x38] sm:$0xff]
        %v339 = vld [vmem:[%s218 + $0x40] sm:$0xff]
        %v340 = vld [vmem:[%s218 + $0x48] sm:$0xff]
        %v341 = vld [vmem:[%s218 + $0x50] sm:$0xff]
        %v342 = vld [vmem:[%s218 + $0x58] sm:$0xff]
        %v343 = vld [vmem:[%s218 + $0x60] sm:$0xff]
        %v344 = vld [vmem:[%s218 + $0x68] sm:$0xff]
        %v345 = vld [vmem:[%s218 + $0x70] sm:$0xff]
        %v346 = vld [vmem:[%s218 + $0x78] sm:$0xff]
        %v347 = vld [vmem:[%s218 + $0x80] sm:$0xff]
        %v348 = vld [vmem:[%s218 + $0x88] sm:$0xff]
        %v349 = vld [vmem:[%s218 + $0x90] sm:$0xff]
        %v350 = vld [vmem:[%s218 + $0x98] sm:$0xff]
        %v351 = vld [vmem:[%s218 + $0xa0] sm:$0xff]
        %v352 = vld [vmem:[%s218 + $0xa8] sm:$0xff]
        %v353 = vld [vmem:[%s218 + $0xb0] sm:$0xff]
        %v354 = vld [vmem:[%s218 + $0xb8] sm:$0xff]
        %v355 = vld [vmem:[%s218 + $0xc0] sm:$0xff]
        %v356 = vld [vmem:[%s218 + $0xc8] sm:$0xff]
        %v357 = vld [vmem:[%s218 + $0xd0] sm:$0xff]
        %v358 = vld [vmem:[%s218 + $0xd8] sm:$0xff]
        %v359 = vld [vmem:[%s218 + $0xe0] sm:$0xff]
        %v360 = vld [vmem:[%s218 + $0xe8] sm:$0xff]
        %v361 = vld [vmem:[%s218 + $0xf0] sm:$0xff]
        %v362 = vld [vmem:[%s218 + $0xf8] sm:$0xff]
        %v363 = vadd.f32 %v299, %v331
        %v364 = vadd.f32 %v300, %v332
        %v365 = vadd.f32 %v301, %v333
        %v366 = vadd.f32 %v302, %v334
        %v367 = vadd.f32 %v303, %v335
        %v368 = vadd.f32 %v304, %v336
        %v369 = vadd.f32 %v305, %v337
        %v370 = vadd.f32 %v306, %v338
        %v371 = vadd.f32 %v307, %v339
        %v372 = vadd.f32 %v308, %v340
        %v373 = vadd.f32 %v309, %v341
        %v374 = vadd.f32 %v310, %v342
        %v375 = vadd.f32 %v311, %v343
        %v376 = vadd.f32 %v312, %v344
        %v377 = vadd.f32 %v313, %v345
        %v378 = vadd.f32 %v314, %v346
        %v379 = vadd.f32 %v315, %v347
        %v380 = vadd.f32 %v316, %v348
        %v381 = vadd.f32 %v317, %v349
        %v382 = vadd.f32 %v318, %v350
        %v383 = vadd.f32 %v319, %v351
        %v384 = vadd.f32 %v320, %v352
        %v385 = vadd.f32 %v321, %v353
        %v386 = vadd.f32 %v322, %v354
        %v387 = vadd.f32 %v323, %v355
        %v388 = vadd.f32 %v324, %v356
        %v389 = vadd.f32 %v325, %v357
        %v390 = vadd.f32 %v326, %v358
        %v391 = vadd.f32 %v327, %v359
        %v392 = vadd.f32 %v328, %v360
        %v393 = vadd.f32 %v329, %v361
        %v394 = vadd.f32 %v330, %v362
        %v395 = vmax.f32 %v363, 0.0
        %v396 = vmax.f32 %v364, 0.0
        %v397 = vmax.f32 %v365, 0.0
        %v398 = vmax.f32 %v366, 0.0
        %v399 = vmax.f32 %v367, 0.0
        %v400 = vmax.f32 %v368, 0.0
        %v401 = vmax.f32 %v369, 0.0
        %v402 = vmax.f32 %v370, 0.0
        %v403 = vmax.f32 %v371, 0.0
        %v404 = vmax.f32 %v372, 0.0
        %v405 = vmax.f32 %v373, 0.0
        %v406 = vmax.f32 %v374, 0.0
        %v407 = vmax.f32 %v375, 0.0
        %v408 = vmax.f32 %v376, 0.0
        %v409 = vmax.f32 %v377, 0.0
        %v410 = vmax.f32 %v378, 0.0
        %v411 = vmax.f32 %v379, 0.0
        %v412 = vmax.f32 %v380, 0.0
        %v413 = vmax.f32 %v381, 0.0
        %v414 = vmax.f32 %v382, 0.0
        %v415 = vmax.f32 %v383, 0.0
        %v416 = vmax.f32 %v384, 0.0
        %v417 = vmax.f32 %v385, 0.0
        %v418 = vmax.f32 %v386, 0.0
        %v419 = vmax.f32 %v387, 0.0
        %v420 = vmax.f32 %v388, 0.0
        %v421 = vmax.f32 %v389, 0.0
        %v422 = vmax.f32 %v390, 0.0
        %v423 = vmax.f32 %v391, 0.0
        %v424 = vmax.f32 %v392, 0.0
        %v425 = vmax.f32 %v393, 0.0
        %v426 = vmax.f32 %v394, 0.0
        %vm427 = vcmask 523264
        %428 = vst.msk [vmem:[%s207] sm:$0xff] %vm427, %v395
        %429 = vst.msk [vmem:[%s207 + $0x8] sm:$0xff] %vm427, %v396
        %430 = vst.msk [vmem:[%s207 + $0x10] sm:$0xff] %vm427, %v397
        %431 = vst.msk [vmem:[%s207 + $0x18] sm:$0xff] %vm427, %v398
        %432 = vst.msk [vmem:[%s207 + $0x20] sm:$0xff] %vm427, %v399
        %433 = vst.msk [vmem:[%s207 + $0x28] sm:$0xff] %vm427, %v400
        %434 = vst.msk [vmem:[%s207 + $0x30] sm:$0xff] %vm427, %v401
        %435 = vst.msk [vmem:[%s207 + $0x38] sm:$0xff] %vm427, %v402
        %436 = vst.msk [vmem:[%s207 + $0x40] sm:$0xff] %vm427, %v403
        %437 = vst.msk [vmem:[%s207 + $0x48] sm:$0xff] %vm427, %v404
        %438 = vst.msk [vmem:[%s207 + $0x50] sm:$0xff] %vm427, %v405
        %439 = vst.msk [vmem:[%s207 + $0x58] sm:$0xff] %vm427, %v406
        %440 = vst.msk [vmem:[%s207 + $0x60] sm:$0xff] %vm427, %v407
        %441 = vst.msk [vmem:[%s207 + $0x68] sm:$0xff] %vm427, %v408
        %442 = vst.msk [vmem:[%s207 + $0x70] sm:$0xff] %vm427, %v409
        %443 = vst.msk [vmem:[%s207 + $0x78] sm:$0xff] %vm427, %v410
        %444 = vst.msk [vmem:[%s207 + $0x80] sm:$0xff] %vm427, %v411
        %445 = vst.msk [vmem:[%s207 + $0x88] sm:$0xff] %vm427, %v412
        %446 = vst.msk [vmem:[%s207 + $0x90] sm:$0xff] %vm427, %v413
        %447 = vst.msk [vmem:[%s207 + $0x98] sm:$0xff] %vm427, %v414
        %448 = vst.msk [vmem:[%s207 + $0xa0] sm:$0xff] %vm427, %v415
        %449 = vst.msk [vmem:[%s207 + $0xa8] sm:$0xff] %vm427, %v416
        %450 = vst.msk [vmem:[%s207 + $0xb0] sm:$0xff] %vm427, %v417
        %451 = vst.msk [vmem:[%s207 + $0xb8] sm:$0xff] %vm427, %v418
        %452 = vst.msk [vmem:[%s207 + $0xc0] sm:$0xff] %vm427, %v419
        %453 = vst.msk [vmem:[%s207 + $0xc8] sm:$0xff] %vm427, %v420
        %454 = vst.msk [vmem:[%s207 + $0xd0] sm:$0xff] %vm427, %v421
        %455 = vst.msk [vmem:[%s207 + $0xd8] sm:$0xff] %vm427, %v422
        %456 = vst.msk [vmem:[%s207 + $0xe0] sm:$0xff] %vm427, %v423
        %457 = vst.msk [vmem:[%s207 + $0xe8] sm:$0xff] %vm427, %v424
        %458 = vst.msk [vmem:[%s207 + $0xf0] sm:$0xff] %vm427, %v425
        %459 = vst.msk [vmem:[%s207 + $0xf8] sm:$0xff] %vm427, %v426
        %s460 = sand.u32 %s120, 1
        %s461 = scalar_lea.sflag [#allocation3], %s460
        %s462 = sand.u32 %s120, 1
        %s463 = smul.addr %s462, 256
        %s464 = scalar_lea.vmem [#allocation2], %s463
        // Predicated region
        $region37: #{restnet_basic_block_forward.7} parent=35 // pred_check
          %p465 = pneg %p130
        $region38: #{restnet_basic_block_forward.7} parent=35 // pred_check_branch
          %467 = sbr.rel (%p465) target = $region40
        $region39: #{restnet_basic_block_forward.7} parent=35 // pred_region
          %s468 = smul.u32 32, %s18
          %s470 = ssub.s32 4096, 4096
          %471 = vsyncadd %s461, %s470
          %s472 = smul.addr %s468, 128
          %s473 = scalar_lea.hbm %s4, %s472
          %s474 = sshll.u32 %s464, 4
          %s475 = int_to_ptr.vmem [resolvable:$true] %s474
          %480 = dma.vmem_to_hbm [thread:$0]  %s475, 4096, %s473, %s461, 128, 128, 8
        $region40: #{restnet_basic_block_forward.7} parent=35 // pred_fallthru
          _
      $region36: #{restnet_basic_block_forward.7} parent=5 // pred_fallthru
        _
      %p481 = scmp.le.s32.totalorder 2, %s13
      // Predicated region
      $region41: #{restnet_basic_block_forward.7} parent=5 // pred_check
        %p482 = pneg %p481
      $region42: #{restnet_basic_block_forward.7} parent=5 // pred_check_branch
        %484 = sbr.rel (%p482) target = $region44
      $region43: #{restnet_basic_block_forward.7} parent=5 // pred_region
        %s485 = ssub.s32 %s13, 2
        // Predicated region
        $region45: #{restnet_basic_block_forward.7} parent=43 // pred_check
          %p486 = pneg %p136
        $region46: #{restnet_basic_block_forward.7} parent=43 // pred_check_branch
          %488 = sbr.rel (%p486) target = $region48
        $region47: #{restnet_basic_block_forward.7} parent=43 // pred_region
          %s489 = sand.u32 %s121, 1
          %s490 = scalar_lea.sflag [#allocation3], %s489
          %s491 = sand.u32 %s121, 1
          %s492 = smul.addr %s491, 256
          %s493 = scalar_lea.vmem [#allocation2], %s492
          %494 = dma.done %s490, 4096
        $region48: #{restnet_basic_block_forward.7} parent=43 // pred_fallthru
          _
      $region44: #{restnet_basic_block_forward.7} parent=5 // pred_fallthru
        _
    $region6: #{restnet_basic_block_forward.7} parent=1 // loop_footer
      %s17 = sadd.s32 1, %s13
    $region7: #{restnet_basic_block_forward.7} parent=1 // loop_footer_branch
      %12 = sbr.rel target = $region3
    $region8: #{restnet_basic_block_forward.7} parent=1 // loop_exit
      _
    %495 = vsyncpa [#allocation3], 1
    %s496 = scalar_lea.sflag [#allocation3], 1
    %497 = vsyncpa %s496, 1

// kernel: restnet_basic_block_forward.4
$region0: #{restnet_basic_block_forward.4}
  #allocation0 [shape = 'u32[]', space=smem, size = 0x4, offset = 0x4, fixed_abs, tag = 'smem constant byte address 0x4 - core index']
  #allocation1 [shape = 'u32[144,128]{1,0:T(1,128)}', space=vmem, size = 0x12000, scoped, tag = 'internal scratch']
  %s0 = inlined_call_operand.vmem [shape: f32[2,18,18,64], index: 0, kind: input, shape index: {}]
  %s1 = inlined_call_operand.vmem [shape: bf16[9,64,64], index: 1, kind: input, shape index: {}]
  %s2 = inlined_call_operand.vmem [shape: f32[512,64], index: 2, kind: output, shape index: {0}]
  %s3 = inlined_call_operand.vmem [shape: f32[2,2,64], index: 3, kind: output, shape index: {1}]
  %4 = xla_tuple %s2, %s3
  %s5 = sld [smem:[#allocation0]]
  $region49: #{restnet_basic_block_forward.4} parent=0
    _
  %s7 = ssub.s32 1, %s5
  %s8 = scalar_select 0, %s7, %s5
  loop: start=0, step=1, limit=4
  $region2: #{restnet_basic_block_forward.4} parent=0 // loop_pre_header
    _
  $region3: #{restnet_basic_block_forward.4} parent=0 // loop_header
    %s10 = sphi 0, %s14
    %p11 = scmp.ge.s32.totalorder %s10, 4
    %s20 = sphi 0, %s22
    %s23 = sphi 0, %s20
    %s24 = sphi 0, %s23
    %s40 = sphi 0, %s24
    %s44 = sphi 0, %s44
    %s46 = sphi 0, %s44
    %s47 = sphi 0, %s46
    %s61 = sphi 0, %s47
    %s67 = sphi 0, %s69
    %s70 = sphi 0, %s67
    %s71 = sphi 0, %s70
    %s87 = sphi 0, %s71
    %s93 = sphi 0, %s95
    %s96 = sphi 0, %s93
    %s97 = sphi 0, %s96
    %s113 = sphi 0, %s97
  $region4: #{restnet_basic_block_forward.4} parent=0 // loop_header_branch
    %13 = sbr.rel (%p11) target = $region8
  $region5: #{restnet_basic_block_forward.4} parent=0 // loop_body
    %s15 = ssub.s32 %s10, 1
    %s16 = ssub.s32 %s10, 2
    %s17 = sadd.s32 %s10, 1
    %s18 = ssub.s32 %s10, %s17
    %p19 = scmp.eq.s32.totalorder %s18, 0
    %s21 = sadd.s32 %s20, 1
    %s22 = scalar_select %p19, %s20, %s21
    %p25 = pneg %p19
    %p26 = scmp.eq.s32.totalorder %s10, 1
    %p27 = por %p25, %p26
    %p28 = scmp.ne.s32.totalorder %s20, %s23
    %p29 = scmp.eq.s32.totalorder %s10, 0
    %p30 = por %p28, %p29
    %p31 = scmp.ne.s32.totalorder %s20, %s23
    %p32 = scmp.eq.s32.totalorder %s15, 1
    %p33 = por %p31, %p32
    %p34 = scmp.ne.s32.totalorder %s23, %s24
    %p35 = scmp.eq.s32.totalorder %s15, 0
    %p36 = por %p34, %p35
    %p37 = scmp.ne.s32.totalorder %s23, %s24
    %p38 = scmp.eq.s32.totalorder %s16, 1
    %p39 = por %p37, %p38
    %p41 = scmp.ne.s32.totalorder %s24, %s40
    %p42 = scmp.eq.s32.totalorder %s16, 0
    %p43 = por %p41, %p42
    %s45 = sadd.s32 %s44, 1
    %p48 = scmp.eq.s32.totalorder %s10, 1
    %p49 = scmp.ne.s32.totalorder %s44, %s46
    %p50 = scmp.eq.s32.totalorder %s10, 0
    %p51 = por %p49, %p50
    %p52 = scmp.ne.s32.totalorder %s44, %s46
    %p53 = scmp.eq.s32.totalorder %s15, 1
    %p54 = por %p52, %p53
    %p55 = scmp.ne.s32.totalorder %s46, %s47
    %p56 = scmp.eq.s32.totalorder %s15, 0
    %p57 = por %p55, %p56
    %p58 = scmp.ne.s32.totalorder %s46, %s47
    %p59 = scmp.eq.s32.totalorder %s16, 1
    %p60 = por %p58, %p59
    %p62 = scmp.ne.s32.totalorder %s47, %s61
    %p63 = scmp.eq.s32.totalorder %s16, 0
    %p64 = por %p62, %p63
    %s65 = ssub.s32 %s10, %s17
    %p66 = scmp.eq.s32.totalorder %s65, 0
    %s68 = sadd.s32 %s67, 1
    %s69 = scalar_select %p66, %s67, %s68
    %p72 = pneg %p66
    %p73 = scmp.eq.s32.totalorder %s10, 1
    %p74 = por %p72, %p73
    %p75 = scmp.ne.s32.totalorder %s67, %s70
    %p76 = scmp.eq.s32.totalorder %s10, 0
    %p77 = por %p75, %p76
    %p78 = scmp.ne.s32.totalorder %s67, %s70
    %p79 = scmp.eq.s32.totalorder %s15, 1
    %p80 = por %p78, %p79
    %p81 = scmp.ne.s32.totalorder %s70, %s71
    %p82 = scmp.eq.s32.totalorder %s15, 0
    %p83 = por %p81, %p82
    %p84 = scmp.ne.s32.totalorder %s70, %s71
    %p85 = scmp.eq.s32.totalorder %s16, 1
    %p86 = por %p84, %p85
    %p88 = scmp.ne.s32.totalorder %s71, %s87
    %p89 = scmp.eq.s32.totalorder %s16, 0
    %p90 = por %p88, %p89
    %s91 = ssub.s32 %s10, %s17
    %p92 = scmp.eq.s32.totalorder %s91, 0
    %s94 = sadd.s32 %s93, 1
    %s95 = scalar_select %p92, %s93, %s94
    %p98 = pneg %p92
    %p99 = scmp.eq.s32.totalorder %s10, 1
    %p100 = por %p98, %p99
    %p101 = scmp.ne.s32.totalorder %s93, %s96
    %p102 = scmp.eq.s32.totalorder %s10, 0
    %p103 = por %p101, %p102
    %p104 = scmp.ne.s32.totalorder %s93, %s96
    %p105 = scmp.eq.s32.totalorder %s15, 1
    %p106 = por %p104, %p105
    %p107 = scmp.ne.s32.totalorder %s96, %s97
    %p108 = scmp.eq.s32.totalorder %s15, 0
    %p109 = por %p107, %p108
    %p110 = scmp.ne.s32.totalorder %s96, %s97
    %p111 = scmp.eq.s32.totalorder %s16, 1
    %p112 = por %p110, %p111
    %p114 = scmp.ne.s32.totalorder %s97, %s113
    %p115 = scmp.eq.s32.totalorder %s16, 0
    %p116 = por %p114, %p115
    %p117 = scmp.le.s32.totalorder 1, %s10
    %p118 = scmp.lt.s32.totalorder %s10, 3
    %p119 = pnand %p117, %p118
    %p120 = pneg %p119
    // Predicated region
    $region9: #{restnet_basic_block_forward.4} parent=5 // pred_check
      _
    $region10: #{restnet_basic_block_forward.4} parent=5 // pred_check_branch
      %122 = sbr.rel (%p119) target = $region12
    $region11: #{restnet_basic_block_forward.4} parent=5 // pred_region
      %s123 = ssub.s32 %s10, 1
      // Predicated region
      $region13: #{restnet_basic_block_forward.4} parent=11 // pred_check
        %p124 = pneg %p57
      $region14: #{restnet_basic_block_forward.4} parent=11 // pred_check_branch
        %126 = sbr.rel (%p124) target = $region16
      $region15: #{restnet_basic_block_forward.4} parent=11 // pred_region
        _
      $region16: #{restnet_basic_block_forward.4} parent=11 // pred_fallthru
        _
    $region12: #{restnet_basic_block_forward.4} parent=5 // pred_fallthru
      _
    %p127 = scmp.lt.s32.totalorder %s10, 2
    // Predicated region
    $region17: #{restnet_basic_block_forward.4} parent=5 // pred_check
      %p128 = pneg %p127
    $region18: #{restnet_basic_block_forward.4} parent=5 // pred_check_branch
      %130 = sbr.rel (%p128) target = $region20
    $region19: #{restnet_basic_block_forward.4} parent=5 // pred_region
      // Predicated region
      $region21: #{restnet_basic_block_forward.4} parent=19 // pred_check
        %p131 = pneg %p30
      $region22: #{restnet_basic_block_forward.4} parent=19 // pred_check_branch
        %133 = sbr.rel (%p131) target = $region24
      $region23: #{restnet_basic_block_forward.4} parent=19 // pred_region
        %p134 = scmp.lt.s32.totalorder %s10, 1
        %s135 = scalar_select %p134, %s10, 1
        %s136 = smul.addr %s135, 54
        %s137 = smul.addr %s136, 8
        %s138 = scalar_lea.vmem %s0, %s137
      $region24: #{restnet_basic_block_forward.4} parent=19 // pred_fallthru
        _
    $region20: #{restnet_basic_block_forward.4} parent=5 // pred_fallthru
      _
    %p139 = scmp.le.s32.totalorder 1, %s10
    %p140 = scmp.lt.s32.totalorder %s10, 3
    %p141 = pnand %p139, %p140
    %p142 = pneg %p141
    // Predicated region
    $region25: #{restnet_basic_block_forward.4} parent=5 // pred_check
      _
    $region26: #{restnet_basic_block_forward.4} parent=5 // pred_check_branch
      %144 = sbr.rel (%p141) target = $region28
    $region27: #{restnet_basic_block_forward.4} parent=5 // pred_region
      %s145 = ssub.s32 %s10, 1
      %p146 = scmp.lt.s32.totalorder %s15, 1
      %s147 = scalar_select %p146, %s15, 1
      %s148 = smul.addr %s147, 54
      %s149 = smul.addr %s148, 8
      %s150 = scalar_lea.vmem %s0, %s149
      %p151 = pneg %p36
      %p152 = pneg %p33
      %p153 = pneg %p57
      %p154 = pneg %p54
      %p155 = pneg %p83
      %p156 = pneg %p80
      %s157 = smul.u32 32, %s15
      %p158 = scmp.lt.s32.totalorder %s157, 63
      %s159 = scalar_select %p158, %s157, 63
      %s160 = smul.addr %s159, 8
      %s161 = scalar_lea.vmem %s2, %s160
      %p162 = pneg %p109
      %p163 = pneg %p106
      %p164 = scmp.lt.s32.totalorder %s15, 1
      %s165 = scalar_select %p164, %s15, 1
      %s166 = smul.addr %s165, 2
      %s167 = scalar_lea.vmem %s3, %s166
      %p168 = scmp.lt.s32.totalorder %s15, 1
      %s169 = scalar_select %p168, %s15, 1
      %s170 = smul.addr %s169, 54
      %s171 = smul.addr %s170, 8
      %s172 = scalar_lea.vmem %s0, %s171
      %s173 = smul.u32 32, %s15
      %p174 = scmp.lt.s32.totalorder %s173, 63
      %s175 = scalar_select %p174, %s173, 63
      %s176 = smul.addr %s175, 8
      %s177 = scalar_lea.vmem %s2, %s176
      %s178 = smul.u32 32, %s15
      %p179 = scmp.lt.s32.totalorder %s15, 1
      %s180 = scalar_select %p179, %s15, 1
      %s181 = smul.addr %s180, 2
      %s182 = scalar_lea.vmem %s3, %s181
      %v184 = vld [vmem:[%s172] sm:$0xff]
      %v185 = vld [vmem:[%s172 + $0x8] sm:$0xff]
      %v186 = vld [vmem:[%s172 + $0x18] sm:$0xff]
      %v187 = vld [vmem:[%s172 + $0x20] sm:$0xff]
      %v188 = vld [vmem:[%s172 + $0x30] sm:$0xff]
      %v189 = vld [vmem:[%s172 + $0x38] sm:$0xff]
      %v190 = vld [vmem:[%s172 + $0x48] sm:$0xff]
      %v191 = vld [vmem:[%s172 + $0x50] sm:$0xff]
      %v192 = vld [vmem:[%s172 + $0x60] sm:$0xff]
      %v193 = vld [vmem:[%s172 + $0x68] sm:$0xff]
      %v194 = vld [vmem:[%s172 + $0x78] sm:$0xff]
      %v195 = vld [vmem:[%s172 + $0x80] sm:$0xff]
      %v196 = vld [vmem:[%s172 + $0x90] sm:$0xff]
      %v197 = vld [vmem:[%s172 + $0x98] sm:$0xff]
      %v198 = vld [vmem:[%s172 + $0xa8] sm:$0xff]
      %v199 = vld [vmem:[%s172 + $0xb0] sm:$0xff]
      %v200 = vld [vmem:[%s172 + $0xc0] sm:$0xff]
      %v201 = vld [vmem:[%s172 + $0xc8] sm:$0xff]
      %v202 = vld [vmem:[%s172 + $0xd8] sm:$0xff]
      %v203 = vld [vmem:[%s172 + $0xe0] sm:$0xff]
      %v204 = vld [vmem:[%s172 + $0xf0] sm:$0xff]
      %v205 = vld [vmem:[%s172 + $0xf8] sm:$0xff]
      %v206 = vld [vmem:[%s172 + $0x108] sm:$0xff]
      %v207 = vld [vmem:[%s172 + $0x110] sm:$0xff]
      %v208 = vld [vmem:[%s172 + $0x120] sm:$0xff]
      %v209 = vld [vmem:[%s172 + $0x128] sm:$0xff]
      %v210 = vld [vmem:[%s172 + $0x138] sm:$0xff]
      %v211 = vld [vmem:[%s172 + $0x140] sm:$0xff]
      %v212 = vld [vmem:[%s172 + $0x150] sm:$0xff]
      %v213 = vld [vmem:[%s172 + $0x158] sm:$0xff]
      %v214 = vld [vmem:[%s172 + $0x168] sm:$0xff]
      %v215 = vld [vmem:[%s172 + $0x170] sm:$0xff]
      %v216 = vpack.c.bf16 %v185, %v184
      %v217 = vpack.c.bf16 %v187, %v186
      %v218 = vpack.c.bf16 %v189, %v188
      %v219 = vpack.c.bf16 %v191, %v190
      %v220 = vpack.c.bf16 %v193, %v192
      %v221 = vpack.c.bf16 %v195, %v194
      %v222 = vpack.c.bf16 %v197, %v196
      %v223 = vpack.c.bf16 %v199, %v198
      %v224 = vpack.c.bf16 %v201, %v200
      %v225 = vpack.c.bf16 %v203, %v202
      %v226 = vpack.c.bf16 %v205, %v204
      %v227 = vpack.c.bf16 %v207, %v206
      %v228 = vpack.c.bf16 %v209, %v208
      %v229 = vpack.c.bf16 %v211, %v210
      %v230 = vpack.c.bf16 %v213, %v212
      %v231 = vpack.c.bf16 %v215, %v214
      %v232 = vld [vmem:[%s1] sm:$0xf]
      %v233 = vld [vmem:[%s1 + $0x4] sm:$0xf]
      %v234 = vld [vmem:[%s1 + $0x8] sm:$0xf]
      %v235 = vld [vmem:[%s1 + $0xc] sm:$0xf]
      %v236 = vld [vmem:[%s1 + $0x10] sm:$0xf]
      %v237 = vld [vmem:[%s1 + $0x14] sm:$0xf]
      %v238 = vld [vmem:[%s1 + $0x18] sm:$0xf]
      %v239 = vld [vmem:[%s1 + $0x1c] sm:$0xf]
      %v240 = vld [vmem:[%s172 + $0x1] sm:$0xff]
      %v241 = vld [vmem:[%s172 + $0x9] sm:$0xff]
      %v242 = vld [vmem:[%s172 + $0x19] sm:$0xff]
      %v243 = vld [vmem:[%s172 + $0x21] sm:$0xff]
      %v244 = vld [vmem:[%s172 + $0x31] sm:$0xff]
      %v245 = vld [vmem:[%s172 + $0x39] sm:$0xff]
      %v246 = vld [vmem:[%s172 + $0x49] sm:$0xff]
      %v247 = vld [vmem:[%s172 + $0x51] sm:$0xff]
      %v248 = vld [vmem:[%s172 + $0x61] sm:$0xff]
      %v249 = vld [vmem:[%s172 + $0x69] sm:$0xff]
      %v250 = vld [vmem:[%s172 + $0x79] sm:$0xff]
      %v251 = vld [vmem:[%s172 + $0x81] sm:$0xff]
      %v252 = vld [vmem:[%s172 + $0x91] sm:$0xff]
      %v253 = vld [vmem:[%s172 + $0x99] sm:$0xff]
      %v254 = vld [vmem:[%s172 + $0xa9] sm:$0xff]
      %v255 = vld [vmem:[%s172 + $0xb1] sm:$0xff]
      %v256 = vld [vmem:[%s172 + $0xc1] sm:$0xff]
      %v257 = vld [vmem:[%s172 + $0xc9] sm:$0xff]
      %v258 = vld [vmem:[%s172 + $0xd9] sm:$0xff]
      %v259 = vld [vmem:[%s172 + $0xe1] sm:$0xff]
      %v260 = vld [vmem:[%s172 + $0xf1] sm:$0xff]
      %v261 = vld [vmem:[%s172 + $0xf9] sm:$0xff]
      %v262 = vld [vmem:[%s172 + $0x109] sm:$0xff]
      %v263 = vld [vmem:[%s172 + $0x111] sm:$0xff]
      %v264 = vld [vmem:[%s172 + $0x121] sm:$0xff]
      %v265 = vld [vmem:[%s172 + $0x129] sm:$0xff]
      %v266 = vld [vmem:[%s172 + $0x139] sm:$0xff]
      %v267 = vld [vmem:[%s172 + $0x141] sm:$0xff]
      %v268 = vld [vmem:[%s172 + $0x151] sm:$0xff]
      %v269 = vld [vmem:[%s172 + $0x159] sm:$0xff]
      %v270 = vld [vmem:[%s172 + $0x169] sm:$0xff]
      %v271 = vld [vmem:[%s172 + $0x171] sm:$0xff]
      %v272 = vpack.c.bf16 %v241, %v240
      %v273 = vpack.c.bf16 %v243, %v242
      %v274 = vpack.c.bf16 %v245, %v244
      %v275 = vpack.c.bf16 %v247, %v246
      %v276 = vpack.c.bf16 %v249, %v248
      %v277 = vpack.c.bf16 %v251, %v250
      %v278 = vpack.c.bf16 %v253, %v252
      %v279 = vpack.c.bf16 %v255, %v254
      %v280 = vpack.c.bf16 %v257, %v256
      %v281 = vpack.c.bf16 %v259, %v258
      %v282 = vpack.c.bf16 %v261, %v260
      %v283 = vpack.c.bf16 %v263, %v262
      %v284 = vpack.c.bf16 %v265, %v264
      %v285 = vpack.c.bf16 %v267, %v266
      %v286 = vpack.c.bf16 %v269, %v268
      %v287 = vpack.c.bf16 %v271, %v270
      %s288 = scalar_lea.vmem %s1, 32
      %v289 = vld [vmem:[%s288] sm:$0xf]
      %v290 = vld [vmem:[%s288 + $0x4] sm:$0xf]
      %v291 = vld [vmem:[%s288 + $0x8] sm:$0xf]
      %v292 = vld [vmem:[%s288 + $0xc] sm:$0xf]
      %v293 = vld [vmem:[%s288 + $0x10] sm:$0xf]
      %v294 = vld [vmem:[%s288 + $0x14] sm:$0xf]
      %v295 = vld [vmem:[%s288 + $0x18] sm:$0xf]
      %v296 = vld [vmem:[%s288 + $0x1c] sm:$0xf]
      %v305 = vunpack.c.l.b16 %v289
      %v306 = vunpack.c.l.b16 %v290
      %v307 = vunpack.c.l.b16 %v291
      %v308 = vunpack.c.l.b16 %v292
      %v309 = vunpack.c.l.b16 %v293
      %v310 = vunpack.c.l.b16 %v294
      %v311 = vunpack.c.l.b16 %v295
      %v312 = vunpack.c.l.b16 %v296
      %v313 = vpack.c.b16 %v306, %v305
      %v314 = vpack.c.b16 %v308, %v307
      %v315 = vpack.c.b16 %v310, %v309
      %v316 = vpack.c.b16 %v312, %v311
      %vm321 = vcmask 523264
      %v323 = vsel %vm321, %v272, 0
      %v326 = vsel %vm321, %v273, 0
      %v329 = vsel %vm321, %v274, 0
      %v332 = vsel %vm321, %v275, 0
      %v335 = vsel %vm321, %v276, 0
      %v338 = vsel %vm321, %v277, 0
      %v341 = vsel %vm321, %v278, 0
      %v344 = vsel %vm321, %v279, 0
      %v347 = vsel %vm321, %v280, 0
      %v350 = vsel %vm321, %v281, 0
      %v353 = vsel %vm321, %v282, 0
      %v356 = vsel %vm321, %v283, 0
      %v359 = vsel %vm321, %v284, 0
      %v362 = vsel %vm321, %v285, 0
      %v365 = vsel %vm321, %v286, 0
      %v368 = vsel %vm321, %v287, 0
      %370 = vmatprep.subr.bf16.mxu0 0
      %371 = vmatpush1.bf16.msra.mxu0 0
      %372 = vmatprep.subr.bf16.mxu0 0
      %373 = vmatpush1.bf16.msra.mxu0 0
      %374 = vmatprep.subr.bf16.mxu0 0
      %375 = vmatpush1.bf16.msra.mxu0 0
      %376 = vmatprep.subr.bf16.mxu0 0
      %377 = vmatpush1.bf16.msra.mxu0 0
      %378 = vmatprep.subr.bf16.mxu0 0
      %379 = vmatpush1.bf16.msra.mxu0 %v316
      %380 = vmatprep.subr.bf16.mxu0 0
      %381 = vmatpush1.bf16.msra.mxu0 %v315
      %382 = vmatprep.subr.bf16.mxu0 0
      %383 = vmatpush1.bf16.msra.mxu0 %v314
      %384 = vmatprep.subr.bf16.mxu0 0
      %385 = vmatpush1.bf16.msra.mxu0 %v313
      %386 = vmatprep.subr.bf16.mxu0 0
      %387 = vmatpush2.bf16.msra.mxu0 0
      %388 = vmatprep.subr.bf16.mxu0 0
      %389 = vmatpush2.bf16.msra.mxu0 0
      %390 = vmatprep.subr.bf16.mxu0 0
      %391 = vmatpush2.bf16.msra.mxu0 0
      %392 = vmatprep.subr.bf16.mxu0 0
      %393 = vmatpush2.bf16.msra.mxu0 0
      %394 = vmatprep.subr.bf16.mxu0 0
      %395 = vmatpush2.bf16.msra.mxu0 0
      %396 = vmatprep.subr.bf16.mxu0 0
      %397 = vmatpush2.bf16.msra.mxu0 0
      %398 = vmatprep.subr.bf16.mxu0 0
      %399 = vmatpush2.bf16.msra.mxu0 0
      %400 = vmatprep.subr.bf16.mxu0 0
      %401 = vmatpush2.bf16.msra.mxu0 0
      %402 = vmatprep.mubr.bf16.mxu0 0
      %403 = vmatmul.mubr.bf16.gmra.mxu0 %v323
      %v404 = vpop.f32.mrf.mxu0
      %v405 = vadd.f32 0.0, %v404
      %v406 = vpop.f32.mrf.mxu0
      %v407 = vpop.f32.mrf.mxu0
      %v408 = vadd.f32 0.0, %v407
      %v409 = vpop.f32.mrf.mxu0
      %410 = vmatprep.mubr.bf16.mxu0 0
      %411 = vmatmul.mubr.bf16.gmra.mxu0 %v326
      %v412 = vpop.f32.mrf.mxu0
      %v413 = vadd.f32 0.0, %v412
      %v414 = vpop.f32.mrf.mxu0
      %v415 = vpop.f32.mrf.mxu0
      %v416 = vadd.f32 0.0, %v415
      %v417 = vpop.f32.mrf.mxu0
      %418 = vmatprep.mubr.bf16.mxu0 0
      %419 = vmatmul.mubr.bf16.gmra.mxu0 %v329
      %v420 = vpop.f32.mrf.mxu0
      %v421 = vadd.f32 0.0, %v420
      %v422 = vpop.f32.mrf.mxu0
      %v423 = vpop.f32.mrf.mxu0
      %v424 = vadd.f32 0.0, %v423
      %v425 = vpop.f32.mrf.mxu0
      %426 = vmatprep.mubr.bf16.mxu0 0
      %427 = vmatmul.mubr.bf16.gmra.mxu0 %v332
      %v428 = vpop.f32.mrf.mxu0
      %v429 = vadd.f32 0.0, %v428
      %v430 = vpop.f32.mrf.mxu0
      %v431 = vpop.f32.mrf.mxu0
      %v432 = vadd.f32 0.0, %v431
      %v433 = vpop.f32.mrf.mxu0
      %434 = vmatprep.mubr.bf16.mxu0 0
      %435 = vmatmul.mubr.bf16.gmra.mxu0 %v335
      %v436 = vpop.f32.mrf.mxu0
      %v437 = vadd.f32 0.0, %v436
      %v438 = vpop.f32.mrf.mxu0
      %v439 = vpop.f32.mrf.mxu0
      %v440 = vadd.f32 0.0, %v439
      %v441 = vpop.f32.mrf.mxu0
      %442 = vmatprep.mubr.bf16.mxu0 0
      %443 = vmatmul.mubr.bf16.gmra.mxu0 %v338
      %v444 = vpop.f32.mrf.mxu0
      %v445 = vadd.f32 0.0, %v444
      %v446 = vpop.f32.mrf.mxu0
      %v447 = vpop.f32.mrf.mxu0
      %v448 = vadd.f32 0.0, %v447
      %v449 = vpop.f32.mrf.mxu0
      %450 = vmatprep.mubr.bf16.mxu0 0
      %451 = vmatmul.mubr.bf16.gmra.mxu0 %v341
      %v452 = vpop.f32.mrf.mxu0
      %v453 = vadd.f32 0.0, %v452
      %v454 = vpop.f32.mrf.mxu0
      %v455 = vpop.f32.mrf.mxu0
      %v456 = vadd.f32 0.0, %v455
      %v457 = vpop.f32.mrf.mxu0
      %458 = vmatprep.mubr.bf16.mxu0 0
      %459 = vmatmul.mubr.bf16.gmra.mxu0 %v344
      %v460 = vpop.f32.mrf.mxu0
      %v461 = vadd.f32 0.0, %v460
      %v462 = vpop.f32.mrf.mxu0
      %v463 = vpop.f32.mrf.mxu0
      %v464 = vadd.f32 0.0, %v463
      %v465 = vpop.f32.mrf.mxu0
      %466 = vmatprep.mubr.bf16.mxu0 0
      %467 = vmatmul.mubr.bf16.gmra.mxu0 %v347
      %v468 = vpop.f32.mrf.mxu0
      %v469 = vadd.f32 0.0, %v468
      %v470 = vpop.f32.mrf.mxu0
      %v471 = vpop.f32.mrf.mxu0
      %v472 = vadd.f32 0.0, %v471
      %v473 = vpop.f32.mrf.mxu0
      %474 = vmatprep.mubr.bf16.mxu0 0
      %475 = vmatmul.mubr.bf16.gmra.mxu0 %v350
      %v476 = vpop.f32.mrf.mxu0
      %v477 = vadd.f32 0.0, %v476
      %v478 = vpop.f32.mrf.mxu0
      %v479 = vpop.f32.mrf.mxu0
      %v480 = vadd.f32 0.0, %v479
      %v481 = vpop.f32.mrf.mxu0
      %482 = vmatprep.mubr.bf16.mxu0 0
      %483 = vmatmul.mubr.bf16.gmra.mxu0 %v353
      %v484 = vpop.f32.mrf.mxu0
      %v485 = vadd.f32 0.0, %v484
      %v486 = vpop.f32.mrf.mxu0
      %v487 = vpop.f32.mrf.mxu0
      %v488 = vadd.f32 0.0, %v487
      %v489 = vpop.f32.mrf.mxu0
      %490 = vmatprep.mubr.bf16.mxu0 0
      %491 = vmatmul.mubr.bf16.gmra.mxu0 %v356
      %v492 = vpop.f32.mrf.mxu0
      %v493 = vadd.f32 0.0, %v492
      %v494 = vpop.f32.mrf.mxu0
      %v495 = vpop.f32.mrf.mxu0
      %v496 = vadd.f32 0.0, %v495
      %v497 = vpop.f32.mrf.mxu0
      %498 = vmatprep.mubr.bf16.mxu0 0
      %499 = vmatmul.mubr.bf16.gmra.mxu0 %v359
      %v500 = vpop.f32.mrf.mxu0
      %v501 = vadd.f32 0.0, %v500
      %v502 = vpop.f32.mrf.mxu0
      %v503 = vpop.f32.mrf.mxu0
      %v504 = vadd.f32 0.0, %v503
      %v505 = vpop.f32.mrf.mxu0
      %506 = vmatprep.mubr.bf16.mxu0 0
      %507 = vmatmul.mubr.bf16.gmra.mxu0 %v362
      %v508 = vpop.f32.mrf.mxu0
      %v509 = vadd.f32 0.0, %v508
      %v510 = vpop.f32.mrf.mxu0
      %v511 = vpop.f32.mrf.mxu0
      %v512 = vadd.f32 0.0, %v511
      %v513 = vpop.f32.mrf.mxu0
      %514 = vmatprep.mubr.bf16.mxu0 0
      %515 = vmatmul.mubr.bf16.gmra.mxu0 %v365
      %v516 = vpop.f32.mrf.mxu0
      %v517 = vadd.f32 0.0, %v516
      %v518 = vpop.f32.mrf.mxu0
      %v519 = vpop.f32.mrf.mxu0
      %v520 = vadd.f32 0.0, %v519
      %v521 = vpop.f32.mrf.mxu0
      %522 = vmatprep.mubr.bf16.mxu0 0
      %523 = vmatmul.mubr.bf16.gmra.mxu0 %v368
      %v524 = vpop.f32.mrf.mxu0
      %v525 = vadd.f32 0.0, %v524
      %v526 = vpop.f32.mrf.mxu0
      %v527 = vpop.f32.mrf.mxu0
      %v528 = vadd.f32 0.0, %v527
      %v529 = vpop.f32.mrf.mxu0
      %530 = vdwg.mxu0
      %v539 = vunpack.c.l.b16 %v232
      %v540 = vunpack.c.l.b16 %v233
      %v541 = vunpack.c.l.b16 %v234
      %v542 = vunpack.c.l.b16 %v235
      %v543 = vunpack.c.l.b16 %v236
      %v544 = vunpack.c.l.b16 %v237
      %v545 = vunpack.c.l.b16 %v238
      %v546 = vunpack.c.l.b16 %v239
      %v547 = vpack.c.b16 %v540, %v539
      %v548 = vpack.c.b16 %v542, %v541
      %v549 = vpack.c.b16 %v544, %v543
      %v550 = vpack.c.b16 %v546, %v545
      %v556 = vsel %vm321, %v216, 0
      %v559 = vsel %vm321, %v217, 0
      %v562 = vsel %vm321, %v218, 0
      %v565 = vsel %vm321, %v219, 0
      %v568 = vsel %vm321, %v220, 0
      %v571 = vsel %vm321, %v221, 0
      %v574 = vsel %vm321, %v222, 0
      %v577 = vsel %vm321, %v223, 0
      %v580 = vsel %vm321, %v224, 0
      %v583 = vsel %vm321, %v225, 0
      %v586 = vsel %vm321, %v226, 0
      %v589 = vsel %vm321, %v227, 0
      %v592 = vsel %vm321, %v228, 0
      %v595 = vsel %vm321, %v229, 0
      %v598 = vsel %vm321, %v230, 0
      %v601 = vsel %vm321, %v231, 0
      %603 = vmatprep.subr.bf16.mxu0 0
      %604 = vmatpush1.bf16.msra.mxu0 0
      %605 = vmatprep.subr.bf16.mxu0 0
      %606 = vmatpush1.bf16.msra.mxu0 0
      %607 = vmatprep.subr.bf16.mxu0 0
      %608 = vmatpush1.bf16.msra.mxu0 0
      %609 = vmatprep.subr.bf16.mxu0 0
      %610 = vmatpush1.bf16.msra.mxu0 0
      %611 = vmatprep.subr.bf16.mxu0 0
      %612 = vmatpush1.bf16.msra.mxu0 %v550
      %613 = vmatprep.subr.bf16.mxu0 0
      %614 = vmatpush1.bf16.msra.mxu0 %v549
      %615 = vmatprep.subr.bf16.mxu0 0
      %616 = vmatpush1.bf16.msra.mxu0 %v548
      %617 = vmatprep.subr.bf16.mxu0 0
      %618 = vmatpush1.bf16.msra.mxu0 %v547
      %619 = vmatprep.subr.bf16.mxu0 0
      %620 = vmatpush2.bf16.msra.mxu0 0
      %621 = vmatprep.subr.bf16.mxu0 0
      %622 = vmatpush2.bf16.msra.mxu0 0
      %623 = vmatprep.subr.bf16.mxu0 0
      %624 = vmatpush2.bf16.msra.mxu0 0
      %625 = vmatprep.subr.bf16.mxu0 0
      %626 = vmatpush2.bf16.msra.mxu0 0
      %627 = vmatprep.subr.bf16.mxu0 0
      %628 = vmatpush2.bf16.msra.mxu0 0
      %629 = vmatprep.subr.bf16.mxu0 0
      %630 = vmatpush2.bf16.msra.mxu0 0
      %631 = vmatprep.subr.bf16.mxu0 0
      %632 = vmatpush2.bf16.msra.mxu0 0
      %633 = vmatprep.subr.bf16.mxu0 0
      %634 = vmatpush2.bf16.msra.mxu0 0
      %635 = vmatprep.mubr.bf16.mxu0 0
      %636 = vmatmul.mubr.bf16.gmra.mxu0 %v556
      %v637 = vpop.f32.mrf.mxu0
      %v638 = vadd.f32 %v405, %v637
      %v639 = vpop.f32.mrf.mxu0
      %v640 = vpop.f32.mrf.mxu0
      %v641 = vadd.f32 %v408, %v640
      %v642 = vpop.f32.mrf.mxu0
      %643 = vmatprep.mubr.bf16.mxu0 0
      %644 = vmatmul.mubr.bf16.gmra.mxu0 %v559
      %v645 = vpop.f32.mrf.mxu0
      %v646 = vadd.f32 %v413, %v645
      %v647 = vpop.f32.mrf.mxu0
      %v648 = vpop.f32.mrf.mxu0
      %v649 = vadd.f32 %v416, %v648
      %v650 = vpop.f32.mrf.mxu0
      %651 = vmatprep.mubr.bf16.mxu0 0
      %652 = vmatmul.mubr.bf16.gmra.mxu0 %v562
      %v653 = vpop.f32.mrf.mxu0
      %v654 = vadd.f32 %v421, %v653
      %v655 = vpop.f32.mrf.mxu0
      %v656 = vpop.f32.mrf.mxu0
      %v657 = vadd.f32 %v424, %v656
      %v658 = vpop.f32.mrf.mxu0
      %659 = vmatprep.mubr.bf16.mxu0 0
      %660 = vmatmul.mubr.bf16.gmra.mxu0 %v565
      %v661 = vpop.f32.mrf.mxu0
      %v662 = vadd.f32 %v429, %v661
      %v663 = vpop.f32.mrf.mxu0
      %v664 = vpop.f32.mrf.mxu0
      %v665 = vadd.f32 %v432, %v664
      %v666 = vpop.f32.mrf.mxu0
      %667 = vmatprep.mubr.bf16.mxu0 0
      %668 = vmatmul.mubr.bf16.gmra.mxu0 %v568
      %v669 = vpop.f32.mrf.mxu0
      %v670 = vadd.f32 %v437, %v669
      %v671 = vpop.f32.mrf.mxu0
      %v672 = vpop.f32.mrf.mxu0
      %v673 = vadd.f32 %v440, %v672
      %v674 = vpop.f32.mrf.mxu0
      %675 = vmatprep.mubr.bf16.mxu0 0
      %676 = vmatmul.mubr.bf16.gmra.mxu0 %v571
      %v677 = vpop.f32.mrf.mxu0
      %v678 = vadd.f32 %v445, %v677
      %v679 = vpop.f32.mrf.mxu0
      %v680 = vpop.f32.mrf.mxu0
      %v681 = vadd.f32 %v448, %v680
      %v682 = vpop.f32.mrf.mxu0
      %683 = vmatprep.mubr.bf16.mxu0 0
      %684 = vmatmul.mubr.bf16.gmra.mxu0 %v574
      %v685 = vpop.f32.mrf.mxu0
      %v686 = vadd.f32 %v453, %v685
      %v687 = vpop.f32.mrf.mxu0
      %v688 = vpop.f32.mrf.mxu0
      %v689 = vadd.f32 %v456, %v688
      %v690 = vpop.f32.mrf.mxu0
      %691 = vmatprep.mubr.bf16.mxu0 0
      %692 = vmatmul.mubr.bf16.gmra.mxu0 %v577
      %v693 = vpop.f32.mrf.mxu0
      %v694 = vadd.f32 %v461, %v693
      %v695 = vpop.f32.mrf.mxu0
      %v696 = vpop.f32.mrf.mxu0
      %v697 = vadd.f32 %v464, %v696
      %v698 = vpop.f32.mrf.mxu0
      %699 = vmatprep.mubr.bf16.mxu0 0
      %700 = vmatmul.mubr.bf16.gmra.mxu0 %v580
      %v701 = vpop.f32.mrf.mxu0
      %v702 = vadd.f32 %v469, %v701
      %v703 = vpop.f32.mrf.mxu0
      %v704 = vpop.f32.mrf.mxu0
      %v705 = vadd.f32 %v472, %v704
      %v706 = vpop.f32.mrf.mxu0
      %707 = vmatprep.mubr.bf16.mxu0 0
      %708 = vmatmul.mubr.bf16.gmra.mxu0 %v583
      %v709 = vpop.f32.mrf.mxu0
      %v710 = vadd.f32 %v477, %v709
      %v711 = vpop.f32.mrf.mxu0
      %v712 = vpop.f32.mrf.mxu0
      %v713 = vadd.f32 %v480, %v712
      %v714 = vpop.f32.mrf.mxu0
      %715 = vmatprep.mubr.bf16.mxu0 0
      %716 = vmatmul.mubr.bf16.gmra.mxu0 %v586
      %v717 = vpop.f32.mrf.mxu0
      %v718 = vadd.f32 %v485, %v717
      %v719 = vpop.f32.mrf.mxu0
      %v720 = vpop.f32.mrf.mxu0
      %v721 = vadd.f32 %v488, %v720
      %v722 = vpop.f32.mrf.mxu0
      %723 = vmatprep.mubr.bf16.mxu0 0
      %724 = vmatmul.mubr.bf16.gmra.mxu0 %v589
      %v725 = vpop.f32.mrf.mxu0
      %v726 = vadd.f32 %v493, %v725
      %v727 = vpop.f32.mrf.mxu0
      %v728 = vpop.f32.mrf.mxu0
      %v729 = vadd.f32 %v496, %v728
      %v730 = vpop.f32.mrf.mxu0
      %731 = vmatprep.mubr.bf16.mxu0 0
      %732 = vmatmul.mubr.bf16.gmra.mxu0 %v592
      %v733 = vpop.f32.mrf.mxu0
      %v734 = vadd.f32 %v501, %v733
      %v735 = vpop.f32.mrf.mxu0
      %v736 = vpop.f32.mrf.mxu0
      %v737 = vadd.f32 %v504, %v736
      %v738 = vpop.f32.mrf.mxu0
      %739 = vmatprep.mubr.bf16.mxu0 0
      %740 = vmatmul.mubr.bf16.gmra.mxu0 %v595
      %v741 = vpop.f32.mrf.mxu0
      %v742 = vadd.f32 %v509, %v741
      %v743 = vpop.f32.mrf.mxu0
      %v744 = vpop.f32.mrf.mxu0
      %v745 = vadd.f32 %v512, %v744
      %v746 = vpop.f32.mrf.mxu0
      %747 = vmatprep.mubr.bf16.mxu0 0
      %748 = vmatmul.mubr.bf16.gmra.mxu0 %v598
      %v749 = vpop.f32.mrf.mxu0
      %v750 = vadd.f32 %v517, %v749
      %v751 = vpop.f32.mrf.mxu0
      %v752 = vpop.f32.mrf.mxu0
      %v753 = vadd.f32 %v520, %v752
      %v754 = vpop.f32.mrf.mxu0
      %755 = vmatprep.mubr.bf16.mxu0 0
      %756 = vmatmul.mubr.bf16.gmra.mxu0 %v601
      %v757 = vpop.f32.mrf.mxu0
      %v758 = vadd.f32 %v525, %v757
      %v759 = vpop.f32.mrf.mxu0
      %v760 = vpop.f32.mrf.mxu0
      %v761 = vadd.f32 %v528, %v760
      %v762 = vpop.f32.mrf.mxu0
      %763 = vdwg.mxu0
      %v764 = vld [vmem:[%s172 + $0x2] sm:$0xff]
      %v765 = vld [vmem:[%s172 + $0xa] sm:$0xff]
      %v766 = vld [vmem:[%s172 + $0x1a] sm:$0xff]
      %v767 = vld [vmem:[%s172 + $0x22] sm:$0xff]
      %v768 = vld [vmem:[%s172 + $0x32] sm:$0xff]
      %v769 = vld [vmem:[%s172 + $0x3a] sm:$0xff]
      %v770 = vld [vmem:[%s172 + $0x4a] sm:$0xff]
      %v771 = vld [vmem:[%s172 + $0x52] sm:$0xff]
      %v772 = vld [vmem:[%s172 + $0x62] sm:$0xff]
      %v773 = vld [vmem:[%s172 + $0x6a] sm:$0xff]
      %v774 = vld [vmem:[%s172 + $0x7a] sm:$0xff]
      %v775 = vld [vmem:[%s172 + $0x82] sm:$0xff]
      %v776 = vld [vmem:[%s172 + $0x92] sm:$0xff]
      %v777 = vld [vmem:[%s172 + $0x9a] sm:$0xff]
      %v778 = vld [vmem:[%s172 + $0xaa] sm:$0xff]
      %v779 = vld [vmem:[%s172 + $0xb2] sm:$0xff]
      %v780 = vld [vmem:[%s172 + $0xc2] sm:$0xff]
      %v781 = vld [vmem:[%s172 + $0xca] sm:$0xff]
      %v782 = vld [vmem:[%s172 + $0xda] sm:$0xff]
      %v783 = vld [vmem:[%s172 + $0xe2] sm:$0xff]
      %v784 = vld [vmem:[%s172 + $0xf2] sm:$0xff]
      %v785 = vld [vmem:[%s172 + $0xfa] sm:$0xff]
      %v786 = vld [vmem:[%s172 + $0x10a] sm:$0xff]
      %v787 = vld [vmem:[%s172 + $0x112] sm:$0xff]
      %v788 = vld [vmem:[%s172 + $0x122] sm:$0xff]
      %v789 = vld [vmem:[%s172 + $0x12a] sm:$0xff]
      %v790 = vld [vmem:[%s172 + $0x13a] sm:$0xff]
      %v791 = vld [vmem:[%s172 + $0x142] sm:$0xff]
      %v792 = vld [vmem:[%s172 + $0x152] sm:$0xff]
      %v793 = vld [vmem:[%s172 + $0x15a] sm:$0xff]
      %v794 = vld [vmem:[%s172 + $0x16a] sm:$0xff]
      %v795 = vld [vmem:[%s172 + $0x172] sm:$0xff]
      %v796 = vpack.c.bf16 %v765, %v764
      %v797 = vpack.c.bf16 %v767, %v766
      %v798 = vpack.c.bf16 %v769, %v768
      %v799 = vpack.c.bf16 %v771, %v770
      %v800 = vpack.c.bf16 %v773, %v772
      %v801 = vpack.c.bf16 %v775, %v774
      %v802 = vpack.c.bf16 %v777, %v776
      %v803 = vpack.c.bf16 %v779, %v778
      %v804 = vpack.c.bf16 %v781, %v780
      %v805 = vpack.c.bf16 %v783, %v782
      %v806 = vpack.c.bf16 %v785, %v784
      %v807 = vpack.c.bf16 %v787, %v786
      %v808 = vpack.c.bf16 %v789, %v788
      %v809 = vpack.c.bf16 %v791, %v790
      %v810 = vpack.c.bf16 %v793, %v792
      %v811 = vpack.c.bf16 %v795, %v794
      %s812 = scalar_lea.vmem %s1, 64
      %v813 = vld [vmem:[%s812] sm:$0xf]
      %v814 = vld [vmem:[%s812 + $0x4] sm:$0xf]
      %v815 = vld [vmem:[%s812 + $0x8] sm:$0xf]
      %v816 = vld [vmem:[%s812 + $0xc] sm:$0xf]
      %v817 = vld [vmem:[%s812 + $0x10] sm:$0xf]
      %v818 = vld [vmem:[%s812 + $0x14] sm:$0xf]
      %v819 = vld [vmem:[%s812 + $0x18] sm:$0xf]
      %v820 = vld [vmem:[%s812 + $0x1c] sm:$0xf]
      %v829 = vunpack.c.l.b16 %v813
      %v830 = vunpack.c.l.b16 %v814
      %v831 = vunpack.c.l.b16 %v815
      %v832 = vunpack.c.l.b16 %v816
      %v833 = vunpack.c.l.b16 %v817
      %v834 = vunpack.c.l.b16 %v818
      %v835 = vunpack.c.l.b16 %v819
      %v836 = vunpack.c.l.b16 %v820
      %v837 = vpack.c.b16 %v830, %v829
      %v838 = vpack.c.b16 %v832, %v831
      %v839 = vpack.c.b16 %v834, %v833
      %v840 = vpack.c.b16 %v836, %v835
      %v846 = vsel %vm321, %v796, 0
      %v849 = vsel %vm321, %v797, 0
      %v852 = vsel %vm321, %v798, 0
      %v855 = vsel %vm321, %v799, 0
      %v858 = vsel %vm321, %v800, 0
      %v861 = vsel %vm321, %v801, 0
      %v864 = vsel %vm321, %v802, 0
      %v867 = vsel %vm321, %v803, 0
      %v870 = vsel %vm321, %v804, 0
      %v873 = vsel %vm321, %v805, 0
      %v876 = vsel %vm321, %v806, 0
      %v879 = vsel %vm321, %v807, 0
      %v882 = vsel %vm321, %v808, 0
      %v885 = vsel %vm321, %v809, 0
      %v888 = vsel %vm321, %v810, 0
      %v891 = vsel %vm321, %v811, 0
      %893 = vmatprep.subr.bf16.mxu0 0
      %894 = vmatpush1.bf16.msra.mxu0 0
      %895 = vmatprep.subr.bf16.mxu0 0
      %896 = vmatpush1.bf16.msra.mxu0 0
      %897 = vmatprep.subr.bf16.mxu0 0
      %898 = vmatpush1.bf16.msra.mxu0 0
      %899 = vmatprep.subr.bf16.mxu0 0
      %900 = vmatpush1.bf16.msra.mxu0 0
      %901 = vmatprep.subr.bf16.mxu0 0
      %902 = vmatpush1.bf16.msra.mxu0 %v840
      %903 = vmatprep.subr.bf16.mxu0 0
      %904 = vmatpush1.bf16.msra.mxu0 %v839
      %905 = vmatprep.subr.bf16.mxu0 0
      %906 = vmatpush1.bf16.msra.mxu0 %v838
      %907 = vmatprep.subr.bf16.mxu0 0
      %908 = vmatpush1.bf16.msra.mxu0 %v837
      %909 = vmatprep.subr.bf16.mxu0 0
      %910 = vmatpush2.bf16.msra.mxu0 0
      %911 = vmatprep.subr.bf16.mxu0 0
      %912 = vmatpush2.bf16.msra.mxu0 0
      %913 = vmatprep.subr.bf16.mxu0 0
      %914 = vmatpush2.bf16.msra.mxu0 0
      %915 = vmatprep.subr.bf16.mxu0 0
      %916 = vmatpush2.bf16.msra.mxu0 0
      %917 = vmatprep.subr.bf16.mxu0 0
      %918 = vmatpush2.bf16.msra.mxu0 0
      %919 = vmatprep.subr.bf16.mxu0 0
      %920 = vmatpush2.bf16.msra.mxu0 0
      %921 = vmatprep.subr.bf16.mxu0 0
      %922 = vmatpush2.bf16.msra.mxu0 0
      %923 = vmatprep.subr.bf16.mxu0 0
      %924 = vmatpush2.bf16.msra.mxu0 0
      %925 = vmatprep.mubr.bf16.mxu0 0
      %926 = vmatmul.mubr.bf16.gmra.mxu0 %v846
      %v927 = vpop.f32.mrf.mxu0
      %v928 = vadd.f32 0.0, %v927
      %v929 = vpop.f32.mrf.mxu0
      %v930 = vpop.f32.mrf.mxu0
      %v931 = vadd.f32 0.0, %v930
      %v932 = vpop.f32.mrf.mxu0
      %933 = vmatprep.mubr.bf16.mxu0 0
      %934 = vmatmul.mubr.bf16.gmra.mxu0 %v849
      %v935 = vpop.f32.mrf.mxu0
      %v936 = vadd.f32 0.0, %v935
      %v937 = vpop.f32.mrf.mxu0
      %v938 = vpop.f32.mrf.mxu0
      %v939 = vadd.f32 0.0, %v938
      %v940 = vpop.f32.mrf.mxu0
      %941 = vmatprep.mubr.bf16.mxu0 0
      %942 = vmatmul.mubr.bf16.gmra.mxu0 %v852
      %v943 = vpop.f32.mrf.mxu0
      %v944 = vadd.f32 0.0, %v943
      %v945 = vpop.f32.mrf.mxu0
      %v946 = vpop.f32.mrf.mxu0
      %v947 = vadd.f32 0.0, %v946
      %v948 = vpop.f32.mrf.mxu0
      %949 = vmatprep.mubr.bf16.mxu0 0
      %950 = vmatmul.mubr.bf16.gmra.mxu0 %v855
      %v951 = vpop.f32.mrf.mxu0
      %v952 = vadd.f32 0.0, %v951
      %v953 = vpop.f32.mrf.mxu0
      %v954 = vpop.f32.mrf.mxu0
      %v955 = vadd.f32 0.0, %v954
      %v956 = vpop.f32.mrf.mxu0
      %957 = vmatprep.mubr.bf16.mxu0 0
      %958 = vmatmul.mubr.bf16.gmra.mxu0 %v858
      %v959 = vpop.f32.mrf.mxu0
      %v960 = vadd.f32 0.0, %v959
      %v961 = vpop.f32.mrf.mxu0
      %v962 = vpop.f32.mrf.mxu0
      %v963 = vadd.f32 0.0, %v962
      %v964 = vpop.f32.mrf.mxu0
      %965 = vmatprep.mubr.bf16.mxu0 0
      %966 = vmatmul.mubr.bf16.gmra.mxu0 %v861
      %v967 = vpop.f32.mrf.mxu0
      %v968 = vadd.f32 0.0, %v967
      %v969 = vpop.f32.mrf.mxu0
      %v970 = vpop.f32.mrf.mxu0
      %v971 = vadd.f32 0.0, %v970
      %v972 = vpop.f32.mrf.mxu0
      %973 = vmatprep.mubr.bf16.mxu0 0
      %974 = vmatmul.mubr.bf16.gmra.mxu0 %v864
      %v975 = vpop.f32.mrf.mxu0
      %v976 = vadd.f32 0.0, %v975
      %v977 = vpop.f32.mrf.mxu0
      %v978 = vpop.f32.mrf.mxu0
      %v979 = vadd.f32 0.0, %v978
      %v980 = vpop.f32.mrf.mxu0
      %981 = vmatprep.mubr.bf16.mxu0 0
      %982 = vmatmul.mubr.bf16.gmra.mxu0 %v867
      %v983 = vpop.f32.mrf.mxu0
      %v984 = vadd.f32 0.0, %v983
      %v985 = vpop.f32.mrf.mxu0
      %v986 = vpop.f32.mrf.mxu0
      %v987 = vadd.f32 0.0, %v986
      %v988 = vpop.f32.mrf.mxu0
      %989 = vmatprep.mubr.bf16.mxu0 0
      %990 = vmatmul.mubr.bf16.gmra.mxu0 %v870
      %v991 = vpop.f32.mrf.mxu0
      %v992 = vadd.f32 0.0, %v991
      %v993 = vpop.f32.mrf.mxu0
      %v994 = vpop.f32.mrf.mxu0
      %v995 = vadd.f32 0.0, %v994
      %v996 = vpop.f32.mrf.mxu0
      %997 = vmatprep.mubr.bf16.mxu0 0
      %998 = vmatmul.mubr.bf16.gmra.mxu0 %v873
      %v999 = vpop.f32.mrf.mxu0
      %v1000 = vadd.f32 0.0, %v999
      %v1001 = vpop.f32.mrf.mxu0
      %v1002 = vpop.f32.mrf.mxu0
      %v1003 = vadd.f32 0.0, %v1002
      %v1004 = vpop.f32.mrf.mxu0
      %1005 = vmatprep.mubr.bf16.mxu0 0
      %1006 = vmatmul.mubr.bf16.gmra.mxu0 %v876
      %v1007 = vpop.f32.mrf.mxu0
      %v1008 = vadd.f32 0.0, %v1007
      %v1009 = vpop.f32.mrf.mxu0
      %v1010 = vpop.f32.mrf.mxu0
      %v1011 = vadd.f32 0.0, %v1010
      %v1012 = vpop.f32.mrf.mxu0
      %1013 = vmatprep.mubr.bf16.mxu0 0
      %1014 = vmatmul.mubr.bf16.gmra.mxu0 %v879
      %v1015 = vpop.f32.mrf.mxu0
      %v1016 = vadd.f32 0.0, %v1015
      %v1017 = vpop.f32.mrf.mxu0
      %v1018 = vpop.f32.mrf.mxu0
      %v1019 = vadd.f32 0.0, %v1018
      %v1020 = vpop.f32.mrf.mxu0
      %1021 = vmatprep.mubr.bf16.mxu0 0
      %1022 = vmatmul.mubr.bf16.gmra.mxu0 %v882
      %v1023 = vpop.f32.mrf.mxu0
      %v1024 = vadd.f32 0.0, %v1023
      %v1025 = vpop.f32.mrf.mxu0
      %v1026 = vpop.f32.mrf.mxu0
      %v1027 = vadd.f32 0.0, %v1026
      %v1028 = vpop.f32.mrf.mxu0
      %1029 = vmatprep.mubr.bf16.mxu0 0
      %1030 = vmatmul.mubr.bf16.gmra.mxu0 %v885
      %v1031 = vpop.f32.mrf.mxu0
      %v1032 = vadd.f32 0.0, %v1031
      %v1033 = vpop.f32.mrf.mxu0
      %v1034 = vpop.f32.mrf.mxu0
      %v1035 = vadd.f32 0.0, %v1034
      %v1036 = vpop.f32.mrf.mxu0
      %1037 = vmatprep.mubr.bf16.mxu0 0
      %1038 = vmatmul.mubr.bf16.gmra.mxu0 %v888
      %v1039 = vpop.f32.mrf.mxu0
      %v1040 = vadd.f32 0.0, %v1039
      %v1041 = vpop.f32.mrf.mxu0
      %v1042 = vpop.f32.mrf.mxu0
      %v1043 = vadd.f32 0.0, %v1042
      %v1044 = vpop.f32.mrf.mxu0
      %1045 = vmatprep.mubr.bf16.mxu0 0
      %1046 = vmatmul.mubr.bf16.gmra.mxu0 %v891
      %v1047 = vpop.f32.mrf.mxu0
      %v1048 = vadd.f32 0.0, %v1047
      %v1049 = vpop.f32.mrf.mxu0
      %v1050 = vpop.f32.mrf.mxu0
      %v1051 = vadd.f32 0.0, %v1050
      %v1052 = vpop.f32.mrf.mxu0
      %1053 = vdwg.mxu0
      %v1054 = vadd.f32 %v638, %v928
      %v1055 = vadd.f32 %v641, %v931
      %v1056 = vadd.f32 %v646, %v936
      %v1057 = vadd.f32 %v649, %v939
      %v1058 = vadd.f32 %v654, %v944
      %v1059 = vadd.f32 %v657, %v947
      %v1060 = vadd.f32 %v662, %v952
      %v1061 = vadd.f32 %v665, %v955
      %v1062 = vadd.f32 %v670, %v960
      %v1063 = vadd.f32 %v673, %v963
      %v1064 = vadd.f32 %v678, %v968
      %v1065 = vadd.f32 %v681, %v971
      %v1066 = vadd.f32 %v686, %v976
      %v1067 = vadd.f32 %v689, %v979
      %v1068 = vadd.f32 %v694, %v984
      %v1069 = vadd.f32 %v697, %v987
      %v1070 = vadd.f32 %v702, %v992
      %v1071 = vadd.f32 %v705, %v995
      %v1072 = vadd.f32 %v710, %v1000
      %v1073 = vadd.f32 %v713, %v1003
      %v1074 = vadd.f32 %v718, %v1008
      %v1075 = vadd.f32 %v721, %v1011
      %v1076 = vadd.f32 %v726, %v1016
      %v1077 = vadd.f32 %v729, %v1019
      %v1078 = vadd.f32 %v734, %v1024
      %v1079 = vadd.f32 %v737, %v1027
      %v1080 = vadd.f32 %v742, %v1032
      %v1081 = vadd.f32 %v745, %v1035
      %v1082 = vadd.f32 %v750, %v1040
      %v1083 = vadd.f32 %v753, %v1043
      %v1084 = vadd.f32 %v758, %v1048
      %v1085 = vadd.f32 %v761, %v1051
      %s1086 = scalar_lea.vmem %s172, 24
      %v1087 = vld [vmem:[%s1086] sm:$0xff]
      %v1088 = vld [vmem:[%s1086 + $0x8] sm:$0xff]
      %v1089 = vld [vmem:[%s1086 + $0x18] sm:$0xff]
      %v1090 = vld [vmem:[%s1086 + $0x20] sm:$0xff]
      %v1091 = vld [vmem:[%s1086 + $0x30] sm:$0xff]
      %v1092 = vld [vmem:[%s1086 + $0x38] sm:$0xff]
      %v1093 = vld [vmem:[%s1086 + $0x48] sm:$0xff]
      %v1094 = vld [vmem:[%s1086 + $0x50] sm:$0xff]
      %v1095 = vld [vmem:[%s1086 + $0x60] sm:$0xff]
      %v1096 = vld [vmem:[%s1086 + $0x68] sm:$0xff]
      %v1097 = vld [vmem:[%s1086 + $0x78] sm:$0xff]
      %v1098 = vld [vmem:[%s1086 + $0x80] sm:$0xff]
      %v1099 = vld [vmem:[%s1086 + $0x90] sm:$0xff]
      %v1100 = vld [vmem:[%s1086 + $0x98] sm:$0xff]
      %v1101 = vld [vmem:[%s1086 + $0xa8] sm:$0xff]
      %v1102 = vld [vmem:[%s1086 + $0xb0] sm:$0xff]
      %v1103 = vld [vmem:[%s1086 + $0xc0] sm:$0xff]
      %v1104 = vld [vmem:[%s1086 + $0xc8] sm:$0xff]
      %v1105 = vld [vmem:[%s1086 + $0xd8] sm:$0xff]
      %v1106 = vld [vmem:[%s1086 + $0xe0] sm:$0xff]
      %v1107 = vld [vmem:[%s1086 + $0xf0] sm:$0xff]
      %v1108 = vld [vmem:[%s1086 + $0xf8] sm:$0xff]
      %v1109 = vld [vmem:[%s1086 + $0x108] sm:$0xff]
      %v1110 = vld [vmem:[%s1086 + $0x110] sm:$0xff]
      %v1111 = vld [vmem:[%s1086 + $0x120] sm:$0xff]
      %v1112 = vld [vmem:[%s1086 + $0x128] sm:$0xff]
      %v1113 = vld [vmem:[%s1086 + $0x138] sm:$0xff]
      %v1114 = vld [vmem:[%s1086 + $0x140] sm:$0xff]
      %v1115 = vld [vmem:[%s1086 + $0x150] sm:$0xff]
      %v1116 = vld [vmem:[%s1086 + $0x158] sm:$0xff]
      %v1117 = vld [vmem:[%s1086 + $0x168] sm:$0xff]
      %v1118 = vld [vmem:[%s1086 + $0x170] sm:$0xff]
      %v1119 = vpack.c.bf16 %v1088, %v1087
      %v1120 = vpack.c.bf16 %v1090, %v1089
      %v1121 = vpack.c.bf16 %v1092, %v1091
      %v1122 = vpack.c.bf16 %v1094, %v1093
      %v1123 = vpack.c.bf16 %v1096, %v1095
      %v1124 = vpack.c.bf16 %v1098, %v1097
      %v1125 = vpack.c.bf16 %v1100, %v1099
      %v1126 = vpack.c.bf16 %v1102, %v1101
      %v1127 = vpack.c.bf16 %v1104, %v1103
      %v1128 = vpack.c.bf16 %v1106, %v1105
      %v1129 = vpack.c.bf16 %v1108, %v1107
      %v1130 = vpack.c.bf16 %v1110, %v1109
      %v1131 = vpack.c.bf16 %v1112, %v1111
      %v1132 = vpack.c.bf16 %v1114, %v1113
      %v1133 = vpack.c.bf16 %v1116, %v1115
      %v1134 = vpack.c.bf16 %v1118, %v1117
      %s1135 = scalar_lea.vmem %s1, 96
      %v1136 = vld [vmem:[%s1135] sm:$0xf]
      %v1137 = vld [vmem:[%s1135 + $0x4] sm:$0xf]
      %v1138 = vld [vmem:[%s1135 + $0x8] sm:$0xf]
      %v1139 = vld [vmem:[%s1135 + $0xc] sm:$0xf]
      %v1140 = vld [vmem:[%s1135 + $0x10] sm:$0xf]
      %v1141 = vld [vmem:[%s1135 + $0x14] sm:$0xf]
      %v1142 = vld [vmem:[%s1135 + $0x18] sm:$0xf]
      %v1143 = vld [vmem:[%s1135 + $0x1c] sm:$0xf]
      %v1152 = vunpack.c.l.b16 %v1136
      %v1153 = vunpack.c.l.b16 %v1137
      %v1154 = vunpack.c.l.b16 %v1138
      %v1155 = vunpack.c.l.b16 %v1139
      %v1156 = vunpack.c.l.b16 %v1140
      %v1157 = vunpack.c.l.b16 %v1141
      %v1158 = vunpack.c.l.b16 %v1142
      %v1159 = vunpack.c.l.b16 %v1143
      %v1160 = vpack.c.b16 %v1153, %v1152
      %v1161 = vpack.c.b16 %v1155, %v1154
      %v1162 = vpack.c.b16 %v1157, %v1156
      %v1163 = vpack.c.b16 %v1159, %v1158
      %v1169 = vsel %vm321, %v1119, 0
      %v1172 = vsel %vm321, %v1120, 0
      %v1175 = vsel %vm321, %v1121, 0
      %v1178 = vsel %vm321, %v1122, 0
      %v1181 = vsel %vm321, %v1123, 0
      %v1184 = vsel %vm321, %v1124, 0
      %v1187 = vsel %vm321, %v1125, 0
      %v1190 = vsel %vm321, %v1126, 0
      %v1193 = vsel %vm321, %v1127, 0
      %v1196 = vsel %vm321, %v1128, 0
      %v1199 = vsel %vm321, %v1129, 0
      %v1202 = vsel %vm321, %v1130, 0
      %v1205 = vsel %vm321, %v1131, 0
      %v1208 = vsel %vm321, %v1132, 0
      %v1211 = vsel %vm321, %v1133, 0
      %v1214 = vsel %vm321, %v1134, 0
      %1216 = vmatprep.subr.bf16.mxu0 0
      %1217 = vmatpush1.bf16.msra.mxu0 0
      %1218 = vmatprep.subr.bf16.mxu0 0
      %1219 = vmatpush1.bf16.msra.mxu0 0
      %1220 = vmatprep.subr.bf16.mxu0 0
      %1221 = vmatpush1.bf16.msra.mxu0 0
      %1222 = vmatprep.subr.bf16.mxu0 0
      %1223 = vmatpush1.bf16.msra.mxu0 0
      %1224 = vmatprep.subr.bf16.mxu0 0
      %1225 = vmatpush1.bf16.msra.mxu0 %v1163
      %1226 = vmatprep.subr.bf16.mxu0 0
      %1227 = vmatpush1.bf16.msra.mxu0 %v1162
      %1228 = vmatprep.subr.bf16.mxu0 0
      %1229 = vmatpush1.bf16.msra.mxu0 %v1161
      %1230 = vmatprep.subr.bf16.mxu0 0
      %1231 = vmatpush1.bf16.msra.mxu0 %v1160
      %1232 = vmatprep.subr.bf16.mxu0 0
      %1233 = vmatpush2.bf16.msra.mxu0 0
      %1234 = vmatprep.subr.bf16.mxu0 0
      %1235 = vmatpush2.bf16.msra.mxu0 0
      %1236 = vmatprep.subr.bf16.mxu0 0
      %1237 = vmatpush2.bf16.msra.mxu0 0
      %1238 = vmatprep.subr.bf16.mxu0 0
      %1239 = vmatpush2.bf16.msra.mxu0 0
      %1240 = vmatprep.subr.bf16.mxu0 0
      %1241 = vmatpush2.bf16.msra.mxu0 0
      %1242 = vmatprep.subr.bf16.mxu0 0
      %1243 = vmatpush2.bf16.msra.mxu0 0
      %1244 = vmatprep.subr.bf16.mxu0 0
      %1245 = vmatpush2.bf16.msra.mxu0 0
      %1246 = vmatprep.subr.bf16.mxu0 0
      %1247 = vmatpush2.bf16.msra.mxu0 0
      %1248 = vmatprep.mubr.bf16.mxu0 0
      %1249 = vmatmul.mubr.bf16.gmra.mxu0 %v1169
      %v1250 = vpop.f32.mrf.mxu0
      %v1251 = vadd.f32 0.0, %v1250
      %v1252 = vpop.f32.mrf.mxu0
      %v1253 = vpop.f32.mrf.mxu0
      %v1254 = vadd.f32 0.0, %v1253
      %v1255 = vpop.f32.mrf.mxu0
      %1256 = vmatprep.mubr.bf16.mxu0 0
      %1257 = vmatmul.mubr.bf16.gmra.mxu0 %v1172
      %v1258 = vpop.f32.mrf.mxu0
      %v1259 = vadd.f32 0.0, %v1258
      %v1260 = vpop.f32.mrf.mxu0
      %v1261 = vpop.f32.mrf.mxu0
      %v1262 = vadd.f32 0.0, %v1261
      %v1263 = vpop.f32.mrf.mxu0
      %1264 = vmatprep.mubr.bf16.mxu0 0
      %1265 = vmatmul.mubr.bf16.gmra.mxu0 %v1175
      %v1266 = vpop.f32.mrf.mxu0
      %v1267 = vadd.f32 0.0, %v1266
      %v1268 = vpop.f32.mrf.mxu0
      %v1269 = vpop.f32.mrf.mxu0
      %v1270 = vadd.f32 0.0, %v1269
      %v1271 = vpop.f32.mrf.mxu0
      %1272 = vmatprep.mubr.bf16.mxu0 0
      %1273 = vmatmul.mubr.bf16.gmra.mxu0 %v1178
      %v1274 = vpop.f32.mrf.mxu0
      %v1275 = vadd.f32 0.0, %v1274
      %v1276 = vpop.f32.mrf.mxu0
      %v1277 = vpop.f32.mrf.mxu0
      %v1278 = vadd.f32 0.0, %v1277
      %v1279 = vpop.f32.mrf.mxu0
      %1280 = vmatprep.mubr.bf16.mxu0 0
      %1281 = vmatmul.mubr.bf16.gmra.mxu0 %v1181
      %v1282 = vpop.f32.mrf.mxu0
      %v1283 = vadd.f32 0.0, %v1282
      %v1284 = vpop.f32.mrf.mxu0
      %v1285 = vpop.f32.mrf.mxu0
      %v1286 = vadd.f32 0.0, %v1285
      %v1287 = vpop.f32.mrf.mxu0
      %1288 = vmatprep.mubr.bf16.mxu0 0
      %1289 = vmatmul.mubr.bf16.gmra.mxu0 %v1184
      %v1290 = vpop.f32.mrf.mxu0
      %v1291 = vadd.f32 0.0, %v1290
      %v1292 = vpop.f32.mrf.mxu0
      %v1293 = vpop.f32.mrf.mxu0
      %v1294 = vadd.f32 0.0, %v1293
      %v1295 = vpop.f32.mrf.mxu0
      %1296 = vmatprep.mubr.bf16.mxu0 0
      %1297 = vmatmul.mubr.bf16.gmra.mxu0 %v1187
      %v1298 = vpop.f32.mrf.mxu0
      %v1299 = vadd.f32 0.0, %v1298
      %v1300 = vpop.f32.mrf.mxu0
      %v1301 = vpop.f32.mrf.mxu0
      %v1302 = vadd.f32 0.0, %v1301
      %v1303 = vpop.f32.mrf.mxu0
      %1304 = vmatprep.mubr.bf16.mxu0 0
      %1305 = vmatmul.mubr.bf16.gmra.mxu0 %v1190
      %v1306 = vpop.f32.mrf.mxu0
      %v1307 = vadd.f32 0.0, %v1306
      %v1308 = vpop.f32.mrf.mxu0
      %v1309 = vpop.f32.mrf.mxu0
      %v1310 = vadd.f32 0.0, %v1309
      %v1311 = vpop.f32.mrf.mxu0
      %1312 = vmatprep.mubr.bf16.mxu0 0
      %1313 = vmatmul.mubr.bf16.gmra.mxu0 %v1193
      %v1314 = vpop.f32.mrf.mxu0
      %v1315 = vadd.f32 0.0, %v1314
      %v1316 = vpop.f32.mrf.mxu0
      %v1317 = vpop.f32.mrf.mxu0
      %v1318 = vadd.f32 0.0, %v1317
      %v1319 = vpop.f32.mrf.mxu0
      %1320 = vmatprep.mubr.bf16.mxu0 0
      %1321 = vmatmul.mubr.bf16.gmra.mxu0 %v1196
      %v1322 = vpop.f32.mrf.mxu0
      %v1323 = vadd.f32 0.0, %v1322
      %v1324 = vpop.f32.mrf.mxu0
      %v1325 = vpop.f32.mrf.mxu0
      %v1326 = vadd.f32 0.0, %v1325
      %v1327 = vpop.f32.mrf.mxu0
      %1328 = vmatprep.mubr.bf16.mxu0 0
      %1329 = vmatmul.mubr.bf16.gmra.mxu0 %v1199
      %v1330 = vpop.f32.mrf.mxu0
      %v1331 = vadd.f32 0.0, %v1330
      %v1332 = vpop.f32.mrf.mxu0
      %v1333 = vpop.f32.mrf.mxu0
      %v1334 = vadd.f32 0.0, %v1333
      %v1335 = vpop.f32.mrf.mxu0
      %1336 = vmatprep.mubr.bf16.mxu0 0
      %1337 = vmatmul.mubr.bf16.gmra.mxu0 %v1202
      %v1338 = vpop.f32.mrf.mxu0
      %v1339 = vadd.f32 0.0, %v1338
      %v1340 = vpop.f32.mrf.mxu0
      %v1341 = vpop.f32.mrf.mxu0
      %v1342 = vadd.f32 0.0, %v1341
      %v1343 = vpop.f32.mrf.mxu0
      %1344 = vmatprep.mubr.bf16.mxu0 0
      %1345 = vmatmul.mubr.bf16.gmra.mxu0 %v1205
      %v1346 = vpop.f32.mrf.mxu0
      %v1347 = vadd.f32 0.0, %v1346
      %v1348 = vpop.f32.mrf.mxu0
      %v1349 = vpop.f32.mrf.mxu0
      %v1350 = vadd.f32 0.0, %v1349
      %v1351 = vpop.f32.mrf.mxu0
      %1352 = vmatprep.mubr.bf16.mxu0 0
      %1353 = vmatmul.mubr.bf16.gmra.mxu0 %v1208
      %v1354 = vpop.f32.mrf.mxu0
      %v1355 = vadd.f32 0.0, %v1354
      %v1356 = vpop.f32.mrf.mxu0
      %v1357 = vpop.f32.mrf.mxu0
      %v1358 = vadd.f32 0.0, %v1357
      %v1359 = vpop.f32.mrf.mxu0
      %1360 = vmatprep.mubr.bf16.mxu0 0
      %1361 = vmatmul.mubr.bf16.gmra.mxu0 %v1211
      %v1362 = vpop.f32.mrf.mxu0
      %v1363 = vadd.f32 0.0, %v1362
      %v1364 = vpop.f32.mrf.mxu0
      %v1365 = vpop.f32.mrf.mxu0
      %v1366 = vadd.f32 0.0, %v1365
      %v1367 = vpop.f32.mrf.mxu0
      %1368 = vmatprep.mubr.bf16.mxu0 0
      %1369 = vmatmul.mubr.bf16.gmra.mxu0 %v1214
      %v1370 = vpop.f32.mrf.mxu0
      %v1371 = vadd.f32 0.0, %v1370
      %v1372 = vpop.f32.mrf.mxu0
      %v1373 = vpop.f32.mrf.mxu0
      %v1374 = vadd.f32 0.0, %v1373
      %v1375 = vpop.f32.mrf.mxu0
      %1376 = vdwg.mxu0
      %v1377 = vadd.f32 %v1054, %v1251
      %v1378 = vadd.f32 %v1055, %v1254
      %v1379 = vadd.f32 %v1056, %v1259
      %v1380 = vadd.f32 %v1057, %v1262
      %v1381 = vadd.f32 %v1058, %v1267
      %v1382 = vadd.f32 %v1059, %v1270
      %v1383 = vadd.f32 %v1060, %v1275
      %v1384 = vadd.f32 %v1061, %v1278
      %v1385 = vadd.f32 %v1062, %v1283
      %v1386 = vadd.f32 %v1063, %v1286
      %v1387 = vadd.f32 %v1064, %v1291
      %v1388 = vadd.f32 %v1065, %v1294
      %v1389 = vadd.f32 %v1066, %v1299
      %v1390 = vadd.f32 %v1067, %v1302
      %v1391 = vadd.f32 %v1068, %v1307
      %v1392 = vadd.f32 %v1069, %v1310
      %v1393 = vadd.f32 %v1070, %v1315
      %v1394 = vadd.f32 %v1071, %v1318
      %v1395 = vadd.f32 %v1072, %v1323
      %v1396 = vadd.f32 %v1073, %v1326
      %v1397 = vadd.f32 %v1074, %v1331
      %v1398 = vadd.f32 %v1075, %v1334
      %v1399 = vadd.f32 %v1076, %v1339
      %v1400 = vadd.f32 %v1077, %v1342
      %v1401 = vadd.f32 %v1078, %v1347
      %v1402 = vadd.f32 %v1079, %v1350
      %v1403 = vadd.f32 %v1080, %v1355
      %v1404 = vadd.f32 %v1081, %v1358
      %v1405 = vadd.f32 %v1082, %v1363
      %v1406 = vadd.f32 %v1083, %v1366
      %v1407 = vadd.f32 %v1084, %v1371
      %v1408 = vadd.f32 %v1085, %v1374
      %v1409 = vld [vmem:[%s1086 + $0x1] sm:$0xff]
      %v1410 = vld [vmem:[%s1086 + $0x9] sm:$0xff]
      %v1411 = vld [vmem:[%s1086 + $0x19] sm:$0xff]
      %v1412 = vld [vmem:[%s1086 + $0x21] sm:$0xff]
      %v1413 = vld [vmem:[%s1086 + $0x31] sm:$0xff]
      %v1414 = vld [vmem:[%s1086 + $0x39] sm:$0xff]
      %v1415 = vld [vmem:[%s1086 + $0x49] sm:$0xff]
      %v1416 = vld [vmem:[%s1086 + $0x51] sm:$0xff]
      %v1417 = vld [vmem:[%s1086 + $0x61] sm:$0xff]
      %v1418 = vld [vmem:[%s1086 + $0x69] sm:$0xff]
      %v1419 = vld [vmem:[%s1086 + $0x79] sm:$0xff]
      %v1420 = vld [vmem:[%s1086 + $0x81] sm:$0xff]
      %v1421 = vld [vmem:[%s1086 + $0x91] sm:$0xff]
      %v1422 = vld [vmem:[%s1086 + $0x99] sm:$0xff]
      %v1423 = vld [vmem:[%s1086 + $0xa9] sm:$0xff]
      %v1424 = vld [vmem:[%s1086 + $0xb1] sm:$0xff]
      %v1425 = vld [vmem:[%s1086 + $0xc1] sm:$0xff]
      %v1426 = vld [vmem:[%s1086 + $0xc9] sm:$0xff]
      %v1427 = vld [vmem:[%s1086 + $0xd9] sm:$0xff]
      %v1428 = vld [vmem:[%s1086 + $0xe1] sm:$0xff]
      %v1429 = vld [vmem:[%s1086 + $0xf1] sm:$0xff]
      %v1430 = vld [vmem:[%s1086 + $0xf9] sm:$0xff]
      %v1431 = vld [vmem:[%s1086 + $0x109] sm:$0xff]
      %v1432 = vld [vmem:[%s1086 + $0x111] sm:$0xff]
      %v1433 = vld [vmem:[%s1086 + $0x121] sm:$0xff]
      %v1434 = vld [vmem:[%s1086 + $0x129] sm:$0xff]
      %v1435 = vld [vmem:[%s1086 + $0x139] sm:$0xff]
      %v1436 = vld [vmem:[%s1086 + $0x141] sm:$0xff]
      %v1437 = vld [vmem:[%s1086 + $0x151] sm:$0xff]
      %v1438 = vld [vmem:[%s1086 + $0x159] sm:$0xff]
      %v1439 = vld [vmem:[%s1086 + $0x169] sm:$0xff]
      %v1440 = vld [vmem:[%s1086 + $0x171] sm:$0xff]
      %v1441 = vpack.c.bf16 %v1410, %v1409
      %v1442 = vpack.c.bf16 %v1412, %v1411
      %v1443 = vpack.c.bf16 %v1414, %v1413
      %v1444 = vpack.c.bf16 %v1416, %v1415
      %v1445 = vpack.c.bf16 %v1418, %v1417
      %v1446 = vpack.c.bf16 %v1420, %v1419
      %v1447 = vpack.c.bf16 %v1422, %v1421
      %v1448 = vpack.c.bf16 %v1424, %v1423
      %v1449 = vpack.c.bf16 %v1426, %v1425
      %v1450 = vpack.c.bf16 %v1428, %v1427
      %v1451 = vpack.c.bf16 %v1430, %v1429
      %v1452 = vpack.c.bf16 %v1432, %v1431
      %v1453 = vpack.c.bf16 %v1434, %v1433
      %v1454 = vpack.c.bf16 %v1436, %v1435
      %v1455 = vpack.c.bf16 %v1438, %v1437
      %v1456 = vpack.c.bf16 %v1440, %v1439
      %s1457 = scalar_lea.vmem %s1, 128
      %v1458 = vld [vmem:[%s1457] sm:$0xf]
      %v1459 = vld [vmem:[%s1457 + $0x4] sm:$0xf]
      %v1460 = vld [vmem:[%s1457 + $0x8] sm:$0xf]
      %v1461 = vld [vmem:[%s1457 + $0xc] sm:$0xf]
      %v1462 = vld [vmem:[%s1457 + $0x10] sm:$0xf]
      %v1463 = vld [vmem:[%s1457 + $0x14] sm:$0xf]
      %v1464 = vld [vmem:[%s1457 + $0x18] sm:$0xf]
      %v1465 = vld [vmem:[%s1457 + $0x1c] sm:$0xf]
      %v1474 = vunpack.c.l.b16 %v1458
      %v1475 = vunpack.c.l.b16 %v1459
      %v1476 = vunpack.c.l.b16 %v1460
      %v1477 = vunpack.c.l.b16 %v1461
      %v1478 = vunpack.c.l.b16 %v1462
      %v1479 = vunpack.c.l.b16 %v1463
      %v1480 = vunpack.c.l.b16 %v1464
      %v1481 = vunpack.c.l.b16 %v1465
      %v1482 = vpack.c.b16 %v1475, %v1474
      %v1483 = vpack.c.b16 %v1477, %v1476
      %v1484 = vpack.c.b16 %v1479, %v1478
      %v1485 = vpack.c.b16 %v1481, %v1480
      %v1491 = vsel %vm321, %v1441, 0
      %v1494 = vsel %vm321, %v1442, 0
      %v1497 = vsel %vm321, %v1443, 0
      %v1500 = vsel %vm321, %v1444, 0
      %v1503 = vsel %vm321, %v1445, 0
      %v1506 = vsel %vm321, %v1446, 0
      %v1509 = vsel %vm321, %v1447, 0
      %v1512 = vsel %vm321, %v1448, 0
      %v1515 = vsel %vm321, %v1449, 0
      %v1518 = vsel %vm321, %v1450, 0
      %v1521 = vsel %vm321, %v1451, 0
      %v1524 = vsel %vm321, %v1452, 0
      %v1527 = vsel %vm321, %v1453, 0
      %v1530 = vsel %vm321, %v1454, 0
      %v1533 = vsel %vm321, %v1455, 0
      %v1536 = vsel %vm321, %v1456, 0
      %1538 = vmatprep.subr.bf16.mxu0 0
      %1539 = vmatpush1.bf16.msra.mxu0 0
      %1540 = vmatprep.subr.bf16.mxu0 0
      %1541 = vmatpush1.bf16.msra.mxu0 0
      %1542 = vmatprep.subr.bf16.mxu0 0
      %1543 = vmatpush1.bf16.msra.mxu0 0
      %1544 = vmatprep.subr.bf16.mxu0 0
      %1545 = vmatpush1.bf16.msra.mxu0 0
      %1546 = vmatprep.subr.bf16.mxu0 0
      %1547 = vmatpush1.bf16.msra.mxu0 %v1485
      %1548 = vmatprep.subr.bf16.mxu0 0
      %1549 = vmatpush1.bf16.msra.mxu0 %v1484
      %1550 = vmatprep.subr.bf16.mxu0 0
      %1551 = vmatpush1.bf16.msra.mxu0 %v1483
      %1552 = vmatprep.subr.bf16.mxu0 0
      %1553 = vmatpush1.bf16.msra.mxu0 %v1482
      %1554 = vmatprep.subr.bf16.mxu0 0
      %1555 = vmatpush2.bf16.msra.mxu0 0
      %1556 = vmatprep.subr.bf16.mxu0 0
      %1557 = vmatpush2.bf16.msra.mxu0 0
      %1558 = vmatprep.subr.bf16.mxu0 0
      %1559 = vmatpush2.bf16.msra.mxu0 0
      %1560 = vmatprep.subr.bf16.mxu0 0
      %1561 = vmatpush2.bf16.msra.mxu0 0
      %1562 = vmatprep.subr.bf16.mxu0 0
      %1563 = vmatpush2.bf16.msra.mxu0 0
      %1564 = vmatprep.subr.bf16.mxu0 0
      %1565 = vmatpush2.bf16.msra.mxu0 0
      %1566 = vmatprep.subr.bf16.mxu0 0
      %1567 = vmatpush2.bf16.msra.mxu0 0
      %1568 = vmatprep.subr.bf16.mxu0 0
      %1569 = vmatpush2.bf16.msra.mxu0 0
      %1570 = vmatprep.mubr.bf16.mxu0 0
      %1571 = vmatmul.mubr.bf16.gmra.mxu0 %v1491
      %v1572 = vpop.f32.mrf.mxu0
      %v1573 = vadd.f32 0.0, %v1572
      %v1574 = vpop.f32.mrf.mxu0
      %v1575 = vpop.f32.mrf.mxu0
      %v1576 = vadd.f32 0.0, %v1575
      %v1577 = vpop.f32.mrf.mxu0
      %1578 = vmatprep.mubr.bf16.mxu0 0
      %1579 = vmatmul.mubr.bf16.gmra.mxu0 %v1494
      %v1580 = vpop.f32.mrf.mxu0
      %v1581 = vadd.f32 0.0, %v1580
      %v1582 = vpop.f32.mrf.mxu0
      %v1583 = vpop.f32.mrf.mxu0
      %v1584 = vadd.f32 0.0, %v1583
      %v1585 = vpop.f32.mrf.mxu0
      %1586 = vmatprep.mubr.bf16.mxu0 0
      %1587 = vmatmul.mubr.bf16.gmra.mxu0 %v1497
      %v1588 = vpop.f32.mrf.mxu0
      %v1589 = vadd.f32 0.0, %v1588
      %v1590 = vpop.f32.mrf.mxu0
      %v1591 = vpop.f32.mrf.mxu0
      %v1592 = vadd.f32 0.0, %v1591
      %v1593 = vpop.f32.mrf.mxu0
      %1594 = vmatprep.mubr.bf16.mxu0 0
      %1595 = vmatmul.mubr.bf16.gmra.mxu0 %v1500
      %v1596 = vpop.f32.mrf.mxu0
      %v1597 = vadd.f32 0.0, %v1596
      %v1598 = vpop.f32.mrf.mxu0
      %v1599 = vpop.f32.mrf.mxu0
      %v1600 = vadd.f32 0.0, %v1599
      %v1601 = vpop.f32.mrf.mxu0
      %1602 = vmatprep.mubr.bf16.mxu0 0
      %1603 = vmatmul.mubr.bf16.gmra.mxu0 %v1503
      %v1604 = vpop.f32.mrf.mxu0
      %v1605 = vadd.f32 0.0, %v1604
      %v1606 = vpop.f32.mrf.mxu0
      %v1607 = vpop.f32.mrf.mxu0
      %v1608 = vadd.f32 0.0, %v1607
      %v1609 = vpop.f32.mrf.mxu0
      %1610 = vmatprep.mubr.bf16.mxu0 0
      %1611 = vmatmul.mubr.bf16.gmra.mxu0 %v1506
      %v1612 = vpop.f32.mrf.mxu0
      %v1613 = vadd.f32 0.0, %v1612
      %v1614 = vpop.f32.mrf.mxu0
      %v1615 = vpop.f32.mrf.mxu0
      %v1616 = vadd.f32 0.0, %v1615
      %v1617 = vpop.f32.mrf.mxu0
      %1618 = vmatprep.mubr.bf16.mxu0 0
      %1619 = vmatmul.mubr.bf16.gmra.mxu0 %v1509
      %v1620 = vpop.f32.mrf.mxu0
      %v1621 = vadd.f32 0.0, %v1620
      %v1622 = vpop.f32.mrf.mxu0
      %v1623 = vpop.f32.mrf.mxu0
      %v1624 = vadd.f32 0.0, %v1623
      %v1625 = vpop.f32.mrf.mxu0
      %1626 = vmatprep.mubr.bf16.mxu0 0
      %1627 = vmatmul.mubr.bf16.gmra.mxu0 %v1512
      %v1628 = vpop.f32.mrf.mxu0
      %v1629 = vadd.f32 0.0, %v1628
      %v1630 = vpop.f32.mrf.mxu0
      %v1631 = vpop.f32.mrf.mxu0
      %v1632 = vadd.f32 0.0, %v1631
      %v1633 = vpop.f32.mrf.mxu0
      %1634 = vmatprep.mubr.bf16.mxu0 0
      %1635 = vmatmul.mubr.bf16.gmra.mxu0 %v1515
      %v1636 = vpop.f32.mrf.mxu0
      %v1637 = vadd.f32 0.0, %v1636
      %v1638 = vpop.f32.mrf.mxu0
      %v1639 = vpop.f32.mrf.mxu0
      %v1640 = vadd.f32 0.0, %v1639
      %v1641 = vpop.f32.mrf.mxu0
      %1642 = vmatprep.mubr.bf16.mxu0 0
      %1643 = vmatmul.mubr.bf16.gmra.mxu0 %v1518
      %v1644 = vpop.f32.mrf.mxu0
      %v1645 = vadd.f32 0.0, %v1644
      %v1646 = vpop.f32.mrf.mxu0
      %v1647 = vpop.f32.mrf.mxu0
      %v1648 = vadd.f32 0.0, %v1647
      %v1649 = vpop.f32.mrf.mxu0
      %1650 = vmatprep.mubr.bf16.mxu0 0
      %1651 = vmatmul.mubr.bf16.gmra.mxu0 %v1521
      %v1652 = vpop.f32.mrf.mxu0
      %v1653 = vadd.f32 0.0, %v1652
      %v1654 = vpop.f32.mrf.mxu0
      %v1655 = vpop.f32.mrf.mxu0
      %v1656 = vadd.f32 0.0, %v1655
      %v1657 = vpop.f32.mrf.mxu0
      %1658 = vmatprep.mubr.bf16.mxu0 0
      %1659 = vmatmul.mubr.bf16.gmra.mxu0 %v1524
      %v1660 = vpop.f32.mrf.mxu0
      %v1661 = vadd.f32 0.0, %v1660
      %v1662 = vpop.f32.mrf.mxu0
      %v1663 = vpop.f32.mrf.mxu0
      %v1664 = vadd.f32 0.0, %v1663
      %v1665 = vpop.f32.mrf.mxu0
      %1666 = vmatprep.mubr.bf16.mxu0 0
      %1667 = vmatmul.mubr.bf16.gmra.mxu0 %v1527
      %v1668 = vpop.f32.mrf.mxu0
      %v1669 = vadd.f32 0.0, %v1668
      %v1670 = vpop.f32.mrf.mxu0
      %v1671 = vpop.f32.mrf.mxu0
      %v1672 = vadd.f32 0.0, %v1671
      %v1673 = vpop.f32.mrf.mxu0
      %1674 = vmatprep.mubr.bf16.mxu0 0
      %1675 = vmatmul.mubr.bf16.gmra.mxu0 %v1530
      %v1676 = vpop.f32.mrf.mxu0
      %v1677 = vadd.f32 0.0, %v1676
      %v1678 = vpop.f32.mrf.mxu0
      %v1679 = vpop.f32.mrf.mxu0
      %v1680 = vadd.f32 0.0, %v1679
      %v1681 = vpop.f32.mrf.mxu0
      %1682 = vmatprep.mubr.bf16.mxu0 0
      %1683 = vmatmul.mubr.bf16.gmra.mxu0 %v1533
      %v1684 = vpop.f32.mrf.mxu0
      %v1685 = vadd.f32 0.0, %v1684
      %v1686 = vpop.f32.mrf.mxu0
      %v1687 = vpop.f32.mrf.mxu0
      %v1688 = vadd.f32 0.0, %v1687
      %v1689 = vpop.f32.mrf.mxu0
      %1690 = vmatprep.mubr.bf16.mxu0 0
      %1691 = vmatmul.mubr.bf16.gmra.mxu0 %v1536
      %v1692 = vpop.f32.mrf.mxu0
      %v1693 = vadd.f32 0.0, %v1692
      %v1694 = vpop.f32.mrf.mxu0
      %v1695 = vpop.f32.mrf.mxu0
      %v1696 = vadd.f32 0.0, %v1695
      %v1697 = vpop.f32.mrf.mxu0
      %1698 = vdwg.mxu0
      %v1699 = vadd.f32 %v1377, %v1573
      %v1700 = vadd.f32 %v1378, %v1576
      %v1701 = vadd.f32 %v1379, %v1581
      %v1702 = vadd.f32 %v1380, %v1584
      %v1703 = vadd.f32 %v1381, %v1589
      %v1704 = vadd.f32 %v1382, %v1592
      %v1705 = vadd.f32 %v1383, %v1597
      %v1706 = vadd.f32 %v1384, %v1600
      %v1707 = vadd.f32 %v1385, %v1605
      %v1708 = vadd.f32 %v1386, %v1608
      %v1709 = vadd.f32 %v1387, %v1613
      %v1710 = vadd.f32 %v1388, %v1616
      %v1711 = vadd.f32 %v1389, %v1621
      %v1712 = vadd.f32 %v1390, %v1624
      %v1713 = vadd.f32 %v1391, %v1629
      %v1714 = vadd.f32 %v1392, %v1632
      %v1715 = vadd.f32 %v1393, %v1637
      %v1716 = vadd.f32 %v1394, %v1640
      %v1717 = vadd.f32 %v1395, %v1645
      %v1718 = vadd.f32 %v1396, %v1648
      %v1719 = vadd.f32 %v1397, %v1653
      %v1720 = vadd.f32 %v1398, %v1656
      %v1721 = vadd.f32 %v1399, %v1661
      %v1722 = vadd.f32 %v1400, %v1664
      %v1723 = vadd.f32 %v1401, %v1669
      %v1724 = vadd.f32 %v1402, %v1672
      %v1725 = vadd.f32 %v1403, %v1677
      %v1726 = vadd.f32 %v1404, %v1680
      %v1727 = vadd.f32 %v1405, %v1685
      %v1728 = vadd.f32 %v1406, %v1688
      %v1729 = vadd.f32 %v1407, %v1693
      %v1730 = vadd.f32 %v1408, %v1696
      %v1731 = vld [vmem:[%s1086 + $0x2] sm:$0xff]
      %v1732 = vld [vmem:[%s1086 + $0xa] sm:$0xff]
      %v1733 = vld [vmem:[%s1086 + $0x1a] sm:$0xff]
      %v1734 = vld [vmem:[%s1086 + $0x22] sm:$0xff]
      %v1735 = vld [vmem:[%s1086 + $0x32] sm:$0xff]
      %v1736 = vld [vmem:[%s1086 + $0x3a] sm:$0xff]
      %v1737 = vld [vmem:[%s1086 + $0x4a] sm:$0xff]
      %v1738 = vld [vmem:[%s1086 + $0x52] sm:$0xff]
      %v1739 = vld [vmem:[%s1086 + $0x62] sm:$0xff]
      %v1740 = vld [vmem:[%s1086 + $0x6a] sm:$0xff]
      %v1741 = vld [vmem:[%s1086 + $0x7a] sm:$0xff]
      %v1742 = vld [vmem:[%s1086 + $0x82] sm:$0xff]
      %v1743 = vld [vmem:[%s1086 + $0x92] sm:$0xff]
      %v1744 = vld [vmem:[%s1086 + $0x9a] sm:$0xff]
      %v1745 = vld [vmem:[%s1086 + $0xaa] sm:$0xff]
      %v1746 = vld [vmem:[%s1086 + $0xb2] sm:$0xff]
      %v1747 = vld [vmem:[%s1086 + $0xc2] sm:$0xff]
      %v1748 = vld [vmem:[%s1086 + $0xca] sm:$0xff]
      %v1749 = vld [vmem:[%s1086 + $0xda] sm:$0xff]
      %v1750 = vld [vmem:[%s1086 + $0xe2] sm:$0xff]
      %v1751 = vld [vmem:[%s1086 + $0xf2] sm:$0xff]
      %v1752 = vld [vmem:[%s1086 + $0xfa] sm:$0xff]
      %v1753 = vld [vmem:[%s1086 + $0x10a] sm:$0xff]
      %v1754 = vld [vmem:[%s1086 + $0x112] sm:$0xff]
      %v1755 = vld [vmem:[%s1086 + $0x122] sm:$0xff]
      %v1756 = vld [vmem:[%s1086 + $0x12a] sm:$0xff]
      %v1757 = vld [vmem:[%s1086 + $0x13a] sm:$0xff]
      %v1758 = vld [vmem:[%s1086 + $0x142] sm:$0xff]
      %v1759 = vld [vmem:[%s1086 + $0x152] sm:$0xff]
      %v1760 = vld [vmem:[%s1086 + $0x15a] sm:$0xff]
      %v1761 = vld [vmem:[%s1086 + $0x16a] sm:$0xff]
      %v1762 = vld [vmem:[%s1086 + $0x172] sm:$0xff]
      %v1763 = vpack.c.bf16 %v1732, %v1731
      %v1764 = vpack.c.bf16 %v1734, %v1733
      %v1765 = vpack.c.bf16 %v1736, %v1735
      %v1766 = vpack.c.bf16 %v1738, %v1737
      %v1767 = vpack.c.bf16 %v1740, %v1739
      %v1768 = vpack.c.bf16 %v1742, %v1741
      %v1769 = vpack.c.bf16 %v1744, %v1743
      %v1770 = vpack.c.bf16 %v1746, %v1745
      %v1771 = vpack.c.bf16 %v1748, %v1747
      %v1772 = vpack.c.bf16 %v1750, %v1749
      %v1773 = vpack.c.bf16 %v1752, %v1751
      %v1774 = vpack.c.bf16 %v1754, %v1753
      %v1775 = vpack.c.bf16 %v1756, %v1755
      %v1776 = vpack.c.bf16 %v1758, %v1757
      %v1777 = vpack.c.bf16 %v1760, %v1759
      %v1778 = vpack.c.bf16 %v1762, %v1761
      %s1779 = scalar_lea.vmem %s1, 160
      %v1780 = vld [vmem:[%s1779] sm:$0xf]
      %v1781 = vld [vmem:[%s1779 + $0x4] sm:$0xf]
      %v1782 = vld [vmem:[%s1779 + $0x8] sm:$0xf]
      %v1783 = vld [vmem:[%s1779 + $0xc] sm:$0xf]
      %v1784 = vld [vmem:[%s1779 + $0x10] sm:$0xf]
      %v1785 = vld [vmem:[%s1779 + $0x14] sm:$0xf]
      %v1786 = vld [vmem:[%s1779 + $0x18] sm:$0xf]
      %v1787 = vld [vmem:[%s1779 + $0x1c] sm:$0xf]
      %v1796 = vunpack.c.l.b16 %v1780
      %v1797 = vunpack.c.l.b16 %v1781
      %v1798 = vunpack.c.l.b16 %v1782
      %v1799 = vunpack.c.l.b16 %v1783
      %v1800 = vunpack.c.l.b16 %v1784
      %v1801 = vunpack.c.l.b16 %v1785
      %v1802 = vunpack.c.l.b16 %v1786
      %v1803 = vunpack.c.l.b16 %v1787
      %v1804 = vpack.c.b16 %v1797, %v1796
      %v1805 = vpack.c.b16 %v1799, %v1798
      %v1806 = vpack.c.b16 %v1801, %v1800
      %v1807 = vpack.c.b16 %v1803, %v1802
      %v1813 = vsel %vm321, %v1763, 0
      %v1816 = vsel %vm321, %v1764, 0
      %v1819 = vsel %vm321, %v1765, 0
      %v1822 = vsel %vm321, %v1766, 0
      %v1825 = vsel %vm321, %v1767, 0
      %v1828 = vsel %vm321, %v1768, 0
      %v1831 = vsel %vm321, %v1769, 0
      %v1834 = vsel %vm321, %v1770, 0
      %v1837 = vsel %vm321, %v1771, 0
      %v1840 = vsel %vm321, %v1772, 0
      %v1843 = vsel %vm321, %v1773, 0
      %v1846 = vsel %vm321, %v1774, 0
      %v1849 = vsel %vm321, %v1775, 0
      %v1852 = vsel %vm321, %v1776, 0
      %v1855 = vsel %vm321, %v1777, 0
      %v1858 = vsel %vm321, %v1778, 0
      %1860 = vmatprep.subr.bf16.mxu0 0
      %1861 = vmatpush1.bf16.msra.mxu0 0
      %1862 = vmatprep.subr.bf16.mxu0 0
      %1863 = vmatpush1.bf16.msra.mxu0 0
      %1864 = vmatprep.subr.bf16.mxu0 0
      %1865 = vmatpush1.bf16.msra.mxu0 0
      %1866 = vmatprep.subr.bf16.mxu0 0
      %1867 = vmatpush1.bf16.msra.mxu0 0
      %1868 = vmatprep.subr.bf16.mxu0 0
      %1869 = vmatpush1.bf16.msra.mxu0 %v1807
      %1870 = vmatprep.subr.bf16.mxu0 0
      %1871 = vmatpush1.bf16.msra.mxu0 %v1806
      %1872 = vmatprep.subr.bf16.mxu0 0
      %1873 = vmatpush1.bf16.msra.mxu0 %v1805
      %1874 = vmatprep.subr.bf16.mxu0 0
      %1875 = vmatpush1.bf16.msra.mxu0 %v1804
      %1876 = vmatprep.subr.bf16.mxu0 0
      %1877 = vmatpush2.bf16.msra.mxu0 0
      %1878 = vmatprep.subr.bf16.mxu0 0
      %1879 = vmatpush2.bf16.msra.mxu0 0
      %1880 = vmatprep.subr.bf16.mxu0 0
      %1881 = vmatpush2.bf16.msra.mxu0 0
      %1882 = vmatprep.subr.bf16.mxu0 0
      %1883 = vmatpush2.bf16.msra.mxu0 0
      %1884 = vmatprep.subr.bf16.mxu0 0
      %1885 = vmatpush2.bf16.msra.mxu0 0
      %1886 = vmatprep.subr.bf16.mxu0 0
      %1887 = vmatpush2.bf16.msra.mxu0 0
      %1888 = vmatprep.subr.bf16.mxu0 0
      %1889 = vmatpush2.bf16.msra.mxu0 0
      %1890 = vmatprep.subr.bf16.mxu0 0
      %1891 = vmatpush2.bf16.msra.mxu0 0
      %1892 = vmatprep.mubr.bf16.mxu0 0
      %1893 = vmatmul.mubr.bf16.gmra.mxu0 %v1813
      %v1894 = vpop.f32.mrf.mxu0
      %v1895 = vadd.f32 0.0, %v1894
      %v1896 = vpop.f32.mrf.mxu0
      %v1897 = vpop.f32.mrf.mxu0
      %v1898 = vadd.f32 0.0, %v1897
      %v1899 = vpop.f32.mrf.mxu0
      %1900 = vmatprep.mubr.bf16.mxu0 0
      %1901 = vmatmul.mubr.bf16.gmra.mxu0 %v1816
      %v1902 = vpop.f32.mrf.mxu0
      %v1903 = vadd.f32 0.0, %v1902
      %v1904 = vpop.f32.mrf.mxu0
      %v1905 = vpop.f32.mrf.mxu0
      %v1906 = vadd.f32 0.0, %v1905
      %v1907 = vpop.f32.mrf.mxu0
      %1908 = vmatprep.mubr.bf16.mxu0 0
      %1909 = vmatmul.mubr.bf16.gmra.mxu0 %v1819
      %v1910 = vpop.f32.mrf.mxu0
      %v1911 = vadd.f32 0.0, %v1910
      %v1912 = vpop.f32.mrf.mxu0
      %v1913 = vpop.f32.mrf.mxu0
      %v1914 = vadd.f32 0.0, %v1913
      %v1915 = vpop.f32.mrf.mxu0
      %1916 = vmatprep.mubr.bf16.mxu0 0
      %1917 = vmatmul.mubr.bf16.gmra.mxu0 %v1822
      %v1918 = vpop.f32.mrf.mxu0
      %v1919 = vadd.f32 0.0, %v1918
      %v1920 = vpop.f32.mrf.mxu0
      %v1921 = vpop.f32.mrf.mxu0
      %v1922 = vadd.f32 0.0, %v1921
      %v1923 = vpop.f32.mrf.mxu0
      %1924 = vmatprep.mubr.bf16.mxu0 0
      %1925 = vmatmul.mubr.bf16.gmra.mxu0 %v1825
      %v1926 = vpop.f32.mrf.mxu0
      %v1927 = vadd.f32 0.0, %v1926
      %v1928 = vpop.f32.mrf.mxu0
      %v1929 = vpop.f32.mrf.mxu0
      %v1930 = vadd.f32 0.0, %v1929
      %v1931 = vpop.f32.mrf.mxu0
      %1932 = vmatprep.mubr.bf16.mxu0 0
      %1933 = vmatmul.mubr.bf16.gmra.mxu0 %v1828
      %v1934 = vpop.f32.mrf.mxu0
      %v1935 = vadd.f32 0.0, %v1934
      %v1936 = vpop.f32.mrf.mxu0
      %v1937 = vpop.f32.mrf.mxu0
      %v1938 = vadd.f32 0.0, %v1937
      %v1939 = vpop.f32.mrf.mxu0
      %1940 = vmatprep.mubr.bf16.mxu0 0
      %1941 = vmatmul.mubr.bf16.gmra.mxu0 %v1831
      %v1942 = vpop.f32.mrf.mxu0
      %v1943 = vadd.f32 0.0, %v1942
      %v1944 = vpop.f32.mrf.mxu0
      %v1945 = vpop.f32.mrf.mxu0
      %v1946 = vadd.f32 0.0, %v1945
      %v1947 = vpop.f32.mrf.mxu0
      %1948 = vmatprep.mubr.bf16.mxu0 0
      %1949 = vmatmul.mubr.bf16.gmra.mxu0 %v1834
      %v1950 = vpop.f32.mrf.mxu0
      %v1951 = vadd.f32 0.0, %v1950
      %v1952 = vpop.f32.mrf.mxu0
      %v1953 = vpop.f32.mrf.mxu0
      %v1954 = vadd.f32 0.0, %v1953
      %v1955 = vpop.f32.mrf.mxu0
      %1956 = vmatprep.mubr.bf16.mxu0 0
      %1957 = vmatmul.mubr.bf16.gmra.mxu0 %v1837
      %v1958 = vpop.f32.mrf.mxu0
      %v1959 = vadd.f32 0.0, %v1958
      %v1960 = vpop.f32.mrf.mxu0
      %v1961 = vpop.f32.mrf.mxu0
      %v1962 = vadd.f32 0.0, %v1961
      %v1963 = vpop.f32.mrf.mxu0
      %1964 = vmatprep.mubr.bf16.mxu0 0
      %1965 = vmatmul.mubr.bf16.gmra.mxu0 %v1840
      %v1966 = vpop.f32.mrf.mxu0
      %v1967 = vadd.f32 0.0, %v1966
      %v1968 = vpop.f32.mrf.mxu0
      %v1969 = vpop.f32.mrf.mxu0
      %v1970 = vadd.f32 0.0, %v1969
      %v1971 = vpop.f32.mrf.mxu0
      %1972 = vmatprep.mubr.bf16.mxu0 0
      %1973 = vmatmul.mubr.bf16.gmra.mxu0 %v1843
      %v1974 = vpop.f32.mrf.mxu0
      %v1975 = vadd.f32 0.0, %v1974
      %v1976 = vpop.f32.mrf.mxu0
      %v1977 = vpop.f32.mrf.mxu0
      %v1978 = vadd.f32 0.0, %v1977
      %v1979 = vpop.f32.mrf.mxu0
      %1980 = vmatprep.mubr.bf16.mxu0 0
      %1981 = vmatmul.mubr.bf16.gmra.mxu0 %v1846
      %v1982 = vpop.f32.mrf.mxu0
      %v1983 = vadd.f32 0.0, %v1982
      %v1984 = vpop.f32.mrf.mxu0
      %v1985 = vpop.f32.mrf.mxu0
      %v1986 = vadd.f32 0.0, %v1985
      %v1987 = vpop.f32.mrf.mxu0
      %1988 = vmatprep.mubr.bf16.mxu0 0
      %1989 = vmatmul.mubr.bf16.gmra.mxu0 %v1849
      %v1990 = vpop.f32.mrf.mxu0
      %v1991 = vadd.f32 0.0, %v1990
      %v1992 = vpop.f32.mrf.mxu0
      %v1993 = vpop.f32.mrf.mxu0
      %v1994 = vadd.f32 0.0, %v1993
      %v1995 = vpop.f32.mrf.mxu0
      %1996 = vmatprep.mubr.bf16.mxu0 0
      %1997 = vmatmul.mubr.bf16.gmra.mxu0 %v1852
      %v1998 = vpop.f32.mrf.mxu0
      %v1999 = vadd.f32 0.0, %v1998
      %v2000 = vpop.f32.mrf.mxu0
      %v2001 = vpop.f32.mrf.mxu0
      %v2002 = vadd.f32 0.0, %v2001
      %v2003 = vpop.f32.mrf.mxu0
      %2004 = vmatprep.mubr.bf16.mxu0 0
      %2005 = vmatmul.mubr.bf16.gmra.mxu0 %v1855
      %v2006 = vpop.f32.mrf.mxu0
      %v2007 = vadd.f32 0.0, %v2006
      %v2008 = vpop.f32.mrf.mxu0
      %v2009 = vpop.f32.mrf.mxu0
      %v2010 = vadd.f32 0.0, %v2009
      %v2011 = vpop.f32.mrf.mxu0
      %2012 = vmatprep.mubr.bf16.mxu0 0
      %2013 = vmatmul.mubr.bf16.gmra.mxu0 %v1858
      %v2014 = vpop.f32.mrf.mxu0
      %v2015 = vadd.f32 0.0, %v2014
      %v2016 = vpop.f32.mrf.mxu0
      %v2017 = vpop.f32.mrf.mxu0
      %v2018 = vadd.f32 0.0, %v2017
      %v2019 = vpop.f32.mrf.mxu0
      %2020 = vdwg.mxu0
      %v2021 = vadd.f32 %v1699, %v1895
      %v2022 = vadd.f32 %v1700, %v1898
      %v2023 = vadd.f32 %v1701, %v1903
      %v2024 = vadd.f32 %v1702, %v1906
      %v2025 = vadd.f32 %v1703, %v1911
      %v2026 = vadd.f32 %v1704, %v1914
      %v2027 = vadd.f32 %v1705, %v1919
      %v2028 = vadd.f32 %v1706, %v1922
      %v2029 = vadd.f32 %v1707, %v1927
      %v2030 = vadd.f32 %v1708, %v1930
      %v2031 = vadd.f32 %v1709, %v1935
      %v2032 = vadd.f32 %v1710, %v1938
      %v2033 = vadd.f32 %v1711, %v1943
      %v2034 = vadd.f32 %v1712, %v1946
      %v2035 = vadd.f32 %v1713, %v1951
      %v2036 = vadd.f32 %v1714, %v1954
      %v2037 = vadd.f32 %v1715, %v1959
      %v2038 = vadd.f32 %v1716, %v1962
      %v2039 = vadd.f32 %v1717, %v1967
      %v2040 = vadd.f32 %v1718, %v1970
      %v2041 = vadd.f32 %v1719, %v1975
      %v2042 = vadd.f32 %v1720, %v1978
      %v2043 = vadd.f32 %v1721, %v1983
      %v2044 = vadd.f32 %v1722, %v1986
      %v2045 = vadd.f32 %v1723, %v1991
      %v2046 = vadd.f32 %v1724, %v1994
      %v2047 = vadd.f32 %v1725, %v1999
      %v2048 = vadd.f32 %v1726, %v2002
      %v2049 = vadd.f32 %v1727, %v2007
      %v2050 = vadd.f32 %v1728, %v2010
      %v2051 = vadd.f32 %v1729, %v2015
      %v2052 = vadd.f32 %v1730, %v2018
      %s2053 = scalar_lea.vmem %s172, 48
      %v2054 = vld [vmem:[%s2053] sm:$0xff]
      %v2055 = vld [vmem:[%s2053 + $0x8] sm:$0xff]
      %v2056 = vld [vmem:[%s2053 + $0x18] sm:$0xff]
      %v2057 = vld [vmem:[%s2053 + $0x20] sm:$0xff]
      %v2058 = vld [vmem:[%s2053 + $0x30] sm:$0xff]
      %v2059 = vld [vmem:[%s2053 + $0x38] sm:$0xff]
      %v2060 = vld [vmem:[%s2053 + $0x48] sm:$0xff]
      %v2061 = vld [vmem:[%s2053 + $0x50] sm:$0xff]
      %v2062 = vld [vmem:[%s2053 + $0x60] sm:$0xff]
      %v2063 = vld [vmem:[%s2053 + $0x68] sm:$0xff]
      %v2064 = vld [vmem:[%s2053 + $0x78] sm:$0xff]
      %v2065 = vld [vmem:[%s2053 + $0x80] sm:$0xff]
      %v2066 = vld [vmem:[%s2053 + $0x90] sm:$0xff]
      %v2067 = vld [vmem:[%s2053 + $0x98] sm:$0xff]
      %v2068 = vld [vmem:[%s2053 + $0xa8] sm:$0xff]
      %v2069 = vld [vmem:[%s2053 + $0xb0] sm:$0xff]
      %v2070 = vld [vmem:[%s2053 + $0xc0] sm:$0xff]
      %v2071 = vld [vmem:[%s2053 + $0xc8] sm:$0xff]
      %v2072 = vld [vmem:[%s2053 + $0xd8] sm:$0xff]
      %v2073 = vld [vmem:[%s2053 + $0xe0] sm:$0xff]
      %v2074 = vld [vmem:[%s2053 + $0xf0] sm:$0xff]
      %v2075 = vld [vmem:[%s2053 + $0xf8] sm:$0xff]
      %v2076 = vld [vmem:[%s2053 + $0x108] sm:$0xff]
      %v2077 = vld [vmem:[%s2053 + $0x110] sm:$0xff]
      %v2078 = vld [vmem:[%s2053 + $0x120] sm:$0xff]
      %v2079 = vld [vmem:[%s2053 + $0x128] sm:$0xff]
      %v2080 = vld [vmem:[%s2053 + $0x138] sm:$0xff]
      %v2081 = vld [vmem:[%s2053 + $0x140] sm:$0xff]
      %v2082 = vld [vmem:[%s2053 + $0x150] sm:$0xff]
      %v2083 = vld [vmem:[%s2053 + $0x158] sm:$0xff]
      %v2084 = vld [vmem:[%s2053 + $0x168] sm:$0xff]
      %v2085 = vld [vmem:[%s2053 + $0x170] sm:$0xff]
      %v2086 = vpack.c.bf16 %v2055, %v2054
      %v2087 = vpack.c.bf16 %v2057, %v2056
      %v2088 = vpack.c.bf16 %v2059, %v2058
      %v2089 = vpack.c.bf16 %v2061, %v2060
      %v2090 = vpack.c.bf16 %v2063, %v2062
      %v2091 = vpack.c.bf16 %v2065, %v2064
      %v2092 = vpack.c.bf16 %v2067, %v2066
      %v2093 = vpack.c.bf16 %v2069, %v2068
      %v2094 = vpack.c.bf16 %v2071, %v2070
      %v2095 = vpack.c.bf16 %v2073, %v2072
      %v2096 = vpack.c.bf16 %v2075, %v2074
      %v2097 = vpack.c.bf16 %v2077, %v2076
      %v2098 = vpack.c.bf16 %v2079, %v2078
      %v2099 = vpack.c.bf16 %v2081, %v2080
      %v2100 = vpack.c.bf16 %v2083, %v2082
      %v2101 = vpack.c.bf16 %v2085, %v2084
      %s2102 = scalar_lea.vmem %s1, 192
      %v2103 = vld [vmem:[%s2102] sm:$0xf]
      %v2104 = vld [vmem:[%s2102 + $0x4] sm:$0xf]
      %v2105 = vld [vmem:[%s2102 + $0x8] sm:$0xf]
      %v2106 = vld [vmem:[%s2102 + $0xc] sm:$0xf]
      %v2107 = vld [vmem:[%s2102 + $0x10] sm:$0xf]
      %v2108 = vld [vmem:[%s2102 + $0x14] sm:$0xf]
      %v2109 = vld [vmem:[%s2102 + $0x18] sm:$0xf]
      %v2110 = vld [vmem:[%s2102 + $0x1c] sm:$0xf]
      %v2119 = vunpack.c.l.b16 %v2103
      %v2120 = vunpack.c.l.b16 %v2104
      %v2121 = vunpack.c.l.b16 %v2105
      %v2122 = vunpack.c.l.b16 %v2106
      %v2123 = vunpack.c.l.b16 %v2107
      %v2124 = vunpack.c.l.b16 %v2108
      %v2125 = vunpack.c.l.b16 %v2109
      %v2126 = vunpack.c.l.b16 %v2110
      %v2127 = vpack.c.b16 %v2120, %v2119
      %v2128 = vpack.c.b16 %v2122, %v2121
      %v2129 = vpack.c.b16 %v2124, %v2123
      %v2130 = vpack.c.b16 %v2126, %v2125
      %v2136 = vsel %vm321, %v2086, 0
      %v2139 = vsel %vm321, %v2087, 0
      %v2142 = vsel %vm321, %v2088, 0
      %v2145 = vsel %vm321, %v2089, 0
      %v2148 = vsel %vm321, %v2090, 0
      %v2151 = vsel %vm321, %v2091, 0
      %v2154 = vsel %vm321, %v2092, 0
      %v2157 = vsel %vm321, %v2093, 0
      %v2160 = vsel %vm321, %v2094, 0
      %v2163 = vsel %vm321, %v2095, 0
      %v2166 = vsel %vm321, %v2096, 0
      %v2169 = vsel %vm321, %v2097, 0
      %v2172 = vsel %vm321, %v2098, 0
      %v2175 = vsel %vm321, %v2099, 0
      %v2178 = vsel %vm321, %v2100, 0
      %v2181 = vsel %vm321, %v2101, 0
      %2183 = vmatprep.subr.bf16.mxu0 0
      %2184 = vmatpush1.bf16.msra.mxu0 0
      %2185 = vmatprep.subr.bf16.mxu0 0
      %2186 = vmatpush1.bf16.msra.mxu0 0
      %2187 = vmatprep.subr.bf16.mxu0 0
      %2188 = vmatpush1.bf16.msra.mxu0 0
      %2189 = vmatprep.subr.bf16.mxu0 0
      %2190 = vmatpush1.bf16.msra.mxu0 0
      %2191 = vmatprep.subr.bf16.mxu0 0
      %2192 = vmatpush1.bf16.msra.mxu0 %v2130
      %2193 = vmatprep.subr.bf16.mxu0 0
      %2194 = vmatpush1.bf16.msra.mxu0 %v2129
      %2195 = vmatprep.subr.bf16.mxu0 0
      %2196 = vmatpush1.bf16.msra.mxu0 %v2128
      %2197 = vmatprep.subr.bf16.mxu0 0
      %2198 = vmatpush1.bf16.msra.mxu0 %v2127
      %2199 = vmatprep.subr.bf16.mxu0 0
      %2200 = vmatpush2.bf16.msra.mxu0 0
      %2201 = vmatprep.subr.bf16.mxu0 0
      %2202 = vmatpush2.bf16.msra.mxu0 0
      %2203 = vmatprep.subr.bf16.mxu0 0
      %2204 = vmatpush2.bf16.msra.mxu0 0
      %2205 = vmatprep.subr.bf16.mxu0 0
      %2206 = vmatpush2.bf16.msra.mxu0 0
      %2207 = vmatprep.subr.bf16.mxu0 0
      %2208 = vmatpush2.bf16.msra.mxu0 0
      %2209 = vmatprep.subr.bf16.mxu0 0
      %2210 = vmatpush2.bf16.msra.mxu0 0
      %2211 = vmatprep.subr.bf16.mxu0 0
      %2212 = vmatpush2.bf16.msra.mxu0 0
      %2213 = vmatprep.subr.bf16.mxu0 0
      %2214 = vmatpush2.bf16.msra.mxu0 0
      %2215 = vmatprep.mubr.bf16.mxu0 0
      %2216 = vmatmul.mubr.bf16.gmra.mxu0 %v2136
      %v2217 = vpop.f32.mrf.mxu0
      %v2218 = vadd.f32 0.0, %v2217
      %v2219 = vpop.f32.mrf.mxu0
      %v2220 = vpop.f32.mrf.mxu0
      %v2221 = vadd.f32 0.0, %v2220
      %v2222 = vpop.f32.mrf.mxu0
      %2223 = vmatprep.mubr.bf16.mxu0 0
      %2224 = vmatmul.mubr.bf16.gmra.mxu0 %v2139
      %v2225 = vpop.f32.mrf.mxu0
      %v2226 = vadd.f32 0.0, %v2225
      %v2227 = vpop.f32.mrf.mxu0
      %v2228 = vpop.f32.mrf.mxu0
      %v2229 = vadd.f32 0.0, %v2228
      %v2230 = vpop.f32.mrf.mxu0
      %2231 = vmatprep.mubr.bf16.mxu0 0
      %2232 = vmatmul.mubr.bf16.gmra.mxu0 %v2142
      %v2233 = vpop.f32.mrf.mxu0
      %v2234 = vadd.f32 0.0, %v2233
      %v2235 = vpop.f32.mrf.mxu0
      %v2236 = vpop.f32.mrf.mxu0
      %v2237 = vadd.f32 0.0, %v2236
      %v2238 = vpop.f32.mrf.mxu0
      %2239 = vmatprep.mubr.bf16.mxu0 0
      %2240 = vmatmul.mubr.bf16.gmra.mxu0 %v2145
      %v2241 = vpop.f32.mrf.mxu0
      %v2242 = vadd.f32 0.0, %v2241
      %v2243 = vpop.f32.mrf.mxu0
      %v2244 = vpop.f32.mrf.mxu0
      %v2245 = vadd.f32 0.0, %v2244
      %v2246 = vpop.f32.mrf.mxu0
      %2247 = vmatprep.mubr.bf16.mxu0 0
      %2248 = vmatmul.mubr.bf16.gmra.mxu0 %v2148
      %v2249 = vpop.f32.mrf.mxu0
      %v2250 = vadd.f32 0.0, %v2249
      %v2251 = vpop.f32.mrf.mxu0
      %v2252 = vpop.f32.mrf.mxu0
      %v2253 = vadd.f32 0.0, %v2252
      %v2254 = vpop.f32.mrf.mxu0
      %2255 = vmatprep.mubr.bf16.mxu0 0
      %2256 = vmatmul.mubr.bf16.gmra.mxu0 %v2151
      %v2257 = vpop.f32.mrf.mxu0
      %v2258 = vadd.f32 0.0, %v2257
      %v2259 = vpop.f32.mrf.mxu0
      %v2260 = vpop.f32.mrf.mxu0
      %v2261 = vadd.f32 0.0, %v2260
      %v2262 = vpop.f32.mrf.mxu0
      %2263 = vmatprep.mubr.bf16.mxu0 0
      %2264 = vmatmul.mubr.bf16.gmra.mxu0 %v2154
      %v2265 = vpop.f32.mrf.mxu0
      %v2266 = vadd.f32 0.0, %v2265
      %v2267 = vpop.f32.mrf.mxu0
      %v2268 = vpop.f32.mrf.mxu0
      %v2269 = vadd.f32 0.0, %v2268
      %v2270 = vpop.f32.mrf.mxu0
      %2271 = vmatprep.mubr.bf16.mxu0 0
      %2272 = vmatmul.mubr.bf16.gmra.mxu0 %v2157
      %v2273 = vpop.f32.mrf.mxu0
      %v2274 = vadd.f32 0.0, %v2273
      %v2275 = vpop.f32.mrf.mxu0
      %v2276 = vpop.f32.mrf.mxu0
      %v2277 = vadd.f32 0.0, %v2276
      %v2278 = vpop.f32.mrf.mxu0
      %2279 = vmatprep.mubr.bf16.mxu0 0
      %2280 = vmatmul.mubr.bf16.gmra.mxu0 %v2160
      %v2281 = vpop.f32.mrf.mxu0
      %v2282 = vadd.f32 0.0, %v2281
      %v2283 = vpop.f32.mrf.mxu0
      %v2284 = vpop.f32.mrf.mxu0
      %v2285 = vadd.f32 0.0, %v2284
      %v2286 = vpop.f32.mrf.mxu0
      %2287 = vmatprep.mubr.bf16.mxu0 0
      %2288 = vmatmul.mubr.bf16.gmra.mxu0 %v2163
      %v2289 = vpop.f32.mrf.mxu0
      %v2290 = vadd.f32 0.0, %v2289
      %v2291 = vpop.f32.mrf.mxu0
      %v2292 = vpop.f32.mrf.mxu0
      %v2293 = vadd.f32 0.0, %v2292
      %v2294 = vpop.f32.mrf.mxu0
      %2295 = vmatprep.mubr.bf16.mxu0 0
      %2296 = vmatmul.mubr.bf16.gmra.mxu0 %v2166
      %v2297 = vpop.f32.mrf.mxu0
      %v2298 = vadd.f32 0.0, %v2297
      %v2299 = vpop.f32.mrf.mxu0
      %v2300 = vpop.f32.mrf.mxu0
      %v2301 = vadd.f32 0.0, %v2300
      %v2302 = vpop.f32.mrf.mxu0
      %2303 = vmatprep.mubr.bf16.mxu0 0
      %2304 = vmatmul.mubr.bf16.gmra.mxu0 %v2169
      %v2305 = vpop.f32.mrf.mxu0
      %v2306 = vadd.f32 0.0, %v2305
      %v2307 = vpop.f32.mrf.mxu0
      %v2308 = vpop.f32.mrf.mxu0
      %v2309 = vadd.f32 0.0, %v2308
      %v2310 = vpop.f32.mrf.mxu0
      %2311 = vmatprep.mubr.bf16.mxu0 0
      %2312 = vmatmul.mubr.bf16.gmra.mxu0 %v2172
      %v2313 = vpop.f32.mrf.mxu0
      %v2314 = vadd.f32 0.0, %v2313
      %v2315 = vpop.f32.mrf.mxu0
      %v2316 = vpop.f32.mrf.mxu0
      %v2317 = vadd.f32 0.0, %v2316
      %v2318 = vpop.f32.mrf.mxu0
      %2319 = vmatprep.mubr.bf16.mxu0 0
      %2320 = vmatmul.mubr.bf16.gmra.mxu0 %v2175
      %v2321 = vpop.f32.mrf.mxu0
      %v2322 = vadd.f32 0.0, %v2321
      %v2323 = vpop.f32.mrf.mxu0
      %v2324 = vpop.f32.mrf.mxu0
      %v2325 = vadd.f32 0.0, %v2324
      %v2326 = vpop.f32.mrf.mxu0
      %2327 = vmatprep.mubr.bf16.mxu0 0
      %2328 = vmatmul.mubr.bf16.gmra.mxu0 %v2178
      %v2329 = vpop.f32.mrf.mxu0
      %v2330 = vadd.f32 0.0, %v2329
      %v2331 = vpop.f32.mrf.mxu0
      %v2332 = vpop.f32.mrf.mxu0
      %v2333 = vadd.f32 0.0, %v2332
      %v2334 = vpop.f32.mrf.mxu0
      %2335 = vmatprep.mubr.bf16.mxu0 0
      %2336 = vmatmul.mubr.bf16.gmra.mxu0 %v2181
      %v2337 = vpop.f32.mrf.mxu0
      %v2338 = vadd.f32 0.0, %v2337
      %v2339 = vpop.f32.mrf.mxu0
      %v2340 = vpop.f32.mrf.mxu0
      %v2341 = vadd.f32 0.0, %v2340
      %v2342 = vpop.f32.mrf.mxu0
      %2343 = vdwg.mxu0
      %v2344 = vadd.f32 %v2021, %v2218
      %v2345 = vadd.f32 %v2022, %v2221
      %v2346 = vadd.f32 %v2023, %v2226
      %v2347 = vadd.f32 %v2024, %v2229
      %v2348 = vadd.f32 %v2025, %v2234
      %v2349 = vadd.f32 %v2026, %v2237
      %v2350 = vadd.f32 %v2027, %v2242
      %v2351 = vadd.f32 %v2028, %v2245
      %v2352 = vadd.f32 %v2029, %v2250
      %v2353 = vadd.f32 %v2030, %v2253
      %v2354 = vadd.f32 %v2031, %v2258
      %v2355 = vadd.f32 %v2032, %v2261
      %v2356 = vadd.f32 %v2033, %v2266
      %v2357 = vadd.f32 %v2034, %v2269
      %v2358 = vadd.f32 %v2035, %v2274
      %v2359 = vadd.f32 %v2036, %v2277
      %v2360 = vadd.f32 %v2037, %v2282
      %v2361 = vadd.f32 %v2038, %v2285
      %v2362 = vadd.f32 %v2039, %v2290
      %v2363 = vadd.f32 %v2040, %v2293
      %v2364 = vadd.f32 %v2041, %v2298
      %v2365 = vadd.f32 %v2042, %v2301
      %v2366 = vadd.f32 %v2043, %v2306
      %v2367 = vadd.f32 %v2044, %v2309
      %v2368 = vadd.f32 %v2045, %v2314
      %v2369 = vadd.f32 %v2046, %v2317
      %v2370 = vadd.f32 %v2047, %v2322
      %v2371 = vadd.f32 %v2048, %v2325
      %v2372 = vadd.f32 %v2049, %v2330
      %v2373 = vadd.f32 %v2050, %v2333
      %v2374 = vadd.f32 %v2051, %v2338
      %v2375 = vadd.f32 %v2052, %v2341
      %v2376 = vld [vmem:[%s2053 + $0x1] sm:$0xff]
      %v2377 = vld [vmem:[%s2053 + $0x9] sm:$0xff]
      %v2378 = vld [vmem:[%s2053 + $0x19] sm:$0xff]
      %v2379 = vld [vmem:[%s2053 + $0x21] sm:$0xff]
      %v2380 = vld [vmem:[%s2053 + $0x31] sm:$0xff]
      %v2381 = vld [vmem:[%s2053 + $0x39] sm:$0xff]
      %v2382 = vld [vmem:[%s2053 + $0x49] sm:$0xff]
      %v2383 = vld [vmem:[%s2053 + $0x51] sm:$0xff]
      %v2384 = vld [vmem:[%s2053 + $0x61] sm:$0xff]
      %v2385 = vld [vmem:[%s2053 + $0x69] sm:$0xff]
      %v2386 = vld [vmem:[%s2053 + $0x79] sm:$0xff]
      %v2387 = vld [vmem:[%s2053 + $0x81] sm:$0xff]
      %v2388 = vld [vmem:[%s2053 + $0x91] sm:$0xff]
      %v2389 = vld [vmem:[%s2053 + $0x99] sm:$0xff]
      %v2390 = vld [vmem:[%s2053 + $0xa9] sm:$0xff]
      %v2391 = vld [vmem:[%s2053 + $0xb1] sm:$0xff]
      %v2392 = vld [vmem:[%s2053 + $0xc1] sm:$0xff]
      %v2393 = vld [vmem:[%s2053 + $0xc9] sm:$0xff]
      %v2394 = vld [vmem:[%s2053 + $0xd9] sm:$0xff]
      %v2395 = vld [vmem:[%s2053 + $0xe1] sm:$0xff]
      %v2396 = vld [vmem:[%s2053 + $0xf1] sm:$0xff]
      %v2397 = vld [vmem:[%s2053 + $0xf9] sm:$0xff]
      %v2398 = vld [vmem:[%s2053 + $0x109] sm:$0xff]
      %v2399 = vld [vmem:[%s2053 + $0x111] sm:$0xff]
      %v2400 = vld [vmem:[%s2053 + $0x121] sm:$0xff]
      %v2401 = vld [vmem:[%s2053 + $0x129] sm:$0xff]
      %v2402 = vld [vmem:[%s2053 + $0x139] sm:$0xff]
      %v2403 = vld [vmem:[%s2053 + $0x141] sm:$0xff]
      %v2404 = vld [vmem:[%s2053 + $0x151] sm:$0xff]
      %v2405 = vld [vmem:[%s2053 + $0x159] sm:$0xff]
      %v2406 = vld [vmem:[%s2053 + $0x169] sm:$0xff]
      %v2407 = vld [vmem:[%s2053 + $0x171] sm:$0xff]
      %v2408 = vpack.c.bf16 %v2377, %v2376
      %v2409 = vpack.c.bf16 %v2379, %v2378
      %v2410 = vpack.c.bf16 %v2381, %v2380
      %v2411 = vpack.c.bf16 %v2383, %v2382
      %v2412 = vpack.c.bf16 %v2385, %v2384
      %v2413 = vpack.c.bf16 %v2387, %v2386
      %v2414 = vpack.c.bf16 %v2389, %v2388
      %v2415 = vpack.c.bf16 %v2391, %v2390
      %v2416 = vpack.c.bf16 %v2393, %v2392
      %v2417 = vpack.c.bf16 %v2395, %v2394
      %v2418 = vpack.c.bf16 %v2397, %v2396
      %v2419 = vpack.c.bf16 %v2399, %v2398
      %v2420 = vpack.c.bf16 %v2401, %v2400
      %v2421 = vpack.c.bf16 %v2403, %v2402
      %v2422 = vpack.c.bf16 %v2405, %v2404
      %v2423 = vpack.c.bf16 %v2407, %v2406
      %s2424 = scalar_lea.vmem %s1, 224
      %v2425 = vld [vmem:[%s2424] sm:$0xf]
      %v2426 = vld [vmem:[%s2424 + $0x4] sm:$0xf]
      %v2427 = vld [vmem:[%s2424 + $0x8] sm:$0xf]
      %v2428 = vld [vmem:[%s2424 + $0xc] sm:$0xf]
      %v2429 = vld [vmem:[%s2424 + $0x10] sm:$0xf]
      %v2430 = vld [vmem:[%s2424 + $0x14] sm:$0xf]
      %v2431 = vld [vmem:[%s2424 + $0x18] sm:$0xf]
      %v2432 = vld [vmem:[%s2424 + $0x1c] sm:$0xf]
      %v2441 = vunpack.c.l.b16 %v2425
      %v2442 = vunpack.c.l.b16 %v2426
      %v2443 = vunpack.c.l.b16 %v2427
      %v2444 = vunpack.c.l.b16 %v2428
      %v2445 = vunpack.c.l.b16 %v2429
      %v2446 = vunpack.c.l.b16 %v2430
      %v2447 = vunpack.c.l.b16 %v2431
      %v2448 = vunpack.c.l.b16 %v2432
      %v2449 = vpack.c.b16 %v2442, %v2441
      %v2450 = vpack.c.b16 %v2444, %v2443
      %v2451 = vpack.c.b16 %v2446, %v2445
      %v2452 = vpack.c.b16 %v2448, %v2447
      %v2458 = vsel %vm321, %v2408, 0
      %v2461 = vsel %vm321, %v2409, 0
      %v2464 = vsel %vm321, %v2410, 0
      %v2467 = vsel %vm321, %v2411, 0
      %v2470 = vsel %vm321, %v2412, 0
      %v2473 = vsel %vm321, %v2413, 0
      %v2476 = vsel %vm321, %v2414, 0
      %v2479 = vsel %vm321, %v2415, 0
      %v2482 = vsel %vm321, %v2416, 0
      %v2485 = vsel %vm321, %v2417, 0
      %v2488 = vsel %vm321, %v2418, 0
      %v2491 = vsel %vm321, %v2419, 0
      %v2494 = vsel %vm321, %v2420, 0
      %v2497 = vsel %vm321, %v2421, 0
      %v2500 = vsel %vm321, %v2422, 0
      %v2503 = vsel %vm321, %v2423, 0
      %2505 = vmatprep.subr.bf16.mxu0 0
      %2506 = vmatpush1.bf16.msra.mxu0 0
      %2507 = vmatprep.subr.bf16.mxu0 0
      %2508 = vmatpush1.bf16.msra.mxu0 0
      %2509 = vmatprep.subr.bf16.mxu0 0
      %2510 = vmatpush1.bf16.msra.mxu0 0
      %2511 = vmatprep.subr.bf16.mxu0 0
      %2512 = vmatpush1.bf16.msra.mxu0 0
      %2513 = vmatprep.subr.bf16.mxu0 0
      %2514 = vmatpush1.bf16.msra.mxu0 %v2452
      %2515 = vmatprep.subr.bf16.mxu0 0
      %2516 = vmatpush1.bf16.msra.mxu0 %v2451
      %2517 = vmatprep.subr.bf16.mxu0 0
      %2518 = vmatpush1.bf16.msra.mxu0 %v2450
      %2519 = vmatprep.subr.bf16.mxu0 0
      %2520 = vmatpush1.bf16.msra.mxu0 %v2449
      %2521 = vmatprep.subr.bf16.mxu0 0
      %2522 = vmatpush2.bf16.msra.mxu0 0
      %2523 = vmatprep.subr.bf16.mxu0 0
      %2524 = vmatpush2.bf16.msra.mxu0 0
      %2525 = vmatprep.subr.bf16.mxu0 0
      %2526 = vmatpush2.bf16.msra.mxu0 0
      %2527 = vmatprep.subr.bf16.mxu0 0
      %2528 = vmatpush2.bf16.msra.mxu0 0
      %2529 = vmatprep.subr.bf16.mxu0 0
      %2530 = vmatpush2.bf16.msra.mxu0 0
      %2531 = vmatprep.subr.bf16.mxu0 0
      %2532 = vmatpush2.bf16.msra.mxu0 0
      %2533 = vmatprep.subr.bf16.mxu0 0
      %2534 = vmatpush2.bf16.msra.mxu0 0
      %2535 = vmatprep.subr.bf16.mxu0 0
      %2536 = vmatpush2.bf16.msra.mxu0 0
      %2537 = vmatprep.mubr.bf16.mxu0 0
      %2538 = vmatmul.mubr.bf16.gmra.mxu0 %v2458
      %v2539 = vpop.f32.mrf.mxu0
      %v2540 = vadd.f32 0.0, %v2539
      %v2541 = vpop.f32.mrf.mxu0
      %v2542 = vpop.f32.mrf.mxu0
      %v2543 = vadd.f32 0.0, %v2542
      %v2544 = vpop.f32.mrf.mxu0
      %2545 = vmatprep.mubr.bf16.mxu0 0
      %2546 = vmatmul.mubr.bf16.gmra.mxu0 %v2461
      %v2547 = vpop.f32.mrf.mxu0
      %v2548 = vadd.f32 0.0, %v2547
      %v2549 = vpop.f32.mrf.mxu0
      %v2550 = vpop.f32.mrf.mxu0
      %v2551 = vadd.f32 0.0, %v2550
      %v2552 = vpop.f32.mrf.mxu0
      %2553 = vmatprep.mubr.bf16.mxu0 0
      %2554 = vmatmul.mubr.bf16.gmra.mxu0 %v2464
      %v2555 = vpop.f32.mrf.mxu0
      %v2556 = vadd.f32 0.0, %v2555
      %v2557 = vpop.f32.mrf.mxu0
      %v2558 = vpop.f32.mrf.mxu0
      %v2559 = vadd.f32 0.0, %v2558
      %v2560 = vpop.f32.mrf.mxu0
      %2561 = vmatprep.mubr.bf16.mxu0 0
      %2562 = vmatmul.mubr.bf16.gmra.mxu0 %v2467
      %v2563 = vpop.f32.mrf.mxu0
      %v2564 = vadd.f32 0.0, %v2563
      %v2565 = vpop.f32.mrf.mxu0
      %v2566 = vpop.f32.mrf.mxu0
      %v2567 = vadd.f32 0.0, %v2566
      %v2568 = vpop.f32.mrf.mxu0
      %2569 = vmatprep.mubr.bf16.mxu0 0
      %2570 = vmatmul.mubr.bf16.gmra.mxu0 %v2470
      %v2571 = vpop.f32.mrf.mxu0
      %v2572 = vadd.f32 0.0, %v2571
      %v2573 = vpop.f32.mrf.mxu0
      %v2574 = vpop.f32.mrf.mxu0
      %v2575 = vadd.f32 0.0, %v2574
      %v2576 = vpop.f32.mrf.mxu0
      %2577 = vmatprep.mubr.bf16.mxu0 0
      %2578 = vmatmul.mubr.bf16.gmra.mxu0 %v2473
      %v2579 = vpop.f32.mrf.mxu0
      %v2580 = vadd.f32 0.0, %v2579
      %v2581 = vpop.f32.mrf.mxu0
      %v2582 = vpop.f32.mrf.mxu0
      %v2583 = vadd.f32 0.0, %v2582
      %v2584 = vpop.f32.mrf.mxu0
      %2585 = vmatprep.mubr.bf16.mxu0 0
      %2586 = vmatmul.mubr.bf16.gmra.mxu0 %v2476
      %v2587 = vpop.f32.mrf.mxu0
      %v2588 = vadd.f32 0.0, %v2587
      %v2589 = vpop.f32.mrf.mxu0
      %v2590 = vpop.f32.mrf.mxu0
      %v2591 = vadd.f32 0.0, %v2590
      %v2592 = vpop.f32.mrf.mxu0
      %2593 = vmatprep.mubr.bf16.mxu0 0
      %2594 = vmatmul.mubr.bf16.gmra.mxu0 %v2479
      %v2595 = vpop.f32.mrf.mxu0
      %v2596 = vadd.f32 0.0, %v2595
      %v2597 = vpop.f32.mrf.mxu0
      %v2598 = vpop.f32.mrf.mxu0
      %v2599 = vadd.f32 0.0, %v2598
      %v2600 = vpop.f32.mrf.mxu0
      %2601 = vmatprep.mubr.bf16.mxu0 0
      %2602 = vmatmul.mubr.bf16.gmra.mxu0 %v2482
      %v2603 = vpop.f32.mrf.mxu0
      %v2604 = vadd.f32 0.0, %v2603
      %v2605 = vpop.f32.mrf.mxu0
      %v2606 = vpop.f32.mrf.mxu0
      %v2607 = vadd.f32 0.0, %v2606
      %v2608 = vpop.f32.mrf.mxu0
      %2609 = vmatprep.mubr.bf16.mxu0 0
      %2610 = vmatmul.mubr.bf16.gmra.mxu0 %v2485
      %v2611 = vpop.f32.mrf.mxu0
      %v2612 = vadd.f32 0.0, %v2611
      %v2613 = vpop.f32.mrf.mxu0
      %v2614 = vpop.f32.mrf.mxu0
      %v2615 = vadd.f32 0.0, %v2614
      %v2616 = vpop.f32.mrf.mxu0
      %2617 = vmatprep.mubr.bf16.mxu0 0
      %2618 = vmatmul.mubr.bf16.gmra.mxu0 %v2488
      %v2619 = vpop.f32.mrf.mxu0
      %v2620 = vadd.f32 0.0, %v2619
      %v2621 = vpop.f32.mrf.mxu0
      %v2622 = vpop.f32.mrf.mxu0
      %v2623 = vadd.f32 0.0, %v2622
      %v2624 = vpop.f32.mrf.mxu0
      %2625 = vmatprep.mubr.bf16.mxu0 0
      %2626 = vmatmul.mubr.bf16.gmra.mxu0 %v2491
      %v2627 = vpop.f32.mrf.mxu0
      %v2628 = vadd.f32 0.0, %v2627
      %v2629 = vpop.f32.mrf.mxu0
      %v2630 = vpop.f32.mrf.mxu0
      %v2631 = vadd.f32 0.0, %v2630
      %v2632 = vpop.f32.mrf.mxu0
      %2633 = vmatprep.mubr.bf16.mxu0 0
      %2634 = vmatmul.mubr.bf16.gmra.mxu0 %v2494
      %v2635 = vpop.f32.mrf.mxu0
      %v2636 = vadd.f32 0.0, %v2635
      %v2637 = vpop.f32.mrf.mxu0
      %v2638 = vpop.f32.mrf.mxu0
      %v2639 = vadd.f32 0.0, %v2638
      %v2640 = vpop.f32.mrf.mxu0
      %2641 = vmatprep.mubr.bf16.mxu0 0
      %2642 = vmatmul.mubr.bf16.gmra.mxu0 %v2497
      %v2643 = vpop.f32.mrf.mxu0
      %v2644 = vadd.f32 0.0, %v2643
      %v2645 = vpop.f32.mrf.mxu0
      %v2646 = vpop.f32.mrf.mxu0
      %v2647 = vadd.f32 0.0, %v2646
      %v2648 = vpop.f32.mrf.mxu0
      %2649 = vmatprep.mubr.bf16.mxu0 0
      %2650 = vmatmul.mubr.bf16.gmra.mxu0 %v2500
      %v2651 = vpop.f32.mrf.mxu0
      %v2652 = vadd.f32 0.0, %v2651
      %v2653 = vpop.f32.mrf.mxu0
      %v2654 = vpop.f32.mrf.mxu0
      %v2655 = vadd.f32 0.0, %v2654
      %v2656 = vpop.f32.mrf.mxu0
      %2657 = vmatprep.mubr.bf16.mxu0 0
      %2658 = vmatmul.mubr.bf16.gmra.mxu0 %v2503
      %v2659 = vpop.f32.mrf.mxu0
      %v2660 = vadd.f32 0.0, %v2659
      %v2661 = vpop.f32.mrf.mxu0
      %v2662 = vpop.f32.mrf.mxu0
      %v2663 = vadd.f32 0.0, %v2662
      %v2664 = vpop.f32.mrf.mxu0
      %2665 = vdwg.mxu0
      %v2666 = vadd.f32 %v2344, %v2540
      %v2667 = vadd.f32 %v2345, %v2543
      %v2668 = vadd.f32 %v2346, %v2548
      %v2669 = vadd.f32 %v2347, %v2551
      %v2670 = vadd.f32 %v2348, %v2556
      %v2671 = vadd.f32 %v2349, %v2559
      %v2672 = vadd.f32 %v2350, %v2564
      %v2673 = vadd.f32 %v2351, %v2567
      %v2674 = vadd.f32 %v2352, %v2572
      %v2675 = vadd.f32 %v2353, %v2575
      %v2676 = vadd.f32 %v2354, %v2580
      %v2677 = vadd.f32 %v2355, %v2583
      %v2678 = vadd.f32 %v2356, %v2588
      %v2679 = vadd.f32 %v2357, %v2591
      %v2680 = vadd.f32 %v2358, %v2596
      %v2681 = vadd.f32 %v2359, %v2599
      %v2682 = vadd.f32 %v2360, %v2604
      %v2683 = vadd.f32 %v2361, %v2607
      %v2684 = vadd.f32 %v2362, %v2612
      %v2685 = vadd.f32 %v2363, %v2615
      %v2686 = vadd.f32 %v2364, %v2620
      %v2687 = vadd.f32 %v2365, %v2623
      %v2688 = vadd.f32 %v2366, %v2628
      %v2689 = vadd.f32 %v2367, %v2631
      %v2690 = vadd.f32 %v2368, %v2636
      %v2691 = vadd.f32 %v2369, %v2639
      %v2692 = vadd.f32 %v2370, %v2644
      %v2693 = vadd.f32 %v2371, %v2647
      %v2694 = vadd.f32 %v2372, %v2652
      %v2695 = vadd.f32 %v2373, %v2655
      %v2696 = vadd.f32 %v2374, %v2660
      %v2697 = vadd.f32 %v2375, %v2663
      %v2698 = vld [vmem:[%s2053 + $0x2] sm:$0xff]
      %v2699 = vld [vmem:[%s2053 + $0xa] sm:$0xff]
      %v2700 = vld [vmem:[%s2053 + $0x1a] sm:$0xff]
      %v2701 = vld [vmem:[%s2053 + $0x22] sm:$0xff]
      %v2702 = vld [vmem:[%s2053 + $0x32] sm:$0xff]
      %v2703 = vld [vmem:[%s2053 + $0x3a] sm:$0xff]
      %v2704 = vld [vmem:[%s2053 + $0x4a] sm:$0xff]
      %v2705 = vld [vmem:[%s2053 + $0x52] sm:$0xff]
      %v2706 = vld [vmem:[%s2053 + $0x62] sm:$0xff]
      %v2707 = vld [vmem:[%s2053 + $0x6a] sm:$0xff]
      %v2708 = vld [vmem:[%s2053 + $0x7a] sm:$0xff]
      %v2709 = vld [vmem:[%s2053 + $0x82] sm:$0xff]
      %v2710 = vld [vmem:[%s2053 + $0x92] sm:$0xff]
      %v2711 = vld [vmem:[%s2053 + $0x9a] sm:$0xff]
      %v2712 = vld [vmem:[%s2053 + $0xaa] sm:$0xff]
      %v2713 = vld [vmem:[%s2053 + $0xb2] sm:$0xff]
      %v2714 = vld [vmem:[%s2053 + $0xc2] sm:$0xff]
      %v2715 = vld [vmem:[%s2053 + $0xca] sm:$0xff]
      %v2716 = vld [vmem:[%s2053 + $0xda] sm:$0xff]
      %v2717 = vld [vmem:[%s2053 + $0xe2] sm:$0xff]
      %v2718 = vld [vmem:[%s2053 + $0xf2] sm:$0xff]
      %v2719 = vld [vmem:[%s2053 + $0xfa] sm:$0xff]
      %v2720 = vld [vmem:[%s2053 + $0x10a] sm:$0xff]
      %v2721 = vld [vmem:[%s2053 + $0x112] sm:$0xff]
      %v2722 = vld [vmem:[%s2053 + $0x122] sm:$0xff]
      %v2723 = vld [vmem:[%s2053 + $0x12a] sm:$0xff]
      %v2724 = vld [vmem:[%s2053 + $0x13a] sm:$0xff]
      %v2725 = vld [vmem:[%s2053 + $0x142] sm:$0xff]
      %v2726 = vld [vmem:[%s2053 + $0x152] sm:$0xff]
      %v2727 = vld [vmem:[%s2053 + $0x15a] sm:$0xff]
      %v2728 = vld [vmem:[%s2053 + $0x16a] sm:$0xff]
      %v2729 = vld [vmem:[%s2053 + $0x172] sm:$0xff]
      %v2730 = vpack.c.bf16 %v2699, %v2698
      %v2731 = vpack.c.bf16 %v2701, %v2700
      %v2732 = vpack.c.bf16 %v2703, %v2702
      %v2733 = vpack.c.bf16 %v2705, %v2704
      %v2734 = vpack.c.bf16 %v2707, %v2706
      %v2735 = vpack.c.bf16 %v2709, %v2708
      %v2736 = vpack.c.bf16 %v2711, %v2710
      %v2737 = vpack.c.bf16 %v2713, %v2712
      %v2738 = vpack.c.bf16 %v2715, %v2714
      %v2739 = vpack.c.bf16 %v2717, %v2716
      %v2740 = vpack.c.bf16 %v2719, %v2718
      %v2741 = vpack.c.bf16 %v2721, %v2720
      %v2742 = vpack.c.bf16 %v2723, %v2722
      %v2743 = vpack.c.bf16 %v2725, %v2724
      %v2744 = vpack.c.bf16 %v2727, %v2726
      %v2745 = vpack.c.bf16 %v2729, %v2728
      %s2746 = scalar_lea.vmem %s1, 256
      %v2747 = vld [vmem:[%s2746] sm:$0xf]
      %v2748 = vld [vmem:[%s2746 + $0x4] sm:$0xf]
      %v2749 = vld [vmem:[%s2746 + $0x8] sm:$0xf]
      %v2750 = vld [vmem:[%s2746 + $0xc] sm:$0xf]
      %v2751 = vld [vmem:[%s2746 + $0x10] sm:$0xf]
      %v2752 = vld [vmem:[%s2746 + $0x14] sm:$0xf]
      %v2753 = vld [vmem:[%s2746 + $0x18] sm:$0xf]
      %v2754 = vld [vmem:[%s2746 + $0x1c] sm:$0xf]
      %v2763 = vunpack.c.l.b16 %v2747
      %v2764 = vunpack.c.l.b16 %v2748
      %v2765 = vunpack.c.l.b16 %v2749
      %v2766 = vunpack.c.l.b16 %v2750
      %v2767 = vunpack.c.l.b16 %v2751
      %v2768 = vunpack.c.l.b16 %v2752
      %v2769 = vunpack.c.l.b16 %v2753
      %v2770 = vunpack.c.l.b16 %v2754
      %v2771 = vpack.c.b16 %v2764, %v2763
      %v2772 = vpack.c.b16 %v2766, %v2765
      %v2773 = vpack.c.b16 %v2768, %v2767
      %v2774 = vpack.c.b16 %v2770, %v2769
      %v2780 = vsel %vm321, %v2730, 0
      %v2783 = vsel %vm321, %v2731, 0
      %v2786 = vsel %vm321, %v2732, 0
      %v2789 = vsel %vm321, %v2733, 0
      %v2792 = vsel %vm321, %v2734, 0
      %v2795 = vsel %vm321, %v2735, 0
      %v2798 = vsel %vm321, %v2736, 0
      %v2801 = vsel %vm321, %v2737, 0
      %v2804 = vsel %vm321, %v2738, 0
      %v2807 = vsel %vm321, %v2739, 0
      %v2810 = vsel %vm321, %v2740, 0
      %v2813 = vsel %vm321, %v2741, 0
      %v2816 = vsel %vm321, %v2742, 0
      %v2819 = vsel %vm321, %v2743, 0
      %v2822 = vsel %vm321, %v2744, 0
      %v2825 = vsel %vm321, %v2745, 0
      %2827 = vmatprep.subr.bf16.mxu0 0
      %2828 = vmatpush1.bf16.msra.mxu0 0
      %2829 = vmatprep.subr.bf16.mxu0 0
      %2830 = vmatpush1.bf16.msra.mxu0 0
      %2831 = vmatprep.subr.bf16.mxu0 0
      %2832 = vmatpush1.bf16.msra.mxu0 0
      %2833 = vmatprep.subr.bf16.mxu0 0
      %2834 = vmatpush1.bf16.msra.mxu0 0
      %2835 = vmatprep.subr.bf16.mxu0 0
      %2836 = vmatpush1.bf16.msra.mxu0 %v2774
      %2837 = vmatprep.subr.bf16.mxu0 0
      %2838 = vmatpush1.bf16.msra.mxu0 %v2773
      %2839 = vmatprep.subr.bf16.mxu0 0
      %2840 = vmatpush1.bf16.msra.mxu0 %v2772
      %2841 = vmatprep.subr.bf16.mxu0 0
      %2842 = vmatpush1.bf16.msra.mxu0 %v2771
      %2843 = vmatprep.subr.bf16.mxu0 0
      %2844 = vmatpush2.bf16.msra.mxu0 0
      %2845 = vmatprep.subr.bf16.mxu0 0
      %2846 = vmatpush2.bf16.msra.mxu0 0
      %2847 = vmatprep.subr.bf16.mxu0 0
      %2848 = vmatpush2.bf16.msra.mxu0 0
      %2849 = vmatprep.subr.bf16.mxu0 0
      %2850 = vmatpush2.bf16.msra.mxu0 0
      %2851 = vmatprep.subr.bf16.mxu0 0
      %2852 = vmatpush2.bf16.msra.mxu0 0
      %2853 = vmatprep.subr.bf16.mxu0 0
      %2854 = vmatpush2.bf16.msra.mxu0 0
      %2855 = vmatprep.subr.bf16.mxu0 0
      %2856 = vmatpush2.bf16.msra.mxu0 0
      %2857 = vmatprep.subr.bf16.mxu0 0
      %2858 = vmatpush2.bf16.msra.mxu0 0
      %2859 = vmatprep.mubr.bf16.mxu0 0
      %2860 = vmatmul.mubr.bf16.gmra.mxu0 %v2780
      %v2861 = vpop.f32.mrf.mxu0
      %v2862 = vadd.f32 0.0, %v2861
      %v2863 = vpop.f32.mrf.mxu0
      %v2864 = vpop.f32.mrf.mxu0
      %v2865 = vadd.f32 0.0, %v2864
      %v2866 = vpop.f32.mrf.mxu0
      %2867 = vmatprep.mubr.bf16.mxu0 0
      %2868 = vmatmul.mubr.bf16.gmra.mxu0 %v2783
      %v2869 = vpop.f32.mrf.mxu0
      %v2870 = vadd.f32 0.0, %v2869
      %v2871 = vpop.f32.mrf.mxu0
      %v2872 = vpop.f32.mrf.mxu0
      %v2873 = vadd.f32 0.0, %v2872
      %v2874 = vpop.f32.mrf.mxu0
      %2875 = vmatprep.mubr.bf16.mxu0 0
      %2876 = vmatmul.mubr.bf16.gmra.mxu0 %v2786
      %v2877 = vpop.f32.mrf.mxu0
      %v2878 = vadd.f32 0.0, %v2877
      %v2879 = vpop.f32.mrf.mxu0
      %v2880 = vpop.f32.mrf.mxu0
      %v2881 = vadd.f32 0.0, %v2880
      %v2882 = vpop.f32.mrf.mxu0
      %2883 = vmatprep.mubr.bf16.mxu0 0
      %2884 = vmatmul.mubr.bf16.gmra.mxu0 %v2789
      %v2885 = vpop.f32.mrf.mxu0
      %v2886 = vadd.f32 0.0, %v2885
      %v2887 = vpop.f32.mrf.mxu0
      %v2888 = vpop.f32.mrf.mxu0
      %v2889 = vadd.f32 0.0, %v2888
      %v2890 = vpop.f32.mrf.mxu0
      %2891 = vmatprep.mubr.bf16.mxu0 0
      %2892 = vmatmul.mubr.bf16.gmra.mxu0 %v2792
      %v2893 = vpop.f32.mrf.mxu0
      %v2894 = vadd.f32 0.0, %v2893
      %v2895 = vpop.f32.mrf.mxu0
      %v2896 = vpop.f32.mrf.mxu0
      %v2897 = vadd.f32 0.0, %v2896
      %v2898 = vpop.f32.mrf.mxu0
      %2899 = vmatprep.mubr.bf16.mxu0 0
      %2900 = vmatmul.mubr.bf16.gmra.mxu0 %v2795
      %v2901 = vpop.f32.mrf.mxu0
      %v2902 = vadd.f32 0.0, %v2901
      %v2903 = vpop.f32.mrf.mxu0
      %v2904 = vpop.f32.mrf.mxu0
      %v2905 = vadd.f32 0.0, %v2904
      %v2906 = vpop.f32.mrf.mxu0
      %2907 = vmatprep.mubr.bf16.mxu0 0
      %2908 = vmatmul.mubr.bf16.gmra.mxu0 %v2798
      %v2909 = vpop.f32.mrf.mxu0
      %v2910 = vadd.f32 0.0, %v2909
      %v2911 = vpop.f32.mrf.mxu0
      %v2912 = vpop.f32.mrf.mxu0
      %v2913 = vadd.f32 0.0, %v2912
      %v2914 = vpop.f32.mrf.mxu0
      %2915 = vmatprep.mubr.bf16.mxu0 0
      %2916 = vmatmul.mubr.bf16.gmra.mxu0 %v2801
      %v2917 = vpop.f32.mrf.mxu0
      %v2918 = vadd.f32 0.0, %v2917
      %v2919 = vpop.f32.mrf.mxu0
      %v2920 = vpop.f32.mrf.mxu0
      %v2921 = vadd.f32 0.0, %v2920
      %v2922 = vpop.f32.mrf.mxu0
      %2923 = vmatprep.mubr.bf16.mxu0 0
      %2924 = vmatmul.mubr.bf16.gmra.mxu0 %v2804
      %v2925 = vpop.f32.mrf.mxu0
      %v2926 = vadd.f32 0.0, %v2925
      %v2927 = vpop.f32.mrf.mxu0
      %v2928 = vpop.f32.mrf.mxu0
      %v2929 = vadd.f32 0.0, %v2928
      %v2930 = vpop.f32.mrf.mxu0
      %2931 = vmatprep.mubr.bf16.mxu0 0
      %2932 = vmatmul.mubr.bf16.gmra.mxu0 %v2807
      %v2933 = vpop.f32.mrf.mxu0
      %v2934 = vadd.f32 0.0, %v2933
      %v2935 = vpop.f32.mrf.mxu0
      %v2936 = vpop.f32.mrf.mxu0
      %v2937 = vadd.f32 0.0, %v2936
      %v2938 = vpop.f32.mrf.mxu0
      %2939 = vmatprep.mubr.bf16.mxu0 0
      %2940 = vmatmul.mubr.bf16.gmra.mxu0 %v2810
      %v2941 = vpop.f32.mrf.mxu0
      %v2942 = vadd.f32 0.0, %v2941
      %v2943 = vpop.f32.mrf.mxu0
      %v2944 = vpop.f32.mrf.mxu0
      %v2945 = vadd.f32 0.0, %v2944
      %v2946 = vpop.f32.mrf.mxu0
      %2947 = vmatprep.mubr.bf16.mxu0 0
      %2948 = vmatmul.mubr.bf16.gmra.mxu0 %v2813
      %v2949 = vpop.f32.mrf.mxu0
      %v2950 = vadd.f32 0.0, %v2949
      %v2951 = vpop.f32.mrf.mxu0
      %v2952 = vpop.f32.mrf.mxu0
      %v2953 = vadd.f32 0.0, %v2952
      %v2954 = vpop.f32.mrf.mxu0
      %2955 = vmatprep.mubr.bf16.mxu0 0
      %2956 = vmatmul.mubr.bf16.gmra.mxu0 %v2816
      %v2957 = vpop.f32.mrf.mxu0
      %v2958 = vadd.f32 0.0, %v2957
      %v2959 = vpop.f32.mrf.mxu0
      %v2960 = vpop.f32.mrf.mxu0
      %v2961 = vadd.f32 0.0, %v2960
      %v2962 = vpop.f32.mrf.mxu0
      %2963 = vmatprep.mubr.bf16.mxu0 0
      %2964 = vmatmul.mubr.bf16.gmra.mxu0 %v2819
      %v2965 = vpop.f32.mrf.mxu0
      %v2966 = vadd.f32 0.0, %v2965
      %v2967 = vpop.f32.mrf.mxu0
      %v2968 = vpop.f32.mrf.mxu0
      %v2969 = vadd.f32 0.0, %v2968
      %v2970 = vpop.f32.mrf.mxu0
      %2971 = vmatprep.mubr.bf16.mxu0 0
      %2972 = vmatmul.mubr.bf16.gmra.mxu0 %v2822
      %v2973 = vpop.f32.mrf.mxu0
      %v2974 = vadd.f32 0.0, %v2973
      %v2975 = vpop.f32.mrf.mxu0
      %v2976 = vpop.f32.mrf.mxu0
      %v2977 = vadd.f32 0.0, %v2976
      %v2978 = vpop.f32.mrf.mxu0
      %2979 = vmatprep.mubr.bf16.mxu0 0
      %2980 = vmatmul.mubr.bf16.gmra.mxu0 %v2825
      %v2981 = vpop.f32.mrf.mxu0
      %v2982 = vadd.f32 0.0, %v2981
      %v2983 = vpop.f32.mrf.mxu0
      %v2984 = vpop.f32.mrf.mxu0
      %v2985 = vadd.f32 0.0, %v2984
      %v2986 = vpop.f32.mrf.mxu0
      %2987 = vdwg.mxu0
      %v2988 = vadd.f32 %v2666, %v2862
      %v2989 = vadd.f32 %v2667, %v2865
      %v2990 = vadd.f32 %v2668, %v2870
      %v2991 = vadd.f32 %v2669, %v2873
      %v2992 = vadd.f32 %v2670, %v2878
      %v2993 = vadd.f32 %v2671, %v2881
      %v2994 = vadd.f32 %v2672, %v2886
      %v2995 = vadd.f32 %v2673, %v2889
      %v2996 = vadd.f32 %v2674, %v2894
      %v2997 = vadd.f32 %v2675, %v2897
      %v2998 = vadd.f32 %v2676, %v2902
      %v2999 = vadd.f32 %v2677, %v2905
      %v3000 = vadd.f32 %v2678, %v2910
      %v3001 = vadd.f32 %v2679, %v2913
      %v3002 = vadd.f32 %v2680, %v2918
      %v3003 = vadd.f32 %v2681, %v2921
      %v3004 = vadd.f32 %v2682, %v2926
      %v3005 = vadd.f32 %v2683, %v2929
      %v3006 = vadd.f32 %v2684, %v2934
      %v3007 = vadd.f32 %v2685, %v2937
      %v3008 = vadd.f32 %v2686, %v2942
      %v3009 = vadd.f32 %v2687, %v2945
      %v3010 = vadd.f32 %v2688, %v2950
      %v3011 = vadd.f32 %v2689, %v2953
      %v3012 = vadd.f32 %v2690, %v2958
      %v3013 = vadd.f32 %v2691, %v2961
      %v3014 = vadd.f32 %v2692, %v2966
      %v3015 = vadd.f32 %v2693, %v2969
      %v3016 = vadd.f32 %v2694, %v2974
      %v3017 = vadd.f32 %v2695, %v2977
      %v3018 = vadd.f32 %v2696, %v2982
      %v3019 = vadd.f32 %v2697, %v2985
      %3020 = vst.msk [vmem:[%s177] sm:$0xff] %vm321, %v2988
      %3021 = vst.msk [vmem:[%s177 + $0x8] sm:$0xff] %vm321, %v2989
      %3022 = vst.msk [vmem:[%s177 + $0x10] sm:$0xff] %vm321, %v2990
      %3023 = vst.msk [vmem:[%s177 + $0x18] sm:$0xff] %vm321, %v2991
      %3024 = vst.msk [vmem:[%s177 + $0x20] sm:$0xff] %vm321, %v2992
      %3025 = vst.msk [vmem:[%s177 + $0x28] sm:$0xff] %vm321, %v2993
      %3026 = vst.msk [vmem:[%s177 + $0x30] sm:$0xff] %vm321, %v2994
      %3027 = vst.msk [vmem:[%s177 + $0x38] sm:$0xff] %vm321, %v2995
      %3028 = vst.msk [vmem:[%s177 + $0x40] sm:$0xff] %vm321, %v2996
      %3029 = vst.msk [vmem:[%s177 + $0x48] sm:$0xff] %vm321, %v2997
      %3030 = vst.msk [vmem:[%s177 + $0x50] sm:$0xff] %vm321, %v2998
      %3031 = vst.msk [vmem:[%s177 + $0x58] sm:$0xff] %vm321, %v2999
      %3032 = vst.msk [vmem:[%s177 + $0x60] sm:$0xff] %vm321, %v3000
      %3033 = vst.msk [vmem:[%s177 + $0x68] sm:$0xff] %vm321, %v3001
      %3034 = vst.msk [vmem:[%s177 + $0x70] sm:$0xff] %vm321, %v3002
      %3035 = vst.msk [vmem:[%s177 + $0x78] sm:$0xff] %vm321, %v3003
      %3036 = vst.msk [vmem:[%s177 + $0x80] sm:$0xff] %vm321, %v3004
      %3037 = vst.msk [vmem:[%s177 + $0x88] sm:$0xff] %vm321, %v3005
      %3038 = vst.msk [vmem:[%s177 + $0x90] sm:$0xff] %vm321, %v3006
      %3039 = vst.msk [vmem:[%s177 + $0x98] sm:$0xff] %vm321, %v3007
      %3040 = vst.msk [vmem:[%s177 + $0xa0] sm:$0xff] %vm321, %v3008
      %3041 = vst.msk [vmem:[%s177 + $0xa8] sm:$0xff] %vm321, %v3009
      %3042 = vst.msk [vmem:[%s177 + $0xb0] sm:$0xff] %vm321, %v3010
      %3043 = vst.msk [vmem:[%s177 + $0xb8] sm:$0xff] %vm321, %v3011
      %3044 = vst.msk [vmem:[%s177 + $0xc0] sm:$0xff] %vm321, %v3012
      %3045 = vst.msk [vmem:[%s177 + $0xc8] sm:$0xff] %vm321, %v3013
      %3046 = vst.msk [vmem:[%s177 + $0xd0] sm:$0xff] %vm321, %v3014
      %3047 = vst.msk [vmem:[%s177 + $0xd8] sm:$0xff] %vm321, %v3015
      %3048 = vst.msk [vmem:[%s177 + $0xe0] sm:$0xff] %vm321, %v3016
      %3049 = vst.msk [vmem:[%s177 + $0xe8] sm:$0xff] %vm321, %v3017
      %3050 = vst.msk [vmem:[%s177 + $0xf0] sm:$0xff] %vm321, %v3018
      %3051 = vst.msk [vmem:[%s177 + $0xf8] sm:$0xff] %vm321, %v3019
      %v3052 = vsel %vm321, %v2988, 0.0
      %v3053 = vsel %vm321, %v2989, 0.0
      %v3054 = vadd.f32 %v3052, %v3053
      %v3055 = vsel %vm321, %v2990, 0.0
      %v3056 = vadd.f32 %v3054, %v3055
      %v3057 = vsel %vm321, %v2991, 0.0
      %v3058 = vadd.f32 %v3056, %v3057
      %v3059 = vsel %vm321, %v2992, 0.0
      %v3060 = vadd.f32 %v3058, %v3059
      %v3061 = vsel %vm321, %v2993, 0.0
      %v3062 = vadd.f32 %v3060, %v3061
      %v3063 = vsel %vm321, %v2994, 0.0
      %v3064 = vadd.f32 %v3062, %v3063
      %v3065 = vsel %vm321, %v2995, 0.0
      %v3066 = vadd.f32 %v3064, %v3065
      %v3067 = vsel %vm321, %v2996, 0.0
      %v3068 = vadd.f32 %v3066, %v3067
      %v3069 = vsel %vm321, %v2997, 0.0
      %v3070 = vadd.f32 %v3068, %v3069
      %v3071 = vsel %vm321, %v2998, 0.0
      %v3072 = vadd.f32 %v3070, %v3071
      %v3073 = vsel %vm321, %v2999, 0.0
      %v3074 = vadd.f32 %v3072, %v3073
      %v3075 = vsel %vm321, %v3000, 0.0
      %v3076 = vadd.f32 %v3074, %v3075
      %v3077 = vsel %vm321, %v3001, 0.0
      %v3078 = vadd.f32 %v3076, %v3077
      %v3079 = vsel %vm321, %v3002, 0.0
      %v3080 = vadd.f32 %v3078, %v3079
      %v3081 = vsel %vm321, %v3003, 0.0
      %v3082 = vadd.f32 %v3080, %v3081
      %v3083 = vsel %vm321, %v3004, 0.0
      %v3084 = vadd.f32 %v3082, %v3083
      %v3085 = vsel %vm321, %v3005, 0.0
      %v3086 = vadd.f32 %v3084, %v3085
      %v3087 = vsel %vm321, %v3006, 0.0
      %v3088 = vadd.f32 %v3086, %v3087
      %v3089 = vsel %vm321, %v3007, 0.0
      %v3090 = vadd.f32 %v3088, %v3089
      %v3091 = vsel %vm321, %v3008, 0.0
      %v3092 = vadd.f32 %v3090, %v3091
      %v3093 = vsel %vm321, %v3009, 0.0
      %v3094 = vadd.f32 %v3092, %v3093
      %v3095 = vsel %vm321, %v3010, 0.0
      %v3096 = vadd.f32 %v3094, %v3095
      %v3097 = vsel %vm321, %v3011, 0.0
      %v3098 = vadd.f32 %v3096, %v3097
      %v3099 = vsel %vm321, %v3012, 0.0
      %v3100 = vadd.f32 %v3098, %v3099
      %v3101 = vsel %vm321, %v3013, 0.0
      %v3102 = vadd.f32 %v3100, %v3101
      %v3103 = vsel %vm321, %v3014, 0.0
      %v3104 = vadd.f32 %v3102, %v3103
      %v3105 = vsel %vm321, %v3015, 0.0
      %v3106 = vadd.f32 %v3104, %v3105
      %v3107 = vsel %vm321, %v3016, 0.0
      %v3108 = vadd.f32 %v3106, %v3107
      %v3109 = vsel %vm321, %v3017, 0.0
      %v3110 = vadd.f32 %v3108, %v3109
      %v3111 = vsel %vm321, %v3018, 0.0
      %v3112 = vadd.f32 %v3110, %v3111
      %v3113 = vsel %vm321, %v3019, 0.0
      %v3114 = vadd.f32 %v3112, %v3113
      %v3115 = vrot.slane %v3114, 4
      %v3116 = vadd.f32 %v3114, %v3115
      %v3117 = vrot.slane %v3116, 2
      %v3118 = vadd.f32 %v3116, %v3117
      %v3119 = vrot.slane %v3118, 1
      %v3120 = vadd.f32 %v3118, %v3119
      %v3121 = vmul.f32 %v2988, %v2988
      %v3122 = vmul.f32 %v2989, %v2989
      %v3123 = vmul.f32 %v2990, %v2990
      %v3124 = vmul.f32 %v2991, %v2991
      %v3125 = vmul.f32 %v2992, %v2992
      %v3126 = vmul.f32 %v2993, %v2993
      %v3127 = vmul.f32 %v2994, %v2994
      %v3128 = vmul.f32 %v2995, %v2995
      %v3129 = vmul.f32 %v2996, %v2996
      %v3130 = vmul.f32 %v2997, %v2997
      %v3131 = vmul.f32 %v2998, %v2998
      %v3132 = vmul.f32 %v2999, %v2999
      %v3133 = vmul.f32 %v3000, %v3000
      %v3134 = vmul.f32 %v3001, %v3001
      %v3135 = vmul.f32 %v3002, %v3002
      %v3136 = vmul.f32 %v3003, %v3003
      %v3137 = vmul.f32 %v3004, %v3004
      %v3138 = vmul.f32 %v3005, %v3005
      %v3139 = vmul.f32 %v3006, %v3006
      %v3140 = vmul.f32 %v3007, %v3007
      %v3141 = vmul.f32 %v3008, %v3008
      %v3142 = vmul.f32 %v3009, %v3009
      %v3143 = vmul.f32 %v3010, %v3010
      %v3144 = vmul.f32 %v3011, %v3011
      %v3145 = vmul.f32 %v3012, %v3012
      %v3146 = vmul.f32 %v3013, %v3013
      %v3147 = vmul.f32 %v3014, %v3014
      %v3148 = vmul.f32 %v3015, %v3015
      %v3149 = vmul.f32 %v3016, %v3016
      %v3150 = vmul.f32 %v3017, %v3017
      %v3151 = vmul.f32 %v3018, %v3018
      %v3152 = vmul.f32 %v3019, %v3019
      %v3153 = vsel %vm321, %v3121, 0.0
      %v3154 = vsel %vm321, %v3122, 0.0
      %v3155 = vadd.f32 %v3153, %v3154
      %v3156 = vsel %vm321, %v3123, 0.0
      %v3157 = vadd.f32 %v3155, %v3156
      %v3158 = vsel %vm321, %v3124, 0.0
      %v3159 = vadd.f32 %v3157, %v3158
      %v3160 = vsel %vm321, %v3125, 0.0
      %v3161 = vadd.f32 %v3159, %v3160
      %v3162 = vsel %vm321, %v3126, 0.0
      %v3163 = vadd.f32 %v3161, %v3162
      %v3164 = vsel %vm321, %v3127, 0.0
      %v3165 = vadd.f32 %v3163, %v3164
      %v3166 = vsel %vm321, %v3128, 0.0
      %v3167 = vadd.f32 %v3165, %v3166
      %v3168 = vsel %vm321, %v3129, 0.0
      %v3169 = vadd.f32 %v3167, %v3168
      %v3170 = vsel %vm321, %v3130, 0.0
      %v3171 = vadd.f32 %v3169, %v3170
      %v3172 = vsel %vm321, %v3131, 0.0
      %v3173 = vadd.f32 %v3171, %v3172
      %v3174 = vsel %vm321, %v3132, 0.0
      %v3175 = vadd.f32 %v3173, %v3174
      %v3176 = vsel %vm321, %v3133, 0.0
      %v3177 = vadd.f32 %v3175, %v3176
      %v3178 = vsel %vm321, %v3134, 0.0
      %v3179 = vadd.f32 %v3177, %v3178
      %v3180 = vsel %vm321, %v3135, 0.0
      %v3181 = vadd.f32 %v3179, %v3180
      %v3182 = vsel %vm321, %v3136, 0.0
      %v3183 = vadd.f32 %v3181, %v3182
      %v3184 = vsel %vm321, %v3137, 0.0
      %v3185 = vadd.f32 %v3183, %v3184
      %v3186 = vsel %vm321, %v3138, 0.0
      %v3187 = vadd.f32 %v3185, %v3186
      %v3188 = vsel %vm321, %v3139, 0.0
      %v3189 = vadd.f32 %v3187, %v3188
      %v3190 = vsel %vm321, %v3140, 0.0
      %v3191 = vadd.f32 %v3189, %v3190
      %v3192 = vsel %vm321, %v3141, 0.0
      %v3193 = vadd.f32 %v3191, %v3192
      %v3194 = vsel %vm321, %v3142, 0.0
      %v3195 = vadd.f32 %v3193, %v3194
      %v3196 = vsel %vm321, %v3143, 0.0
      %v3197 = vadd.f32 %v3195, %v3196
      %v3198 = vsel %vm321, %v3144, 0.0
      %v3199 = vadd.f32 %v3197, %v3198
      %v3200 = vsel %vm321, %v3145, 0.0
      %v3201 = vadd.f32 %v3199, %v3200
      %v3202 = vsel %vm321, %v3146, 0.0
      %v3203 = vadd.f32 %v3201, %v3202
      %v3204 = vsel %vm321, %v3147, 0.0
      %v3205 = vadd.f32 %v3203, %v3204
      %v3206 = vsel %vm321, %v3148, 0.0
      %v3207 = vadd.f32 %v3205, %v3206
      %v3208 = vsel %vm321, %v3149, 0.0
      %v3209 = vadd.f32 %v3207, %v3208
      %v3210 = vsel %vm321, %v3150, 0.0
      %v3211 = vadd.f32 %v3209, %v3210
      %v3212 = vsel %vm321, %v3151, 0.0
      %v3213 = vadd.f32 %v3211, %v3212
      %v3214 = vsel %vm321, %v3152, 0.0
      %v3215 = vadd.f32 %v3213, %v3214
      %v3216 = vrot.slane %v3215, 4
      %v3217 = vadd.f32 %v3215, %v3216
      %v3218 = vrot.slane %v3217, 2
      %v3219 = vadd.f32 %v3217, %v3218
      %v3220 = vrot.slane %v3219, 1
      %v3221 = vadd.f32 %v3219, %v3220
      %vm3222 = vcmask 1040384
      %v3223 = vsel %vm3222, %v3120, %v3221
      %vm3224 = vcmask 517120
      %3225 = vst.msk [vmem:[%s182] sm:$0x3] %vm3224, %v3223
      %s3226 = smul.u32 32, %s15
      %p3227 = scmp.lt.s32.totalorder %s3226, 63
      %s3228 = scalar_select %p3227, %s3226, 63
      %s3229 = smul.addr %s3228, 8
      %s3230 = scalar_lea.vmem %s2, %s3229
      %p3231 = scmp.lt.s32.totalorder %s15, 1
      %s3232 = scalar_select %p3231, %s15, 1
      %s3233 = smul.addr %s3232, 2
      %s3234 = scalar_lea.vmem %s3, %s3233
      // Predicated region
      $region29: #{restnet_basic_block_forward.4} parent=27 // pred_check
        %p3235 = pneg %p80
      $region30: #{restnet_basic_block_forward.4} parent=27 // pred_check_branch
        %3237 = sbr.rel (%p3235) target = $region32
      $region31: #{restnet_basic_block_forward.4} parent=27 // pred_region
        %s3238 = smul.u32 32, %s15
      $region32: #{restnet_basic_block_forward.4} parent=27 // pred_fallthru
        _
      // Predicated region
      $region33: #{restnet_basic_block_forward.4} parent=27 // pred_check
        %p3239 = pneg %p106
      $region34: #{restnet_basic_block_forward.4} parent=27 // pred_check_branch
        %3241 = sbr.rel (%p3239) target = $region36
      $region35: #{restnet_basic_block_forward.4} parent=27 // pred_region
        _
      $region36: #{restnet_basic_block_forward.4} parent=27 // pred_fallthru
        _
    $region28: #{restnet_basic_block_forward.4} parent=5 // pred_fallthru
      _
    %p3242 = scmp.le.s32.totalorder 2, %s10
    // Predicated region
    $region37: #{restnet_basic_block_forward.4} parent=5 // pred_check
      %p3243 = pneg %p3242
    $region38: #{restnet_basic_block_forward.4} parent=5 // pred_check_branch
      %3245 = sbr.rel (%p3243) target = $region40
    $region39: #{restnet_basic_block_forward.4} parent=5 // pred_region
      %s3246 = ssub.s32 %s10, 2
      // Predicated region
      $region41: #{restnet_basic_block_forward.4} parent=39 // pred_check
        %p3247 = pneg %p86
      $region42: #{restnet_basic_block_forward.4} parent=39 // pred_check_branch
        %3249 = sbr.rel (%p3247) target = $region44
      $region43: #{restnet_basic_block_forward.4} parent=39 // pred_region
        %s3250 = smul.u32 32, %s16
        %p3251 = scmp.lt.s32.totalorder %s3250, 63
        %s3252 = scalar_select %p3251, %s3250, 63
        %s3253 = smul.addr %s3252, 8
        %s3254 = scalar_lea.vmem %s2, %s3253
      $region44: #{restnet_basic_block_forward.4} parent=39 // pred_fallthru
        _
      // Predicated region
      $region45: #{restnet_basic_block_forward.4} parent=39 // pred_check
        %p3255 = pneg %p112
      $region46: #{restnet_basic_block_forward.4} parent=39 // pred_check_branch
        %3257 = sbr.rel (%p3255) target = $region48
      $region47: #{restnet_basic_block_forward.4} parent=39 // pred_region
        %p3258 = scmp.lt.s32.totalorder %s16, 1
        %s3259 = scalar_select %p3258, %s16, 1
        %s3260 = smul.addr %s3259, 2
        %s3261 = scalar_lea.vmem %s3, %s3260
      $region48: #{restnet_basic_block_forward.4} parent=39 // pred_fallthru
        _
    $region40: #{restnet_basic_block_forward.4} parent=5 // pred_fallthru
      _
  $region6: #{restnet_basic_block_forward.4} parent=0 // loop_footer
    %s14 = sadd.s32 1, %s10
  $region7: #{restnet_basic_block_forward.4} parent=0 // loop_footer_branch
    %9 = sbr.rel target = $region3
  $region8: #{restnet_basic_block_forward.4} parent=0 // loop_exit
    _

// kernel: restnet_basic_block_forward.6
$region0: #{restnet_basic_block_forward.6}
  #allocation0 [shape = 'u32[]', space=smem, size = 0x4, offset = 0x4, fixed_abs, tag = 'smem constant byte address 0x4 - core index']
  #allocation1 [shape = 'u32[144,128]{1,0:T(1,128)}', space=vmem, size = 0x12000, scoped, tag = 'internal scratch']
  %s0 = inlined_call_operand.vmem [shape: bf16[2,18,18,64], index: 0, kind: input, shape index: {}]
  %s1 = inlined_call_operand.vmem [shape: bf16[9,64,64], index: 1, kind: input, shape index: {}]
  %s2 = inlined_call_operand.vmem [shape: f32[512,64], index: 2, kind: output, shape index: {0}]
  %s3 = inlined_call_operand.vmem [shape: f32[2,2,64], index: 3, kind: output, shape index: {1}]
  %4 = xla_tuple %s2, %s3
  %s5 = sld [smem:[#allocation0]]
  $region49: #{restnet_basic_block_forward.6} parent=0
    _
  %s7 = ssub.s32 1, %s5
  %s8 = scalar_select 0, %s7, %s5
  loop: start=0, step=1, limit=4
  $region2: #{restnet_basic_block_forward.6} parent=0 // loop_pre_header
    _
  $region3: #{restnet_basic_block_forward.6} parent=0 // loop_header
    %s10 = sphi 0, %s14
    %p11 = scmp.ge.s32.totalorder %s10, 4
    %s20 = sphi 0, %s22
    %s23 = sphi 0, %s20
    %s24 = sphi 0, %s23
    %s40 = sphi 0, %s24
    %s44 = sphi 0, %s44
    %s46 = sphi 0, %s44
    %s47 = sphi 0, %s46
    %s61 = sphi 0, %s47
    %s67 = sphi 0, %s69
    %s70 = sphi 0, %s67
    %s71 = sphi 0, %s70
    %s87 = sphi 0, %s71
    %s93 = sphi 0, %s95
    %s96 = sphi 0, %s93
    %s97 = sphi 0, %s96
    %s113 = sphi 0, %s97
  $region4: #{restnet_basic_block_forward.6} parent=0 // loop_header_branch
    %13 = sbr.rel (%p11) target = $region8
  $region5: #{restnet_basic_block_forward.6} parent=0 // loop_body
    %s15 = ssub.s32 %s10, 1
    %s16 = ssub.s32 %s10, 2
    %s17 = sadd.s32 %s10, 1
    %s18 = ssub.s32 %s10, %s17
    %p19 = scmp.eq.s32.totalorder %s18, 0
    %s21 = sadd.s32 %s20, 1
    %s22 = scalar_select %p19, %s20, %s21
    %p25 = pneg %p19
    %p26 = scmp.eq.s32.totalorder %s10, 1
    %p27 = por %p25, %p26
    %p28 = scmp.ne.s32.totalorder %s20, %s23
    %p29 = scmp.eq.s32.totalorder %s10, 0
    %p30 = por %p28, %p29
    %p31 = scmp.ne.s32.totalorder %s20, %s23
    %p32 = scmp.eq.s32.totalorder %s15, 1
    %p33 = por %p31, %p32
    %p34 = scmp.ne.s32.totalorder %s23, %s24
    %p35 = scmp.eq.s32.totalorder %s15, 0
    %p36 = por %p34, %p35
    %p37 = scmp.ne.s32.totalorder %s23, %s24
    %p38 = scmp.eq.s32.totalorder %s16, 1
    %p39 = por %p37, %p38
    %p41 = scmp.ne.s32.totalorder %s24, %s40
    %p42 = scmp.eq.s32.totalorder %s16, 0
    %p43 = por %p41, %p42
    %s45 = sadd.s32 %s44, 1
    %p48 = scmp.eq.s32.totalorder %s10, 1
    %p49 = scmp.ne.s32.totalorder %s44, %s46
    %p50 = scmp.eq.s32.totalorder %s10, 0
    %p51 = por %p49, %p50
    %p52 = scmp.ne.s32.totalorder %s44, %s46
    %p53 = scmp.eq.s32.totalorder %s15, 1
    %p54 = por %p52, %p53
    %p55 = scmp.ne.s32.totalorder %s46, %s47
    %p56 = scmp.eq.s32.totalorder %s15, 0
    %p57 = por %p55, %p56
    %p58 = scmp.ne.s32.totalorder %s46, %s47
    %p59 = scmp.eq.s32.totalorder %s16, 1
    %p60 = por %p58, %p59
    %p62 = scmp.ne.s32.totalorder %s47, %s61
    %p63 = scmp.eq.s32.totalorder %s16, 0
    %p64 = por %p62, %p63
    %s65 = ssub.s32 %s10, %s17
    %p66 = scmp.eq.s32.totalorder %s65, 0
    %s68 = sadd.s32 %s67, 1
    %s69 = scalar_select %p66, %s67, %s68
    %p72 = pneg %p66
    %p73 = scmp.eq.s32.totalorder %s10, 1
    %p74 = por %p72, %p73
    %p75 = scmp.ne.s32.totalorder %s67, %s70
    %p76 = scmp.eq.s32.totalorder %s10, 0
    %p77 = por %p75, %p76
    %p78 = scmp.ne.s32.totalorder %s67, %s70
    %p79 = scmp.eq.s32.totalorder %s15, 1
    %p80 = por %p78, %p79
    %p81 = scmp.ne.s32.totalorder %s70, %s71
    %p82 = scmp.eq.s32.totalorder %s15, 0
    %p83 = por %p81, %p82
    %p84 = scmp.ne.s32.totalorder %s70, %s71
    %p85 = scmp.eq.s32.totalorder %s16, 1
    %p86 = por %p84, %p85
    %p88 = scmp.ne.s32.totalorder %s71, %s87
    %p89 = scmp.eq.s32.totalorder %s16, 0
    %p90 = por %p88, %p89
    %s91 = ssub.s32 %s10, %s17
    %p92 = scmp.eq.s32.totalorder %s91, 0
    %s94 = sadd.s32 %s93, 1
    %s95 = scalar_select %p92, %s93, %s94
    %p98 = pneg %p92
    %p99 = scmp.eq.s32.totalorder %s10, 1
    %p100 = por %p98, %p99
    %p101 = scmp.ne.s32.totalorder %s93, %s96
    %p102 = scmp.eq.s32.totalorder %s10, 0
    %p103 = por %p101, %p102
    %p104 = scmp.ne.s32.totalorder %s93, %s96
    %p105 = scmp.eq.s32.totalorder %s15, 1
    %p106 = por %p104, %p105
    %p107 = scmp.ne.s32.totalorder %s96, %s97
    %p108 = scmp.eq.s32.totalorder %s15, 0
    %p109 = por %p107, %p108
    %p110 = scmp.ne.s32.totalorder %s96, %s97
    %p111 = scmp.eq.s32.totalorder %s16, 1
    %p112 = por %p110, %p111
    %p114 = scmp.ne.s32.totalorder %s97, %s113
    %p115 = scmp.eq.s32.totalorder %s16, 0
    %p116 = por %p114, %p115
    %p117 = scmp.le.s32.totalorder 1, %s10
    %p118 = scmp.lt.s32.totalorder %s10, 3
    %p119 = pnand %p117, %p118
    %p120 = pneg %p119
    // Predicated region
    $region9: #{restnet_basic_block_forward.6} parent=5 // pred_check
      _
    $region10: #{restnet_basic_block_forward.6} parent=5 // pred_check_branch
      %122 = sbr.rel (%p119) target = $region12
    $region11: #{restnet_basic_block_forward.6} parent=5 // pred_region
      %s123 = ssub.s32 %s10, 1
      // Predicated region
      $region13: #{restnet_basic_block_forward.6} parent=11 // pred_check
        %p124 = pneg %p57
      $region14: #{restnet_basic_block_forward.6} parent=11 // pred_check_branch
        %126 = sbr.rel (%p124) target = $region16
      $region15: #{restnet_basic_block_forward.6} parent=11 // pred_region
        _
      $region16: #{restnet_basic_block_forward.6} parent=11 // pred_fallthru
        _
    $region12: #{restnet_basic_block_forward.6} parent=5 // pred_fallthru
      _
    %p127 = scmp.lt.s32.totalorder %s10, 2
    // Predicated region
    $region17: #{restnet_basic_block_forward.6} parent=5 // pred_check
      %p128 = pneg %p127
    $region18: #{restnet_basic_block_forward.6} parent=5 // pred_check_branch
      %130 = sbr.rel (%p128) target = $region20
    $region19: #{restnet_basic_block_forward.6} parent=5 // pred_region
      // Predicated region
      $region21: #{restnet_basic_block_forward.6} parent=19 // pred_check
        %p131 = pneg %p30
      $region22: #{restnet_basic_block_forward.6} parent=19 // pred_check_branch
        %133 = sbr.rel (%p131) target = $region24
      $region23: #{restnet_basic_block_forward.6} parent=19 // pred_region
        %p134 = scmp.lt.s32.totalorder %s10, 1
        %s135 = scalar_select %p134, %s10, 1
        %s136 = smul.addr %s135, 54
        %s137 = smul.addr %s136, 4
        %s138 = scalar_lea.vmem %s0, %s137
      $region24: #{restnet_basic_block_forward.6} parent=19 // pred_fallthru
        _
    $region20: #{restnet_basic_block_forward.6} parent=5 // pred_fallthru
      _
    %p139 = scmp.le.s32.totalorder 1, %s10
    %p140 = scmp.lt.s32.totalorder %s10, 3
    %p141 = pnand %p139, %p140
    %p142 = pneg %p141
    // Predicated region
    $region25: #{restnet_basic_block_forward.6} parent=5 // pred_check
      _
    $region26: #{restnet_basic_block_forward.6} parent=5 // pred_check_branch
      %144 = sbr.rel (%p141) target = $region28
    $region27: #{restnet_basic_block_forward.6} parent=5 // pred_region
      %s145 = ssub.s32 %s10, 1
      %p146 = scmp.lt.s32.totalorder %s15, 1
      %s147 = scalar_select %p146, %s15, 1
      %s148 = smul.addr %s147, 54
      %s149 = smul.addr %s148, 4
      %s150 = scalar_lea.vmem %s0, %s149
      %p151 = pneg %p36
      %p152 = pneg %p33
      %p153 = pneg %p57
      %p154 = pneg %p54
      %p155 = pneg %p83
      %p156 = pneg %p80
      %s157 = smul.u32 32, %s15
      %p158 = scmp.lt.s32.totalorder %s157, 63
      %s159 = scalar_select %p158, %s157, 63
      %s160 = smul.addr %s159, 8
      %s161 = scalar_lea.vmem %s2, %s160
      %p162 = pneg %p109
      %p163 = pneg %p106
      %p164 = scmp.lt.s32.totalorder %s15, 1
      %s165 = scalar_select %p164, %s15, 1
      %s166 = smul.addr %s165, 2
      %s167 = scalar_lea.vmem %s3, %s166
      %p168 = scmp.lt.s32.totalorder %s15, 1
      %s169 = scalar_select %p168, %s15, 1
      %s170 = smul.addr %s169, 54
      %s171 = smul.addr %s170, 4
      %s172 = scalar_lea.vmem %s0, %s171
      %s173 = smul.u32 32, %s15
      %p174 = scmp.lt.s32.totalorder %s173, 63
      %s175 = scalar_select %p174, %s173, 63
      %s176 = smul.addr %s175, 8
      %s177 = scalar_lea.vmem %s2, %s176
      %s178 = smul.u32 32, %s15
      %p179 = scmp.lt.s32.totalorder %s15, 1
      %s180 = scalar_select %p179, %s15, 1
      %s181 = smul.addr %s180, 2
      %s182 = scalar_lea.vmem %s3, %s181
      %v184 = vld [vmem:[%s172] sm:$0xf]
      %v185 = vld [vmem:[%s172 + $0x4] sm:$0xf]
      %v186 = vld [vmem:[%s172 + $0xc] sm:$0xf]
      %v187 = vld [vmem:[%s172 + $0x10] sm:$0xf]
      %v188 = vld [vmem:[%s172 + $0x18] sm:$0xf]
      %v189 = vld [vmem:[%s172 + $0x1c] sm:$0xf]
      %v190 = vld [vmem:[%s172 + $0x24] sm:$0xf]
      %v191 = vld [vmem:[%s172 + $0x28] sm:$0xf]
      %v192 = vld [vmem:[%s172 + $0x30] sm:$0xf]
      %v193 = vld [vmem:[%s172 + $0x34] sm:$0xf]
      %v194 = vld [vmem:[%s172 + $0x3c] sm:$0xf]
      %v195 = vld [vmem:[%s172 + $0x40] sm:$0xf]
      %v196 = vld [vmem:[%s172 + $0x48] sm:$0xf]
      %v197 = vld [vmem:[%s172 + $0x4c] sm:$0xf]
      %v198 = vld [vmem:[%s172 + $0x54] sm:$0xf]
      %v199 = vld [vmem:[%s172 + $0x58] sm:$0xf]
      %v200 = vld [vmem:[%s172 + $0x60] sm:$0xf]
      %v201 = vld [vmem:[%s172 + $0x64] sm:$0xf]
      %v202 = vld [vmem:[%s172 + $0x6c] sm:$0xf]
      %v203 = vld [vmem:[%s172 + $0x70] sm:$0xf]
      %v204 = vld [vmem:[%s172 + $0x78] sm:$0xf]
      %v205 = vld [vmem:[%s172 + $0x7c] sm:$0xf]
      %v206 = vld [vmem:[%s172 + $0x84] sm:$0xf]
      %v207 = vld [vmem:[%s172 + $0x88] sm:$0xf]
      %v208 = vld [vmem:[%s172 + $0x90] sm:$0xf]
      %v209 = vld [vmem:[%s172 + $0x94] sm:$0xf]
      %v210 = vld [vmem:[%s172 + $0x9c] sm:$0xf]
      %v211 = vld [vmem:[%s172 + $0xa0] sm:$0xf]
      %v212 = vld [vmem:[%s172 + $0xa8] sm:$0xf]
      %v213 = vld [vmem:[%s172 + $0xac] sm:$0xf]
      %v214 = vld [vmem:[%s172 + $0xb4] sm:$0xf]
      %v215 = vld [vmem:[%s172 + $0xb8] sm:$0xf]
      %v216 = vld [vmem:[%s1] sm:$0xf]
      %v217 = vld [vmem:[%s1 + $0x4] sm:$0xf]
      %v218 = vld [vmem:[%s1 + $0x8] sm:$0xf]
      %v219 = vld [vmem:[%s1 + $0xc] sm:$0xf]
      %v220 = vld [vmem:[%s1 + $0x10] sm:$0xf]
      %v221 = vld [vmem:[%s1 + $0x14] sm:$0xf]
      %v222 = vld [vmem:[%s1 + $0x18] sm:$0xf]
      %v223 = vld [vmem:[%s1 + $0x1c] sm:$0xf]
      %v224 = vld [vmem:[%s172 + $0x8] sm:$0x1]
      %v225 = vld [vmem:[%s172 + $0x14] sm:$0x1]
      %v226 = vld [vmem:[%s172 + $0x20] sm:$0x1]
      %v227 = vld [vmem:[%s172 + $0x2c] sm:$0x1]
      %v228 = vld [vmem:[%s172 + $0x38] sm:$0x1]
      %v229 = vld [vmem:[%s172 + $0x44] sm:$0x1]
      %v230 = vld [vmem:[%s172 + $0x50] sm:$0x1]
      %v231 = vld [vmem:[%s172 + $0x5c] sm:$0x1]
      %v232 = vld [vmem:[%s172 + $0x68] sm:$0x1]
      %v233 = vld [vmem:[%s172 + $0x74] sm:$0x1]
      %v234 = vld [vmem:[%s172 + $0x80] sm:$0x1]
      %v235 = vld [vmem:[%s172 + $0x8c] sm:$0x1]
      %v236 = vld [vmem:[%s172 + $0x98] sm:$0x1]
      %v237 = vld [vmem:[%s172 + $0xa4] sm:$0x1]
      %v238 = vld [vmem:[%s172 + $0xb0] sm:$0x1]
      %v239 = vld [vmem:[%s172 + $0xbc] sm:$0x1]
      %vm240 = vsmask.f32 3328
      %vm241 = vsmask.f32 7440
      %vm242 = vmor %vm240, %vm241
      %v244 = vshrl.u32 %v184, 16
      %v246 = vrot.slane %v244, 4
      %v247 = vshll.u32 %v184, 16
      %v249 = vrot.slane %v247, 5
      %v250 = vor.u32 %v246, %v249
      %v251 = vrot.slane %v250, 4
      %v253 = vshll.u32 %v185, 16
      %v255 = vrot.slane %v253, 5
      %v256 = vsel %vm242, %v251, %v255
      %v257 = vshrl.u32 %v185, 16
      %v259 = vrot.slane %v257, 4
      %v260 = vor.u32 %v259, %v255
      %v261 = vrot.slane %v260, 4
      %v263 = vshll.u32 %v224, 16
      %v265 = vrot.slane %v263, 5
      %v266 = vsel %vm242, %v261, %v265
      %v268 = vshrl.u32 %v186, 16
      %v270 = vrot.slane %v268, 4
      %v271 = vshll.u32 %v186, 16
      %v273 = vrot.slane %v271, 5
      %v274 = vor.u32 %v270, %v273
      %v275 = vrot.slane %v274, 4
      %v277 = vshll.u32 %v187, 16
      %v279 = vrot.slane %v277, 5
      %v280 = vsel %vm242, %v275, %v279
      %v281 = vshrl.u32 %v187, 16
      %v283 = vrot.slane %v281, 4
      %v284 = vor.u32 %v283, %v279
      %v285 = vrot.slane %v284, 4
      %v287 = vshll.u32 %v225, 16
      %v289 = vrot.slane %v287, 5
      %v290 = vsel %vm242, %v285, %v289
      %v292 = vshrl.u32 %v188, 16
      %v294 = vrot.slane %v292, 4
      %v295 = vshll.u32 %v188, 16
      %v297 = vrot.slane %v295, 5
      %v298 = vor.u32 %v294, %v297
      %v299 = vrot.slane %v298, 4
      %v301 = vshll.u32 %v189, 16
      %v303 = vrot.slane %v301, 5
      %v304 = vsel %vm242, %v299, %v303
      %v305 = vshrl.u32 %v189, 16
      %v307 = vrot.slane %v305, 4
      %v308 = vor.u32 %v307, %v303
      %v309 = vrot.slane %v308, 4
      %v311 = vshll.u32 %v226, 16
      %v313 = vrot.slane %v311, 5
      %v314 = vsel %vm242, %v309, %v313
      %v316 = vshrl.u32 %v190, 16
      %v318 = vrot.slane %v316, 4
      %v319 = vshll.u32 %v190, 16
      %v321 = vrot.slane %v319, 5
      %v322 = vor.u32 %v318, %v321
      %v323 = vrot.slane %v322, 4
      %v325 = vshll.u32 %v191, 16
      %v327 = vrot.slane %v325, 5
      %v328 = vsel %vm242, %v323, %v327
      %v329 = vshrl.u32 %v191, 16
      %v331 = vrot.slane %v329, 4
      %v332 = vor.u32 %v331, %v327
      %v333 = vrot.slane %v332, 4
      %v335 = vshll.u32 %v227, 16
      %v337 = vrot.slane %v335, 5
      %v338 = vsel %vm242, %v333, %v337
      %v340 = vshrl.u32 %v192, 16
      %v342 = vrot.slane %v340, 4
      %v343 = vshll.u32 %v192, 16
      %v345 = vrot.slane %v343, 5
      %v346 = vor.u32 %v342, %v345
      %v347 = vrot.slane %v346, 4
      %v349 = vshll.u32 %v193, 16
      %v351 = vrot.slane %v349, 5
      %v352 = vsel %vm242, %v347, %v351
      %v353 = vshrl.u32 %v193, 16
      %v355 = vrot.slane %v353, 4
      %v356 = vor.u32 %v355, %v351
      %v357 = vrot.slane %v356, 4
      %v359 = vshll.u32 %v228, 16
      %v361 = vrot.slane %v359, 5
      %v362 = vsel %vm242, %v357, %v361
      %v364 = vshrl.u32 %v194, 16
      %v366 = vrot.slane %v364, 4
      %v367 = vshll.u32 %v194, 16
      %v369 = vrot.slane %v367, 5
      %v370 = vor.u32 %v366, %v369
      %v371 = vrot.slane %v370, 4
      %v373 = vshll.u32 %v195, 16
      %v375 = vrot.slane %v373, 5
      %v376 = vsel %vm242, %v371, %v375
      %v377 = vshrl.u32 %v195, 16
      %v379 = vrot.slane %v377, 4
      %v380 = vor.u32 %v379, %v375
      %v381 = vrot.slane %v380, 4
      %v383 = vshll.u32 %v229, 16
      %v385 = vrot.slane %v383, 5
      %v386 = vsel %vm242, %v381, %v385
      %v388 = vshrl.u32 %v196, 16
      %v390 = vrot.slane %v388, 4
      %v391 = vshll.u32 %v196, 16
      %v393 = vrot.slane %v391, 5
      %v394 = vor.u32 %v390, %v393
      %v395 = vrot.slane %v394, 4
      %v397 = vshll.u32 %v197, 16
      %v399 = vrot.slane %v397, 5
      %v400 = vsel %vm242, %v395, %v399
      %v401 = vshrl.u32 %v197, 16
      %v403 = vrot.slane %v401, 4
      %v404 = vor.u32 %v403, %v399
      %v405 = vrot.slane %v404, 4
      %v407 = vshll.u32 %v230, 16
      %v409 = vrot.slane %v407, 5
      %v410 = vsel %vm242, %v405, %v409
      %v412 = vshrl.u32 %v198, 16
      %v414 = vrot.slane %v412, 4
      %v415 = vshll.u32 %v198, 16
      %v417 = vrot.slane %v415, 5
      %v418 = vor.u32 %v414, %v417
      %v419 = vrot.slane %v418, 4
      %v421 = vshll.u32 %v199, 16
      %v423 = vrot.slane %v421, 5
      %v424 = vsel %vm242, %v419, %v423
      %v425 = vshrl.u32 %v199, 16
      %v427 = vrot.slane %v425, 4
      %v428 = vor.u32 %v427, %v423
      %v429 = vrot.slane %v428, 4
      %v431 = vshll.u32 %v231, 16
      %v433 = vrot.slane %v431, 5
      %v434 = vsel %vm242, %v429, %v433
      %v436 = vshrl.u32 %v200, 16
      %v438 = vrot.slane %v436, 4
      %v439 = vshll.u32 %v200, 16
      %v441 = vrot.slane %v439, 5
      %v442 = vor.u32 %v438, %v441
      %v443 = vrot.slane %v442, 4
      %v445 = vshll.u32 %v201, 16
      %v447 = vrot.slane %v445, 5
      %v448 = vsel %vm242, %v443, %v447
      %v449 = vshrl.u32 %v201, 16
      %v451 = vrot.slane %v449, 4
      %v452 = vor.u32 %v451, %v447
      %v453 = vrot.slane %v452, 4
      %v455 = vshll.u32 %v232, 16
      %v457 = vrot.slane %v455, 5
      %v458 = vsel %vm242, %v453, %v457
      %v460 = vshrl.u32 %v202, 16
      %v462 = vrot.slane %v460, 4
      %v463 = vshll.u32 %v202, 16
      %v465 = vrot.slane %v463, 5
      %v466 = vor.u32 %v462, %v465
      %v467 = vrot.slane %v466, 4
      %v469 = vshll.u32 %v203, 16
      %v471 = vrot.slane %v469, 5
      %v472 = vsel %vm242, %v467, %v471
      %v473 = vshrl.u32 %v203, 16
      %v475 = vrot.slane %v473, 4
      %v476 = vor.u32 %v475, %v471
      %v477 = vrot.slane %v476, 4
      %v479 = vshll.u32 %v233, 16
      %v481 = vrot.slane %v479, 5
      %v482 = vsel %vm242, %v477, %v481
      %v484 = vshrl.u32 %v204, 16
      %v486 = vrot.slane %v484, 4
      %v487 = vshll.u32 %v204, 16
      %v489 = vrot.slane %v487, 5
      %v490 = vor.u32 %v486, %v489
      %v491 = vrot.slane %v490, 4
      %v493 = vshll.u32 %v205, 16
      %v495 = vrot.slane %v493, 5
      %v496 = vsel %vm242, %v491, %v495
      %v497 = vshrl.u32 %v205, 16
      %v499 = vrot.slane %v497, 4
      %v500 = vor.u32 %v499, %v495
      %v501 = vrot.slane %v500, 4
      %v503 = vshll.u32 %v234, 16
      %v505 = vrot.slane %v503, 5
      %v506 = vsel %vm242, %v501, %v505
      %v508 = vshrl.u32 %v206, 16
      %v510 = vrot.slane %v508, 4
      %v511 = vshll.u32 %v206, 16
      %v513 = vrot.slane %v511, 5
      %v514 = vor.u32 %v510, %v513
      %v515 = vrot.slane %v514, 4
      %v517 = vshll.u32 %v207, 16
      %v519 = vrot.slane %v517, 5
      %v520 = vsel %vm242, %v515, %v519
      %v521 = vshrl.u32 %v207, 16
      %v523 = vrot.slane %v521, 4
      %v524 = vor.u32 %v523, %v519
      %v525 = vrot.slane %v524, 4
      %v527 = vshll.u32 %v235, 16
      %v529 = vrot.slane %v527, 5
      %v530 = vsel %vm242, %v525, %v529
      %v532 = vshrl.u32 %v208, 16
      %v534 = vrot.slane %v532, 4
      %v535 = vshll.u32 %v208, 16
      %v537 = vrot.slane %v535, 5
      %v538 = vor.u32 %v534, %v537
      %v539 = vrot.slane %v538, 4
      %v541 = vshll.u32 %v209, 16
      %v543 = vrot.slane %v541, 5
      %v544 = vsel %vm242, %v539, %v543
      %v545 = vshrl.u32 %v209, 16
      %v547 = vrot.slane %v545, 4
      %v548 = vor.u32 %v547, %v543
      %v549 = vrot.slane %v548, 4
      %v551 = vshll.u32 %v236, 16
      %v553 = vrot.slane %v551, 5
      %v554 = vsel %vm242, %v549, %v553
      %v556 = vshrl.u32 %v210, 16
      %v558 = vrot.slane %v556, 4
      %v559 = vshll.u32 %v210, 16
      %v561 = vrot.slane %v559, 5
      %v562 = vor.u32 %v558, %v561
      %v563 = vrot.slane %v562, 4
      %v565 = vshll.u32 %v211, 16
      %v567 = vrot.slane %v565, 5
      %v568 = vsel %vm242, %v563, %v567
      %v569 = vshrl.u32 %v211, 16
      %v571 = vrot.slane %v569, 4
      %v572 = vor.u32 %v571, %v567
      %v573 = vrot.slane %v572, 4
      %v575 = vshll.u32 %v237, 16
      %v577 = vrot.slane %v575, 5
      %v578 = vsel %vm242, %v573, %v577
      %v580 = vshrl.u32 %v212, 16
      %v582 = vrot.slane %v580, 4
      %v583 = vshll.u32 %v212, 16
      %v585 = vrot.slane %v583, 5
      %v586 = vor.u32 %v582, %v585
      %v587 = vrot.slane %v586, 4
      %v589 = vshll.u32 %v213, 16
      %v591 = vrot.slane %v589, 5
      %v592 = vsel %vm242, %v587, %v591
      %v593 = vshrl.u32 %v213, 16
      %v595 = vrot.slane %v593, 4
      %v596 = vor.u32 %v595, %v591
      %v597 = vrot.slane %v596, 4
      %v599 = vshll.u32 %v238, 16
      %v601 = vrot.slane %v599, 5
      %v602 = vsel %vm242, %v597, %v601
      %v604 = vshrl.u32 %v214, 16
      %v606 = vrot.slane %v604, 4
      %v607 = vshll.u32 %v214, 16
      %v609 = vrot.slane %v607, 5
      %v610 = vor.u32 %v606, %v609
      %v611 = vrot.slane %v610, 4
      %v613 = vshll.u32 %v215, 16
      %v615 = vrot.slane %v613, 5
      %v616 = vsel %vm242, %v611, %v615
      %v617 = vshrl.u32 %v215, 16
      %v619 = vrot.slane %v617, 4
      %v620 = vor.u32 %v619, %v615
      %v621 = vrot.slane %v620, 4
      %v623 = vshll.u32 %v239, 16
      %v625 = vrot.slane %v623, 5
      %v626 = vsel %vm242, %v621, %v625
      %s627 = scalar_lea.vmem %s1, 32
      %v628 = vld [vmem:[%s627] sm:$0xf]
      %v629 = vld [vmem:[%s627 + $0x4] sm:$0xf]
      %v630 = vld [vmem:[%s627 + $0x8] sm:$0xf]
      %v631 = vld [vmem:[%s627 + $0xc] sm:$0xf]
      %v632 = vld [vmem:[%s627 + $0x10] sm:$0xf]
      %v633 = vld [vmem:[%s627 + $0x14] sm:$0xf]
      %v634 = vld [vmem:[%s627 + $0x18] sm:$0xf]
      %v635 = vld [vmem:[%s627 + $0x1c] sm:$0xf]
      %v636 = vunpack.c.l.b16 %v256
      %v637 = vunpack.c.l.b16 %v266
      %v638 = vunpack.c.l.b16 %v280
      %v639 = vunpack.c.l.b16 %v290
      %v640 = vunpack.c.l.b16 %v304
      %v641 = vunpack.c.l.b16 %v314
      %v642 = vunpack.c.l.b16 %v328
      %v643 = vunpack.c.l.b16 %v338
      %v644 = vunpack.c.l.b16 %v352
      %v645 = vunpack.c.l.b16 %v362
      %v646 = vunpack.c.l.b16 %v376
      %v647 = vunpack.c.l.b16 %v386
      %v648 = vunpack.c.l.b16 %v400
      %v649 = vunpack.c.l.b16 %v410
      %v650 = vunpack.c.l.b16 %v424
      %v651 = vunpack.c.l.b16 %v434
      %v652 = vunpack.c.l.b16 %v448
      %v653 = vunpack.c.l.b16 %v458
      %v654 = vunpack.c.l.b16 %v472
      %v655 = vunpack.c.l.b16 %v482
      %v656 = vunpack.c.l.b16 %v496
      %v657 = vunpack.c.l.b16 %v506
      %v658 = vunpack.c.l.b16 %v520
      %v659 = vunpack.c.l.b16 %v530
      %v660 = vunpack.c.l.b16 %v544
      %v661 = vunpack.c.l.b16 %v554
      %v662 = vunpack.c.l.b16 %v568
      %v663 = vunpack.c.l.b16 %v578
      %v664 = vunpack.c.l.b16 %v592
      %v665 = vunpack.c.l.b16 %v602
      %v666 = vunpack.c.l.b16 %v616
      %v667 = vunpack.c.l.b16 %v626
      %v668 = vpack.c.b16 %v637, %v636
      %v669 = vpack.c.b16 %v639, %v638
      %v670 = vpack.c.b16 %v641, %v640
      %v671 = vpack.c.b16 %v643, %v642
      %v672 = vpack.c.b16 %v645, %v644
      %v673 = vpack.c.b16 %v647, %v646
      %v674 = vpack.c.b16 %v649, %v648
      %v675 = vpack.c.b16 %v651, %v650
      %v676 = vpack.c.b16 %v653, %v652
      %v677 = vpack.c.b16 %v655, %v654
      %v678 = vpack.c.b16 %v657, %v656
      %v679 = vpack.c.b16 %v659, %v658
      %v680 = vpack.c.b16 %v661, %v660
      %v681 = vpack.c.b16 %v663, %v662
      %v682 = vpack.c.b16 %v665, %v664
      %v683 = vpack.c.b16 %v667, %v666
      %v692 = vunpack.c.l.b16 %v628
      %v693 = vunpack.c.l.b16 %v629
      %v694 = vunpack.c.l.b16 %v630
      %v695 = vunpack.c.l.b16 %v631
      %v696 = vunpack.c.l.b16 %v632
      %v697 = vunpack.c.l.b16 %v633
      %v698 = vunpack.c.l.b16 %v634
      %v699 = vunpack.c.l.b16 %v635
      %v700 = vpack.c.b16 %v693, %v692
      %v701 = vpack.c.b16 %v695, %v694
      %v702 = vpack.c.b16 %v697, %v696
      %v703 = vpack.c.b16 %v699, %v698
      %vm708 = vcmask 523264
      %v710 = vsel %vm708, %v668, 0
      %v713 = vsel %vm708, %v669, 0
      %v716 = vsel %vm708, %v670, 0
      %v719 = vsel %vm708, %v671, 0
      %v722 = vsel %vm708, %v672, 0
      %v725 = vsel %vm708, %v673, 0
      %v728 = vsel %vm708, %v674, 0
      %v731 = vsel %vm708, %v675, 0
      %v734 = vsel %vm708, %v676, 0
      %v737 = vsel %vm708, %v677, 0
      %v740 = vsel %vm708, %v678, 0
      %v743 = vsel %vm708, %v679, 0
      %v746 = vsel %vm708, %v680, 0
      %v749 = vsel %vm708, %v681, 0
      %v752 = vsel %vm708, %v682, 0
      %v755 = vsel %vm708, %v683, 0
      %757 = vmatprep.subr.bf16.mxu0 0
      %758 = vmatpush1.bf16.msra.mxu0 0
      %759 = vmatprep.subr.bf16.mxu0 0
      %760 = vmatpush1.bf16.msra.mxu0 0
      %761 = vmatprep.subr.bf16.mxu0 0
      %762 = vmatpush1.bf16.msra.mxu0 0
      %763 = vmatprep.subr.bf16.mxu0 0
      %764 = vmatpush1.bf16.msra.mxu0 0
      %765 = vmatprep.subr.bf16.mxu0 0
      %766 = vmatpush1.bf16.msra.mxu0 %v703
      %767 = vmatprep.subr.bf16.mxu0 0
      %768 = vmatpush1.bf16.msra.mxu0 %v702
      %769 = vmatprep.subr.bf16.mxu0 0
      %770 = vmatpush1.bf16.msra.mxu0 %v701
      %771 = vmatprep.subr.bf16.mxu0 0
      %772 = vmatpush1.bf16.msra.mxu0 %v700
      %773 = vmatprep.subr.bf16.mxu0 0
      %774 = vmatpush2.bf16.msra.mxu0 0
      %775 = vmatprep.subr.bf16.mxu0 0
      %776 = vmatpush2.bf16.msra.mxu0 0
      %777 = vmatprep.subr.bf16.mxu0 0
      %778 = vmatpush2.bf16.msra.mxu0 0
      %779 = vmatprep.subr.bf16.mxu0 0
      %780 = vmatpush2.bf16.msra.mxu0 0
      %781 = vmatprep.subr.bf16.mxu0 0
      %782 = vmatpush2.bf16.msra.mxu0 0
      %783 = vmatprep.subr.bf16.mxu0 0
      %784 = vmatpush2.bf16.msra.mxu0 0
      %785 = vmatprep.subr.bf16.mxu0 0
      %786 = vmatpush2.bf16.msra.mxu0 0
      %787 = vmatprep.subr.bf16.mxu0 0
      %788 = vmatpush2.bf16.msra.mxu0 0
      %789 = vmatprep.mubr.bf16.mxu0 0
      %790 = vmatmul.mubr.bf16.gmra.mxu0 %v710
      %v791 = vpop.f32.mrf.mxu0
      %v792 = vadd.f32 0.0, %v791
      %v793 = vpop.f32.mrf.mxu0
      %v794 = vpop.f32.mrf.mxu0
      %v795 = vadd.f32 0.0, %v794
      %v796 = vpop.f32.mrf.mxu0
      %797 = vmatprep.mubr.bf16.mxu0 0
      %798 = vmatmul.mubr.bf16.gmra.mxu0 %v713
      %v799 = vpop.f32.mrf.mxu0
      %v800 = vadd.f32 0.0, %v799
      %v801 = vpop.f32.mrf.mxu0
      %v802 = vpop.f32.mrf.mxu0
      %v803 = vadd.f32 0.0, %v802
      %v804 = vpop.f32.mrf.mxu0
      %805 = vmatprep.mubr.bf16.mxu0 0
      %806 = vmatmul.mubr.bf16.gmra.mxu0 %v716
      %v807 = vpop.f32.mrf.mxu0
      %v808 = vadd.f32 0.0, %v807
      %v809 = vpop.f32.mrf.mxu0
      %v810 = vpop.f32.mrf.mxu0
      %v811 = vadd.f32 0.0, %v810
      %v812 = vpop.f32.mrf.mxu0
      %813 = vmatprep.mubr.bf16.mxu0 0
      %814 = vmatmul.mubr.bf16.gmra.mxu0 %v719
      %v815 = vpop.f32.mrf.mxu0
      %v816 = vadd.f32 0.0, %v815
      %v817 = vpop.f32.mrf.mxu0
      %v818 = vpop.f32.mrf.mxu0
      %v819 = vadd.f32 0.0, %v818
      %v820 = vpop.f32.mrf.mxu0
      %821 = vmatprep.mubr.bf16.mxu0 0
      %822 = vmatmul.mubr.bf16.gmra.mxu0 %v722
      %v823 = vpop.f32.mrf.mxu0
      %v824 = vadd.f32 0.0, %v823
      %v825 = vpop.f32.mrf.mxu0
      %v826 = vpop.f32.mrf.mxu0
      %v827 = vadd.f32 0.0, %v826
      %v828 = vpop.f32.mrf.mxu0
      %829 = vmatprep.mubr.bf16.mxu0 0
      %830 = vmatmul.mubr.bf16.gmra.mxu0 %v725
      %v831 = vpop.f32.mrf.mxu0
      %v832 = vadd.f32 0.0, %v831
      %v833 = vpop.f32.mrf.mxu0
      %v834 = vpop.f32.mrf.mxu0
      %v835 = vadd.f32 0.0, %v834
      %v836 = vpop.f32.mrf.mxu0
      %837 = vmatprep.mubr.bf16.mxu0 0
      %838 = vmatmul.mubr.bf16.gmra.mxu0 %v728
      %v839 = vpop.f32.mrf.mxu0
      %v840 = vadd.f32 0.0, %v839
      %v841 = vpop.f32.mrf.mxu0
      %v842 = vpop.f32.mrf.mxu0
      %v843 = vadd.f32 0.0, %v842
      %v844 = vpop.f32.mrf.mxu0
      %845 = vmatprep.mubr.bf16.mxu0 0
      %846 = vmatmul.mubr.bf16.gmra.mxu0 %v731
      %v847 = vpop.f32.mrf.mxu0
      %v848 = vadd.f32 0.0, %v847
      %v849 = vpop.f32.mrf.mxu0
      %v850 = vpop.f32.mrf.mxu0
      %v851 = vadd.f32 0.0, %v850
      %v852 = vpop.f32.mrf.mxu0
      %853 = vmatprep.mubr.bf16.mxu0 0
      %854 = vmatmul.mubr.bf16.gmra.mxu0 %v734
      %v855 = vpop.f32.mrf.mxu0
      %v856 = vadd.f32 0.0, %v855
      %v857 = vpop.f32.mrf.mxu0
      %v858 = vpop.f32.mrf.mxu0
      %v859 = vadd.f32 0.0, %v858
      %v860 = vpop.f32.mrf.mxu0
      %861 = vmatprep.mubr.bf16.mxu0 0
      %862 = vmatmul.mubr.bf16.gmra.mxu0 %v737
      %v863 = vpop.f32.mrf.mxu0
      %v864 = vadd.f32 0.0, %v863
      %v865 = vpop.f32.mrf.mxu0
      %v866 = vpop.f32.mrf.mxu0
      %v867 = vadd.f32 0.0, %v866
      %v868 = vpop.f32.mrf.mxu0
      %869 = vmatprep.mubr.bf16.mxu0 0
      %870 = vmatmul.mubr.bf16.gmra.mxu0 %v740
      %v871 = vpop.f32.mrf.mxu0
      %v872 = vadd.f32 0.0, %v871
      %v873 = vpop.f32.mrf.mxu0
      %v874 = vpop.f32.mrf.mxu0
      %v875 = vadd.f32 0.0, %v874
      %v876 = vpop.f32.mrf.mxu0
      %877 = vmatprep.mubr.bf16.mxu0 0
      %878 = vmatmul.mubr.bf16.gmra.mxu0 %v743
      %v879 = vpop.f32.mrf.mxu0
      %v880 = vadd.f32 0.0, %v879
      %v881 = vpop.f32.mrf.mxu0
      %v882 = vpop.f32.mrf.mxu0
      %v883 = vadd.f32 0.0, %v882
      %v884 = vpop.f32.mrf.mxu0
      %885 = vmatprep.mubr.bf16.mxu0 0
      %886 = vmatmul.mubr.bf16.gmra.mxu0 %v746
      %v887 = vpop.f32.mrf.mxu0
      %v888 = vadd.f32 0.0, %v887
      %v889 = vpop.f32.mrf.mxu0
      %v890 = vpop.f32.mrf.mxu0
      %v891 = vadd.f32 0.0, %v890
      %v892 = vpop.f32.mrf.mxu0
      %893 = vmatprep.mubr.bf16.mxu0 0
      %894 = vmatmul.mubr.bf16.gmra.mxu0 %v749
      %v895 = vpop.f32.mrf.mxu0
      %v896 = vadd.f32 0.0, %v895
      %v897 = vpop.f32.mrf.mxu0
      %v898 = vpop.f32.mrf.mxu0
      %v899 = vadd.f32 0.0, %v898
      %v900 = vpop.f32.mrf.mxu0
      %901 = vmatprep.mubr.bf16.mxu0 0
      %902 = vmatmul.mubr.bf16.gmra.mxu0 %v752
      %v903 = vpop.f32.mrf.mxu0
      %v904 = vadd.f32 0.0, %v903
      %v905 = vpop.f32.mrf.mxu0
      %v906 = vpop.f32.mrf.mxu0
      %v907 = vadd.f32 0.0, %v906
      %v908 = vpop.f32.mrf.mxu0
      %909 = vmatprep.mubr.bf16.mxu0 0
      %910 = vmatmul.mubr.bf16.gmra.mxu0 %v755
      %v911 = vpop.f32.mrf.mxu0
      %v912 = vadd.f32 0.0, %v911
      %v913 = vpop.f32.mrf.mxu0
      %v914 = vpop.f32.mrf.mxu0
      %v915 = vadd.f32 0.0, %v914
      %v916 = vpop.f32.mrf.mxu0
      %917 = vdwg.mxu0
      %v950 = vunpack.c.l.b16 %v184
      %v951 = vunpack.c.l.b16 %v185
      %v952 = vunpack.c.l.b16 %v186
      %v953 = vunpack.c.l.b16 %v187
      %v954 = vunpack.c.l.b16 %v188
      %v955 = vunpack.c.l.b16 %v189
      %v956 = vunpack.c.l.b16 %v190
      %v957 = vunpack.c.l.b16 %v191
      %v958 = vunpack.c.l.b16 %v192
      %v959 = vunpack.c.l.b16 %v193
      %v960 = vunpack.c.l.b16 %v194
      %v961 = vunpack.c.l.b16 %v195
      %v962 = vunpack.c.l.b16 %v196
      %v963 = vunpack.c.l.b16 %v197
      %v964 = vunpack.c.l.b16 %v198
      %v965 = vunpack.c.l.b16 %v199
      %v966 = vunpack.c.l.b16 %v200
      %v967 = vunpack.c.l.b16 %v201
      %v968 = vunpack.c.l.b16 %v202
      %v969 = vunpack.c.l.b16 %v203
      %v970 = vunpack.c.l.b16 %v204
      %v971 = vunpack.c.l.b16 %v205
      %v972 = vunpack.c.l.b16 %v206
      %v973 = vunpack.c.l.b16 %v207
      %v974 = vunpack.c.l.b16 %v208
      %v975 = vunpack.c.l.b16 %v209
      %v976 = vunpack.c.l.b16 %v210
      %v977 = vunpack.c.l.b16 %v211
      %v978 = vunpack.c.l.b16 %v212
      %v979 = vunpack.c.l.b16 %v213
      %v980 = vunpack.c.l.b16 %v214
      %v981 = vunpack.c.l.b16 %v215
      %v982 = vpack.c.b16 %v951, %v950
      %v983 = vpack.c.b16 %v953, %v952
      %v984 = vpack.c.b16 %v955, %v954
      %v985 = vpack.c.b16 %v957, %v956
      %v986 = vpack.c.b16 %v959, %v958
      %v987 = vpack.c.b16 %v961, %v960
      %v988 = vpack.c.b16 %v963, %v962
      %v989 = vpack.c.b16 %v965, %v964
      %v990 = vpack.c.b16 %v967, %v966
      %v991 = vpack.c.b16 %v969, %v968
      %v992 = vpack.c.b16 %v971, %v970
      %v993 = vpack.c.b16 %v973, %v972
      %v994 = vpack.c.b16 %v975, %v974
      %v995 = vpack.c.b16 %v977, %v976
      %v996 = vpack.c.b16 %v979, %v978
      %v997 = vpack.c.b16 %v981, %v980
      %v1006 = vunpack.c.l.b16 %v216
      %v1007 = vunpack.c.l.b16 %v217
      %v1008 = vunpack.c.l.b16 %v218
      %v1009 = vunpack.c.l.b16 %v219
      %v1010 = vunpack.c.l.b16 %v220
      %v1011 = vunpack.c.l.b16 %v221
      %v1012 = vunpack.c.l.b16 %v222
      %v1013 = vunpack.c.l.b16 %v223
      %v1014 = vpack.c.b16 %v1007, %v1006
      %v1015 = vpack.c.b16 %v1009, %v1008
      %v1016 = vpack.c.b16 %v1011, %v1010
      %v1017 = vpack.c.b16 %v1013, %v1012
      %v1023 = vsel %vm708, %v982, 0
      %v1026 = vsel %vm708, %v983, 0
      %v1029 = vsel %vm708, %v984, 0
      %v1032 = vsel %vm708, %v985, 0
      %v1035 = vsel %vm708, %v986, 0
      %v1038 = vsel %vm708, %v987, 0
      %v1041 = vsel %vm708, %v988, 0
      %v1044 = vsel %vm708, %v989, 0
      %v1047 = vsel %vm708, %v990, 0
      %v1050 = vsel %vm708, %v991, 0
      %v1053 = vsel %vm708, %v992, 0
      %v1056 = vsel %vm708, %v993, 0
      %v1059 = vsel %vm708, %v994, 0
      %v1062 = vsel %vm708, %v995, 0
      %v1065 = vsel %vm708, %v996, 0
      %v1068 = vsel %vm708, %v997, 0
      %1070 = vmatprep.subr.bf16.mxu0 0
      %1071 = vmatpush1.bf16.msra.mxu0 0
      %1072 = vmatprep.subr.bf16.mxu0 0
      %1073 = vmatpush1.bf16.msra.mxu0 0
      %1074 = vmatprep.subr.bf16.mxu0 0
      %1075 = vmatpush1.bf16.msra.mxu0 0
      %1076 = vmatprep.subr.bf16.mxu0 0
      %1077 = vmatpush1.bf16.msra.mxu0 0
      %1078 = vmatprep.subr.bf16.mxu0 0
      %1079 = vmatpush1.bf16.msra.mxu0 %v1017
      %1080 = vmatprep.subr.bf16.mxu0 0
      %1081 = vmatpush1.bf16.msra.mxu0 %v1016
      %1082 = vmatprep.subr.bf16.mxu0 0
      %1083 = vmatpush1.bf16.msra.mxu0 %v1015
      %1084 = vmatprep.subr.bf16.mxu0 0
      %1085 = vmatpush1.bf16.msra.mxu0 %v1014
      %1086 = vmatprep.subr.bf16.mxu0 0
      %1087 = vmatpush2.bf16.msra.mxu0 0
      %1088 = vmatprep.subr.bf16.mxu0 0
      %1089 = vmatpush2.bf16.msra.mxu0 0
      %1090 = vmatprep.subr.bf16.mxu0 0
      %1091 = vmatpush2.bf16.msra.mxu0 0
      %1092 = vmatprep.subr.bf16.mxu0 0
      %1093 = vmatpush2.bf16.msra.mxu0 0
      %1094 = vmatprep.subr.bf16.mxu0 0
      %1095 = vmatpush2.bf16.msra.mxu0 0
      %1096 = vmatprep.subr.bf16.mxu0 0
      %1097 = vmatpush2.bf16.msra.mxu0 0
      %1098 = vmatprep.subr.bf16.mxu0 0
      %1099 = vmatpush2.bf16.msra.mxu0 0
      %1100 = vmatprep.subr.bf16.mxu0 0
      %1101 = vmatpush2.bf16.msra.mxu0 0
      %1102 = vmatprep.mubr.bf16.mxu0 0
      %1103 = vmatmul.mubr.bf16.gmra.mxu0 %v1023
      %v1104 = vpop.f32.mrf.mxu0
      %v1105 = vadd.f32 %v792, %v1104
      %v1106 = vpop.f32.mrf.mxu0
      %v1107 = vpop.f32.mrf.mxu0
      %v1108 = vadd.f32 %v795, %v1107
      %v1109 = vpop.f32.mrf.mxu0
      %1110 = vmatprep.mubr.bf16.mxu0 0
      %1111 = vmatmul.mubr.bf16.gmra.mxu0 %v1026
      %v1112 = vpop.f32.mrf.mxu0
      %v1113 = vadd.f32 %v800, %v1112
      %v1114 = vpop.f32.mrf.mxu0
      %v1115 = vpop.f32.mrf.mxu0
      %v1116 = vadd.f32 %v803, %v1115
      %v1117 = vpop.f32.mrf.mxu0
      %1118 = vmatprep.mubr.bf16.mxu0 0
      %1119 = vmatmul.mubr.bf16.gmra.mxu0 %v1029
      %v1120 = vpop.f32.mrf.mxu0
      %v1121 = vadd.f32 %v808, %v1120
      %v1122 = vpop.f32.mrf.mxu0
      %v1123 = vpop.f32.mrf.mxu0
      %v1124 = vadd.f32 %v811, %v1123
      %v1125 = vpop.f32.mrf.mxu0
      %1126 = vmatprep.mubr.bf16.mxu0 0
      %1127 = vmatmul.mubr.bf16.gmra.mxu0 %v1032
      %v1128 = vpop.f32.mrf.mxu0
      %v1129 = vadd.f32 %v816, %v1128
      %v1130 = vpop.f32.mrf.mxu0
      %v1131 = vpop.f32.mrf.mxu0
      %v1132 = vadd.f32 %v819, %v1131
      %v1133 = vpop.f32.mrf.mxu0
      %1134 = vmatprep.mubr.bf16.mxu0 0
      %1135 = vmatmul.mubr.bf16.gmra.mxu0 %v1035
      %v1136 = vpop.f32.mrf.mxu0
      %v1137 = vadd.f32 %v824, %v1136
      %v1138 = vpop.f32.mrf.mxu0
      %v1139 = vpop.f32.mrf.mxu0
      %v1140 = vadd.f32 %v827, %v1139
      %v1141 = vpop.f32.mrf.mxu0
      %1142 = vmatprep.mubr.bf16.mxu0 0
      %1143 = vmatmul.mubr.bf16.gmra.mxu0 %v1038
      %v1144 = vpop.f32.mrf.mxu0
      %v1145 = vadd.f32 %v832, %v1144
      %v1146 = vpop.f32.mrf.mxu0
      %v1147 = vpop.f32.mrf.mxu0
      %v1148 = vadd.f32 %v835, %v1147
      %v1149 = vpop.f32.mrf.mxu0
      %1150 = vmatprep.mubr.bf16.mxu0 0
      %1151 = vmatmul.mubr.bf16.gmra.mxu0 %v1041
      %v1152 = vpop.f32.mrf.mxu0
      %v1153 = vadd.f32 %v840, %v1152
      %v1154 = vpop.f32.mrf.mxu0
      %v1155 = vpop.f32.mrf.mxu0
      %v1156 = vadd.f32 %v843, %v1155
      %v1157 = vpop.f32.mrf.mxu0
      %1158 = vmatprep.mubr.bf16.mxu0 0
      %1159 = vmatmul.mubr.bf16.gmra.mxu0 %v1044
      %v1160 = vpop.f32.mrf.mxu0
      %v1161 = vadd.f32 %v848, %v1160
      %v1162 = vpop.f32.mrf.mxu0
      %v1163 = vpop.f32.mrf.mxu0
      %v1164 = vadd.f32 %v851, %v1163
      %v1165 = vpop.f32.mrf.mxu0
      %1166 = vmatprep.mubr.bf16.mxu0 0
      %1167 = vmatmul.mubr.bf16.gmra.mxu0 %v1047
      %v1168 = vpop.f32.mrf.mxu0
      %v1169 = vadd.f32 %v856, %v1168
      %v1170 = vpop.f32.mrf.mxu0
      %v1171 = vpop.f32.mrf.mxu0
      %v1172 = vadd.f32 %v859, %v1171
      %v1173 = vpop.f32.mrf.mxu0
      %1174 = vmatprep.mubr.bf16.mxu0 0
      %1175 = vmatmul.mubr.bf16.gmra.mxu0 %v1050
      %v1176 = vpop.f32.mrf.mxu0
      %v1177 = vadd.f32 %v864, %v1176
      %v1178 = vpop.f32.mrf.mxu0
      %v1179 = vpop.f32.mrf.mxu0
      %v1180 = vadd.f32 %v867, %v1179
      %v1181 = vpop.f32.mrf.mxu0
      %1182 = vmatprep.mubr.bf16.mxu0 0
      %1183 = vmatmul.mubr.bf16.gmra.mxu0 %v1053
      %v1184 = vpop.f32.mrf.mxu0
      %v1185 = vadd.f32 %v872, %v1184
      %v1186 = vpop.f32.mrf.mxu0
      %v1187 = vpop.f32.mrf.mxu0
      %v1188 = vadd.f32 %v875, %v1187
      %v1189 = vpop.f32.mrf.mxu0
      %1190 = vmatprep.mubr.bf16.mxu0 0
      %1191 = vmatmul.mubr.bf16.gmra.mxu0 %v1056
      %v1192 = vpop.f32.mrf.mxu0
      %v1193 = vadd.f32 %v880, %v1192
      %v1194 = vpop.f32.mrf.mxu0
      %v1195 = vpop.f32.mrf.mxu0
      %v1196 = vadd.f32 %v883, %v1195
      %v1197 = vpop.f32.mrf.mxu0
      %1198 = vmatprep.mubr.bf16.mxu0 0
      %1199 = vmatmul.mubr.bf16.gmra.mxu0 %v1059
      %v1200 = vpop.f32.mrf.mxu0
      %v1201 = vadd.f32 %v888, %v1200
      %v1202 = vpop.f32.mrf.mxu0
      %v1203 = vpop.f32.mrf.mxu0
      %v1204 = vadd.f32 %v891, %v1203
      %v1205 = vpop.f32.mrf.mxu0
      %1206 = vmatprep.mubr.bf16.mxu0 0
      %1207 = vmatmul.mubr.bf16.gmra.mxu0 %v1062
      %v1208 = vpop.f32.mrf.mxu0
      %v1209 = vadd.f32 %v896, %v1208
      %v1210 = vpop.f32.mrf.mxu0
      %v1211 = vpop.f32.mrf.mxu0
      %v1212 = vadd.f32 %v899, %v1211
      %v1213 = vpop.f32.mrf.mxu0
      %1214 = vmatprep.mubr.bf16.mxu0 0
      %1215 = vmatmul.mubr.bf16.gmra.mxu0 %v1065
      %v1216 = vpop.f32.mrf.mxu0
      %v1217 = vadd.f32 %v904, %v1216
      %v1218 = vpop.f32.mrf.mxu0
      %v1219 = vpop.f32.mrf.mxu0
      %v1220 = vadd.f32 %v907, %v1219
      %v1221 = vpop.f32.mrf.mxu0
      %1222 = vmatprep.mubr.bf16.mxu0 0
      %1223 = vmatmul.mubr.bf16.gmra.mxu0 %v1068
      %v1224 = vpop.f32.mrf.mxu0
      %v1225 = vadd.f32 %v912, %v1224
      %v1226 = vpop.f32.mrf.mxu0
      %v1227 = vpop.f32.mrf.mxu0
      %v1228 = vadd.f32 %v915, %v1227
      %v1229 = vpop.f32.mrf.mxu0
      %1230 = vdwg.mxu0
      %v1231 = vld [vmem:[%s172] sm:$0xe]
      %v1232 = vld [vmem:[%s172 + $0xc] sm:$0xe]
      %v1233 = vld [vmem:[%s172 + $0x18] sm:$0xe]
      %v1234 = vld [vmem:[%s172 + $0x24] sm:$0xe]
      %v1235 = vld [vmem:[%s172 + $0x30] sm:$0xe]
      %v1236 = vld [vmem:[%s172 + $0x3c] sm:$0xe]
      %v1237 = vld [vmem:[%s172 + $0x48] sm:$0xe]
      %v1238 = vld [vmem:[%s172 + $0x54] sm:$0xe]
      %v1239 = vld [vmem:[%s172 + $0x60] sm:$0xe]
      %v1240 = vld [vmem:[%s172 + $0x6c] sm:$0xe]
      %v1241 = vld [vmem:[%s172 + $0x78] sm:$0xe]
      %v1242 = vld [vmem:[%s172 + $0x84] sm:$0xe]
      %v1243 = vld [vmem:[%s172 + $0x90] sm:$0xe]
      %v1244 = vld [vmem:[%s172 + $0x9c] sm:$0xe]
      %v1245 = vld [vmem:[%s172 + $0xa8] sm:$0xe]
      %v1246 = vld [vmem:[%s172 + $0xb4] sm:$0xe]
      %vm1279 = vcmask 1042432
      %vm1280 = vcmask 1046532
      %vm1281 = vmor %vm1279, %vm1280
      %v1282 = vrot.slane %v1231, 5
      %v1283 = vrot.slane %v1282, 4
      %v1284 = vrot.slane %v185, 5
      %v1285 = vsel %vm1281, %v1283, %v1284
      %v1286 = vrot.slane %v1284, 4
      %v1287 = vrot.slane %v224, 5
      %v1288 = vsel %vm1281, %v1286, %v1287
      %v1289 = vrot.slane %v1232, 5
      %v1290 = vrot.slane %v1289, 4
      %v1291 = vrot.slane %v187, 5
      %v1292 = vsel %vm1281, %v1290, %v1291
      %v1293 = vrot.slane %v1291, 4
      %v1294 = vrot.slane %v225, 5
      %v1295 = vsel %vm1281, %v1293, %v1294
      %v1296 = vrot.slane %v1233, 5
      %v1297 = vrot.slane %v1296, 4
      %v1298 = vrot.slane %v189, 5
      %v1299 = vsel %vm1281, %v1297, %v1298
      %v1300 = vrot.slane %v1298, 4
      %v1301 = vrot.slane %v226, 5
      %v1302 = vsel %vm1281, %v1300, %v1301
      %v1303 = vrot.slane %v1234, 5
      %v1304 = vrot.slane %v1303, 4
      %v1305 = vrot.slane %v191, 5
      %v1306 = vsel %vm1281, %v1304, %v1305
      %v1307 = vrot.slane %v1305, 4
      %v1308 = vrot.slane %v227, 5
      %v1309 = vsel %vm1281, %v1307, %v1308
      %v1310 = vrot.slane %v1235, 5
      %v1311 = vrot.slane %v1310, 4
      %v1312 = vrot.slane %v193, 5
      %v1313 = vsel %vm1281, %v1311, %v1312
      %v1314 = vrot.slane %v1312, 4
      %v1315 = vrot.slane %v228, 5
      %v1316 = vsel %vm1281, %v1314, %v1315
      %v1317 = vrot.slane %v1236, 5
      %v1318 = vrot.slane %v1317, 4
      %v1319 = vrot.slane %v195, 5
      %v1320 = vsel %vm1281, %v1318, %v1319
      %v1321 = vrot.slane %v1319, 4
      %v1322 = vrot.slane %v229, 5
      %v1323 = vsel %vm1281, %v1321, %v1322
      %v1324 = vrot.slane %v1237, 5
      %v1325 = vrot.slane %v1324, 4
      %v1326 = vrot.slane %v197, 5
      %v1327 = vsel %vm1281, %v1325, %v1326
      %v1328 = vrot.slane %v1326, 4
      %v1329 = vrot.slane %v230, 5
      %v1330 = vsel %vm1281, %v1328, %v1329
      %v1331 = vrot.slane %v1238, 5
      %v1332 = vrot.slane %v1331, 4
      %v1333 = vrot.slane %v199, 5
      %v1334 = vsel %vm1281, %v1332, %v1333
      %v1335 = vrot.slane %v1333, 4
      %v1336 = vrot.slane %v231, 5
      %v1337 = vsel %vm1281, %v1335, %v1336
      %v1338 = vrot.slane %v1239, 5
      %v1339 = vrot.slane %v1338, 4
      %v1340 = vrot.slane %v201, 5
      %v1341 = vsel %vm1281, %v1339, %v1340
      %v1342 = vrot.slane %v1340, 4
      %v1343 = vrot.slane %v232, 5
      %v1344 = vsel %vm1281, %v1342, %v1343
      %v1345 = vrot.slane %v1240, 5
      %v1346 = vrot.slane %v1345, 4
      %v1347 = vrot.slane %v203, 5
      %v1348 = vsel %vm1281, %v1346, %v1347
      %v1349 = vrot.slane %v1347, 4
      %v1350 = vrot.slane %v233, 5
      %v1351 = vsel %vm1281, %v1349, %v1350
      %v1352 = vrot.slane %v1241, 5
      %v1353 = vrot.slane %v1352, 4
      %v1354 = vrot.slane %v205, 5
      %v1355 = vsel %vm1281, %v1353, %v1354
      %v1356 = vrot.slane %v1354, 4
      %v1357 = vrot.slane %v234, 5
      %v1358 = vsel %vm1281, %v1356, %v1357
      %v1359 = vrot.slane %v1242, 5
      %v1360 = vrot.slane %v1359, 4
      %v1361 = vrot.slane %v207, 5
      %v1362 = vsel %vm1281, %v1360, %v1361
      %v1363 = vrot.slane %v1361, 4
      %v1364 = vrot.slane %v235, 5
      %v1365 = vsel %vm1281, %v1363, %v1364
      %v1366 = vrot.slane %v1243, 5
      %v1367 = vrot.slane %v1366, 4
      %v1368 = vrot.slane %v209, 5
      %v1369 = vsel %vm1281, %v1367, %v1368
      %v1370 = vrot.slane %v1368, 4
      %v1371 = vrot.slane %v236, 5
      %v1372 = vsel %vm1281, %v1370, %v1371
      %v1373 = vrot.slane %v1244, 5
      %v1374 = vrot.slane %v1373, 4
      %v1375 = vrot.slane %v211, 5
      %v1376 = vsel %vm1281, %v1374, %v1375
      %v1377 = vrot.slane %v1375, 4
      %v1378 = vrot.slane %v237, 5
      %v1379 = vsel %vm1281, %v1377, %v1378
      %v1380 = vrot.slane %v1245, 5
      %v1381 = vrot.slane %v1380, 4
      %v1382 = vrot.slane %v213, 5
      %v1383 = vsel %vm1281, %v1381, %v1382
      %v1384 = vrot.slane %v1382, 4
      %v1385 = vrot.slane %v238, 5
      %v1386 = vsel %vm1281, %v1384, %v1385
      %v1387 = vrot.slane %v1246, 5
      %v1388 = vrot.slane %v1387, 4
      %v1389 = vrot.slane %v215, 5
      %v1390 = vsel %vm1281, %v1388, %v1389
      %v1391 = vrot.slane %v1389, 4
      %v1392 = vrot.slane %v239, 5
      %v1393 = vsel %vm1281, %v1391, %v1392
      %s1394 = scalar_lea.vmem %s1, 64
      %v1395 = vld [vmem:[%s1394] sm:$0xf]
      %v1396 = vld [vmem:[%s1394 + $0x4] sm:$0xf]
      %v1397 = vld [vmem:[%s1394 + $0x8] sm:$0xf]
      %v1398 = vld [vmem:[%s1394 + $0xc] sm:$0xf]
      %v1399 = vld [vmem:[%s1394 + $0x10] sm:$0xf]
      %v1400 = vld [vmem:[%s1394 + $0x14] sm:$0xf]
      %v1401 = vld [vmem:[%s1394 + $0x18] sm:$0xf]
      %v1402 = vld [vmem:[%s1394 + $0x1c] sm:$0xf]
      %v1403 = vunpack.c.l.b16 %v1285
      %v1404 = vunpack.c.l.b16 %v1288
      %v1405 = vunpack.c.l.b16 %v1292
      %v1406 = vunpack.c.l.b16 %v1295
      %v1407 = vunpack.c.l.b16 %v1299
      %v1408 = vunpack.c.l.b16 %v1302
      %v1409 = vunpack.c.l.b16 %v1306
      %v1410 = vunpack.c.l.b16 %v1309
      %v1411 = vunpack.c.l.b16 %v1313
      %v1412 = vunpack.c.l.b16 %v1316
      %v1413 = vunpack.c.l.b16 %v1320
      %v1414 = vunpack.c.l.b16 %v1323
      %v1415 = vunpack.c.l.b16 %v1327
      %v1416 = vunpack.c.l.b16 %v1330
      %v1417 = vunpack.c.l.b16 %v1334
      %v1418 = vunpack.c.l.b16 %v1337
      %v1419 = vunpack.c.l.b16 %v1341
      %v1420 = vunpack.c.l.b16 %v1344
      %v1421 = vunpack.c.l.b16 %v1348
      %v1422 = vunpack.c.l.b16 %v1351
      %v1423 = vunpack.c.l.b16 %v1355
      %v1424 = vunpack.c.l.b16 %v1358
      %v1425 = vunpack.c.l.b16 %v1362
      %v1426 = vunpack.c.l.b16 %v1365
      %v1427 = vunpack.c.l.b16 %v1369
      %v1428 = vunpack.c.l.b16 %v1372
      %v1429 = vunpack.c.l.b16 %v1376
      %v1430 = vunpack.c.l.b16 %v1379
      %v1431 = vunpack.c.l.b16 %v1383
      %v1432 = vunpack.c.l.b16 %v1386
      %v1433 = vunpack.c.l.b16 %v1390
      %v1434 = vunpack.c.l.b16 %v1393
      %v1435 = vpack.c.b16 %v1404, %v1403
      %v1436 = vpack.c.b16 %v1406, %v1405
      %v1437 = vpack.c.b16 %v1408, %v1407
      %v1438 = vpack.c.b16 %v1410, %v1409
      %v1439 = vpack.c.b16 %v1412, %v1411
      %v1440 = vpack.c.b16 %v1414, %v1413
      %v1441 = vpack.c.b16 %v1416, %v1415
      %v1442 = vpack.c.b16 %v1418, %v1417
      %v1443 = vpack.c.b16 %v1420, %v1419
      %v1444 = vpack.c.b16 %v1422, %v1421
      %v1445 = vpack.c.b16 %v1424, %v1423
      %v1446 = vpack.c.b16 %v1426, %v1425
      %v1447 = vpack.c.b16 %v1428, %v1427
      %v1448 = vpack.c.b16 %v1430, %v1429
      %v1449 = vpack.c.b16 %v1432, %v1431
      %v1450 = vpack.c.b16 %v1434, %v1433
      %v1459 = vunpack.c.l.b16 %v1395
      %v1460 = vunpack.c.l.b16 %v1396
      %v1461 = vunpack.c.l.b16 %v1397
      %v1462 = vunpack.c.l.b16 %v1398
      %v1463 = vunpack.c.l.b16 %v1399
      %v1464 = vunpack.c.l.b16 %v1400
      %v1465 = vunpack.c.l.b16 %v1401
      %v1466 = vunpack.c.l.b16 %v1402
      %v1467 = vpack.c.b16 %v1460, %v1459
      %v1468 = vpack.c.b16 %v1462, %v1461
      %v1469 = vpack.c.b16 %v1464, %v1463
      %v1470 = vpack.c.b16 %v1466, %v1465
      %v1476 = vsel %vm708, %v1435, 0
      %v1479 = vsel %vm708, %v1436, 0
      %v1482 = vsel %vm708, %v1437, 0
      %v1485 = vsel %vm708, %v1438, 0
      %v1488 = vsel %vm708, %v1439, 0
      %v1491 = vsel %vm708, %v1440, 0
      %v1494 = vsel %vm708, %v1441, 0
      %v1497 = vsel %vm708, %v1442, 0
      %v1500 = vsel %vm708, %v1443, 0
      %v1503 = vsel %vm708, %v1444, 0
      %v1506 = vsel %vm708, %v1445, 0
      %v1509 = vsel %vm708, %v1446, 0
      %v1512 = vsel %vm708, %v1447, 0
      %v1515 = vsel %vm708, %v1448, 0
      %v1518 = vsel %vm708, %v1449, 0
      %v1521 = vsel %vm708, %v1450, 0
      %1523 = vmatprep.subr.bf16.mxu0 0
      %1524 = vmatpush1.bf16.msra.mxu0 0
      %1525 = vmatprep.subr.bf16.mxu0 0
      %1526 = vmatpush1.bf16.msra.mxu0 0
      %1527 = vmatprep.subr.bf16.mxu0 0
      %1528 = vmatpush1.bf16.msra.mxu0 0
      %1529 = vmatprep.subr.bf16.mxu0 0
      %1530 = vmatpush1.bf16.msra.mxu0 0
      %1531 = vmatprep.subr.bf16.mxu0 0
      %1532 = vmatpush1.bf16.msra.mxu0 %v1470
      %1533 = vmatprep.subr.bf16.mxu0 0
      %1534 = vmatpush1.bf16.msra.mxu0 %v1469
      %1535 = vmatprep.subr.bf16.mxu0 0
      %1536 = vmatpush1.bf16.msra.mxu0 %v1468
      %1537 = vmatprep.subr.bf16.mxu0 0
      %1538 = vmatpush1.bf16.msra.mxu0 %v1467
      %1539 = vmatprep.subr.bf16.mxu0 0
      %1540 = vmatpush2.bf16.msra.mxu0 0
      %1541 = vmatprep.subr.bf16.mxu0 0
      %1542 = vmatpush2.bf16.msra.mxu0 0
      %1543 = vmatprep.subr.bf16.mxu0 0
      %1544 = vmatpush2.bf16.msra.mxu0 0
      %1545 = vmatprep.subr.bf16.mxu0 0
      %1546 = vmatpush2.bf16.msra.mxu0 0
      %1547 = vmatprep.subr.bf16.mxu0 0
      %1548 = vmatpush2.bf16.msra.mxu0 0
      %1549 = vmatprep.subr.bf16.mxu0 0
      %1550 = vmatpush2.bf16.msra.mxu0 0
      %1551 = vmatprep.subr.bf16.mxu0 0
      %1552 = vmatpush2.bf16.msra.mxu0 0
      %1553 = vmatprep.subr.bf16.mxu0 0
      %1554 = vmatpush2.bf16.msra.mxu0 0
      %1555 = vmatprep.mubr.bf16.mxu0 0
      %1556 = vmatmul.mubr.bf16.gmra.mxu0 %v1476
      %v1557 = vpop.f32.mrf.mxu0
      %v1558 = vadd.f32 0.0, %v1557
      %v1559 = vpop.f32.mrf.mxu0
      %v1560 = vpop.f32.mrf.mxu0
      %v1561 = vadd.f32 0.0, %v1560
      %v1562 = vpop.f32.mrf.mxu0
      %1563 = vmatprep.mubr.bf16.mxu0 0
      %1564 = vmatmul.mubr.bf16.gmra.mxu0 %v1479
      %v1565 = vpop.f32.mrf.mxu0
      %v1566 = vadd.f32 0.0, %v1565
      %v1567 = vpop.f32.mrf.mxu0
      %v1568 = vpop.f32.mrf.mxu0
      %v1569 = vadd.f32 0.0, %v1568
      %v1570 = vpop.f32.mrf.mxu0
      %1571 = vmatprep.mubr.bf16.mxu0 0
      %1572 = vmatmul.mubr.bf16.gmra.mxu0 %v1482
      %v1573 = vpop.f32.mrf.mxu0
      %v1574 = vadd.f32 0.0, %v1573
      %v1575 = vpop.f32.mrf.mxu0
      %v1576 = vpop.f32.mrf.mxu0
      %v1577 = vadd.f32 0.0, %v1576
      %v1578 = vpop.f32.mrf.mxu0
      %1579 = vmatprep.mubr.bf16.mxu0 0
      %1580 = vmatmul.mubr.bf16.gmra.mxu0 %v1485
      %v1581 = vpop.f32.mrf.mxu0
      %v1582 = vadd.f32 0.0, %v1581
      %v1583 = vpop.f32.mrf.mxu0
      %v1584 = vpop.f32.mrf.mxu0
      %v1585 = vadd.f32 0.0, %v1584
      %v1586 = vpop.f32.mrf.mxu0
      %1587 = vmatprep.mubr.bf16.mxu0 0
      %1588 = vmatmul.mubr.bf16.gmra.mxu0 %v1488
      %v1589 = vpop.f32.mrf.mxu0
      %v1590 = vadd.f32 0.0, %v1589
      %v1591 = vpop.f32.mrf.mxu0
      %v1592 = vpop.f32.mrf.mxu0
      %v1593 = vadd.f32 0.0, %v1592
      %v1594 = vpop.f32.mrf.mxu0
      %1595 = vmatprep.mubr.bf16.mxu0 0
      %1596 = vmatmul.mubr.bf16.gmra.mxu0 %v1491
      %v1597 = vpop.f32.mrf.mxu0
      %v1598 = vadd.f32 0.0, %v1597
      %v1599 = vpop.f32.mrf.mxu0
      %v1600 = vpop.f32.mrf.mxu0
      %v1601 = vadd.f32 0.0, %v1600
      %v1602 = vpop.f32.mrf.mxu0
      %1603 = vmatprep.mubr.bf16.mxu0 0
      %1604 = vmatmul.mubr.bf16.gmra.mxu0 %v1494
      %v1605 = vpop.f32.mrf.mxu0
      %v1606 = vadd.f32 0.0, %v1605
      %v1607 = vpop.f32.mrf.mxu0
      %v1608 = vpop.f32.mrf.mxu0
      %v1609 = vadd.f32 0.0, %v1608
      %v1610 = vpop.f32.mrf.mxu0
      %1611 = vmatprep.mubr.bf16.mxu0 0
      %1612 = vmatmul.mubr.bf16.gmra.mxu0 %v1497
      %v1613 = vpop.f32.mrf.mxu0
      %v1614 = vadd.f32 0.0, %v1613
      %v1615 = vpop.f32.mrf.mxu0
      %v1616 = vpop.f32.mrf.mxu0
      %v1617 = vadd.f32 0.0, %v1616
      %v1618 = vpop.f32.mrf.mxu0
      %1619 = vmatprep.mubr.bf16.mxu0 0
      %1620 = vmatmul.mubr.bf16.gmra.mxu0 %v1500
      %v1621 = vpop.f32.mrf.mxu0
      %v1622 = vadd.f32 0.0, %v1621
      %v1623 = vpop.f32.mrf.mxu0
      %v1624 = vpop.f32.mrf.mxu0
      %v1625 = vadd.f32 0.0, %v1624
      %v1626 = vpop.f32.mrf.mxu0
      %1627 = vmatprep.mubr.bf16.mxu0 0
      %1628 = vmatmul.mubr.bf16.gmra.mxu0 %v1503
      %v1629 = vpop.f32.mrf.mxu0
      %v1630 = vadd.f32 0.0, %v1629
      %v1631 = vpop.f32.mrf.mxu0
      %v1632 = vpop.f32.mrf.mxu0
      %v1633 = vadd.f32 0.0, %v1632
      %v1634 = vpop.f32.mrf.mxu0
      %1635 = vmatprep.mubr.bf16.mxu0 0
      %1636 = vmatmul.mubr.bf16.gmra.mxu0 %v1506
      %v1637 = vpop.f32.mrf.mxu0
      %v1638 = vadd.f32 0.0, %v1637
      %v1639 = vpop.f32.mrf.mxu0
      %v1640 = vpop.f32.mrf.mxu0
      %v1641 = vadd.f32 0.0, %v1640
      %v1642 = vpop.f32.mrf.mxu0
      %1643 = vmatprep.mubr.bf16.mxu0 0
      %1644 = vmatmul.mubr.bf16.gmra.mxu0 %v1509
      %v1645 = vpop.f32.mrf.mxu0
      %v1646 = vadd.f32 0.0, %v1645
      %v1647 = vpop.f32.mrf.mxu0
      %v1648 = vpop.f32.mrf.mxu0
      %v1649 = vadd.f32 0.0, %v1648
      %v1650 = vpop.f32.mrf.mxu0
      %1651 = vmatprep.mubr.bf16.mxu0 0
      %1652 = vmatmul.mubr.bf16.gmra.mxu0 %v1512
      %v1653 = vpop.f32.mrf.mxu0
      %v1654 = vadd.f32 0.0, %v1653
      %v1655 = vpop.f32.mrf.mxu0
      %v1656 = vpop.f32.mrf.mxu0
      %v1657 = vadd.f32 0.0, %v1656
      %v1658 = vpop.f32.mrf.mxu0
      %1659 = vmatprep.mubr.bf16.mxu0 0
      %1660 = vmatmul.mubr.bf16.gmra.mxu0 %v1515
      %v1661 = vpop.f32.mrf.mxu0
      %v1662 = vadd.f32 0.0, %v1661
      %v1663 = vpop.f32.mrf.mxu0
      %v1664 = vpop.f32.mrf.mxu0
      %v1665 = vadd.f32 0.0, %v1664
      %v1666 = vpop.f32.mrf.mxu0
      %1667 = vmatprep.mubr.bf16.mxu0 0
      %1668 = vmatmul.mubr.bf16.gmra.mxu0 %v1518
      %v1669 = vpop.f32.mrf.mxu0
      %v1670 = vadd.f32 0.0, %v1669
      %v1671 = vpop.f32.mrf.mxu0
      %v1672 = vpop.f32.mrf.mxu0
      %v1673 = vadd.f32 0.0, %v1672
      %v1674 = vpop.f32.mrf.mxu0
      %1675 = vmatprep.mubr.bf16.mxu0 0
      %1676 = vmatmul.mubr.bf16.gmra.mxu0 %v1521
      %v1677 = vpop.f32.mrf.mxu0
      %v1678 = vadd.f32 0.0, %v1677
      %v1679 = vpop.f32.mrf.mxu0
      %v1680 = vpop.f32.mrf.mxu0
      %v1681 = vadd.f32 0.0, %v1680
      %v1682 = vpop.f32.mrf.mxu0
      %1683 = vdwg.mxu0
      %v1684 = vadd.f32 %v1105, %v1558
      %v1685 = vadd.f32 %v1108, %v1561
      %v1686 = vadd.f32 %v1113, %v1566
      %v1687 = vadd.f32 %v1116, %v1569
      %v1688 = vadd.f32 %v1121, %v1574
      %v1689 = vadd.f32 %v1124, %v1577
      %v1690 = vadd.f32 %v1129, %v1582
      %v1691 = vadd.f32 %v1132, %v1585
      %v1692 = vadd.f32 %v1137, %v1590
      %v1693 = vadd.f32 %v1140, %v1593
      %v1694 = vadd.f32 %v1145, %v1598
      %v1695 = vadd.f32 %v1148, %v1601
      %v1696 = vadd.f32 %v1153, %v1606
      %v1697 = vadd.f32 %v1156, %v1609
      %v1698 = vadd.f32 %v1161, %v1614
      %v1699 = vadd.f32 %v1164, %v1617
      %v1700 = vadd.f32 %v1169, %v1622
      %v1701 = vadd.f32 %v1172, %v1625
      %v1702 = vadd.f32 %v1177, %v1630
      %v1703 = vadd.f32 %v1180, %v1633
      %v1704 = vadd.f32 %v1185, %v1638
      %v1705 = vadd.f32 %v1188, %v1641
      %v1706 = vadd.f32 %v1193, %v1646
      %v1707 = vadd.f32 %v1196, %v1649
      %v1708 = vadd.f32 %v1201, %v1654
      %v1709 = vadd.f32 %v1204, %v1657
      %v1710 = vadd.f32 %v1209, %v1662
      %v1711 = vadd.f32 %v1212, %v1665
      %v1712 = vadd.f32 %v1217, %v1670
      %v1713 = vadd.f32 %v1220, %v1673
      %v1714 = vadd.f32 %v1225, %v1678
      %v1715 = vadd.f32 %v1228, %v1681
      %s1716 = scalar_lea.vmem %s172, 12
      %v1717 = vld [vmem:[%s1716] sm:$0xf]
      %v1718 = vld [vmem:[%s1716 + $0x4] sm:$0xf]
      %v1719 = vld [vmem:[%s1716 + $0xc] sm:$0xf]
      %v1720 = vld [vmem:[%s1716 + $0x10] sm:$0xf]
      %v1721 = vld [vmem:[%s1716 + $0x18] sm:$0xf]
      %v1722 = vld [vmem:[%s1716 + $0x1c] sm:$0xf]
      %v1723 = vld [vmem:[%s1716 + $0x24] sm:$0xf]
      %v1724 = vld [vmem:[%s1716 + $0x28] sm:$0xf]
      %v1725 = vld [vmem:[%s1716 + $0x30] sm:$0xf]
      %v1726 = vld [vmem:[%s1716 + $0x34] sm:$0xf]
      %v1727 = vld [vmem:[%s1716 + $0x3c] sm:$0xf]
      %v1728 = vld [vmem:[%s1716 + $0x40] sm:$0xf]
      %v1729 = vld [vmem:[%s1716 + $0x48] sm:$0xf]
      %v1730 = vld [vmem:[%s1716 + $0x4c] sm:$0xf]
      %v1731 = vld [vmem:[%s1716 + $0x54] sm:$0xf]
      %v1732 = vld [vmem:[%s1716 + $0x58] sm:$0xf]
      %v1733 = vld [vmem:[%s1716 + $0x60] sm:$0xf]
      %v1734 = vld [vmem:[%s1716 + $0x64] sm:$0xf]
      %v1735 = vld [vmem:[%s1716 + $0x6c] sm:$0xf]
      %v1736 = vld [vmem:[%s1716 + $0x70] sm:$0xf]
      %v1737 = vld [vmem:[%s1716 + $0x78] sm:$0xf]
      %v1738 = vld [vmem:[%s1716 + $0x7c] sm:$0xf]
      %v1739 = vld [vmem:[%s1716 + $0x84] sm:$0xf]
      %v1740 = vld [vmem:[%s1716 + $0x88] sm:$0xf]
      %v1741 = vld [vmem:[%s1716 + $0x90] sm:$0xf]
      %v1742 = vld [vmem:[%s1716 + $0x94] sm:$0xf]
      %v1743 = vld [vmem:[%s1716 + $0x9c] sm:$0xf]
      %v1744 = vld [vmem:[%s1716 + $0xa0] sm:$0xf]
      %v1745 = vld [vmem:[%s1716 + $0xa8] sm:$0xf]
      %v1746 = vld [vmem:[%s1716 + $0xac] sm:$0xf]
      %v1747 = vld [vmem:[%s1716 + $0xb4] sm:$0xf]
      %v1748 = vld [vmem:[%s1716 + $0xb8] sm:$0xf]
      %s1749 = scalar_lea.vmem %s1, 96
      %v1750 = vld [vmem:[%s1749] sm:$0xf]
      %v1751 = vld [vmem:[%s1749 + $0x4] sm:$0xf]
      %v1752 = vld [vmem:[%s1749 + $0x8] sm:$0xf]
      %v1753 = vld [vmem:[%s1749 + $0xc] sm:$0xf]
      %v1754 = vld [vmem:[%s1749 + $0x10] sm:$0xf]
      %v1755 = vld [vmem:[%s1749 + $0x14] sm:$0xf]
      %v1756 = vld [vmem:[%s1749 + $0x18] sm:$0xf]
      %v1757 = vld [vmem:[%s1749 + $0x1c] sm:$0xf]
      %v1790 = vunpack.c.l.b16 %v1717
      %v1791 = vunpack.c.l.b16 %v1718
      %v1792 = vunpack.c.l.b16 %v1719
      %v1793 = vunpack.c.l.b16 %v1720
      %v1794 = vunpack.c.l.b16 %v1721
      %v1795 = vunpack.c.l.b16 %v1722
      %v1796 = vunpack.c.l.b16 %v1723
      %v1797 = vunpack.c.l.b16 %v1724
      %v1798 = vunpack.c.l.b16 %v1725
      %v1799 = vunpack.c.l.b16 %v1726
      %v1800 = vunpack.c.l.b16 %v1727
      %v1801 = vunpack.c.l.b16 %v1728
      %v1802 = vunpack.c.l.b16 %v1729
      %v1803 = vunpack.c.l.b16 %v1730
      %v1804 = vunpack.c.l.b16 %v1731
      %v1805 = vunpack.c.l.b16 %v1732
      %v1806 = vunpack.c.l.b16 %v1733
      %v1807 = vunpack.c.l.b16 %v1734
      %v1808 = vunpack.c.l.b16 %v1735
      %v1809 = vunpack.c.l.b16 %v1736
      %v1810 = vunpack.c.l.b16 %v1737
      %v1811 = vunpack.c.l.b16 %v1738
      %v1812 = vunpack.c.l.b16 %v1739
      %v1813 = vunpack.c.l.b16 %v1740
      %v1814 = vunpack.c.l.b16 %v1741
      %v1815 = vunpack.c.l.b16 %v1742
      %v1816 = vunpack.c.l.b16 %v1743
      %v1817 = vunpack.c.l.b16 %v1744
      %v1818 = vunpack.c.l.b16 %v1745
      %v1819 = vunpack.c.l.b16 %v1746
      %v1820 = vunpack.c.l.b16 %v1747
      %v1821 = vunpack.c.l.b16 %v1748
      %v1822 = vpack.c.b16 %v1791, %v1790
      %v1823 = vpack.c.b16 %v1793, %v1792
      %v1824 = vpack.c.b16 %v1795, %v1794
      %v1825 = vpack.c.b16 %v1797, %v1796
      %v1826 = vpack.c.b16 %v1799, %v1798
      %v1827 = vpack.c.b16 %v1801, %v1800
      %v1828 = vpack.c.b16 %v1803, %v1802
      %v1829 = vpack.c.b16 %v1805, %v1804
      %v1830 = vpack.c.b16 %v1807, %v1806
      %v1831 = vpack.c.b16 %v1809, %v1808
      %v1832 = vpack.c.b16 %v1811, %v1810
      %v1833 = vpack.c.b16 %v1813, %v1812
      %v1834 = vpack.c.b16 %v1815, %v1814
      %v1835 = vpack.c.b16 %v1817, %v1816
      %v1836 = vpack.c.b16 %v1819, %v1818
      %v1837 = vpack.c.b16 %v1821, %v1820
      %v1846 = vunpack.c.l.b16 %v1750
      %v1847 = vunpack.c.l.b16 %v1751
      %v1848 = vunpack.c.l.b16 %v1752
      %v1849 = vunpack.c.l.b16 %v1753
      %v1850 = vunpack.c.l.b16 %v1754
      %v1851 = vunpack.c.l.b16 %v1755
      %v1852 = vunpack.c.l.b16 %v1756
      %v1853 = vunpack.c.l.b16 %v1757
      %v1854 = vpack.c.b16 %v1847, %v1846
      %v1855 = vpack.c.b16 %v1849, %v1848
      %v1856 = vpack.c.b16 %v1851, %v1850
      %v1857 = vpack.c.b16 %v1853, %v1852
      %v1863 = vsel %vm708, %v1822, 0
      %v1866 = vsel %vm708, %v1823, 0
      %v1869 = vsel %vm708, %v1824, 0
      %v1872 = vsel %vm708, %v1825, 0
      %v1875 = vsel %vm708, %v1826, 0
      %v1878 = vsel %vm708, %v1827, 0
      %v1881 = vsel %vm708, %v1828, 0
      %v1884 = vsel %vm708, %v1829, 0
      %v1887 = vsel %vm708, %v1830, 0
      %v1890 = vsel %vm708, %v1831, 0
      %v1893 = vsel %vm708, %v1832, 0
      %v1896 = vsel %vm708, %v1833, 0
      %v1899 = vsel %vm708, %v1834, 0
      %v1902 = vsel %vm708, %v1835, 0
      %v1905 = vsel %vm708, %v1836, 0
      %v1908 = vsel %vm708, %v1837, 0
      %1910 = vmatprep.subr.bf16.mxu0 0
      %1911 = vmatpush1.bf16.msra.mxu0 0
      %1912 = vmatprep.subr.bf16.mxu0 0
      %1913 = vmatpush1.bf16.msra.mxu0 0
      %1914 = vmatprep.subr.bf16.mxu0 0
      %1915 = vmatpush1.bf16.msra.mxu0 0
      %1916 = vmatprep.subr.bf16.mxu0 0
      %1917 = vmatpush1.bf16.msra.mxu0 0
      %1918 = vmatprep.subr.bf16.mxu0 0
      %1919 = vmatpush1.bf16.msra.mxu0 %v1857
      %1920 = vmatprep.subr.bf16.mxu0 0
      %1921 = vmatpush1.bf16.msra.mxu0 %v1856
      %1922 = vmatprep.subr.bf16.mxu0 0
      %1923 = vmatpush1.bf16.msra.mxu0 %v1855
      %1924 = vmatprep.subr.bf16.mxu0 0
      %1925 = vmatpush1.bf16.msra.mxu0 %v1854
      %1926 = vmatprep.subr.bf16.mxu0 0
      %1927 = vmatpush2.bf16.msra.mxu0 0
      %1928 = vmatprep.subr.bf16.mxu0 0
      %1929 = vmatpush2.bf16.msra.mxu0 0
      %1930 = vmatprep.subr.bf16.mxu0 0
      %1931 = vmatpush2.bf16.msra.mxu0 0
      %1932 = vmatprep.subr.bf16.mxu0 0
      %1933 = vmatpush2.bf16.msra.mxu0 0
      %1934 = vmatprep.subr.bf16.mxu0 0
      %1935 = vmatpush2.bf16.msra.mxu0 0
      %1936 = vmatprep.subr.bf16.mxu0 0
      %1937 = vmatpush2.bf16.msra.mxu0 0
      %1938 = vmatprep.subr.bf16.mxu0 0
      %1939 = vmatpush2.bf16.msra.mxu0 0
      %1940 = vmatprep.subr.bf16.mxu0 0
      %1941 = vmatpush2.bf16.msra.mxu0 0
      %1942 = vmatprep.mubr.bf16.mxu0 0
      %1943 = vmatmul.mubr.bf16.gmra.mxu0 %v1863
      %v1944 = vpop.f32.mrf.mxu0
      %v1945 = vadd.f32 0.0, %v1944
      %v1946 = vpop.f32.mrf.mxu0
      %v1947 = vpop.f32.mrf.mxu0
      %v1948 = vadd.f32 0.0, %v1947
      %v1949 = vpop.f32.mrf.mxu0
      %1950 = vmatprep.mubr.bf16.mxu0 0
      %1951 = vmatmul.mubr.bf16.gmra.mxu0 %v1866
      %v1952 = vpop.f32.mrf.mxu0
      %v1953 = vadd.f32 0.0, %v1952
      %v1954 = vpop.f32.mrf.mxu0
      %v1955 = vpop.f32.mrf.mxu0
      %v1956 = vadd.f32 0.0, %v1955
      %v1957 = vpop.f32.mrf.mxu0
      %1958 = vmatprep.mubr.bf16.mxu0 0
      %1959 = vmatmul.mubr.bf16.gmra.mxu0 %v1869
      %v1960 = vpop.f32.mrf.mxu0
      %v1961 = vadd.f32 0.0, %v1960
      %v1962 = vpop.f32.mrf.mxu0
      %v1963 = vpop.f32.mrf.mxu0
      %v1964 = vadd.f32 0.0, %v1963
      %v1965 = vpop.f32.mrf.mxu0
      %1966 = vmatprep.mubr.bf16.mxu0 0
      %1967 = vmatmul.mubr.bf16.gmra.mxu0 %v1872
      %v1968 = vpop.f32.mrf.mxu0
      %v1969 = vadd.f32 0.0, %v1968
      %v1970 = vpop.f32.mrf.mxu0
      %v1971 = vpop.f32.mrf.mxu0
      %v1972 = vadd.f32 0.0, %v1971
      %v1973 = vpop.f32.mrf.mxu0
      %1974 = vmatprep.mubr.bf16.mxu0 0
      %1975 = vmatmul.mubr.bf16.gmra.mxu0 %v1875
      %v1976 = vpop.f32.mrf.mxu0
      %v1977 = vadd.f32 0.0, %v1976
      %v1978 = vpop.f32.mrf.mxu0
      %v1979 = vpop.f32.mrf.mxu0
      %v1980 = vadd.f32 0.0, %v1979
      %v1981 = vpop.f32.mrf.mxu0
      %1982 = vmatprep.mubr.bf16.mxu0 0
      %1983 = vmatmul.mubr.bf16.gmra.mxu0 %v1878
      %v1984 = vpop.f32.mrf.mxu0
      %v1985 = vadd.f32 0.0, %v1984
      %v1986 = vpop.f32.mrf.mxu0
      %v1987 = vpop.f32.mrf.mxu0
      %v1988 = vadd.f32 0.0, %v1987
      %v1989 = vpop.f32.mrf.mxu0
      %1990 = vmatprep.mubr.bf16.mxu0 0
      %1991 = vmatmul.mubr.bf16.gmra.mxu0 %v1881
      %v1992 = vpop.f32.mrf.mxu0
      %v1993 = vadd.f32 0.0, %v1992
      %v1994 = vpop.f32.mrf.mxu0
      %v1995 = vpop.f32.mrf.mxu0
      %v1996 = vadd.f32 0.0, %v1995
      %v1997 = vpop.f32.mrf.mxu0
      %1998 = vmatprep.mubr.bf16.mxu0 0
      %1999 = vmatmul.mubr.bf16.gmra.mxu0 %v1884
      %v2000 = vpop.f32.mrf.mxu0
      %v2001 = vadd.f32 0.0, %v2000
      %v2002 = vpop.f32.mrf.mxu0
      %v2003 = vpop.f32.mrf.mxu0
      %v2004 = vadd.f32 0.0, %v2003
      %v2005 = vpop.f32.mrf.mxu0
      %2006 = vmatprep.mubr.bf16.mxu0 0
      %2007 = vmatmul.mubr.bf16.gmra.mxu0 %v1887
      %v2008 = vpop.f32.mrf.mxu0
      %v2009 = vadd.f32 0.0, %v2008
      %v2010 = vpop.f32.mrf.mxu0
      %v2011 = vpop.f32.mrf.mxu0
      %v2012 = vadd.f32 0.0, %v2011
      %v2013 = vpop.f32.mrf.mxu0
      %2014 = vmatprep.mubr.bf16.mxu0 0
      %2015 = vmatmul.mubr.bf16.gmra.mxu0 %v1890
      %v2016 = vpop.f32.mrf.mxu0
      %v2017 = vadd.f32 0.0, %v2016
      %v2018 = vpop.f32.mrf.mxu0
      %v2019 = vpop.f32.mrf.mxu0
      %v2020 = vadd.f32 0.0, %v2019
      %v2021 = vpop.f32.mrf.mxu0
      %2022 = vmatprep.mubr.bf16.mxu0 0
      %2023 = vmatmul.mubr.bf16.gmra.mxu0 %v1893
      %v2024 = vpop.f32.mrf.mxu0
      %v2025 = vadd.f32 0.0, %v2024
      %v2026 = vpop.f32.mrf.mxu0
      %v2027 = vpop.f32.mrf.mxu0
      %v2028 = vadd.f32 0.0, %v2027
      %v2029 = vpop.f32.mrf.mxu0
      %2030 = vmatprep.mubr.bf16.mxu0 0
      %2031 = vmatmul.mubr.bf16.gmra.mxu0 %v1896
      %v2032 = vpop.f32.mrf.mxu0
      %v2033 = vadd.f32 0.0, %v2032
      %v2034 = vpop.f32.mrf.mxu0
      %v2035 = vpop.f32.mrf.mxu0
      %v2036 = vadd.f32 0.0, %v2035
      %v2037 = vpop.f32.mrf.mxu0
      %2038 = vmatprep.mubr.bf16.mxu0 0
      %2039 = vmatmul.mubr.bf16.gmra.mxu0 %v1899
      %v2040 = vpop.f32.mrf.mxu0
      %v2041 = vadd.f32 0.0, %v2040
      %v2042 = vpop.f32.mrf.mxu0
      %v2043 = vpop.f32.mrf.mxu0
      %v2044 = vadd.f32 0.0, %v2043
      %v2045 = vpop.f32.mrf.mxu0
      %2046 = vmatprep.mubr.bf16.mxu0 0
      %2047 = vmatmul.mubr.bf16.gmra.mxu0 %v1902
      %v2048 = vpop.f32.mrf.mxu0
      %v2049 = vadd.f32 0.0, %v2048
      %v2050 = vpop.f32.mrf.mxu0
      %v2051 = vpop.f32.mrf.mxu0
      %v2052 = vadd.f32 0.0, %v2051
      %v2053 = vpop.f32.mrf.mxu0
      %2054 = vmatprep.mubr.bf16.mxu0 0
      %2055 = vmatmul.mubr.bf16.gmra.mxu0 %v1905
      %v2056 = vpop.f32.mrf.mxu0
      %v2057 = vadd.f32 0.0, %v2056
      %v2058 = vpop.f32.mrf.mxu0
      %v2059 = vpop.f32.mrf.mxu0
      %v2060 = vadd.f32 0.0, %v2059
      %v2061 = vpop.f32.mrf.mxu0
      %2062 = vmatprep.mubr.bf16.mxu0 0
      %2063 = vmatmul.mubr.bf16.gmra.mxu0 %v1908
      %v2064 = vpop.f32.mrf.mxu0
      %v2065 = vadd.f32 0.0, %v2064
      %v2066 = vpop.f32.mrf.mxu0
      %v2067 = vpop.f32.mrf.mxu0
      %v2068 = vadd.f32 0.0, %v2067
      %v2069 = vpop.f32.mrf.mxu0
      %2070 = vdwg.mxu0
      %v2071 = vadd.f32 %v1684, %v1945
      %v2072 = vadd.f32 %v1685, %v1948
      %v2073 = vadd.f32 %v1686, %v1953
      %v2074 = vadd.f32 %v1687, %v1956
      %v2075 = vadd.f32 %v1688, %v1961
      %v2076 = vadd.f32 %v1689, %v1964
      %v2077 = vadd.f32 %v1690, %v1969
      %v2078 = vadd.f32 %v1691, %v1972
      %v2079 = vadd.f32 %v1692, %v1977
      %v2080 = vadd.f32 %v1693, %v1980
      %v2081 = vadd.f32 %v1694, %v1985
      %v2082 = vadd.f32 %v1695, %v1988
      %v2083 = vadd.f32 %v1696, %v1993
      %v2084 = vadd.f32 %v1697, %v1996
      %v2085 = vadd.f32 %v1698, %v2001
      %v2086 = vadd.f32 %v1699, %v2004
      %v2087 = vadd.f32 %v1700, %v2009
      %v2088 = vadd.f32 %v1701, %v2012
      %v2089 = vadd.f32 %v1702, %v2017
      %v2090 = vadd.f32 %v1703, %v2020
      %v2091 = vadd.f32 %v1704, %v2025
      %v2092 = vadd.f32 %v1705, %v2028
      %v2093 = vadd.f32 %v1706, %v2033
      %v2094 = vadd.f32 %v1707, %v2036
      %v2095 = vadd.f32 %v1708, %v2041
      %v2096 = vadd.f32 %v1709, %v2044
      %v2097 = vadd.f32 %v1710, %v2049
      %v2098 = vadd.f32 %v1711, %v2052
      %v2099 = vadd.f32 %v1712, %v2057
      %v2100 = vadd.f32 %v1713, %v2060
      %v2101 = vadd.f32 %v1714, %v2065
      %v2102 = vadd.f32 %v1715, %v2068
      %v2103 = vld [vmem:[%s1716] sm:$0xf]
      %v2104 = vld [vmem:[%s1716 + $0x4] sm:$0xf]
      %v2105 = vld [vmem:[%s1716 + $0x8] sm:$0x1]
      %v2106 = vld [vmem:[%s1716 + $0xc] sm:$0xf]
      %v2107 = vld [vmem:[%s1716 + $0x10] sm:$0xf]
      %v2108 = vld [vmem:[%s1716 + $0x14] sm:$0x1]
      %v2109 = vld [vmem:[%s1716 + $0x18] sm:$0xf]
      %v2110 = vld [vmem:[%s1716 + $0x1c] sm:$0xf]
      %v2111 = vld [vmem:[%s1716 + $0x20] sm:$0x1]
      %v2112 = vld [vmem:[%s1716 + $0x24] sm:$0xf]
      %v2113 = vld [vmem:[%s1716 + $0x28] sm:$0xf]
      %v2114 = vld [vmem:[%s1716 + $0x2c] sm:$0x1]
      %v2115 = vld [vmem:[%s1716 + $0x30] sm:$0xf]
      %v2116 = vld [vmem:[%s1716 + $0x34] sm:$0xf]
      %v2117 = vld [vmem:[%s1716 + $0x38] sm:$0x1]
      %v2118 = vld [vmem:[%s1716 + $0x3c] sm:$0xf]
      %v2119 = vld [vmem:[%s1716 + $0x40] sm:$0xf]
      %v2120 = vld [vmem:[%s1716 + $0x44] sm:$0x1]
      %v2121 = vld [vmem:[%s1716 + $0x48] sm:$0xf]
      %v2122 = vld [vmem:[%s1716 + $0x4c] sm:$0xf]
      %v2123 = vld [vmem:[%s1716 + $0x50] sm:$0x1]
      %v2124 = vld [vmem:[%s1716 + $0x54] sm:$0xf]
      %v2125 = vld [vmem:[%s1716 + $0x58] sm:$0xf]
      %v2126 = vld [vmem:[%s1716 + $0x5c] sm:$0x1]
      %v2127 = vld [vmem:[%s1716 + $0x60] sm:$0xf]
      %v2128 = vld [vmem:[%s1716 + $0x64] sm:$0xf]
      %v2129 = vld [vmem:[%s1716 + $0x68] sm:$0x1]
      %v2130 = vld [vmem:[%s1716 + $0x6c] sm:$0xf]
      %v2131 = vld [vmem:[%s1716 + $0x70] sm:$0xf]
      %v2132 = vld [vmem:[%s1716 + $0x74] sm:$0x1]
      %v2133 = vld [vmem:[%s1716 + $0x78] sm:$0xf]
      %v2134 = vld [vmem:[%s1716 + $0x7c] sm:$0xf]
      %v2135 = vld [vmem:[%s1716 + $0x80] sm:$0x1]
      %v2136 = vld [vmem:[%s1716 + $0x84] sm:$0xf]
      %v2137 = vld [vmem:[%s1716 + $0x88] sm:$0xf]
      %v2138 = vld [vmem:[%s1716 + $0x8c] sm:$0x1]
      %v2139 = vld [vmem:[%s1716 + $0x90] sm:$0xf]
      %v2140 = vld [vmem:[%s1716 + $0x94] sm:$0xf]
      %v2141 = vld [vmem:[%s1716 + $0x98] sm:$0x1]
      %v2142 = vld [vmem:[%s1716 + $0x9c] sm:$0xf]
      %v2143 = vld [vmem:[%s1716 + $0xa0] sm:$0xf]
      %v2144 = vld [vmem:[%s1716 + $0xa4] sm:$0x1]
      %v2145 = vld [vmem:[%s1716 + $0xa8] sm:$0xf]
      %v2146 = vld [vmem:[%s1716 + $0xac] sm:$0xf]
      %v2147 = vld [vmem:[%s1716 + $0xb0] sm:$0x1]
      %v2148 = vld [vmem:[%s1716 + $0xb4] sm:$0xf]
      %v2149 = vld [vmem:[%s1716 + $0xb8] sm:$0xf]
      %v2150 = vld [vmem:[%s1716 + $0xbc] sm:$0x1]
      %v2152 = vshrl.u32 %v2103, 16
      %v2154 = vrot.slane %v2152, 4
      %v2155 = vshll.u32 %v2103, 16
      %v2157 = vrot.slane %v2155, 5
      %v2158 = vor.u32 %v2154, %v2157
      %v2159 = vrot.slane %v2158, 4
      %v2161 = vshll.u32 %v2104, 16
      %v2163 = vrot.slane %v2161, 5
      %v2164 = vsel %vm242, %v2159, %v2163
      %v2165 = vshrl.u32 %v2104, 16
      %v2167 = vrot.slane %v2165, 4
      %v2168 = vor.u32 %v2167, %v2163
      %v2169 = vrot.slane %v2168, 4
      %v2171 = vshll.u32 %v2105, 16
      %v2173 = vrot.slane %v2171, 5
      %v2174 = vsel %vm242, %v2169, %v2173
      %v2176 = vshrl.u32 %v2106, 16
      %v2178 = vrot.slane %v2176, 4
      %v2179 = vshll.u32 %v2106, 16
      %v2181 = vrot.slane %v2179, 5
      %v2182 = vor.u32 %v2178, %v2181
      %v2183 = vrot.slane %v2182, 4
      %v2185 = vshll.u32 %v2107, 16
      %v2187 = vrot.slane %v2185, 5
      %v2188 = vsel %vm242, %v2183, %v2187
      %v2189 = vshrl.u32 %v2107, 16
      %v2191 = vrot.slane %v2189, 4
      %v2192 = vor.u32 %v2191, %v2187
      %v2193 = vrot.slane %v2192, 4
      %v2195 = vshll.u32 %v2108, 16
      %v2197 = vrot.slane %v2195, 5
      %v2198 = vsel %vm242, %v2193, %v2197
      %v2200 = vshrl.u32 %v2109, 16
      %v2202 = vrot.slane %v2200, 4
      %v2203 = vshll.u32 %v2109, 16
      %v2205 = vrot.slane %v2203, 5
      %v2206 = vor.u32 %v2202, %v2205
      %v2207 = vrot.slane %v2206, 4
      %v2209 = vshll.u32 %v2110, 16
      %v2211 = vrot.slane %v2209, 5
      %v2212 = vsel %vm242, %v2207, %v2211
      %v2213 = vshrl.u32 %v2110, 16
      %v2215 = vrot.slane %v2213, 4
      %v2216 = vor.u32 %v2215, %v2211
      %v2217 = vrot.slane %v2216, 4
      %v2219 = vshll.u32 %v2111, 16
      %v2221 = vrot.slane %v2219, 5
      %v2222 = vsel %vm242, %v2217, %v2221
      %v2224 = vshrl.u32 %v2112, 16
      %v2226 = vrot.slane %v2224, 4
      %v2227 = vshll.u32 %v2112, 16
      %v2229 = vrot.slane %v2227, 5
      %v2230 = vor.u32 %v2226, %v2229
      %v2231 = vrot.slane %v2230, 4
      %v2233 = vshll.u32 %v2113, 16
      %v2235 = vrot.slane %v2233, 5
      %v2236 = vsel %vm242, %v2231, %v2235
      %v2237 = vshrl.u32 %v2113, 16
      %v2239 = vrot.slane %v2237, 4
      %v2240 = vor.u32 %v2239, %v2235
      %v2241 = vrot.slane %v2240, 4
      %v2243 = vshll.u32 %v2114, 16
      %v2245 = vrot.slane %v2243, 5
      %v2246 = vsel %vm242, %v2241, %v2245
      %v2248 = vshrl.u32 %v2115, 16
      %v2250 = vrot.slane %v2248, 4
      %v2251 = vshll.u32 %v2115, 16
      %v2253 = vrot.slane %v2251, 5
      %v2254 = vor.u32 %v2250, %v2253
      %v2255 = vrot.slane %v2254, 4
      %v2257 = vshll.u32 %v2116, 16
      %v2259 = vrot.slane %v2257, 5
      %v2260 = vsel %vm242, %v2255, %v2259
      %v2261 = vshrl.u32 %v2116, 16
      %v2263 = vrot.slane %v2261, 4
      %v2264 = vor.u32 %v2263, %v2259
      %v2265 = vrot.slane %v2264, 4
      %v2267 = vshll.u32 %v2117, 16
      %v2269 = vrot.slane %v2267, 5
      %v2270 = vsel %vm242, %v2265, %v2269
      %v2272 = vshrl.u32 %v2118, 16
      %v2274 = vrot.slane %v2272, 4
      %v2275 = vshll.u32 %v2118, 16
      %v2277 = vrot.slane %v2275, 5
      %v2278 = vor.u32 %v2274, %v2277
      %v2279 = vrot.slane %v2278, 4
      %v2281 = vshll.u32 %v2119, 16
      %v2283 = vrot.slane %v2281, 5
      %v2284 = vsel %vm242, %v2279, %v2283
      %v2285 = vshrl.u32 %v2119, 16
      %v2287 = vrot.slane %v2285, 4
      %v2288 = vor.u32 %v2287, %v2283
      %v2289 = vrot.slane %v2288, 4
      %v2291 = vshll.u32 %v2120, 16
      %v2293 = vrot.slane %v2291, 5
      %v2294 = vsel %vm242, %v2289, %v2293
      %v2296 = vshrl.u32 %v2121, 16
      %v2298 = vrot.slane %v2296, 4
      %v2299 = vshll.u32 %v2121, 16
      %v2301 = vrot.slane %v2299, 5
      %v2302 = vor.u32 %v2298, %v2301
      %v2303 = vrot.slane %v2302, 4
      %v2305 = vshll.u32 %v2122, 16
      %v2307 = vrot.slane %v2305, 5
      %v2308 = vsel %vm242, %v2303, %v2307
      %v2309 = vshrl.u32 %v2122, 16
      %v2311 = vrot.slane %v2309, 4
      %v2312 = vor.u32 %v2311, %v2307
      %v2313 = vrot.slane %v2312, 4
      %v2315 = vshll.u32 %v2123, 16
      %v2317 = vrot.slane %v2315, 5
      %v2318 = vsel %vm242, %v2313, %v2317
      %v2320 = vshrl.u32 %v2124, 16
      %v2322 = vrot.slane %v2320, 4
      %v2323 = vshll.u32 %v2124, 16
      %v2325 = vrot.slane %v2323, 5
      %v2326 = vor.u32 %v2322, %v2325
      %v2327 = vrot.slane %v2326, 4
      %v2329 = vshll.u32 %v2125, 16
      %v2331 = vrot.slane %v2329, 5
      %v2332 = vsel %vm242, %v2327, %v2331
      %v2333 = vshrl.u32 %v2125, 16
      %v2335 = vrot.slane %v2333, 4
      %v2336 = vor.u32 %v2335, %v2331
      %v2337 = vrot.slane %v2336, 4
      %v2339 = vshll.u32 %v2126, 16
      %v2341 = vrot.slane %v2339, 5
      %v2342 = vsel %vm242, %v2337, %v2341
      %v2344 = vshrl.u32 %v2127, 16
      %v2346 = vrot.slane %v2344, 4
      %v2347 = vshll.u32 %v2127, 16
      %v2349 = vrot.slane %v2347, 5
      %v2350 = vor.u32 %v2346, %v2349
      %v2351 = vrot.slane %v2350, 4
      %v2353 = vshll.u32 %v2128, 16
      %v2355 = vrot.slane %v2353, 5
      %v2356 = vsel %vm242, %v2351, %v2355
      %v2357 = vshrl.u32 %v2128, 16
      %v2359 = vrot.slane %v2357, 4
      %v2360 = vor.u32 %v2359, %v2355
      %v2361 = vrot.slane %v2360, 4
      %v2363 = vshll.u32 %v2129, 16
      %v2365 = vrot.slane %v2363, 5
      %v2366 = vsel %vm242, %v2361, %v2365
      %v2368 = vshrl.u32 %v2130, 16
      %v2370 = vrot.slane %v2368, 4
      %v2371 = vshll.u32 %v2130, 16
      %v2373 = vrot.slane %v2371, 5
      %v2374 = vor.u32 %v2370, %v2373
      %v2375 = vrot.slane %v2374, 4
      %v2377 = vshll.u32 %v2131, 16
      %v2379 = vrot.slane %v2377, 5
      %v2380 = vsel %vm242, %v2375, %v2379
      %v2381 = vshrl.u32 %v2131, 16
      %v2383 = vrot.slane %v2381, 4
      %v2384 = vor.u32 %v2383, %v2379
      %v2385 = vrot.slane %v2384, 4
      %v2387 = vshll.u32 %v2132, 16
      %v2389 = vrot.slane %v2387, 5
      %v2390 = vsel %vm242, %v2385, %v2389
      %v2392 = vshrl.u32 %v2133, 16
      %v2394 = vrot.slane %v2392, 4
      %v2395 = vshll.u32 %v2133, 16
      %v2397 = vrot.slane %v2395, 5
      %v2398 = vor.u32 %v2394, %v2397
      %v2399 = vrot.slane %v2398, 4
      %v2401 = vshll.u32 %v2134, 16
      %v2403 = vrot.slane %v2401, 5
      %v2404 = vsel %vm242, %v2399, %v2403
      %v2405 = vshrl.u32 %v2134, 16
      %v2407 = vrot.slane %v2405, 4
      %v2408 = vor.u32 %v2407, %v2403
      %v2409 = vrot.slane %v2408, 4
      %v2411 = vshll.u32 %v2135, 16
      %v2413 = vrot.slane %v2411, 5
      %v2414 = vsel %vm242, %v2409, %v2413
      %v2416 = vshrl.u32 %v2136, 16
      %v2418 = vrot.slane %v2416, 4
      %v2419 = vshll.u32 %v2136, 16
      %v2421 = vrot.slane %v2419, 5
      %v2422 = vor.u32 %v2418, %v2421
      %v2423 = vrot.slane %v2422, 4
      %v2425 = vshll.u32 %v2137, 16
      %v2427 = vrot.slane %v2425, 5
      %v2428 = vsel %vm242, %v2423, %v2427
      %v2429 = vshrl.u32 %v2137, 16
      %v2431 = vrot.slane %v2429, 4
      %v2432 = vor.u32 %v2431, %v2427
      %v2433 = vrot.slane %v2432, 4
      %v2435 = vshll.u32 %v2138, 16
      %v2437 = vrot.slane %v2435, 5
      %v2438 = vsel %vm242, %v2433, %v2437
      %v2440 = vshrl.u32 %v2139, 16
      %v2442 = vrot.slane %v2440, 4
      %v2443 = vshll.u32 %v2139, 16
      %v2445 = vrot.slane %v2443, 5
      %v2446 = vor.u32 %v2442, %v2445
      %v2447 = vrot.slane %v2446, 4
      %v2449 = vshll.u32 %v2140, 16
      %v2451 = vrot.slane %v2449, 5
      %v2452 = vsel %vm242, %v2447, %v2451
      %v2453 = vshrl.u32 %v2140, 16
      %v2455 = vrot.slane %v2453, 4
      %v2456 = vor.u32 %v2455, %v2451
      %v2457 = vrot.slane %v2456, 4
      %v2459 = vshll.u32 %v2141, 16
      %v2461 = vrot.slane %v2459, 5
      %v2462 = vsel %vm242, %v2457, %v2461
      %v2464 = vshrl.u32 %v2142, 16
      %v2466 = vrot.slane %v2464, 4
      %v2467 = vshll.u32 %v2142, 16
      %v2469 = vrot.slane %v2467, 5
      %v2470 = vor.u32 %v2466, %v2469
      %v2471 = vrot.slane %v2470, 4
      %v2473 = vshll.u32 %v2143, 16
      %v2475 = vrot.slane %v2473, 5
      %v2476 = vsel %vm242, %v2471, %v2475
      %v2477 = vshrl.u32 %v2143, 16
      %v2479 = vrot.slane %v2477, 4
      %v2480 = vor.u32 %v2479, %v2475
      %v2481 = vrot.slane %v2480, 4
      %v2483 = vshll.u32 %v2144, 16
      %v2485 = vrot.slane %v2483, 5
      %v2486 = vsel %vm242, %v2481, %v2485
      %v2488 = vshrl.u32 %v2145, 16
      %v2490 = vrot.slane %v2488, 4
      %v2491 = vshll.u32 %v2145, 16
      %v2493 = vrot.slane %v2491, 5
      %v2494 = vor.u32 %v2490, %v2493
      %v2495 = vrot.slane %v2494, 4
      %v2497 = vshll.u32 %v2146, 16
      %v2499 = vrot.slane %v2497, 5
      %v2500 = vsel %vm242, %v2495, %v2499
      %v2501 = vshrl.u32 %v2146, 16
      %v2503 = vrot.slane %v2501, 4
      %v2504 = vor.u32 %v2503, %v2499
      %v2505 = vrot.slane %v2504, 4
      %v2507 = vshll.u32 %v2147, 16
      %v2509 = vrot.slane %v2507, 5
      %v2510 = vsel %vm242, %v2505, %v2509
      %v2512 = vshrl.u32 %v2148, 16
      %v2514 = vrot.slane %v2512, 4
      %v2515 = vshll.u32 %v2148, 16
      %v2517 = vrot.slane %v2515, 5
      %v2518 = vor.u32 %v2514, %v2517
      %v2519 = vrot.slane %v2518, 4
      %v2521 = vshll.u32 %v2149, 16
      %v2523 = vrot.slane %v2521, 5
      %v2524 = vsel %vm242, %v2519, %v2523
      %v2525 = vshrl.u32 %v2149, 16
      %v2527 = vrot.slane %v2525, 4
      %v2528 = vor.u32 %v2527, %v2523
      %v2529 = vrot.slane %v2528, 4
      %v2531 = vshll.u32 %v2150, 16
      %v2533 = vrot.slane %v2531, 5
      %v2534 = vsel %vm242, %v2529, %v2533
      %s2535 = scalar_lea.vmem %s1, 128
      %v2536 = vld [vmem:[%s2535] sm:$0xf]
      %v2537 = vld [vmem:[%s2535 + $0x4] sm:$0xf]
      %v2538 = vld [vmem:[%s2535 + $0x8] sm:$0xf]
      %v2539 = vld [vmem:[%s2535 + $0xc] sm:$0xf]
      %v2540 = vld [vmem:[%s2535 + $0x10] sm:$0xf]
      %v2541 = vld [vmem:[%s2535 + $0x14] sm:$0xf]
      %v2542 = vld [vmem:[%s2535 + $0x18] sm:$0xf]
      %v2543 = vld [vmem:[%s2535 + $0x1c] sm:$0xf]
      %v2544 = vunpack.c.l.b16 %v2164
      %v2545 = vunpack.c.l.b16 %v2174
      %v2546 = vunpack.c.l.b16 %v2188
      %v2547 = vunpack.c.l.b16 %v2198
      %v2548 = vunpack.c.l.b16 %v2212
      %v2549 = vunpack.c.l.b16 %v2222
      %v2550 = vunpack.c.l.b16 %v2236
      %v2551 = vunpack.c.l.b16 %v2246
      %v2552 = vunpack.c.l.b16 %v2260
      %v2553 = vunpack.c.l.b16 %v2270
      %v2554 = vunpack.c.l.b16 %v2284
      %v2555 = vunpack.c.l.b16 %v2294
      %v2556 = vunpack.c.l.b16 %v2308
      %v2557 = vunpack.c.l.b16 %v2318
      %v2558 = vunpack.c.l.b16 %v2332
      %v2559 = vunpack.c.l.b16 %v2342
      %v2560 = vunpack.c.l.b16 %v2356
      %v2561 = vunpack.c.l.b16 %v2366
      %v2562 = vunpack.c.l.b16 %v2380
      %v2563 = vunpack.c.l.b16 %v2390
      %v2564 = vunpack.c.l.b16 %v2404
      %v2565 = vunpack.c.l.b16 %v2414
      %v2566 = vunpack.c.l.b16 %v2428
      %v2567 = vunpack.c.l.b16 %v2438
      %v2568 = vunpack.c.l.b16 %v2452
      %v2569 = vunpack.c.l.b16 %v2462
      %v2570 = vunpack.c.l.b16 %v2476
      %v2571 = vunpack.c.l.b16 %v2486
      %v2572 = vunpack.c.l.b16 %v2500
      %v2573 = vunpack.c.l.b16 %v2510
      %v2574 = vunpack.c.l.b16 %v2524
      %v2575 = vunpack.c.l.b16 %v2534
      %v2576 = vpack.c.b16 %v2545, %v2544
      %v2577 = vpack.c.b16 %v2547, %v2546
      %v2578 = vpack.c.b16 %v2549, %v2548
      %v2579 = vpack.c.b16 %v2551, %v2550
      %v2580 = vpack.c.b16 %v2553, %v2552
      %v2581 = vpack.c.b16 %v2555, %v2554
      %v2582 = vpack.c.b16 %v2557, %v2556
      %v2583 = vpack.c.b16 %v2559, %v2558
      %v2584 = vpack.c.b16 %v2561, %v2560
      %v2585 = vpack.c.b16 %v2563, %v2562
      %v2586 = vpack.c.b16 %v2565, %v2564
      %v2587 = vpack.c.b16 %v2567, %v2566
      %v2588 = vpack.c.b16 %v2569, %v2568
      %v2589 = vpack.c.b16 %v2571, %v2570
      %v2590 = vpack.c.b16 %v2573, %v2572
      %v2591 = vpack.c.b16 %v2575, %v2574
      %v2600 = vunpack.c.l.b16 %v2536
      %v2601 = vunpack.c.l.b16 %v2537
      %v2602 = vunpack.c.l.b16 %v2538
      %v2603 = vunpack.c.l.b16 %v2539
      %v2604 = vunpack.c.l.b16 %v2540
      %v2605 = vunpack.c.l.b16 %v2541
      %v2606 = vunpack.c.l.b16 %v2542
      %v2607 = vunpack.c.l.b16 %v2543
      %v2608 = vpack.c.b16 %v2601, %v2600
      %v2609 = vpack.c.b16 %v2603, %v2602
      %v2610 = vpack.c.b16 %v2605, %v2604
      %v2611 = vpack.c.b16 %v2607, %v2606
      %v2617 = vsel %vm708, %v2576, 0
      %v2620 = vsel %vm708, %v2577, 0
      %v2623 = vsel %vm708, %v2578, 0
      %v2626 = vsel %vm708, %v2579, 0
      %v2629 = vsel %vm708, %v2580, 0
      %v2632 = vsel %vm708, %v2581, 0
      %v2635 = vsel %vm708, %v2582, 0
      %v2638 = vsel %vm708, %v2583, 0
      %v2641 = vsel %vm708, %v2584, 0
      %v2644 = vsel %vm708, %v2585, 0
      %v2647 = vsel %vm708, %v2586, 0
      %v2650 = vsel %vm708, %v2587, 0
      %v2653 = vsel %vm708, %v2588, 0
      %v2656 = vsel %vm708, %v2589, 0
      %v2659 = vsel %vm708, %v2590, 0
      %v2662 = vsel %vm708, %v2591, 0
      %2664 = vmatprep.subr.bf16.mxu0 0
      %2665 = vmatpush1.bf16.msra.mxu0 0
      %2666 = vmatprep.subr.bf16.mxu0 0
      %2667 = vmatpush1.bf16.msra.mxu0 0
      %2668 = vmatprep.subr.bf16.mxu0 0
      %2669 = vmatpush1.bf16.msra.mxu0 0
      %2670 = vmatprep.subr.bf16.mxu0 0
      %2671 = vmatpush1.bf16.msra.mxu0 0
      %2672 = vmatprep.subr.bf16.mxu0 0
      %2673 = vmatpush1.bf16.msra.mxu0 %v2611
      %2674 = vmatprep.subr.bf16.mxu0 0
      %2675 = vmatpush1.bf16.msra.mxu0 %v2610
      %2676 = vmatprep.subr.bf16.mxu0 0
      %2677 = vmatpush1.bf16.msra.mxu0 %v2609
      %2678 = vmatprep.subr.bf16.mxu0 0
      %2679 = vmatpush1.bf16.msra.mxu0 %v2608
      %2680 = vmatprep.subr.bf16.mxu0 0
      %2681 = vmatpush2.bf16.msra.mxu0 0
      %2682 = vmatprep.subr.bf16.mxu0 0
      %2683 = vmatpush2.bf16.msra.mxu0 0
      %2684 = vmatprep.subr.bf16.mxu0 0
      %2685 = vmatpush2.bf16.msra.mxu0 0
      %2686 = vmatprep.subr.bf16.mxu0 0
      %2687 = vmatpush2.bf16.msra.mxu0 0
      %2688 = vmatprep.subr.bf16.mxu0 0
      %2689 = vmatpush2.bf16.msra.mxu0 0
      %2690 = vmatprep.subr.bf16.mxu0 0
      %2691 = vmatpush2.bf16.msra.mxu0 0
      %2692 = vmatprep.subr.bf16.mxu0 0
      %2693 = vmatpush2.bf16.msra.mxu0 0
      %2694 = vmatprep.subr.bf16.mxu0 0
      %2695 = vmatpush2.bf16.msra.mxu0 0
      %2696 = vmatprep.mubr.bf16.mxu0 0
      %2697 = vmatmul.mubr.bf16.gmra.mxu0 %v2617
      %v2698 = vpop.f32.mrf.mxu0
      %v2699 = vadd.f32 0.0, %v2698
      %v2700 = vpop.f32.mrf.mxu0
      %v2701 = vpop.f32.mrf.mxu0
      %v2702 = vadd.f32 0.0, %v2701
      %v2703 = vpop.f32.mrf.mxu0
      %2704 = vmatprep.mubr.bf16.mxu0 0
      %2705 = vmatmul.mubr.bf16.gmra.mxu0 %v2620
      %v2706 = vpop.f32.mrf.mxu0
      %v2707 = vadd.f32 0.0, %v2706
      %v2708 = vpop.f32.mrf.mxu0
      %v2709 = vpop.f32.mrf.mxu0
      %v2710 = vadd.f32 0.0, %v2709
      %v2711 = vpop.f32.mrf.mxu0
      %2712 = vmatprep.mubr.bf16.mxu0 0
      %2713 = vmatmul.mubr.bf16.gmra.mxu0 %v2623
      %v2714 = vpop.f32.mrf.mxu0
      %v2715 = vadd.f32 0.0, %v2714
      %v2716 = vpop.f32.mrf.mxu0
      %v2717 = vpop.f32.mrf.mxu0
      %v2718 = vadd.f32 0.0, %v2717
      %v2719 = vpop.f32.mrf.mxu0
      %2720 = vmatprep.mubr.bf16.mxu0 0
      %2721 = vmatmul.mubr.bf16.gmra.mxu0 %v2626
      %v2722 = vpop.f32.mrf.mxu0
      %v2723 = vadd.f32 0.0, %v2722
      %v2724 = vpop.f32.mrf.mxu0
      %v2725 = vpop.f32.mrf.mxu0
      %v2726 = vadd.f32 0.0, %v2725
      %v2727 = vpop.f32.mrf.mxu0
      %2728 = vmatprep.mubr.bf16.mxu0 0
      %2729 = vmatmul.mubr.bf16.gmra.mxu0 %v2629
      %v2730 = vpop.f32.mrf.mxu0
      %v2731 = vadd.f32 0.0, %v2730
      %v2732 = vpop.f32.mrf.mxu0
      %v2733 = vpop.f32.mrf.mxu0
      %v2734 = vadd.f32 0.0, %v2733
      %v2735 = vpop.f32.mrf.mxu0
      %2736 = vmatprep.mubr.bf16.mxu0 0
      %2737 = vmatmul.mubr.bf16.gmra.mxu0 %v2632
      %v2738 = vpop.f32.mrf.mxu0
      %v2739 = vadd.f32 0.0, %v2738
      %v2740 = vpop.f32.mrf.mxu0
      %v2741 = vpop.f32.mrf.mxu0
      %v2742 = vadd.f32 0.0, %v2741
      %v2743 = vpop.f32.mrf.mxu0
      %2744 = vmatprep.mubr.bf16.mxu0 0
      %2745 = vmatmul.mubr.bf16.gmra.mxu0 %v2635
      %v2746 = vpop.f32.mrf.mxu0
      %v2747 = vadd.f32 0.0, %v2746
      %v2748 = vpop.f32.mrf.mxu0
      %v2749 = vpop.f32.mrf.mxu0
      %v2750 = vadd.f32 0.0, %v2749
      %v2751 = vpop.f32.mrf.mxu0
      %2752 = vmatprep.mubr.bf16.mxu0 0
      %2753 = vmatmul.mubr.bf16.gmra.mxu0 %v2638
      %v2754 = vpop.f32.mrf.mxu0
      %v2755 = vadd.f32 0.0, %v2754
      %v2756 = vpop.f32.mrf.mxu0
      %v2757 = vpop.f32.mrf.mxu0
      %v2758 = vadd.f32 0.0, %v2757
      %v2759 = vpop.f32.mrf.mxu0
      %2760 = vmatprep.mubr.bf16.mxu0 0
      %2761 = vmatmul.mubr.bf16.gmra.mxu0 %v2641
      %v2762 = vpop.f32.mrf.mxu0
      %v2763 = vadd.f32 0.0, %v2762
      %v2764 = vpop.f32.mrf.mxu0
      %v2765 = vpop.f32.mrf.mxu0
      %v2766 = vadd.f32 0.0, %v2765
      %v2767 = vpop.f32.mrf.mxu0
      %2768 = vmatprep.mubr.bf16.mxu0 0
      %2769 = vmatmul.mubr.bf16.gmra.mxu0 %v2644
      %v2770 = vpop.f32.mrf.mxu0
      %v2771 = vadd.f32 0.0, %v2770
      %v2772 = vpop.f32.mrf.mxu0
      %v2773 = vpop.f32.mrf.mxu0
      %v2774 = vadd.f32 0.0, %v2773
      %v2775 = vpop.f32.mrf.mxu0
      %2776 = vmatprep.mubr.bf16.mxu0 0
      %2777 = vmatmul.mubr.bf16.gmra.mxu0 %v2647
      %v2778 = vpop.f32.mrf.mxu0
      %v2779 = vadd.f32 0.0, %v2778
      %v2780 = vpop.f32.mrf.mxu0
      %v2781 = vpop.f32.mrf.mxu0
      %v2782 = vadd.f32 0.0, %v2781
      %v2783 = vpop.f32.mrf.mxu0
      %2784 = vmatprep.mubr.bf16.mxu0 0
      %2785 = vmatmul.mubr.bf16.gmra.mxu0 %v2650
      %v2786 = vpop.f32.mrf.mxu0
      %v2787 = vadd.f32 0.0, %v2786
      %v2788 = vpop.f32.mrf.mxu0
      %v2789 = vpop.f32.mrf.mxu0
      %v2790 = vadd.f32 0.0, %v2789
      %v2791 = vpop.f32.mrf.mxu0
      %2792 = vmatprep.mubr.bf16.mxu0 0
      %2793 = vmatmul.mubr.bf16.gmra.mxu0 %v2653
      %v2794 = vpop.f32.mrf.mxu0
      %v2795 = vadd.f32 0.0, %v2794
      %v2796 = vpop.f32.mrf.mxu0
      %v2797 = vpop.f32.mrf.mxu0
      %v2798 = vadd.f32 0.0, %v2797
      %v2799 = vpop.f32.mrf.mxu0
      %2800 = vmatprep.mubr.bf16.mxu0 0
      %2801 = vmatmul.mubr.bf16.gmra.mxu0 %v2656
      %v2802 = vpop.f32.mrf.mxu0
      %v2803 = vadd.f32 0.0, %v2802
      %v2804 = vpop.f32.mrf.mxu0
      %v2805 = vpop.f32.mrf.mxu0
      %v2806 = vadd.f32 0.0, %v2805
      %v2807 = vpop.f32.mrf.mxu0
      %2808 = vmatprep.mubr.bf16.mxu0 0
      %2809 = vmatmul.mubr.bf16.gmra.mxu0 %v2659
      %v2810 = vpop.f32.mrf.mxu0
      %v2811 = vadd.f32 0.0, %v2810
      %v2812 = vpop.f32.mrf.mxu0
      %v2813 = vpop.f32.mrf.mxu0
      %v2814 = vadd.f32 0.0, %v2813
      %v2815 = vpop.f32.mrf.mxu0
      %2816 = vmatprep.mubr.bf16.mxu0 0
      %2817 = vmatmul.mubr.bf16.gmra.mxu0 %v2662
      %v2818 = vpop.f32.mrf.mxu0
      %v2819 = vadd.f32 0.0, %v2818
      %v2820 = vpop.f32.mrf.mxu0
      %v2821 = vpop.f32.mrf.mxu0
      %v2822 = vadd.f32 0.0, %v2821
      %v2823 = vpop.f32.mrf.mxu0
      %2824 = vdwg.mxu0
      %v2825 = vadd.f32 %v2071, %v2699
      %v2826 = vadd.f32 %v2072, %v2702
      %v2827 = vadd.f32 %v2073, %v2707
      %v2828 = vadd.f32 %v2074, %v2710
      %v2829 = vadd.f32 %v2075, %v2715
      %v2830 = vadd.f32 %v2076, %v2718
      %v2831 = vadd.f32 %v2077, %v2723
      %v2832 = vadd.f32 %v2078, %v2726
      %v2833 = vadd.f32 %v2079, %v2731
      %v2834 = vadd.f32 %v2080, %v2734
      %v2835 = vadd.f32 %v2081, %v2739
      %v2836 = vadd.f32 %v2082, %v2742
      %v2837 = vadd.f32 %v2083, %v2747
      %v2838 = vadd.f32 %v2084, %v2750
      %v2839 = vadd.f32 %v2085, %v2755
      %v2840 = vadd.f32 %v2086, %v2758
      %v2841 = vadd.f32 %v2087, %v2763
      %v2842 = vadd.f32 %v2088, %v2766
      %v2843 = vadd.f32 %v2089, %v2771
      %v2844 = vadd.f32 %v2090, %v2774
      %v2845 = vadd.f32 %v2091, %v2779
      %v2846 = vadd.f32 %v2092, %v2782
      %v2847 = vadd.f32 %v2093, %v2787
      %v2848 = vadd.f32 %v2094, %v2790
      %v2849 = vadd.f32 %v2095, %v2795
      %v2850 = vadd.f32 %v2096, %v2798
      %v2851 = vadd.f32 %v2097, %v2803
      %v2852 = vadd.f32 %v2098, %v2806
      %v2853 = vadd.f32 %v2099, %v2811
      %v2854 = vadd.f32 %v2100, %v2814
      %v2855 = vadd.f32 %v2101, %v2819
      %v2856 = vadd.f32 %v2102, %v2822
      %v2857 = vld [vmem:[%s1716] sm:$0xe]
      %v2858 = vld [vmem:[%s1716 + $0xc] sm:$0xe]
      %v2859 = vld [vmem:[%s1716 + $0x18] sm:$0xe]
      %v2860 = vld [vmem:[%s1716 + $0x24] sm:$0xe]
      %v2861 = vld [vmem:[%s1716 + $0x30] sm:$0xe]
      %v2862 = vld [vmem:[%s1716 + $0x3c] sm:$0xe]
      %v2863 = vld [vmem:[%s1716 + $0x48] sm:$0xe]
      %v2864 = vld [vmem:[%s1716 + $0x54] sm:$0xe]
      %v2865 = vld [vmem:[%s1716 + $0x60] sm:$0xe]
      %v2866 = vld [vmem:[%s1716 + $0x6c] sm:$0xe]
      %v2867 = vld [vmem:[%s1716 + $0x78] sm:$0xe]
      %v2868 = vld [vmem:[%s1716 + $0x84] sm:$0xe]
      %v2869 = vld [vmem:[%s1716 + $0x90] sm:$0xe]
      %v2870 = vld [vmem:[%s1716 + $0x9c] sm:$0xe]
      %v2871 = vld [vmem:[%s1716 + $0xa8] sm:$0xe]
      %v2872 = vld [vmem:[%s1716 + $0xb4] sm:$0xe]
      %v2921 = vrot.slane %v2857, 5
      %v2922 = vrot.slane %v2921, 4
      %v2923 = vrot.slane %v2104, 5
      %v2924 = vsel %vm1281, %v2922, %v2923
      %v2925 = vrot.slane %v2923, 4
      %v2926 = vrot.slane %v2105, 5
      %v2927 = vsel %vm1281, %v2925, %v2926
      %v2928 = vrot.slane %v2858, 5
      %v2929 = vrot.slane %v2928, 4
      %v2930 = vrot.slane %v2107, 5
      %v2931 = vsel %vm1281, %v2929, %v2930
      %v2932 = vrot.slane %v2930, 4
      %v2933 = vrot.slane %v2108, 5
      %v2934 = vsel %vm1281, %v2932, %v2933
      %v2935 = vrot.slane %v2859, 5
      %v2936 = vrot.slane %v2935, 4
      %v2937 = vrot.slane %v2110, 5
      %v2938 = vsel %vm1281, %v2936, %v2937
      %v2939 = vrot.slane %v2937, 4
      %v2940 = vrot.slane %v2111, 5
      %v2941 = vsel %vm1281, %v2939, %v2940
      %v2942 = vrot.slane %v2860, 5
      %v2943 = vrot.slane %v2942, 4
      %v2944 = vrot.slane %v2113, 5
      %v2945 = vsel %vm1281, %v2943, %v2944
      %v2946 = vrot.slane %v2944, 4
      %v2947 = vrot.slane %v2114, 5
      %v2948 = vsel %vm1281, %v2946, %v2947
      %v2949 = vrot.slane %v2861, 5
      %v2950 = vrot.slane %v2949, 4
      %v2951 = vrot.slane %v2116, 5
      %v2952 = vsel %vm1281, %v2950, %v2951
      %v2953 = vrot.slane %v2951, 4
      %v2954 = vrot.slane %v2117, 5
      %v2955 = vsel %vm1281, %v2953, %v2954
      %v2956 = vrot.slane %v2862, 5
      %v2957 = vrot.slane %v2956, 4
      %v2958 = vrot.slane %v2119, 5
      %v2959 = vsel %vm1281, %v2957, %v2958
      %v2960 = vrot.slane %v2958, 4
      %v2961 = vrot.slane %v2120, 5
      %v2962 = vsel %vm1281, %v2960, %v2961
      %v2963 = vrot.slane %v2863, 5
      %v2964 = vrot.slane %v2963, 4
      %v2965 = vrot.slane %v2122, 5
      %v2966 = vsel %vm1281, %v2964, %v2965
      %v2967 = vrot.slane %v2965, 4
      %v2968 = vrot.slane %v2123, 5
      %v2969 = vsel %vm1281, %v2967, %v2968
      %v2970 = vrot.slane %v2864, 5
      %v2971 = vrot.slane %v2970, 4
      %v2972 = vrot.slane %v2125, 5
      %v2973 = vsel %vm1281, %v2971, %v2972
      %v2974 = vrot.slane %v2972, 4
      %v2975 = vrot.slane %v2126, 5
      %v2976 = vsel %vm1281, %v2974, %v2975
      %v2977 = vrot.slane %v2865, 5
      %v2978 = vrot.slane %v2977, 4
      %v2979 = vrot.slane %v2128, 5
      %v2980 = vsel %vm1281, %v2978, %v2979
      %v2981 = vrot.slane %v2979, 4
      %v2982 = vrot.slane %v2129, 5
      %v2983 = vsel %vm1281, %v2981, %v2982
      %v2984 = vrot.slane %v2866, 5
      %v2985 = vrot.slane %v2984, 4
      %v2986 = vrot.slane %v2131, 5
      %v2987 = vsel %vm1281, %v2985, %v2986
      %v2988 = vrot.slane %v2986, 4
      %v2989 = vrot.slane %v2132, 5
      %v2990 = vsel %vm1281, %v2988, %v2989
      %v2991 = vrot.slane %v2867, 5
      %v2992 = vrot.slane %v2991, 4
      %v2993 = vrot.slane %v2134, 5
      %v2994 = vsel %vm1281, %v2992, %v2993
      %v2995 = vrot.slane %v2993, 4
      %v2996 = vrot.slane %v2135, 5
      %v2997 = vsel %vm1281, %v2995, %v2996
      %v2998 = vrot.slane %v2868, 5
      %v2999 = vrot.slane %v2998, 4
      %v3000 = vrot.slane %v2137, 5
      %v3001 = vsel %vm1281, %v2999, %v3000
      %v3002 = vrot.slane %v3000, 4
      %v3003 = vrot.slane %v2138, 5
      %v3004 = vsel %vm1281, %v3002, %v3003
      %v3005 = vrot.slane %v2869, 5
      %v3006 = vrot.slane %v3005, 4
      %v3007 = vrot.slane %v2140, 5
      %v3008 = vsel %vm1281, %v3006, %v3007
      %v3009 = vrot.slane %v3007, 4
      %v3010 = vrot.slane %v2141, 5
      %v3011 = vsel %vm1281, %v3009, %v3010
      %v3012 = vrot.slane %v2870, 5
      %v3013 = vrot.slane %v3012, 4
      %v3014 = vrot.slane %v2143, 5
      %v3015 = vsel %vm1281, %v3013, %v3014
      %v3016 = vrot.slane %v3014, 4
      %v3017 = vrot.slane %v2144, 5
      %v3018 = vsel %vm1281, %v3016, %v3017
      %v3019 = vrot.slane %v2871, 5
      %v3020 = vrot.slane %v3019, 4
      %v3021 = vrot.slane %v2146, 5
      %v3022 = vsel %vm1281, %v3020, %v3021
      %v3023 = vrot.slane %v3021, 4
      %v3024 = vrot.slane %v2147, 5
      %v3025 = vsel %vm1281, %v3023, %v3024
      %v3026 = vrot.slane %v2872, 5
      %v3027 = vrot.slane %v3026, 4
      %v3028 = vrot.slane %v2149, 5
      %v3029 = vsel %vm1281, %v3027, %v3028
      %v3030 = vrot.slane %v3028, 4
      %v3031 = vrot.slane %v2150, 5
      %v3032 = vsel %vm1281, %v3030, %v3031
      %s3033 = scalar_lea.vmem %s1, 160
      %v3034 = vld [vmem:[%s3033] sm:$0xf]
      %v3035 = vld [vmem:[%s3033 + $0x4] sm:$0xf]
      %v3036 = vld [vmem:[%s3033 + $0x8] sm:$0xf]
      %v3037 = vld [vmem:[%s3033 + $0xc] sm:$0xf]
      %v3038 = vld [vmem:[%s3033 + $0x10] sm:$0xf]
      %v3039 = vld [vmem:[%s3033 + $0x14] sm:$0xf]
      %v3040 = vld [vmem:[%s3033 + $0x18] sm:$0xf]
      %v3041 = vld [vmem:[%s3033 + $0x1c] sm:$0xf]
      %v3042 = vunpack.c.l.b16 %v2924
      %v3043 = vunpack.c.l.b16 %v2927
      %v3044 = vunpack.c.l.b16 %v2931
      %v3045 = vunpack.c.l.b16 %v2934
      %v3046 = vunpack.c.l.b16 %v2938
      %v3047 = vunpack.c.l.b16 %v2941
      %v3048 = vunpack.c.l.b16 %v2945
      %v3049 = vunpack.c.l.b16 %v2948
      %v3050 = vunpack.c.l.b16 %v2952
      %v3051 = vunpack.c.l.b16 %v2955
      %v3052 = vunpack.c.l.b16 %v2959
      %v3053 = vunpack.c.l.b16 %v2962
      %v3054 = vunpack.c.l.b16 %v2966
      %v3055 = vunpack.c.l.b16 %v2969
      %v3056 = vunpack.c.l.b16 %v2973
      %v3057 = vunpack.c.l.b16 %v2976
      %v3058 = vunpack.c.l.b16 %v2980
      %v3059 = vunpack.c.l.b16 %v2983
      %v3060 = vunpack.c.l.b16 %v2987
      %v3061 = vunpack.c.l.b16 %v2990
      %v3062 = vunpack.c.l.b16 %v2994
      %v3063 = vunpack.c.l.b16 %v2997
      %v3064 = vunpack.c.l.b16 %v3001
      %v3065 = vunpack.c.l.b16 %v3004
      %v3066 = vunpack.c.l.b16 %v3008
      %v3067 = vunpack.c.l.b16 %v3011
      %v3068 = vunpack.c.l.b16 %v3015
      %v3069 = vunpack.c.l.b16 %v3018
      %v3070 = vunpack.c.l.b16 %v3022
      %v3071 = vunpack.c.l.b16 %v3025
      %v3072 = vunpack.c.l.b16 %v3029
      %v3073 = vunpack.c.l.b16 %v3032
      %v3074 = vpack.c.b16 %v3043, %v3042
      %v3075 = vpack.c.b16 %v3045, %v3044
      %v3076 = vpack.c.b16 %v3047, %v3046
      %v3077 = vpack.c.b16 %v3049, %v3048
      %v3078 = vpack.c.b16 %v3051, %v3050
      %v3079 = vpack.c.b16 %v3053, %v3052
      %v3080 = vpack.c.b16 %v3055, %v3054
      %v3081 = vpack.c.b16 %v3057, %v3056
      %v3082 = vpack.c.b16 %v3059, %v3058
      %v3083 = vpack.c.b16 %v3061, %v3060
      %v3084 = vpack.c.b16 %v3063, %v3062
      %v3085 = vpack.c.b16 %v3065, %v3064
      %v3086 = vpack.c.b16 %v3067, %v3066
      %v3087 = vpack.c.b16 %v3069, %v3068
      %v3088 = vpack.c.b16 %v3071, %v3070
      %v3089 = vpack.c.b16 %v3073, %v3072
      %v3098 = vunpack.c.l.b16 %v3034
      %v3099 = vunpack.c.l.b16 %v3035
      %v3100 = vunpack.c.l.b16 %v3036
      %v3101 = vunpack.c.l.b16 %v3037
      %v3102 = vunpack.c.l.b16 %v3038
      %v3103 = vunpack.c.l.b16 %v3039
      %v3104 = vunpack.c.l.b16 %v3040
      %v3105 = vunpack.c.l.b16 %v3041
      %v3106 = vpack.c.b16 %v3099, %v3098
      %v3107 = vpack.c.b16 %v3101, %v3100
      %v3108 = vpack.c.b16 %v3103, %v3102
      %v3109 = vpack.c.b16 %v3105, %v3104
      %v3115 = vsel %vm708, %v3074, 0
      %v3118 = vsel %vm708, %v3075, 0
      %v3121 = vsel %vm708, %v3076, 0
      %v3124 = vsel %vm708, %v3077, 0
      %v3127 = vsel %vm708, %v3078, 0
      %v3130 = vsel %vm708, %v3079, 0
      %v3133 = vsel %vm708, %v3080, 0
      %v3136 = vsel %vm708, %v3081, 0
      %v3139 = vsel %vm708, %v3082, 0
      %v3142 = vsel %vm708, %v3083, 0
      %v3145 = vsel %vm708, %v3084, 0
      %v3148 = vsel %vm708, %v3085, 0
      %v3151 = vsel %vm708, %v3086, 0
      %v3154 = vsel %vm708, %v3087, 0
      %v3157 = vsel %vm708, %v3088, 0
      %v3160 = vsel %vm708, %v3089, 0
      %3162 = vmatprep.subr.bf16.mxu0 0
      %3163 = vmatpush1.bf16.msra.mxu0 0
      %3164 = vmatprep.subr.bf16.mxu0 0
      %3165 = vmatpush1.bf16.msra.mxu0 0
      %3166 = vmatprep.subr.bf16.mxu0 0
      %3167 = vmatpush1.bf16.msra.mxu0 0
      %3168 = vmatprep.subr.bf16.mxu0 0
      %3169 = vmatpush1.bf16.msra.mxu0 0
      %3170 = vmatprep.subr.bf16.mxu0 0
      %3171 = vmatpush1.bf16.msra.mxu0 %v3109
      %3172 = vmatprep.subr.bf16.mxu0 0
      %3173 = vmatpush1.bf16.msra.mxu0 %v3108
      %3174 = vmatprep.subr.bf16.mxu0 0
      %3175 = vmatpush1.bf16.msra.mxu0 %v3107
      %3176 = vmatprep.subr.bf16.mxu0 0
      %3177 = vmatpush1.bf16.msra.mxu0 %v3106
      %3178 = vmatprep.subr.bf16.mxu0 0
      %3179 = vmatpush2.bf16.msra.mxu0 0
      %3180 = vmatprep.subr.bf16.mxu0 0
      %3181 = vmatpush2.bf16.msra.mxu0 0
      %3182 = vmatprep.subr.bf16.mxu0 0
      %3183 = vmatpush2.bf16.msra.mxu0 0
      %3184 = vmatprep.subr.bf16.mxu0 0
      %3185 = vmatpush2.bf16.msra.mxu0 0
      %3186 = vmatprep.subr.bf16.mxu0 0
      %3187 = vmatpush2.bf16.msra.mxu0 0
      %3188 = vmatprep.subr.bf16.mxu0 0
      %3189 = vmatpush2.bf16.msra.mxu0 0
      %3190 = vmatprep.subr.bf16.mxu0 0
      %3191 = vmatpush2.bf16.msra.mxu0 0
      %3192 = vmatprep.subr.bf16.mxu0 0
      %3193 = vmatpush2.bf16.msra.mxu0 0
      %3194 = vmatprep.mubr.bf16.mxu0 0
      %3195 = vmatmul.mubr.bf16.gmra.mxu0 %v3115
      %v3196 = vpop.f32.mrf.mxu0
      %v3197 = vadd.f32 0.0, %v3196
      %v3198 = vpop.f32.mrf.mxu0
      %v3199 = vpop.f32.mrf.mxu0
      %v3200 = vadd.f32 0.0, %v3199
      %v3201 = vpop.f32.mrf.mxu0
      %3202 = vmatprep.mubr.bf16.mxu0 0
      %3203 = vmatmul.mubr.bf16.gmra.mxu0 %v3118
      %v3204 = vpop.f32.mrf.mxu0
      %v3205 = vadd.f32 0.0, %v3204
      %v3206 = vpop.f32.mrf.mxu0
      %v3207 = vpop.f32.mrf.mxu0
      %v3208 = vadd.f32 0.0, %v3207
      %v3209 = vpop.f32.mrf.mxu0
      %3210 = vmatprep.mubr.bf16.mxu0 0
      %3211 = vmatmul.mubr.bf16.gmra.mxu0 %v3121
      %v3212 = vpop.f32.mrf.mxu0
      %v3213 = vadd.f32 0.0, %v3212
      %v3214 = vpop.f32.mrf.mxu0
      %v3215 = vpop.f32.mrf.mxu0
      %v3216 = vadd.f32 0.0, %v3215
      %v3217 = vpop.f32.mrf.mxu0
      %3218 = vmatprep.mubr.bf16.mxu0 0
      %3219 = vmatmul.mubr.bf16.gmra.mxu0 %v3124
      %v3220 = vpop.f32.mrf.mxu0
      %v3221 = vadd.f32 0.0, %v3220
      %v3222 = vpop.f32.mrf.mxu0
      %v3223 = vpop.f32.mrf.mxu0
      %v3224 = vadd.f32 0.0, %v3223
      %v3225 = vpop.f32.mrf.mxu0
      %3226 = vmatprep.mubr.bf16.mxu0 0
      %3227 = vmatmul.mubr.bf16.gmra.mxu0 %v3127
      %v3228 = vpop.f32.mrf.mxu0
      %v3229 = vadd.f32 0.0, %v3228
      %v3230 = vpop.f32.mrf.mxu0
      %v3231 = vpop.f32.mrf.mxu0
      %v3232 = vadd.f32 0.0, %v3231
      %v3233 = vpop.f32.mrf.mxu0
      %3234 = vmatprep.mubr.bf16.mxu0 0
      %3235 = vmatmul.mubr.bf16.gmra.mxu0 %v3130
      %v3236 = vpop.f32.mrf.mxu0
      %v3237 = vadd.f32 0.0, %v3236
      %v3238 = vpop.f32.mrf.mxu0
      %v3239 = vpop.f32.mrf.mxu0
      %v3240 = vadd.f32 0.0, %v3239
      %v3241 = vpop.f32.mrf.mxu0
      %3242 = vmatprep.mubr.bf16.mxu0 0
      %3243 = vmatmul.mubr.bf16.gmra.mxu0 %v3133
      %v3244 = vpop.f32.mrf.mxu0
      %v3245 = vadd.f32 0.0, %v3244
      %v3246 = vpop.f32.mrf.mxu0
      %v3247 = vpop.f32.mrf.mxu0
      %v3248 = vadd.f32 0.0, %v3247
      %v3249 = vpop.f32.mrf.mxu0
      %3250 = vmatprep.mubr.bf16.mxu0 0
      %3251 = vmatmul.mubr.bf16.gmra.mxu0 %v3136
      %v3252 = vpop.f32.mrf.mxu0
      %v3253 = vadd.f32 0.0, %v3252
      %v3254 = vpop.f32.mrf.mxu0
      %v3255 = vpop.f32.mrf.mxu0
      %v3256 = vadd.f32 0.0, %v3255
      %v3257 = vpop.f32.mrf.mxu0
      %3258 = vmatprep.mubr.bf16.mxu0 0
      %3259 = vmatmul.mubr.bf16.gmra.mxu0 %v3139
      %v3260 = vpop.f32.mrf.mxu0
      %v3261 = vadd.f32 0.0, %v3260
      %v3262 = vpop.f32.mrf.mxu0
      %v3263 = vpop.f32.mrf.mxu0
      %v3264 = vadd.f32 0.0, %v3263
      %v3265 = vpop.f32.mrf.mxu0
      %3266 = vmatprep.mubr.bf16.mxu0 0
      %3267 = vmatmul.mubr.bf16.gmra.mxu0 %v3142
      %v3268 = vpop.f32.mrf.mxu0
      %v3269 = vadd.f32 0.0, %v3268
      %v3270 = vpop.f32.mrf.mxu0
      %v3271 = vpop.f32.mrf.mxu0
      %v3272 = vadd.f32 0.0, %v3271
      %v3273 = vpop.f32.mrf.mxu0
      %3274 = vmatprep.mubr.bf16.mxu0 0
      %3275 = vmatmul.mubr.bf16.gmra.mxu0 %v3145
      %v3276 = vpop.f32.mrf.mxu0
      %v3277 = vadd.f32 0.0, %v3276
      %v3278 = vpop.f32.mrf.mxu0
      %v3279 = vpop.f32.mrf.mxu0
      %v3280 = vadd.f32 0.0, %v3279
      %v3281 = vpop.f32.mrf.mxu0
      %3282 = vmatprep.mubr.bf16.mxu0 0
      %3283 = vmatmul.mubr.bf16.gmra.mxu0 %v3148
      %v3284 = vpop.f32.mrf.mxu0
      %v3285 = vadd.f32 0.0, %v3284
      %v3286 = vpop.f32.mrf.mxu0
      %v3287 = vpop.f32.mrf.mxu0
      %v3288 = vadd.f32 0.0, %v3287
      %v3289 = vpop.f32.mrf.mxu0
      %3290 = vmatprep.mubr.bf16.mxu0 0
      %3291 = vmatmul.mubr.bf16.gmra.mxu0 %v3151
      %v3292 = vpop.f32.mrf.mxu0
      %v3293 = vadd.f32 0.0, %v3292
      %v3294 = vpop.f32.mrf.mxu0
      %v3295 = vpop.f32.mrf.mxu0
      %v3296 = vadd.f32 0.0, %v3295
      %v3297 = vpop.f32.mrf.mxu0
      %3298 = vmatprep.mubr.bf16.mxu0 0
      %3299 = vmatmul.mubr.bf16.gmra.mxu0 %v3154
      %v3300 = vpop.f32.mrf.mxu0
      %v3301 = vadd.f32 0.0, %v3300
      %v3302 = vpop.f32.mrf.mxu0
      %v3303 = vpop.f32.mrf.mxu0
      %v3304 = vadd.f32 0.0, %v3303
      %v3305 = vpop.f32.mrf.mxu0
      %3306 = vmatprep.mubr.bf16.mxu0 0
      %3307 = vmatmul.mubr.bf16.gmra.mxu0 %v3157
      %v3308 = vpop.f32.mrf.mxu0
      %v3309 = vadd.f32 0.0, %v3308
      %v3310 = vpop.f32.mrf.mxu0
      %v3311 = vpop.f32.mrf.mxu0
      %v3312 = vadd.f32 0.0, %v3311
      %v3313 = vpop.f32.mrf.mxu0
      %3314 = vmatprep.mubr.bf16.mxu0 0
      %3315 = vmatmul.mubr.bf16.gmra.mxu0 %v3160
      %v3316 = vpop.f32.mrf.mxu0
      %v3317 = vadd.f32 0.0, %v3316
      %v3318 = vpop.f32.mrf.mxu0
      %v3319 = vpop.f32.mrf.mxu0
      %v3320 = vadd.f32 0.0, %v3319
      %v3321 = vpop.f32.mrf.mxu0
      %3322 = vdwg.mxu0
      %v3323 = vadd.f32 %v2825, %v3197
      %v3324 = vadd.f32 %v2826, %v3200
      %v3325 = vadd.f32 %v2827, %v3205
      %v3326 = vadd.f32 %v2828, %v3208
      %v3327 = vadd.f32 %v2829, %v3213
      %v3328 = vadd.f32 %v2830, %v3216
      %v3329 = vadd.f32 %v2831, %v3221
      %v3330 = vadd.f32 %v2832, %v3224
      %v3331 = vadd.f32 %v2833, %v3229
      %v3332 = vadd.f32 %v2834, %v3232
      %v3333 = vadd.f32 %v2835, %v3237
      %v3334 = vadd.f32 %v2836, %v3240
      %v3335 = vadd.f32 %v2837, %v3245
      %v3336 = vadd.f32 %v2838, %v3248
      %v3337 = vadd.f32 %v2839, %v3253
      %v3338 = vadd.f32 %v2840, %v3256
      %v3339 = vadd.f32 %v2841, %v3261
      %v3340 = vadd.f32 %v2842, %v3264
      %v3341 = vadd.f32 %v2843, %v3269
      %v3342 = vadd.f32 %v2844, %v3272
      %v3343 = vadd.f32 %v2845, %v3277
      %v3344 = vadd.f32 %v2846, %v3280
      %v3345 = vadd.f32 %v2847, %v3285
      %v3346 = vadd.f32 %v2848, %v3288
      %v3347 = vadd.f32 %v2849, %v3293
      %v3348 = vadd.f32 %v2850, %v3296
      %v3349 = vadd.f32 %v2851, %v3301
      %v3350 = vadd.f32 %v2852, %v3304
      %v3351 = vadd.f32 %v2853, %v3309
      %v3352 = vadd.f32 %v2854, %v3312
      %v3353 = vadd.f32 %v2855, %v3317
      %v3354 = vadd.f32 %v2856, %v3320
      %s3355 = scalar_lea.vmem %s172, 24
      %v3356 = vld [vmem:[%s3355] sm:$0xf]
      %v3357 = vld [vmem:[%s3355 + $0x4] sm:$0xf]
      %v3358 = vld [vmem:[%s3355 + $0xc] sm:$0xf]
      %v3359 = vld [vmem:[%s3355 + $0x10] sm:$0xf]
      %v3360 = vld [vmem:[%s3355 + $0x18] sm:$0xf]
      %v3361 = vld [vmem:[%s3355 + $0x1c] sm:$0xf]
      %v3362 = vld [vmem:[%s3355 + $0x24] sm:$0xf]
      %v3363 = vld [vmem:[%s3355 + $0x28] sm:$0xf]
      %v3364 = vld [vmem:[%s3355 + $0x30] sm:$0xf]
      %v3365 = vld [vmem:[%s3355 + $0x34] sm:$0xf]
      %v3366 = vld [vmem:[%s3355 + $0x3c] sm:$0xf]
      %v3367 = vld [vmem:[%s3355 + $0x40] sm:$0xf]
      %v3368 = vld [vmem:[%s3355 + $0x48] sm:$0xf]
      %v3369 = vld [vmem:[%s3355 + $0x4c] sm:$0xf]
      %v3370 = vld [vmem:[%s3355 + $0x54] sm:$0xf]
      %v3371 = vld [vmem:[%s3355 + $0x58] sm:$0xf]
      %v3372 = vld [vmem:[%s3355 + $0x60] sm:$0xf]
      %v3373 = vld [vmem:[%s3355 + $0x64] sm:$0xf]
      %v3374 = vld [vmem:[%s3355 + $0x6c] sm:$0xf]
      %v3375 = vld [vmem:[%s3355 + $0x70] sm:$0xf]
      %v3376 = vld [vmem:[%s3355 + $0x78] sm:$0xf]
      %v3377 = vld [vmem:[%s3355 + $0x7c] sm:$0xf]
      %v3378 = vld [vmem:[%s3355 + $0x84] sm:$0xf]
      %v3379 = vld [vmem:[%s3355 + $0x88] sm:$0xf]
      %v3380 = vld [vmem:[%s3355 + $0x90] sm:$0xf]
      %v3381 = vld [vmem:[%s3355 + $0x94] sm:$0xf]
      %v3382 = vld [vmem:[%s3355 + $0x9c] sm:$0xf]
      %v3383 = vld [vmem:[%s3355 + $0xa0] sm:$0xf]
      %v3384 = vld [vmem:[%s3355 + $0xa8] sm:$0xf]
      %v3385 = vld [vmem:[%s3355 + $0xac] sm:$0xf]
      %v3386 = vld [vmem:[%s3355 + $0xb4] sm:$0xf]
      %v3387 = vld [vmem:[%s3355 + $0xb8] sm:$0xf]
      %s3388 = scalar_lea.vmem %s1, 192
      %v3389 = vld [vmem:[%s3388] sm:$0xf]
      %v3390 = vld [vmem:[%s3388 + $0x4] sm:$0xf]
      %v3391 = vld [vmem:[%s3388 + $0x8] sm:$0xf]
      %v3392 = vld [vmem:[%s3388 + $0xc] sm:$0xf]
      %v3393 = vld [vmem:[%s3388 + $0x10] sm:$0xf]
      %v3394 = vld [vmem:[%s3388 + $0x14] sm:$0xf]
      %v3395 = vld [vmem:[%s3388 + $0x18] sm:$0xf]
      %v3396 = vld [vmem:[%s3388 + $0x1c] sm:$0xf]
      %v3429 = vunpack.c.l.b16 %v3356
      %v3430 = vunpack.c.l.b16 %v3357
      %v3431 = vunpack.c.l.b16 %v3358
      %v3432 = vunpack.c.l.b16 %v3359
      %v3433 = vunpack.c.l.b16 %v3360
      %v3434 = vunpack.c.l.b16 %v3361
      %v3435 = vunpack.c.l.b16 %v3362
      %v3436 = vunpack.c.l.b16 %v3363
      %v3437 = vunpack.c.l.b16 %v3364
      %v3438 = vunpack.c.l.b16 %v3365
      %v3439 = vunpack.c.l.b16 %v3366
      %v3440 = vunpack.c.l.b16 %v3367
      %v3441 = vunpack.c.l.b16 %v3368
      %v3442 = vunpack.c.l.b16 %v3369
      %v3443 = vunpack.c.l.b16 %v3370
      %v3444 = vunpack.c.l.b16 %v3371
      %v3445 = vunpack.c.l.b16 %v3372
      %v3446 = vunpack.c.l.b16 %v3373
      %v3447 = vunpack.c.l.b16 %v3374
      %v3448 = vunpack.c.l.b16 %v3375
      %v3449 = vunpack.c.l.b16 %v3376
      %v3450 = vunpack.c.l.b16 %v3377
      %v3451 = vunpack.c.l.b16 %v3378
      %v3452 = vunpack.c.l.b16 %v3379
      %v3453 = vunpack.c.l.b16 %v3380
      %v3454 = vunpack.c.l.b16 %v3381
      %v3455 = vunpack.c.l.b16 %v3382
      %v3456 = vunpack.c.l.b16 %v3383
      %v3457 = vunpack.c.l.b16 %v3384
      %v3458 = vunpack.c.l.b16 %v3385
      %v3459 = vunpack.c.l.b16 %v3386
      %v3460 = vunpack.c.l.b16 %v3387
      %v3461 = vpack.c.b16 %v3430, %v3429
      %v3462 = vpack.c.b16 %v3432, %v3431
      %v3463 = vpack.c.b16 %v3434, %v3433
      %v3464 = vpack.c.b16 %v3436, %v3435
      %v3465 = vpack.c.b16 %v3438, %v3437
      %v3466 = vpack.c.b16 %v3440, %v3439
      %v3467 = vpack.c.b16 %v3442, %v3441
      %v3468 = vpack.c.b16 %v3444, %v3443
      %v3469 = vpack.c.b16 %v3446, %v3445
      %v3470 = vpack.c.b16 %v3448, %v3447
      %v3471 = vpack.c.b16 %v3450, %v3449
      %v3472 = vpack.c.b16 %v3452, %v3451
      %v3473 = vpack.c.b16 %v3454, %v3453
      %v3474 = vpack.c.b16 %v3456, %v3455
      %v3475 = vpack.c.b16 %v3458, %v3457
      %v3476 = vpack.c.b16 %v3460, %v3459
      %v3485 = vunpack.c.l.b16 %v3389
      %v3486 = vunpack.c.l.b16 %v3390
      %v3487 = vunpack.c.l.b16 %v3391
      %v3488 = vunpack.c.l.b16 %v3392
      %v3489 = vunpack.c.l.b16 %v3393
      %v3490 = vunpack.c.l.b16 %v3394
      %v3491 = vunpack.c.l.b16 %v3395
      %v3492 = vunpack.c.l.b16 %v3396
      %v3493 = vpack.c.b16 %v3486, %v3485
      %v3494 = vpack.c.b16 %v3488, %v3487
      %v3495 = vpack.c.b16 %v3490, %v3489
      %v3496 = vpack.c.b16 %v3492, %v3491
      %v3502 = vsel %vm708, %v3461, 0
      %v3505 = vsel %vm708, %v3462, 0
      %v3508 = vsel %vm708, %v3463, 0
      %v3511 = vsel %vm708, %v3464, 0
      %v3514 = vsel %vm708, %v3465, 0
      %v3517 = vsel %vm708, %v3466, 0
      %v3520 = vsel %vm708, %v3467, 0
      %v3523 = vsel %vm708, %v3468, 0
      %v3526 = vsel %vm708, %v3469, 0
      %v3529 = vsel %vm708, %v3470, 0
      %v3532 = vsel %vm708, %v3471, 0
      %v3535 = vsel %vm708, %v3472, 0
      %v3538 = vsel %vm708, %v3473, 0
      %v3541 = vsel %vm708, %v3474, 0
      %v3544 = vsel %vm708, %v3475, 0
      %v3547 = vsel %vm708, %v3476, 0
      %3549 = vmatprep.subr.bf16.mxu0 0
      %3550 = vmatpush1.bf16.msra.mxu0 0
      %3551 = vmatprep.subr.bf16.mxu0 0
      %3552 = vmatpush1.bf16.msra.mxu0 0
      %3553 = vmatprep.subr.bf16.mxu0 0
      %3554 = vmatpush1.bf16.msra.mxu0 0
      %3555 = vmatprep.subr.bf16.mxu0 0
      %3556 = vmatpush1.bf16.msra.mxu0 0
      %3557 = vmatprep.subr.bf16.mxu0 0
      %3558 = vmatpush1.bf16.msra.mxu0 %v3496
      %3559 = vmatprep.subr.bf16.mxu0 0
      %3560 = vmatpush1.bf16.msra.mxu0 %v3495
      %3561 = vmatprep.subr.bf16.mxu0 0
      %3562 = vmatpush1.bf16.msra.mxu0 %v3494
      %3563 = vmatprep.subr.bf16.mxu0 0
      %3564 = vmatpush1.bf16.msra.mxu0 %v3493
      %3565 = vmatprep.subr.bf16.mxu0 0
      %3566 = vmatpush2.bf16.msra.mxu0 0
      %3567 = vmatprep.subr.bf16.mxu0 0
      %3568 = vmatpush2.bf16.msra.mxu0 0
      %3569 = vmatprep.subr.bf16.mxu0 0
      %3570 = vmatpush2.bf16.msra.mxu0 0
      %3571 = vmatprep.subr.bf16.mxu0 0
      %3572 = vmatpush2.bf16.msra.mxu0 0
      %3573 = vmatprep.subr.bf16.mxu0 0
      %3574 = vmatpush2.bf16.msra.mxu0 0
      %3575 = vmatprep.subr.bf16.mxu0 0
      %3576 = vmatpush2.bf16.msra.mxu0 0
      %3577 = vmatprep.subr.bf16.mxu0 0
      %3578 = vmatpush2.bf16.msra.mxu0 0
      %3579 = vmatprep.subr.bf16.mxu0 0
      %3580 = vmatpush2.bf16.msra.mxu0 0
      %3581 = vmatprep.mubr.bf16.mxu0 0
      %3582 = vmatmul.mubr.bf16.gmra.mxu0 %v3502
      %v3583 = vpop.f32.mrf.mxu0
      %v3584 = vadd.f32 0.0, %v3583
      %v3585 = vpop.f32.mrf.mxu0
      %v3586 = vpop.f32.mrf.mxu0
      %v3587 = vadd.f32 0.0, %v3586
      %v3588 = vpop.f32.mrf.mxu0
      %3589 = vmatprep.mubr.bf16.mxu0 0
      %3590 = vmatmul.mubr.bf16.gmra.mxu0 %v3505
      %v3591 = vpop.f32.mrf.mxu0
      %v3592 = vadd.f32 0.0, %v3591
      %v3593 = vpop.f32.mrf.mxu0
      %v3594 = vpop.f32.mrf.mxu0
      %v3595 = vadd.f32 0.0, %v3594
      %v3596 = vpop.f32.mrf.mxu0
      %3597 = vmatprep.mubr.bf16.mxu0 0
      %3598 = vmatmul.mubr.bf16.gmra.mxu0 %v3508
      %v3599 = vpop.f32.mrf.mxu0
      %v3600 = vadd.f32 0.0, %v3599
      %v3601 = vpop.f32.mrf.mxu0
      %v3602 = vpop.f32.mrf.mxu0
      %v3603 = vadd.f32 0.0, %v3602
      %v3604 = vpop.f32.mrf.mxu0
      %3605 = vmatprep.mubr.bf16.mxu0 0
      %3606 = vmatmul.mubr.bf16.gmra.mxu0 %v3511
      %v3607 = vpop.f32.mrf.mxu0
      %v3608 = vadd.f32 0.0, %v3607
      %v3609 = vpop.f32.mrf.mxu0
      %v3610 = vpop.f32.mrf.mxu0
      %v3611 = vadd.f32 0.0, %v3610
      %v3612 = vpop.f32.mrf.mxu0
      %3613 = vmatprep.mubr.bf16.mxu0 0
      %3614 = vmatmul.mubr.bf16.gmra.mxu0 %v3514
      %v3615 = vpop.f32.mrf.mxu0
      %v3616 = vadd.f32 0.0, %v3615
      %v3617 = vpop.f32.mrf.mxu0
      %v3618 = vpop.f32.mrf.mxu0
      %v3619 = vadd.f32 0.0, %v3618
      %v3620 = vpop.f32.mrf.mxu0
      %3621 = vmatprep.mubr.bf16.mxu0 0
      %3622 = vmatmul.mubr.bf16.gmra.mxu0 %v3517
      %v3623 = vpop.f32.mrf.mxu0
      %v3624 = vadd.f32 0.0, %v3623
      %v3625 = vpop.f32.mrf.mxu0
      %v3626 = vpop.f32.mrf.mxu0
      %v3627 = vadd.f32 0.0, %v3626
      %v3628 = vpop.f32.mrf.mxu0
      %3629 = vmatprep.mubr.bf16.mxu0 0
      %3630 = vmatmul.mubr.bf16.gmra.mxu0 %v3520
      %v3631 = vpop.f32.mrf.mxu0
      %v3632 = vadd.f32 0.0, %v3631
      %v3633 = vpop.f32.mrf.mxu0
      %v3634 = vpop.f32.mrf.mxu0
      %v3635 = vadd.f32 0.0, %v3634
      %v3636 = vpop.f32.mrf.mxu0
      %3637 = vmatprep.mubr.bf16.mxu0 0
      %3638 = vmatmul.mubr.bf16.gmra.mxu0 %v3523
      %v3639 = vpop.f32.mrf.mxu0
      %v3640 = vadd.f32 0.0, %v3639
      %v3641 = vpop.f32.mrf.mxu0
      %v3642 = vpop.f32.mrf.mxu0
      %v3643 = vadd.f32 0.0, %v3642
      %v3644 = vpop.f32.mrf.mxu0
      %3645 = vmatprep.mubr.bf16.mxu0 0
      %3646 = vmatmul.mubr.bf16.gmra.mxu0 %v3526
      %v3647 = vpop.f32.mrf.mxu0
      %v3648 = vadd.f32 0.0, %v3647
      %v3649 = vpop.f32.mrf.mxu0
      %v3650 = vpop.f32.mrf.mxu0
      %v3651 = vadd.f32 0.0, %v3650
      %v3652 = vpop.f32.mrf.mxu0
      %3653 = vmatprep.mubr.bf16.mxu0 0
      %3654 = vmatmul.mubr.bf16.gmra.mxu0 %v3529
      %v3655 = vpop.f32.mrf.mxu0
      %v3656 = vadd.f32 0.0, %v3655
      %v3657 = vpop.f32.mrf.mxu0
      %v3658 = vpop.f32.mrf.mxu0
      %v3659 = vadd.f32 0.0, %v3658
      %v3660 = vpop.f32.mrf.mxu0
      %3661 = vmatprep.mubr.bf16.mxu0 0
      %3662 = vmatmul.mubr.bf16.gmra.mxu0 %v3532
      %v3663 = vpop.f32.mrf.mxu0
      %v3664 = vadd.f32 0.0, %v3663
      %v3665 = vpop.f32.mrf.mxu0
      %v3666 = vpop.f32.mrf.mxu0
      %v3667 = vadd.f32 0.0, %v3666
      %v3668 = vpop.f32.mrf.mxu0
      %3669 = vmatprep.mubr.bf16.mxu0 0
      %3670 = vmatmul.mubr.bf16.gmra.mxu0 %v3535
      %v3671 = vpop.f32.mrf.mxu0
      %v3672 = vadd.f32 0.0, %v3671
      %v3673 = vpop.f32.mrf.mxu0
      %v3674 = vpop.f32.mrf.mxu0
      %v3675 = vadd.f32 0.0, %v3674
      %v3676 = vpop.f32.mrf.mxu0
      %3677 = vmatprep.mubr.bf16.mxu0 0
      %3678 = vmatmul.mubr.bf16.gmra.mxu0 %v3538
      %v3679 = vpop.f32.mrf.mxu0
      %v3680 = vadd.f32 0.0, %v3679
      %v3681 = vpop.f32.mrf.mxu0
      %v3682 = vpop.f32.mrf.mxu0
      %v3683 = vadd.f32 0.0, %v3682
      %v3684 = vpop.f32.mrf.mxu0
      %3685 = vmatprep.mubr.bf16.mxu0 0
      %3686 = vmatmul.mubr.bf16.gmra.mxu0 %v3541
      %v3687 = vpop.f32.mrf.mxu0
      %v3688 = vadd.f32 0.0, %v3687
      %v3689 = vpop.f32.mrf.mxu0
      %v3690 = vpop.f32.mrf.mxu0
      %v3691 = vadd.f32 0.0, %v3690
      %v3692 = vpop.f32.mrf.mxu0
      %3693 = vmatprep.mubr.bf16.mxu0 0
      %3694 = vmatmul.mubr.bf16.gmra.mxu0 %v3544
      %v3695 = vpop.f32.mrf.mxu0
      %v3696 = vadd.f32 0.0, %v3695
      %v3697 = vpop.f32.mrf.mxu0
      %v3698 = vpop.f32.mrf.mxu0
      %v3699 = vadd.f32 0.0, %v3698
      %v3700 = vpop.f32.mrf.mxu0
      %3701 = vmatprep.mubr.bf16.mxu0 0
      %3702 = vmatmul.mubr.bf16.gmra.mxu0 %v3547
      %v3703 = vpop.f32.mrf.mxu0
      %v3704 = vadd.f32 0.0, %v3703
      %v3705 = vpop.f32.mrf.mxu0
      %v3706 = vpop.f32.mrf.mxu0
      %v3707 = vadd.f32 0.0, %v3706
      %v3708 = vpop.f32.mrf.mxu0
      %3709 = vdwg.mxu0
      %v3710 = vadd.f32 %v3323, %v3584
      %v3711 = vadd.f32 %v3324, %v3587
      %v3712 = vadd.f32 %v3325, %v3592
      %v3713 = vadd.f32 %v3326, %v3595
      %v3714 = vadd.f32 %v3327, %v3600
      %v3715 = vadd.f32 %v3328, %v3603
      %v3716 = vadd.f32 %v3329, %v3608
      %v3717 = vadd.f32 %v3330, %v3611
      %v3718 = vadd.f32 %v3331, %v3616
      %v3719 = vadd.f32 %v3332, %v3619
      %v3720 = vadd.f32 %v3333, %v3624
      %v3721 = vadd.f32 %v3334, %v3627
      %v3722 = vadd.f32 %v3335, %v3632
      %v3723 = vadd.f32 %v3336, %v3635
      %v3724 = vadd.f32 %v3337, %v3640
      %v3725 = vadd.f32 %v3338, %v3643
      %v3726 = vadd.f32 %v3339, %v3648
      %v3727 = vadd.f32 %v3340, %v3651
      %v3728 = vadd.f32 %v3341, %v3656
      %v3729 = vadd.f32 %v3342, %v3659
      %v3730 = vadd.f32 %v3343, %v3664
      %v3731 = vadd.f32 %v3344, %v3667
      %v3732 = vadd.f32 %v3345, %v3672
      %v3733 = vadd.f32 %v3346, %v3675
      %v3734 = vadd.f32 %v3347, %v3680
      %v3735 = vadd.f32 %v3348, %v3683
      %v3736 = vadd.f32 %v3349, %v3688
      %v3737 = vadd.f32 %v3350, %v3691
      %v3738 = vadd.f32 %v3351, %v3696
      %v3739 = vadd.f32 %v3352, %v3699
      %v3740 = vadd.f32 %v3353, %v3704
      %v3741 = vadd.f32 %v3354, %v3707
      %v3742 = vld [vmem:[%s3355] sm:$0xf]
      %v3743 = vld [vmem:[%s3355 + $0x4] sm:$0xf]
      %v3744 = vld [vmem:[%s3355 + $0x8] sm:$0x1]
      %v3745 = vld [vmem:[%s3355 + $0xc] sm:$0xf]
      %v3746 = vld [vmem:[%s3355 + $0x10] sm:$0xf]
      %v3747 = vld [vmem:[%s3355 + $0x14] sm:$0x1]
      %v3748 = vld [vmem:[%s3355 + $0x18] sm:$0xf]
      %v3749 = vld [vmem:[%s3355 + $0x1c] sm:$0xf]
      %v3750 = vld [vmem:[%s3355 + $0x20] sm:$0x1]
      %v3751 = vld [vmem:[%s3355 + $0x24] sm:$0xf]
      %v3752 = vld [vmem:[%s3355 + $0x28] sm:$0xf]
      %v3753 = vld [vmem:[%s3355 + $0x2c] sm:$0x1]
      %v3754 = vld [vmem:[%s3355 + $0x30] sm:$0xf]
      %v3755 = vld [vmem:[%s3355 + $0x34] sm:$0xf]
      %v3756 = vld [vmem:[%s3355 + $0x38] sm:$0x1]
      %v3757 = vld [vmem:[%s3355 + $0x3c] sm:$0xf]
      %v3758 = vld [vmem:[%s3355 + $0x40] sm:$0xf]
      %v3759 = vld [vmem:[%s3355 + $0x44] sm:$0x1]
      %v3760 = vld [vmem:[%s3355 + $0x48] sm:$0xf]
      %v3761 = vld [vmem:[%s3355 + $0x4c] sm:$0xf]
      %v3762 = vld [vmem:[%s3355 + $0x50] sm:$0x1]
      %v3763 = vld [vmem:[%s3355 + $0x54] sm:$0xf]
      %v3764 = vld [vmem:[%s3355 + $0x58] sm:$0xf]
      %v3765 = vld [vmem:[%s3355 + $0x5c] sm:$0x1]
      %v3766 = vld [vmem:[%s3355 + $0x60] sm:$0xf]
      %v3767 = vld [vmem:[%s3355 + $0x64] sm:$0xf]
      %v3768 = vld [vmem:[%s3355 + $0x68] sm:$0x1]
      %v3769 = vld [vmem:[%s3355 + $0x6c] sm:$0xf]
      %v3770 = vld [vmem:[%s3355 + $0x70] sm:$0xf]
      %v3771 = vld [vmem:[%s3355 + $0x74] sm:$0x1]
      %v3772 = vld [vmem:[%s3355 + $0x78] sm:$0xf]
      %v3773 = vld [vmem:[%s3355 + $0x7c] sm:$0xf]
      %v3774 = vld [vmem:[%s3355 + $0x80] sm:$0x1]
      %v3775 = vld [vmem:[%s3355 + $0x84] sm:$0xf]
      %v3776 = vld [vmem:[%s3355 + $0x88] sm:$0xf]
      %v3777 = vld [vmem:[%s3355 + $0x8c] sm:$0x1]
      %v3778 = vld [vmem:[%s3355 + $0x90] sm:$0xf]
      %v3779 = vld [vmem:[%s3355 + $0x94] sm:$0xf]
      %v3780 = vld [vmem:[%s3355 + $0x98] sm:$0x1]
      %v3781 = vld [vmem:[%s3355 + $0x9c] sm:$0xf]
      %v3782 = vld [vmem:[%s3355 + $0xa0] sm:$0xf]
      %v3783 = vld [vmem:[%s3355 + $0xa4] sm:$0x1]
      %v3784 = vld [vmem:[%s3355 + $0xa8] sm:$0xf]
      %v3785 = vld [vmem:[%s3355 + $0xac] sm:$0xf]
      %v3786 = vld [vmem:[%s3355 + $0xb0] sm:$0x1]
      %v3787 = vld [vmem:[%s3355 + $0xb4] sm:$0xf]
      %v3788 = vld [vmem:[%s3355 + $0xb8] sm:$0xf]
      %v3789 = vld [vmem:[%s3355 + $0xbc] sm:$0x1]
      %v3791 = vshrl.u32 %v3742, 16
      %v3793 = vrot.slane %v3791, 4
      %v3794 = vshll.u32 %v3742, 16
      %v3796 = vrot.slane %v3794, 5
      %v3797 = vor.u32 %v3793, %v3796
      %v3798 = vrot.slane %v3797, 4
      %v3800 = vshll.u32 %v3743, 16
      %v3802 = vrot.slane %v3800, 5
      %v3803 = vsel %vm242, %v3798, %v3802
      %v3804 = vshrl.u32 %v3743, 16
      %v3806 = vrot.slane %v3804, 4
      %v3807 = vor.u32 %v3806, %v3802
      %v3808 = vrot.slane %v3807, 4
      %v3810 = vshll.u32 %v3744, 16
      %v3812 = vrot.slane %v3810, 5
      %v3813 = vsel %vm242, %v3808, %v3812
      %v3815 = vshrl.u32 %v3745, 16
      %v3817 = vrot.slane %v3815, 4
      %v3818 = vshll.u32 %v3745, 16
      %v3820 = vrot.slane %v3818, 5
      %v3821 = vor.u32 %v3817, %v3820
      %v3822 = vrot.slane %v3821, 4
      %v3824 = vshll.u32 %v3746, 16
      %v3826 = vrot.slane %v3824, 5
      %v3827 = vsel %vm242, %v3822, %v3826
      %v3828 = vshrl.u32 %v3746, 16
      %v3830 = vrot.slane %v3828, 4
      %v3831 = vor.u32 %v3830, %v3826
      %v3832 = vrot.slane %v3831, 4
      %v3834 = vshll.u32 %v3747, 16
      %v3836 = vrot.slane %v3834, 5
      %v3837 = vsel %vm242, %v3832, %v3836
      %v3839 = vshrl.u32 %v3748, 16
      %v3841 = vrot.slane %v3839, 4
      %v3842 = vshll.u32 %v3748, 16
      %v3844 = vrot.slane %v3842, 5
      %v3845 = vor.u32 %v3841, %v3844
      %v3846 = vrot.slane %v3845, 4
      %v3848 = vshll.u32 %v3749, 16
      %v3850 = vrot.slane %v3848, 5
      %v3851 = vsel %vm242, %v3846, %v3850
      %v3852 = vshrl.u32 %v3749, 16
      %v3854 = vrot.slane %v3852, 4
      %v3855 = vor.u32 %v3854, %v3850
      %v3856 = vrot.slane %v3855, 4
      %v3858 = vshll.u32 %v3750, 16
      %v3860 = vrot.slane %v3858, 5
      %v3861 = vsel %vm242, %v3856, %v3860
      %v3863 = vshrl.u32 %v3751, 16
      %v3865 = vrot.slane %v3863, 4
      %v3866 = vshll.u32 %v3751, 16
      %v3868 = vrot.slane %v3866, 5
      %v3869 = vor.u32 %v3865, %v3868
      %v3870 = vrot.slane %v3869, 4
      %v3872 = vshll.u32 %v3752, 16
      %v3874 = vrot.slane %v3872, 5
      %v3875 = vsel %vm242, %v3870, %v3874
      %v3876 = vshrl.u32 %v3752, 16
      %v3878 = vrot.slane %v3876, 4
      %v3879 = vor.u32 %v3878, %v3874
      %v3880 = vrot.slane %v3879, 4
      %v3882 = vshll.u32 %v3753, 16
      %v3884 = vrot.slane %v3882, 5
      %v3885 = vsel %vm242, %v3880, %v3884
      %v3887 = vshrl.u32 %v3754, 16
      %v3889 = vrot.slane %v3887, 4
      %v3890 = vshll.u32 %v3754, 16
      %v3892 = vrot.slane %v3890, 5
      %v3893 = vor.u32 %v3889, %v3892
      %v3894 = vrot.slane %v3893, 4
      %v3896 = vshll.u32 %v3755, 16
      %v3898 = vrot.slane %v3896, 5
      %v3899 = vsel %vm242, %v3894, %v3898
      %v3900 = vshrl.u32 %v3755, 16
      %v3902 = vrot.slane %v3900, 4
      %v3903 = vor.u32 %v3902, %v3898
      %v3904 = vrot.slane %v3903, 4
      %v3906 = vshll.u32 %v3756, 16
      %v3908 = vrot.slane %v3906, 5
      %v3909 = vsel %vm242, %v3904, %v3908
      %v3911 = vshrl.u32 %v3757, 16
      %v3913 = vrot.slane %v3911, 4
      %v3914 = vshll.u32 %v3757, 16
      %v3916 = vrot.slane %v3914, 5
      %v3917 = vor.u32 %v3913, %v3916
      %v3918 = vrot.slane %v3917, 4
      %v3920 = vshll.u32 %v3758, 16
      %v3922 = vrot.slane %v3920, 5
      %v3923 = vsel %vm242, %v3918, %v3922
      %v3924 = vshrl.u32 %v3758, 16
      %v3926 = vrot.slane %v3924, 4
      %v3927 = vor.u32 %v3926, %v3922
      %v3928 = vrot.slane %v3927, 4
      %v3930 = vshll.u32 %v3759, 16
      %v3932 = vrot.slane %v3930, 5
      %v3933 = vsel %vm242, %v3928, %v3932
      %v3935 = vshrl.u32 %v3760, 16
      %v3937 = vrot.slane %v3935, 4
      %v3938 = vshll.u32 %v3760, 16
      %v3940 = vrot.slane %v3938, 5
      %v3941 = vor.u32 %v3937, %v3940
      %v3942 = vrot.slane %v3941, 4
      %v3944 = vshll.u32 %v3761, 16
      %v3946 = vrot.slane %v3944, 5
      %v3947 = vsel %vm242, %v3942, %v3946
      %v3948 = vshrl.u32 %v3761, 16
      %v3950 = vrot.slane %v3948, 4
      %v3951 = vor.u32 %v3950, %v3946
      %v3952 = vrot.slane %v3951, 4
      %v3954 = vshll.u32 %v3762, 16
      %v3956 = vrot.slane %v3954, 5
      %v3957 = vsel %vm242, %v3952, %v3956
      %v3959 = vshrl.u32 %v3763, 16
      %v3961 = vrot.slane %v3959, 4
      %v3962 = vshll.u32 %v3763, 16
      %v3964 = vrot.slane %v3962, 5
      %v3965 = vor.u32 %v3961, %v3964
      %v3966 = vrot.slane %v3965, 4
      %v3968 = vshll.u32 %v3764, 16
      %v3970 = vrot.slane %v3968, 5
      %v3971 = vsel %vm242, %v3966, %v3970
      %v3972 = vshrl.u32 %v3764, 16
      %v3974 = vrot.slane %v3972, 4
      %v3975 = vor.u32 %v3974, %v3970
      %v3976 = vrot.slane %v3975, 4
      %v3978 = vshll.u32 %v3765, 16
      %v3980 = vrot.slane %v3978, 5
      %v3981 = vsel %vm242, %v3976, %v3980
      %v3983 = vshrl.u32 %v3766, 16
      %v3985 = vrot.slane %v3983, 4
      %v3986 = vshll.u32 %v3766, 16
      %v3988 = vrot.slane %v3986, 5
      %v3989 = vor.u32 %v3985, %v3988
      %v3990 = vrot.slane %v3989, 4
      %v3992 = vshll.u32 %v3767, 16
      %v3994 = vrot.slane %v3992, 5
      %v3995 = vsel %vm242, %v3990, %v3994
      %v3996 = vshrl.u32 %v3767, 16
      %v3998 = vrot.slane %v3996, 4
      %v3999 = vor.u32 %v3998, %v3994
      %v4000 = vrot.slane %v3999, 4
      %v4002 = vshll.u32 %v3768, 16
      %v4004 = vrot.slane %v4002, 5
      %v4005 = vsel %vm242, %v4000, %v4004
      %v4007 = vshrl.u32 %v3769, 16
      %v4009 = vrot.slane %v4007, 4
      %v4010 = vshll.u32 %v3769, 16
      %v4012 = vrot.slane %v4010, 5
      %v4013 = vor.u32 %v4009, %v4012
      %v4014 = vrot.slane %v4013, 4
      %v4016 = vshll.u32 %v3770, 16
      %v4018 = vrot.slane %v4016, 5
      %v4019 = vsel %vm242, %v4014, %v4018
      %v4020 = vshrl.u32 %v3770, 16
      %v4022 = vrot.slane %v4020, 4
      %v4023 = vor.u32 %v4022, %v4018
      %v4024 = vrot.slane %v4023, 4
      %v4026 = vshll.u32 %v3771, 16
      %v4028 = vrot.slane %v4026, 5
      %v4029 = vsel %vm242, %v4024, %v4028
      %v4031 = vshrl.u32 %v3772, 16
      %v4033 = vrot.slane %v4031, 4
      %v4034 = vshll.u32 %v3772, 16
      %v4036 = vrot.slane %v4034, 5
      %v4037 = vor.u32 %v4033, %v4036
      %v4038 = vrot.slane %v4037, 4
      %v4040 = vshll.u32 %v3773, 16
      %v4042 = vrot.slane %v4040, 5
      %v4043 = vsel %vm242, %v4038, %v4042
      %v4044 = vshrl.u32 %v3773, 16
      %v4046 = vrot.slane %v4044, 4
      %v4047 = vor.u32 %v4046, %v4042
      %v4048 = vrot.slane %v4047, 4
      %v4050 = vshll.u32 %v3774, 16
      %v4052 = vrot.slane %v4050, 5
      %v4053 = vsel %vm242, %v4048, %v4052
      %v4055 = vshrl.u32 %v3775, 16
      %v4057 = vrot.slane %v4055, 4
      %v4058 = vshll.u32 %v3775, 16
      %v4060 = vrot.slane %v4058, 5
      %v4061 = vor.u32 %v4057, %v4060
      %v4062 = vrot.slane %v4061, 4
      %v4064 = vshll.u32 %v3776, 16
      %v4066 = vrot.slane %v4064, 5
      %v4067 = vsel %vm242, %v4062, %v4066
      %v4068 = vshrl.u32 %v3776, 16
      %v4070 = vrot.slane %v4068, 4
      %v4071 = vor.u32 %v4070, %v4066
      %v4072 = vrot.slane %v4071, 4
      %v4074 = vshll.u32 %v3777, 16
      %v4076 = vrot.slane %v4074, 5
      %v4077 = vsel %vm242, %v4072, %v4076
      %v4079 = vshrl.u32 %v3778, 16
      %v4081 = vrot.slane %v4079, 4
      %v4082 = vshll.u32 %v3778, 16
      %v4084 = vrot.slane %v4082, 5
      %v4085 = vor.u32 %v4081, %v4084
      %v4086 = vrot.slane %v4085, 4
      %v4088 = vshll.u32 %v3779, 16
      %v4090 = vrot.slane %v4088, 5
      %v4091 = vsel %vm242, %v4086, %v4090
      %v4092 = vshrl.u32 %v3779, 16
      %v4094 = vrot.slane %v4092, 4
      %v4095 = vor.u32 %v4094, %v4090
      %v4096 = vrot.slane %v4095, 4
      %v4098 = vshll.u32 %v3780, 16
      %v4100 = vrot.slane %v4098, 5
      %v4101 = vsel %vm242, %v4096, %v4100
      %v4103 = vshrl.u32 %v3781, 16
      %v4105 = vrot.slane %v4103, 4
      %v4106 = vshll.u32 %v3781, 16
      %v4108 = vrot.slane %v4106, 5
      %v4109 = vor.u32 %v4105, %v4108
      %v4110 = vrot.slane %v4109, 4
      %v4112 = vshll.u32 %v3782, 16
      %v4114 = vrot.slane %v4112, 5
      %v4115 = vsel %vm242, %v4110, %v4114
      %v4116 = vshrl.u32 %v3782, 16
      %v4118 = vrot.slane %v4116, 4
      %v4119 = vor.u32 %v4118, %v4114
      %v4120 = vrot.slane %v4119, 4
      %v4122 = vshll.u32 %v3783, 16
      %v4124 = vrot.slane %v4122, 5
      %v4125 = vsel %vm242, %v4120, %v4124
      %v4127 = vshrl.u32 %v3784, 16
      %v4129 = vrot.slane %v4127, 4
      %v4130 = vshll.u32 %v3784, 16
      %v4132 = vrot.slane %v4130, 5
      %v4133 = vor.u32 %v4129, %v4132
      %v4134 = vrot.slane %v4133, 4
      %v4136 = vshll.u32 %v3785, 16
      %v4138 = vrot.slane %v4136, 5
      %v4139 = vsel %vm242, %v4134, %v4138
      %v4140 = vshrl.u32 %v3785, 16
      %v4142 = vrot.slane %v4140, 4
      %v4143 = vor.u32 %v4142, %v4138
      %v4144 = vrot.slane %v4143, 4
      %v4146 = vshll.u32 %v3786, 16
      %v4148 = vrot.slane %v4146, 5
      %v4149 = vsel %vm242, %v4144, %v4148
      %v4151 = vshrl.u32 %v3787, 16
      %v4153 = vrot.slane %v4151, 4
      %v4154 = vshll.u32 %v3787, 16
      %v4156 = vrot.slane %v4154, 5
      %v4157 = vor.u32 %v4153, %v4156
      %v4158 = vrot.slane %v4157, 4
      %v4160 = vshll.u32 %v3788, 16
      %v4162 = vrot.slane %v4160, 5
      %v4163 = vsel %vm242, %v4158, %v4162
      %v4164 = vshrl.u32 %v3788, 16
      %v4166 = vrot.slane %v4164, 4
      %v4167 = vor.u32 %v4166, %v4162
      %v4168 = vrot.slane %v4167, 4
      %v4170 = vshll.u32 %v3789, 16
      %v4172 = vrot.slane %v4170, 5
      %v4173 = vsel %vm242, %v4168, %v4172
      %s4174 = scalar_lea.vmem %s1, 224
      %v4175 = vld [vmem:[%s4174] sm:$0xf]
      %v4176 = vld [vmem:[%s4174 + $0x4] sm:$0xf]
      %v4177 = vld [vmem:[%s4174 + $0x8] sm:$0xf]
      %v4178 = vld [vmem:[%s4174 + $0xc] sm:$0xf]
      %v4179 = vld [vmem:[%s4174 + $0x10] sm:$0xf]
      %v4180 = vld [vmem:[%s4174 + $0x14] sm:$0xf]
      %v4181 = vld [vmem:[%s4174 + $0x18] sm:$0xf]
      %v4182 = vld [vmem:[%s4174 + $0x1c] sm:$0xf]
      %v4183 = vunpack.c.l.b16 %v3803
      %v4184 = vunpack.c.l.b16 %v3813
      %v4185 = vunpack.c.l.b16 %v3827
      %v4186 = vunpack.c.l.b16 %v3837
      %v4187 = vunpack.c.l.b16 %v3851
      %v4188 = vunpack.c.l.b16 %v3861
      %v4189 = vunpack.c.l.b16 %v3875
      %v4190 = vunpack.c.l.b16 %v3885
      %v4191 = vunpack.c.l.b16 %v3899
      %v4192 = vunpack.c.l.b16 %v3909
      %v4193 = vunpack.c.l.b16 %v3923
      %v4194 = vunpack.c.l.b16 %v3933
      %v4195 = vunpack.c.l.b16 %v3947
      %v4196 = vunpack.c.l.b16 %v3957
      %v4197 = vunpack.c.l.b16 %v3971
      %v4198 = vunpack.c.l.b16 %v3981
      %v4199 = vunpack.c.l.b16 %v3995
      %v4200 = vunpack.c.l.b16 %v4005
      %v4201 = vunpack.c.l.b16 %v4019
      %v4202 = vunpack.c.l.b16 %v4029
      %v4203 = vunpack.c.l.b16 %v4043
      %v4204 = vunpack.c.l.b16 %v4053
      %v4205 = vunpack.c.l.b16 %v4067
      %v4206 = vunpack.c.l.b16 %v4077
      %v4207 = vunpack.c.l.b16 %v4091
      %v4208 = vunpack.c.l.b16 %v4101
      %v4209 = vunpack.c.l.b16 %v4115
      %v4210 = vunpack.c.l.b16 %v4125
      %v4211 = vunpack.c.l.b16 %v4139
      %v4212 = vunpack.c.l.b16 %v4149
      %v4213 = vunpack.c.l.b16 %v4163
      %v4214 = vunpack.c.l.b16 %v4173
      %v4215 = vpack.c.b16 %v4184, %v4183
      %v4216 = vpack.c.b16 %v4186, %v4185
      %v4217 = vpack.c.b16 %v4188, %v4187
      %v4218 = vpack.c.b16 %v4190, %v4189
      %v4219 = vpack.c.b16 %v4192, %v4191
      %v4220 = vpack.c.b16 %v4194, %v4193
      %v4221 = vpack.c.b16 %v4196, %v4195
      %v4222 = vpack.c.b16 %v4198, %v4197
      %v4223 = vpack.c.b16 %v4200, %v4199
      %v4224 = vpack.c.b16 %v4202, %v4201
      %v4225 = vpack.c.b16 %v4204, %v4203
      %v4226 = vpack.c.b16 %v4206, %v4205
      %v4227 = vpack.c.b16 %v4208, %v4207
      %v4228 = vpack.c.b16 %v4210, %v4209
      %v4229 = vpack.c.b16 %v4212, %v4211
      %v4230 = vpack.c.b16 %v4214, %v4213
      %v4239 = vunpack.c.l.b16 %v4175
      %v4240 = vunpack.c.l.b16 %v4176
      %v4241 = vunpack.c.l.b16 %v4177
      %v4242 = vunpack.c.l.b16 %v4178
      %v4243 = vunpack.c.l.b16 %v4179
      %v4244 = vunpack.c.l.b16 %v4180
      %v4245 = vunpack.c.l.b16 %v4181
      %v4246 = vunpack.c.l.b16 %v4182
      %v4247 = vpack.c.b16 %v4240, %v4239
      %v4248 = vpack.c.b16 %v4242, %v4241
      %v4249 = vpack.c.b16 %v4244, %v4243
      %v4250 = vpack.c.b16 %v4246, %v4245
      %v4256 = vsel %vm708, %v4215, 0
      %v4259 = vsel %vm708, %v4216, 0
      %v4262 = vsel %vm708, %v4217, 0
      %v4265 = vsel %vm708, %v4218, 0
      %v4268 = vsel %vm708, %v4219, 0
      %v4271 = vsel %vm708, %v4220, 0
      %v4274 = vsel %vm708, %v4221, 0
      %v4277 = vsel %vm708, %v4222, 0
      %v4280 = vsel %vm708, %v4223, 0
      %v4283 = vsel %vm708, %v4224, 0
      %v4286 = vsel %vm708, %v4225, 0
      %v4289 = vsel %vm708, %v4226, 0
      %v4292 = vsel %vm708, %v4227, 0
      %v4295 = vsel %vm708, %v4228, 0
      %v4298 = vsel %vm708, %v4229, 0
      %v4301 = vsel %vm708, %v4230, 0
      %4303 = vmatprep.subr.bf16.mxu0 0
      %4304 = vmatpush1.bf16.msra.mxu0 0
      %4305 = vmatprep.subr.bf16.mxu0 0
      %4306 = vmatpush1.bf16.msra.mxu0 0
      %4307 = vmatprep.subr.bf16.mxu0 0
      %4308 = vmatpush1.bf16.msra.mxu0 0
      %4309 = vmatprep.subr.bf16.mxu0 0
      %4310 = vmatpush1.bf16.msra.mxu0 0
      %4311 = vmatprep.subr.bf16.mxu0 0
      %4312 = vmatpush1.bf16.msra.mxu0 %v4250
      %4313 = vmatprep.subr.bf16.mxu0 0
      %4314 = vmatpush1.bf16.msra.mxu0 %v4249
      %4315 = vmatprep.subr.bf16.mxu0 0
      %4316 = vmatpush1.bf16.msra.mxu0 %v4248
      %4317 = vmatprep.subr.bf16.mxu0 0
      %4318 = vmatpush1.bf16.msra.mxu0 %v4247
      %4319 = vmatprep.subr.bf16.mxu0 0
      %4320 = vmatpush2.bf16.msra.mxu0 0
      %4321 = vmatprep.subr.bf16.mxu0 0
      %4322 = vmatpush2.bf16.msra.mxu0 0
      %4323 = vmatprep.subr.bf16.mxu0 0
      %4324 = vmatpush2.bf16.msra.mxu0 0
      %4325 = vmatprep.subr.bf16.mxu0 0
      %4326 = vmatpush2.bf16.msra.mxu0 0
      %4327 = vmatprep.subr.bf16.mxu0 0
      %4328 = vmatpush2.bf16.msra.mxu0 0
      %4329 = vmatprep.subr.bf16.mxu0 0
      %4330 = vmatpush2.bf16.msra.mxu0 0
      %4331 = vmatprep.subr.bf16.mxu0 0
      %4332 = vmatpush2.bf16.msra.mxu0 0
      %4333 = vmatprep.subr.bf16.mxu0 0
      %4334 = vmatpush2.bf16.msra.mxu0 0
      %4335 = vmatprep.mubr.bf16.mxu0 0
      %4336 = vmatmul.mubr.bf16.gmra.mxu0 %v4256
      %v4337 = vpop.f32.mrf.mxu0
      %v4338 = vadd.f32 0.0, %v4337
      %v4339 = vpop.f32.mrf.mxu0
      %v4340 = vpop.f32.mrf.mxu0
      %v4341 = vadd.f32 0.0, %v4340
      %v4342 = vpop.f32.mrf.mxu0
      %4343 = vmatprep.mubr.bf16.mxu0 0
      %4344 = vmatmul.mubr.bf16.gmra.mxu0 %v4259
      %v4345 = vpop.f32.mrf.mxu0
      %v4346 = vadd.f32 0.0, %v4345
      %v4347 = vpop.f32.mrf.mxu0
      %v4348 = vpop.f32.mrf.mxu0
      %v4349 = vadd.f32 0.0, %v4348
      %v4350 = vpop.f32.mrf.mxu0
      %4351 = vmatprep.mubr.bf16.mxu0 0
      %4352 = vmatmul.mubr.bf16.gmra.mxu0 %v4262
      %v4353 = vpop.f32.mrf.mxu0
      %v4354 = vadd.f32 0.0, %v4353
      %v4355 = vpop.f32.mrf.mxu0
      %v4356 = vpop.f32.mrf.mxu0
      %v4357 = vadd.f32 0.0, %v4356
      %v4358 = vpop.f32.mrf.mxu0
      %4359 = vmatprep.mubr.bf16.mxu0 0
      %4360 = vmatmul.mubr.bf16.gmra.mxu0 %v4265
      %v4361 = vpop.f32.mrf.mxu0
      %v4362 = vadd.f32 0.0, %v4361
      %v4363 = vpop.f32.mrf.mxu0
      %v4364 = vpop.f32.mrf.mxu0
      %v4365 = vadd.f32 0.0, %v4364
      %v4366 = vpop.f32.mrf.mxu0
      %4367 = vmatprep.mubr.bf16.mxu0 0
      %4368 = vmatmul.mubr.bf16.gmra.mxu0 %v4268
      %v4369 = vpop.f32.mrf.mxu0
      %v4370 = vadd.f32 0.0, %v4369
      %v4371 = vpop.f32.mrf.mxu0
      %v4372 = vpop.f32.mrf.mxu0
      %v4373 = vadd.f32 0.0, %v4372
      %v4374 = vpop.f32.mrf.mxu0
      %4375 = vmatprep.mubr.bf16.mxu0 0
      %4376 = vmatmul.mubr.bf16.gmra.mxu0 %v4271
      %v4377 = vpop.f32.mrf.mxu0
      %v4378 = vadd.f32 0.0, %v4377
      %v4379 = vpop.f32.mrf.mxu0
      %v4380 = vpop.f32.mrf.mxu0
      %v4381 = vadd.f32 0.0, %v4380
      %v4382 = vpop.f32.mrf.mxu0
      %4383 = vmatprep.mubr.bf16.mxu0 0
      %4384 = vmatmul.mubr.bf16.gmra.mxu0 %v4274
      %v4385 = vpop.f32.mrf.mxu0
      %v4386 = vadd.f32 0.0, %v4385
      %v4387 = vpop.f32.mrf.mxu0
      %v4388 = vpop.f32.mrf.mxu0
      %v4389 = vadd.f32 0.0, %v4388
      %v4390 = vpop.f32.mrf.mxu0
      %4391 = vmatprep.mubr.bf16.mxu0 0
      %4392 = vmatmul.mubr.bf16.gmra.mxu0 %v4277
      %v4393 = vpop.f32.mrf.mxu0
      %v4394 = vadd.f32 0.0, %v4393
      %v4395 = vpop.f32.mrf.mxu0
      %v4396 = vpop.f32.mrf.mxu0
      %v4397 = vadd.f32 0.0, %v4396
      %v4398 = vpop.f32.mrf.mxu0
      %4399 = vmatprep.mubr.bf16.mxu0 0
      %4400 = vmatmul.mubr.bf16.gmra.mxu0 %v4280
      %v4401 = vpop.f32.mrf.mxu0
      %v4402 = vadd.f32 0.0, %v4401
      %v4403 = vpop.f32.mrf.mxu0
      %v4404 = vpop.f32.mrf.mxu0
      %v4405 = vadd.f32 0.0, %v4404
      %v4406 = vpop.f32.mrf.mxu0
      %4407 = vmatprep.mubr.bf16.mxu0 0
      %4408 = vmatmul.mubr.bf16.gmra.mxu0 %v4283
      %v4409 = vpop.f32.mrf.mxu0
      %v4410 = vadd.f32 0.0, %v4409
      %v4411 = vpop.f32.mrf.mxu0
      %v4412 = vpop.f32.mrf.mxu0
      %v4413 = vadd.f32 0.0, %v4412
      %v4414 = vpop.f32.mrf.mxu0
      %4415 = vmatprep.mubr.bf16.mxu0 0
      %4416 = vmatmul.mubr.bf16.gmra.mxu0 %v4286
      %v4417 = vpop.f32.mrf.mxu0
      %v4418 = vadd.f32 0.0, %v4417
      %v4419 = vpop.f32.mrf.mxu0
      %v4420 = vpop.f32.mrf.mxu0
      %v4421 = vadd.f32 0.0, %v4420
      %v4422 = vpop.f32.mrf.mxu0
      %4423 = vmatprep.mubr.bf16.mxu0 0
      %4424 = vmatmul.mubr.bf16.gmra.mxu0 %v4289
      %v4425 = vpop.f32.mrf.mxu0
      %v4426 = vadd.f32 0.0, %v4425
      %v4427 = vpop.f32.mrf.mxu0
      %v4428 = vpop.f32.mrf.mxu0
      %v4429 = vadd.f32 0.0, %v4428
      %v4430 = vpop.f32.mrf.mxu0
      %4431 = vmatprep.mubr.bf16.mxu0 0
      %4432 = vmatmul.mubr.bf16.gmra.mxu0 %v4292
      %v4433 = vpop.f32.mrf.mxu0
      %v4434 = vadd.f32 0.0, %v4433
      %v4435 = vpop.f32.mrf.mxu0
      %v4436 = vpop.f32.mrf.mxu0
      %v4437 = vadd.f32 0.0, %v4436
      %v4438 = vpop.f32.mrf.mxu0
      %4439 = vmatprep.mubr.bf16.mxu0 0
      %4440 = vmatmul.mubr.bf16.gmra.mxu0 %v4295
      %v4441 = vpop.f32.mrf.mxu0
      %v4442 = vadd.f32 0.0, %v4441
      %v4443 = vpop.f32.mrf.mxu0
      %v4444 = vpop.f32.mrf.mxu0
      %v4445 = vadd.f32 0.0, %v4444
      %v4446 = vpop.f32.mrf.mxu0
      %4447 = vmatprep.mubr.bf16.mxu0 0
      %4448 = vmatmul.mubr.bf16.gmra.mxu0 %v4298
      %v4449 = vpop.f32.mrf.mxu0
      %v4450 = vadd.f32 0.0, %v4449
      %v4451 = vpop.f32.mrf.mxu0
      %v4452 = vpop.f32.mrf.mxu0
      %v4453 = vadd.f32 0.0, %v4452
      %v4454 = vpop.f32.mrf.mxu0
      %4455 = vmatprep.mubr.bf16.mxu0 0
      %4456 = vmatmul.mubr.bf16.gmra.mxu0 %v4301
      %v4457 = vpop.f32.mrf.mxu0
      %v4458 = vadd.f32 0.0, %v4457
      %v4459 = vpop.f32.mrf.mxu0
      %v4460 = vpop.f32.mrf.mxu0
      %v4461 = vadd.f32 0.0, %v4460
      %v4462 = vpop.f32.mrf.mxu0
      %4463 = vdwg.mxu0
      %v4464 = vadd.f32 %v3710, %v4338
      %v4465 = vadd.f32 %v3711, %v4341
      %v4466 = vadd.f32 %v3712, %v4346
      %v4467 = vadd.f32 %v3713, %v4349
      %v4468 = vadd.f32 %v3714, %v4354
      %v4469 = vadd.f32 %v3715, %v4357
      %v4470 = vadd.f32 %v3716, %v4362
      %v4471 = vadd.f32 %v3717, %v4365
      %v4472 = vadd.f32 %v3718, %v4370
      %v4473 = vadd.f32 %v3719, %v4373
      %v4474 = vadd.f32 %v3720, %v4378
      %v4475 = vadd.f32 %v3721, %v4381
      %v4476 = vadd.f32 %v3722, %v4386
      %v4477 = vadd.f32 %v3723, %v4389
      %v4478 = vadd.f32 %v3724, %v4394
      %v4479 = vadd.f32 %v3725, %v4397
      %v4480 = vadd.f32 %v3726, %v4402
      %v4481 = vadd.f32 %v3727, %v4405
      %v4482 = vadd.f32 %v3728, %v4410
      %v4483 = vadd.f32 %v3729, %v4413
      %v4484 = vadd.f32 %v3730, %v4418
      %v4485 = vadd.f32 %v3731, %v4421
      %v4486 = vadd.f32 %v3732, %v4426
      %v4487 = vadd.f32 %v3733, %v4429
      %v4488 = vadd.f32 %v3734, %v4434
      %v4489 = vadd.f32 %v3735, %v4437
      %v4490 = vadd.f32 %v3736, %v4442
      %v4491 = vadd.f32 %v3737, %v4445
      %v4492 = vadd.f32 %v3738, %v4450
      %v4493 = vadd.f32 %v3739, %v4453
      %v4494 = vadd.f32 %v3740, %v4458
      %v4495 = vadd.f32 %v3741, %v4461
      %v4496 = vld [vmem:[%s3355] sm:$0xe]
      %v4497 = vld [vmem:[%s3355 + $0xc] sm:$0xe]
      %v4498 = vld [vmem:[%s3355 + $0x18] sm:$0xe]
      %v4499 = vld [vmem:[%s3355 + $0x24] sm:$0xe]
      %v4500 = vld [vmem:[%s3355 + $0x30] sm:$0xe]
      %v4501 = vld [vmem:[%s3355 + $0x3c] sm:$0xe]
      %v4502 = vld [vmem:[%s3355 + $0x48] sm:$0xe]
      %v4503 = vld [vmem:[%s3355 + $0x54] sm:$0xe]
      %v4504 = vld [vmem:[%s3355 + $0x60] sm:$0xe]
      %v4505 = vld [vmem:[%s3355 + $0x6c] sm:$0xe]
      %v4506 = vld [vmem:[%s3355 + $0x78] sm:$0xe]
      %v4507 = vld [vmem:[%s3355 + $0x84] sm:$0xe]
      %v4508 = vld [vmem:[%s3355 + $0x90] sm:$0xe]
      %v4509 = vld [vmem:[%s3355 + $0x9c] sm:$0xe]
      %v4510 = vld [vmem:[%s3355 + $0xa8] sm:$0xe]
      %v4511 = vld [vmem:[%s3355 + $0xb4] sm:$0xe]
      %v4560 = vrot.slane %v4496, 5
      %v4561 = vrot.slane %v4560, 4
      %v4562 = vrot.slane %v3743, 5
      %v4563 = vsel %vm1281, %v4561, %v4562
      %v4564 = vrot.slane %v4562, 4
      %v4565 = vrot.slane %v3744, 5
      %v4566 = vsel %vm1281, %v4564, %v4565
      %v4567 = vrot.slane %v4497, 5
      %v4568 = vrot.slane %v4567, 4
      %v4569 = vrot.slane %v3746, 5
      %v4570 = vsel %vm1281, %v4568, %v4569
      %v4571 = vrot.slane %v4569, 4
      %v4572 = vrot.slane %v3747, 5
      %v4573 = vsel %vm1281, %v4571, %v4572
      %v4574 = vrot.slane %v4498, 5
      %v4575 = vrot.slane %v4574, 4
      %v4576 = vrot.slane %v3749, 5
      %v4577 = vsel %vm1281, %v4575, %v4576
      %v4578 = vrot.slane %v4576, 4
      %v4579 = vrot.slane %v3750, 5
      %v4580 = vsel %vm1281, %v4578, %v4579
      %v4581 = vrot.slane %v4499, 5
      %v4582 = vrot.slane %v4581, 4
      %v4583 = vrot.slane %v3752, 5
      %v4584 = vsel %vm1281, %v4582, %v4583
      %v4585 = vrot.slane %v4583, 4
      %v4586 = vrot.slane %v3753, 5
      %v4587 = vsel %vm1281, %v4585, %v4586
      %v4588 = vrot.slane %v4500, 5
      %v4589 = vrot.slane %v4588, 4
      %v4590 = vrot.slane %v3755, 5
      %v4591 = vsel %vm1281, %v4589, %v4590
      %v4592 = vrot.slane %v4590, 4
      %v4593 = vrot.slane %v3756, 5
      %v4594 = vsel %vm1281, %v4592, %v4593
      %v4595 = vrot.slane %v4501, 5
      %v4596 = vrot.slane %v4595, 4
      %v4597 = vrot.slane %v3758, 5
      %v4598 = vsel %vm1281, %v4596, %v4597
      %v4599 = vrot.slane %v4597, 4
      %v4600 = vrot.slane %v3759, 5
      %v4601 = vsel %vm1281, %v4599, %v4600
      %v4602 = vrot.slane %v4502, 5
      %v4603 = vrot.slane %v4602, 4
      %v4604 = vrot.slane %v3761, 5
      %v4605 = vsel %vm1281, %v4603, %v4604
      %v4606 = vrot.slane %v4604, 4
      %v4607 = vrot.slane %v3762, 5
      %v4608 = vsel %vm1281, %v4606, %v4607
      %v4609 = vrot.slane %v4503, 5
      %v4610 = vrot.slane %v4609, 4
      %v4611 = vrot.slane %v3764, 5
      %v4612 = vsel %vm1281, %v4610, %v4611
      %v4613 = vrot.slane %v4611, 4
      %v4614 = vrot.slane %v3765, 5
      %v4615 = vsel %vm1281, %v4613, %v4614
      %v4616 = vrot.slane %v4504, 5
      %v4617 = vrot.slane %v4616, 4
      %v4618 = vrot.slane %v3767, 5
      %v4619 = vsel %vm1281, %v4617, %v4618
      %v4620 = vrot.slane %v4618, 4
      %v4621 = vrot.slane %v3768, 5
      %v4622 = vsel %vm1281, %v4620, %v4621
      %v4623 = vrot.slane %v4505, 5
      %v4624 = vrot.slane %v4623, 4
      %v4625 = vrot.slane %v3770, 5
      %v4626 = vsel %vm1281, %v4624, %v4625
      %v4627 = vrot.slane %v4625, 4
      %v4628 = vrot.slane %v3771, 5
      %v4629 = vsel %vm1281, %v4627, %v4628
      %v4630 = vrot.slane %v4506, 5
      %v4631 = vrot.slane %v4630, 4
      %v4632 = vrot.slane %v3773, 5
      %v4633 = vsel %vm1281, %v4631, %v4632
      %v4634 = vrot.slane %v4632, 4
      %v4635 = vrot.slane %v3774, 5
      %v4636 = vsel %vm1281, %v4634, %v4635
      %v4637 = vrot.slane %v4507, 5
      %v4638 = vrot.slane %v4637, 4
      %v4639 = vrot.slane %v3776, 5
      %v4640 = vsel %vm1281, %v4638, %v4639
      %v4641 = vrot.slane %v4639, 4
      %v4642 = vrot.slane %v3777, 5
      %v4643 = vsel %vm1281, %v4641, %v4642
      %v4644 = vrot.slane %v4508, 5
      %v4645 = vrot.slane %v4644, 4
      %v4646 = vrot.slane %v3779, 5
      %v4647 = vsel %vm1281, %v4645, %v4646
      %v4648 = vrot.slane %v4646, 4
      %v4649 = vrot.slane %v3780, 5
      %v4650 = vsel %vm1281, %v4648, %v4649
      %v4651 = vrot.slane %v4509, 5
      %v4652 = vrot.slane %v4651, 4
      %v4653 = vrot.slane %v3782, 5
      %v4654 = vsel %vm1281, %v4652, %v4653
      %v4655 = vrot.slane %v4653, 4
      %v4656 = vrot.slane %v3783, 5
      %v4657 = vsel %vm1281, %v4655, %v4656
      %v4658 = vrot.slane %v4510, 5
      %v4659 = vrot.slane %v4658, 4
      %v4660 = vrot.slane %v3785, 5
      %v4661 = vsel %vm1281, %v4659, %v4660
      %v4662 = vrot.slane %v4660, 4
      %v4663 = vrot.slane %v3786, 5
      %v4664 = vsel %vm1281, %v4662, %v4663
      %v4665 = vrot.slane %v4511, 5
      %v4666 = vrot.slane %v4665, 4
      %v4667 = vrot.slane %v3788, 5
      %v4668 = vsel %vm1281, %v4666, %v4667
      %v4669 = vrot.slane %v4667, 4
      %v4670 = vrot.slane %v3789, 5
      %v4671 = vsel %vm1281, %v4669, %v4670
      %s4672 = scalar_lea.vmem %s1, 256
      %v4673 = vld [vmem:[%s4672] sm:$0xf]
      %v4674 = vld [vmem:[%s4672 + $0x4] sm:$0xf]
      %v4675 = vld [vmem:[%s4672 + $0x8] sm:$0xf]
      %v4676 = vld [vmem:[%s4672 + $0xc] sm:$0xf]
      %v4677 = vld [vmem:[%s4672 + $0x10] sm:$0xf]
      %v4678 = vld [vmem:[%s4672 + $0x14] sm:$0xf]
      %v4679 = vld [vmem:[%s4672 + $0x18] sm:$0xf]
      %v4680 = vld [vmem:[%s4672 + $0x1c] sm:$0xf]
      %v4681 = vunpack.c.l.b16 %v4563
      %v4682 = vunpack.c.l.b16 %v4566
      %v4683 = vunpack.c.l.b16 %v4570
      %v4684 = vunpack.c.l.b16 %v4573
      %v4685 = vunpack.c.l.b16 %v4577
      %v4686 = vunpack.c.l.b16 %v4580
      %v4687 = vunpack.c.l.b16 %v4584
      %v4688 = vunpack.c.l.b16 %v4587
      %v4689 = vunpack.c.l.b16 %v4591
      %v4690 = vunpack.c.l.b16 %v4594
      %v4691 = vunpack.c.l.b16 %v4598
      %v4692 = vunpack.c.l.b16 %v4601
      %v4693 = vunpack.c.l.b16 %v4605
      %v4694 = vunpack.c.l.b16 %v4608
      %v4695 = vunpack.c.l.b16 %v4612
      %v4696 = vunpack.c.l.b16 %v4615
      %v4697 = vunpack.c.l.b16 %v4619
      %v4698 = vunpack.c.l.b16 %v4622
      %v4699 = vunpack.c.l.b16 %v4626
      %v4700 = vunpack.c.l.b16 %v4629
      %v4701 = vunpack.c.l.b16 %v4633
      %v4702 = vunpack.c.l.b16 %v4636
      %v4703 = vunpack.c.l.b16 %v4640
      %v4704 = vunpack.c.l.b16 %v4643
      %v4705 = vunpack.c.l.b16 %v4647
      %v4706 = vunpack.c.l.b16 %v4650
      %v4707 = vunpack.c.l.b16 %v4654
      %v4708 = vunpack.c.l.b16 %v4657
      %v4709 = vunpack.c.l.b16 %v4661
      %v4710 = vunpack.c.l.b16 %v4664
      %v4711 = vunpack.c.l.b16 %v4668
      %v4712 = vunpack.c.l.b16 %v4671
      %v4713 = vpack.c.b16 %v4682, %v4681
      %v4714 = vpack.c.b16 %v4684, %v4683
      %v4715 = vpack.c.b16 %v4686, %v4685
      %v4716 = vpack.c.b16 %v4688, %v4687
      %v4717 = vpack.c.b16 %v4690, %v4689
      %v4718 = vpack.c.b16 %v4692, %v4691
      %v4719 = vpack.c.b16 %v4694, %v4693
      %v4720 = vpack.c.b16 %v4696, %v4695
      %v4721 = vpack.c.b16 %v4698, %v4697
      %v4722 = vpack.c.b16 %v4700, %v4699
      %v4723 = vpack.c.b16 %v4702, %v4701
      %v4724 = vpack.c.b16 %v4704, %v4703
      %v4725 = vpack.c.b16 %v4706, %v4705
      %v4726 = vpack.c.b16 %v4708, %v4707
      %v4727 = vpack.c.b16 %v4710, %v4709
      %v4728 = vpack.c.b16 %v4712, %v4711
      %v4737 = vunpack.c.l.b16 %v4673
      %v4738 = vunpack.c.l.b16 %v4674
      %v4739 = vunpack.c.l.b16 %v4675
      %v4740 = vunpack.c.l.b16 %v4676
      %v4741 = vunpack.c.l.b16 %v4677
      %v4742 = vunpack.c.l.b16 %v4678
      %v4743 = vunpack.c.l.b16 %v4679
      %v4744 = vunpack.c.l.b16 %v4680
      %v4745 = vpack.c.b16 %v4738, %v4737
      %v4746 = vpack.c.b16 %v4740, %v4739
      %v4747 = vpack.c.b16 %v4742, %v4741
      %v4748 = vpack.c.b16 %v4744, %v4743
      %v4754 = vsel %vm708, %v4713, 0
      %v4757 = vsel %vm708, %v4714, 0
      %v4760 = vsel %vm708, %v4715, 0
      %v4763 = vsel %vm708, %v4716, 0
      %v4766 = vsel %vm708, %v4717, 0
      %v4769 = vsel %vm708, %v4718, 0
      %v4772 = vsel %vm708, %v4719, 0
      %v4775 = vsel %vm708, %v4720, 0
      %v4778 = vsel %vm708, %v4721, 0
      %v4781 = vsel %vm708, %v4722, 0
      %v4784 = vsel %vm708, %v4723, 0
      %v4787 = vsel %vm708, %v4724, 0
      %v4790 = vsel %vm708, %v4725, 0
      %v4793 = vsel %vm708, %v4726, 0
      %v4796 = vsel %vm708, %v4727, 0
      %v4799 = vsel %vm708, %v4728, 0
      %4801 = vmatprep.subr.bf16.mxu0 0
      %4802 = vmatpush1.bf16.msra.mxu0 0
      %4803 = vmatprep.subr.bf16.mxu0 0
      %4804 = vmatpush1.bf16.msra.mxu0 0
      %4805 = vmatprep.subr.bf16.mxu0 0
      %4806 = vmatpush1.bf16.msra.mxu0 0
      %4807 = vmatprep.subr.bf16.mxu0 0
      %4808 = vmatpush1.bf16.msra.mxu0 0
      %4809 = vmatprep.subr.bf16.mxu0 0
      %4810 = vmatpush1.bf16.msra.mxu0 %v4748
      %4811 = vmatprep.subr.bf16.mxu0 0
      %4812 = vmatpush1.bf16.msra.mxu0 %v4747
      %4813 = vmatprep.subr.bf16.mxu0 0
      %4814 = vmatpush1.bf16.msra.mxu0 %v4746
      %4815 = vmatprep.subr.bf16.mxu0 0
      %4816 = vmatpush1.bf16.msra.mxu0 %v4745
      %4817 = vmatprep.subr.bf16.mxu0 0
      %4818 = vmatpush2.bf16.msra.mxu0 0
      %4819 = vmatprep.subr.bf16.mxu0 0
      %4820 = vmatpush2.bf16.msra.mxu0 0
      %4821 = vmatprep.subr.bf16.mxu0 0
      %4822 = vmatpush2.bf16.msra.mxu0 0
      %4823 = vmatprep.subr.bf16.mxu0 0
      %4824 = vmatpush2.bf16.msra.mxu0 0
      %4825 = vmatprep.subr.bf16.mxu0 0
      %4826 = vmatpush2.bf16.msra.mxu0 0
      %4827 = vmatprep.subr.bf16.mxu0 0
      %4828 = vmatpush2.bf16.msra.mxu0 0
      %4829 = vmatprep.subr.bf16.mxu0 0
      %4830 = vmatpush2.bf16.msra.mxu0 0
      %4831 = vmatprep.subr.bf16.mxu0 0
      %4832 = vmatpush2.bf16.msra.mxu0 0
      %4833 = vmatprep.mubr.bf16.mxu0 0
      %4834 = vmatmul.mubr.bf16.gmra.mxu0 %v4754
      %v4835 = vpop.f32.mrf.mxu0
      %v4836 = vadd.f32 0.0, %v4835
      %v4837 = vpop.f32.mrf.mxu0
      %v4838 = vpop.f32.mrf.mxu0
      %v4839 = vadd.f32 0.0, %v4838
      %v4840 = vpop.f32.mrf.mxu0
      %4841 = vmatprep.mubr.bf16.mxu0 0
      %4842 = vmatmul.mubr.bf16.gmra.mxu0 %v4757
      %v4843 = vpop.f32.mrf.mxu0
      %v4844 = vadd.f32 0.0, %v4843
      %v4845 = vpop.f32.mrf.mxu0
      %v4846 = vpop.f32.mrf.mxu0
      %v4847 = vadd.f32 0.0, %v4846
      %v4848 = vpop.f32.mrf.mxu0
      %4849 = vmatprep.mubr.bf16.mxu0 0
      %4850 = vmatmul.mubr.bf16.gmra.mxu0 %v4760
      %v4851 = vpop.f32.mrf.mxu0
      %v4852 = vadd.f32 0.0, %v4851
      %v4853 = vpop.f32.mrf.mxu0
      %v4854 = vpop.f32.mrf.mxu0
      %v4855 = vadd.f32 0.0, %v4854
      %v4856 = vpop.f32.mrf.mxu0
      %4857 = vmatprep.mubr.bf16.mxu0 0
      %4858 = vmatmul.mubr.bf16.gmra.mxu0 %v4763
      %v4859 = vpop.f32.mrf.mxu0
      %v4860 = vadd.f32 0.0, %v4859
      %v4861 = vpop.f32.mrf.mxu0
      %v4862 = vpop.f32.mrf.mxu0
      %v4863 = vadd.f32 0.0, %v4862
      %v4864 = vpop.f32.mrf.mxu0
      %4865 = vmatprep.mubr.bf16.mxu0 0
      %4866 = vmatmul.mubr.bf16.gmra.mxu0 %v4766
      %v4867 = vpop.f32.mrf.mxu0
      %v4868 = vadd.f32 0.0, %v4867
      %v4869 = vpop.f32.mrf.mxu0
      %v4870 = vpop.f32.mrf.mxu0
      %v4871 = vadd.f32 0.0, %v4870
      %v4872 = vpop.f32.mrf.mxu0
      %4873 = vmatprep.mubr.bf16.mxu0 0
      %4874 = vmatmul.mubr.bf16.gmra.mxu0 %v4769
      %v4875 = vpop.f32.mrf.mxu0
      %v4876 = vadd.f32 0.0, %v4875
      %v4877 = vpop.f32.mrf.mxu0
      %v4878 = vpop.f32.mrf.mxu0
      %v4879 = vadd.f32 0.0, %v4878
      %v4880 = vpop.f32.mrf.mxu0
      %4881 = vmatprep.mubr.bf16.mxu0 0
      %4882 = vmatmul.mubr.bf16.gmra.mxu0 %v4772
      %v4883 = vpop.f32.mrf.mxu0
      %v4884 = vadd.f32 0.0, %v4883
      %v4885 = vpop.f32.mrf.mxu0
      %v4886 = vpop.f32.mrf.mxu0
      %v4887 = vadd.f32 0.0, %v4886
      %v4888 = vpop.f32.mrf.mxu0
      %4889 = vmatprep.mubr.bf16.mxu0 0
      %4890 = vmatmul.mubr.bf16.gmra.mxu0 %v4775
      %v4891 = vpop.f32.mrf.mxu0
      %v4892 = vadd.f32 0.0, %v4891
      %v4893 = vpop.f32.mrf.mxu0
      %v4894 = vpop.f32.mrf.mxu0
      %v4895 = vadd.f32 0.0, %v4894
      %v4896 = vpop.f32.mrf.mxu0
      %4897 = vmatprep.mubr.bf16.mxu0 0
      %4898 = vmatmul.mubr.bf16.gmra.mxu0 %v4778
      %v4899 = vpop.f32.mrf.mxu0
      %v4900 = vadd.f32 0.0, %v4899
      %v4901 = vpop.f32.mrf.mxu0
      %v4902 = vpop.f32.mrf.mxu0
      %v4903 = vadd.f32 0.0, %v4902
      %v4904 = vpop.f32.mrf.mxu0
      %4905 = vmatprep.mubr.bf16.mxu0 0
      %4906 = vmatmul.mubr.bf16.gmra.mxu0 %v4781
      %v4907 = vpop.f32.mrf.mxu0
      %v4908 = vadd.f32 0.0, %v4907
      %v4909 = vpop.f32.mrf.mxu0
      %v4910 = vpop.f32.mrf.mxu0
      %v4911 = vadd.f32 0.0, %v4910
      %v4912 = vpop.f32.mrf.mxu0
      %4913 = vmatprep.mubr.bf16.mxu0 0
      %4914 = vmatmul.mubr.bf16.gmra.mxu0 %v4784
      %v4915 = vpop.f32.mrf.mxu0
      %v4916 = vadd.f32 0.0, %v4915
      %v4917 = vpop.f32.mrf.mxu0
      %v4918 = vpop.f32.mrf.mxu0
      %v4919 = vadd.f32 0.0, %v4918
      %v4920 = vpop.f32.mrf.mxu0
      %4921 = vmatprep.mubr.bf16.mxu0 0
      %4922 = vmatmul.mubr.bf16.gmra.mxu0 %v4787
      %v4923 = vpop.f32.mrf.mxu0
      %v4924 = vadd.f32 0.0, %v4923
      %v4925 = vpop.f32.mrf.mxu0
      %v4926 = vpop.f32.mrf.mxu0
      %v4927 = vadd.f32 0.0, %v4926
      %v4928 = vpop.f32.mrf.mxu0
      %4929 = vmatprep.mubr.bf16.mxu0 0
      %4930 = vmatmul.mubr.bf16.gmra.mxu0 %v4790
      %v4931 = vpop.f32.mrf.mxu0
      %v4932 = vadd.f32 0.0, %v4931
      %v4933 = vpop.f32.mrf.mxu0
      %v4934 = vpop.f32.mrf.mxu0
      %v4935 = vadd.f32 0.0, %v4934
      %v4936 = vpop.f32.mrf.mxu0
      %4937 = vmatprep.mubr.bf16.mxu0 0
      %4938 = vmatmul.mubr.bf16.gmra.mxu0 %v4793
      %v4939 = vpop.f32.mrf.mxu0
      %v4940 = vadd.f32 0.0, %v4939
      %v4941 = vpop.f32.mrf.mxu0
      %v4942 = vpop.f32.mrf.mxu0
      %v4943 = vadd.f32 0.0, %v4942
      %v4944 = vpop.f32.mrf.mxu0
      %4945 = vmatprep.mubr.bf16.mxu0 0
      %4946 = vmatmul.mubr.bf16.gmra.mxu0 %v4796
      %v4947 = vpop.f32.mrf.mxu0
      %v4948 = vadd.f32 0.0, %v4947
      %v4949 = vpop.f32.mrf.mxu0
      %v4950 = vpop.f32.mrf.mxu0
      %v4951 = vadd.f32 0.0, %v4950
      %v4952 = vpop.f32.mrf.mxu0
      %4953 = vmatprep.mubr.bf16.mxu0 0
      %4954 = vmatmul.mubr.bf16.gmra.mxu0 %v4799
      %v4955 = vpop.f32.mrf.mxu0
      %v4956 = vadd.f32 0.0, %v4955
      %v4957 = vpop.f32.mrf.mxu0
      %v4958 = vpop.f32.mrf.mxu0
      %v4959 = vadd.f32 0.0, %v4958
      %v4960 = vpop.f32.mrf.mxu0
      %4961 = vdwg.mxu0
      %v4962 = vadd.f32 %v4464, %v4836
      %v4963 = vadd.f32 %v4465, %v4839
      %v4964 = vadd.f32 %v4466, %v4844
      %v4965 = vadd.f32 %v4467, %v4847
      %v4966 = vadd.f32 %v4468, %v4852
      %v4967 = vadd.f32 %v4469, %v4855
      %v4968 = vadd.f32 %v4470, %v4860
      %v4969 = vadd.f32 %v4471, %v4863
      %v4970 = vadd.f32 %v4472, %v4868
      %v4971 = vadd.f32 %v4473, %v4871
      %v4972 = vadd.f32 %v4474, %v4876
      %v4973 = vadd.f32 %v4475, %v4879
      %v4974 = vadd.f32 %v4476, %v4884
      %v4975 = vadd.f32 %v4477, %v4887
      %v4976 = vadd.f32 %v4478, %v4892
      %v4977 = vadd.f32 %v4479, %v4895
      %v4978 = vadd.f32 %v4480, %v4900
      %v4979 = vadd.f32 %v4481, %v4903
      %v4980 = vadd.f32 %v4482, %v4908
      %v4981 = vadd.f32 %v4483, %v4911
      %v4982 = vadd.f32 %v4484, %v4916
      %v4983 = vadd.f32 %v4485, %v4919
      %v4984 = vadd.f32 %v4486, %v4924
      %v4985 = vadd.f32 %v4487, %v4927
      %v4986 = vadd.f32 %v4488, %v4932
      %v4987 = vadd.f32 %v4489, %v4935
      %v4988 = vadd.f32 %v4490, %v4940
      %v4989 = vadd.f32 %v4491, %v4943
      %v4990 = vadd.f32 %v4492, %v4948
      %v4991 = vadd.f32 %v4493, %v4951
      %v4992 = vadd.f32 %v4494, %v4956
      %v4993 = vadd.f32 %v4495, %v4959
      %4994 = vst.msk [vmem:[%s177] sm:$0xff] %vm708, %v4962
      %4995 = vst.msk [vmem:[%s177 + $0x8] sm:$0xff] %vm708, %v4963
      %4996 = vst.msk [vmem:[%s177 + $0x10] sm:$0xff] %vm708, %v4964
      %4997 = vst.msk [vmem:[%s177 + $0x18] sm:$0xff] %vm708, %v4965
      %4998 = vst.msk [vmem:[%s177 + $0x20] sm:$0xff] %vm708, %v4966
      %4999 = vst.msk [vmem:[%s177 + $0x28] sm:$0xff] %vm708, %v4967
      %5000 = vst.msk [vmem:[%s177 + $0x30] sm:$0xff] %vm708, %v4968
      %5001 = vst.msk [vmem:[%s177 + $0x38] sm:$0xff] %vm708, %v4969
      %5002 = vst.msk [vmem:[%s177 + $0x40] sm:$0xff] %vm708, %v4970
      %5003 = vst.msk [vmem:[%s177 + $0x48] sm:$0xff] %vm708, %v4971
      %5004 = vst.msk [vmem:[%s177 + $0x50] sm:$0xff] %vm708, %v4972
      %5005 = vst.msk [vmem:[%s177 + $0x58] sm:$0xff] %vm708, %v4973
      %5006 = vst.msk [vmem:[%s177 + $0x60] sm:$0xff] %vm708, %v4974
      %5007 = vst.msk [vmem:[%s177 + $0x68] sm:$0xff] %vm708, %v4975
      %5008 = vst.msk [vmem:[%s177 + $0x70] sm:$0xff] %vm708, %v4976
      %5009 = vst.msk [vmem:[%s177 + $0x78] sm:$0xff] %vm708, %v4977
      %5010 = vst.msk [vmem:[%s177 + $0x80] sm:$0xff] %vm708, %v4978
      %5011 = vst.msk [vmem:[%s177 + $0x88] sm:$0xff] %vm708, %v4979
      %5012 = vst.msk [vmem:[%s177 + $0x90] sm:$0xff] %vm708, %v4980
      %5013 = vst.msk [vmem:[%s177 + $0x98] sm:$0xff] %vm708, %v4981
      %5014 = vst.msk [vmem:[%s177 + $0xa0] sm:$0xff] %vm708, %v4982
      %5015 = vst.msk [vmem:[%s177 + $0xa8] sm:$0xff] %vm708, %v4983
      %5016 = vst.msk [vmem:[%s177 + $0xb0] sm:$0xff] %vm708, %v4984
      %5017 = vst.msk [vmem:[%s177 + $0xb8] sm:$0xff] %vm708, %v4985
      %5018 = vst.msk [vmem:[%s177 + $0xc0] sm:$0xff] %vm708, %v4986
      %5019 = vst.msk [vmem:[%s177 + $0xc8] sm:$0xff] %vm708, %v4987
      %5020 = vst.msk [vmem:[%s177 + $0xd0] sm:$0xff] %vm708, %v4988
      %5021 = vst.msk [vmem:[%s177 + $0xd8] sm:$0xff] %vm708, %v4989
      %5022 = vst.msk [vmem:[%s177 + $0xe0] sm:$0xff] %vm708, %v4990
      %5023 = vst.msk [vmem:[%s177 + $0xe8] sm:$0xff] %vm708, %v4991
      %5024 = vst.msk [vmem:[%s177 + $0xf0] sm:$0xff] %vm708, %v4992
      %5025 = vst.msk [vmem:[%s177 + $0xf8] sm:$0xff] %vm708, %v4993
      %v5026 = vsel %vm708, %v4962, 0.0
      %v5027 = vsel %vm708, %v4963, 0.0
      %v5028 = vadd.f32 %v5026, %v5027
      %v5029 = vsel %vm708, %v4964, 0.0
      %v5030 = vadd.f32 %v5028, %v5029
      %v5031 = vsel %vm708, %v4965, 0.0
      %v5032 = vadd.f32 %v5030, %v5031
      %v5033 = vsel %vm708, %v4966, 0.0
      %v5034 = vadd.f32 %v5032, %v5033
      %v5035 = vsel %vm708, %v4967, 0.0
      %v5036 = vadd.f32 %v5034, %v5035
      %v5037 = vsel %vm708, %v4968, 0.0
      %v5038 = vadd.f32 %v5036, %v5037
      %v5039 = vsel %vm708, %v4969, 0.0
      %v5040 = vadd.f32 %v5038, %v5039
      %v5041 = vsel %vm708, %v4970, 0.0
      %v5042 = vadd.f32 %v5040, %v5041
      %v5043 = vsel %vm708, %v4971, 0.0
      %v5044 = vadd.f32 %v5042, %v5043
      %v5045 = vsel %vm708, %v4972, 0.0
      %v5046 = vadd.f32 %v5044, %v5045
      %v5047 = vsel %vm708, %v4973, 0.0
      %v5048 = vadd.f32 %v5046, %v5047
      %v5049 = vsel %vm708, %v4974, 0.0
      %v5050 = vadd.f32 %v5048, %v5049
      %v5051 = vsel %vm708, %v4975, 0.0
      %v5052 = vadd.f32 %v5050, %v5051
      %v5053 = vsel %vm708, %v4976, 0.0
      %v5054 = vadd.f32 %v5052, %v5053
      %v5055 = vsel %vm708, %v4977, 0.0
      %v5056 = vadd.f32 %v5054, %v5055
      %v5057 = vsel %vm708, %v4978, 0.0
      %v5058 = vadd.f32 %v5056, %v5057
      %v5059 = vsel %vm708, %v4979, 0.0
      %v5060 = vadd.f32 %v5058, %v5059
      %v5061 = vsel %vm708, %v4980, 0.0
      %v5062 = vadd.f32 %v5060, %v5061
      %v5063 = vsel %vm708, %v4981, 0.0
      %v5064 = vadd.f32 %v5062, %v5063
      %v5065 = vsel %vm708, %v4982, 0.0
      %v5066 = vadd.f32 %v5064, %v5065
      %v5067 = vsel %vm708, %v4983, 0.0
      %v5068 = vadd.f32 %v5066, %v5067
      %v5069 = vsel %vm708, %v4984, 0.0
      %v5070 = vadd.f32 %v5068, %v5069
      %v5071 = vsel %vm708, %v4985, 0.0
      %v5072 = vadd.f32 %v5070, %v5071
      %v5073 = vsel %vm708, %v4986, 0.0
      %v5074 = vadd.f32 %v5072, %v5073
      %v5075 = vsel %vm708, %v4987, 0.0
      %v5076 = vadd.f32 %v5074, %v5075
      %v5077 = vsel %vm708, %v4988, 0.0
      %v5078 = vadd.f32 %v5076, %v5077
      %v5079 = vsel %vm708, %v4989, 0.0
      %v5080 = vadd.f32 %v5078, %v5079
      %v5081 = vsel %vm708, %v4990, 0.0
      %v5082 = vadd.f32 %v5080, %v5081
      %v5083 = vsel %vm708, %v4991, 0.0
      %v5084 = vadd.f32 %v5082, %v5083
      %v5085 = vsel %vm708, %v4992, 0.0
      %v5086 = vadd.f32 %v5084, %v5085
      %v5087 = vsel %vm708, %v4993, 0.0
      %v5088 = vadd.f32 %v5086, %v5087
      %v5089 = vrot.slane %v5088, 4
      %v5090 = vadd.f32 %v5088, %v5089
      %v5091 = vrot.slane %v5090, 2
      %v5092 = vadd.f32 %v5090, %v5091
      %v5093 = vrot.slane %v5092, 1
      %v5094 = vadd.f32 %v5092, %v5093
      %v5095 = vmul.f32 %v4962, %v4962
      %v5096 = vmul.f32 %v4963, %v4963
      %v5097 = vmul.f32 %v4964, %v4964
      %v5098 = vmul.f32 %v4965, %v4965
      %v5099 = vmul.f32 %v4966, %v4966
      %v5100 = vmul.f32 %v4967, %v4967
      %v5101 = vmul.f32 %v4968, %v4968
      %v5102 = vmul.f32 %v4969, %v4969
      %v5103 = vmul.f32 %v4970, %v4970
      %v5104 = vmul.f32 %v4971, %v4971
      %v5105 = vmul.f32 %v4972, %v4972
      %v5106 = vmul.f32 %v4973, %v4973
      %v5107 = vmul.f32 %v4974, %v4974
      %v5108 = vmul.f32 %v4975, %v4975
      %v5109 = vmul.f32 %v4976, %v4976
      %v5110 = vmul.f32 %v4977, %v4977
      %v5111 = vmul.f32 %v4978, %v4978
      %v5112 = vmul.f32 %v4979, %v4979
      %v5113 = vmul.f32 %v4980, %v4980
      %v5114 = vmul.f32 %v4981, %v4981
      %v5115 = vmul.f32 %v4982, %v4982
      %v5116 = vmul.f32 %v4983, %v4983
      %v5117 = vmul.f32 %v4984, %v4984
      %v5118 = vmul.f32 %v4985, %v4985
      %v5119 = vmul.f32 %v4986, %v4986
      %v5120 = vmul.f32 %v4987, %v4987
      %v5121 = vmul.f32 %v4988, %v4988
      %v5122 = vmul.f32 %v4989, %v4989
      %v5123 = vmul.f32 %v4990, %v4990
      %v5124 = vmul.f32 %v4991, %v4991
      %v5125 = vmul.f32 %v4992, %v4992
      %v5126 = vmul.f32 %v4993, %v4993
      %v5127 = vsel %vm708, %v5095, 0.0
      %v5128 = vsel %vm708, %v5096, 0.0
      %v5129 = vadd.f32 %v5127, %v5128
      %v5130 = vsel %vm708, %v5097, 0.0
      %v5131 = vadd.f32 %v5129, %v5130
      %v5132 = vsel %vm708, %v5098, 0.0
      %v5133 = vadd.f32 %v5131, %v5132
      %v5134 = vsel %vm708, %v5099, 0.0
      %v5135 = vadd.f32 %v5133, %v5134
      %v5136 = vsel %vm708, %v5100, 0.0
      %v5137 = vadd.f32 %v5135, %v5136
      %v5138 = vsel %vm708, %v5101, 0.0
      %v5139 = vadd.f32 %v5137, %v5138
      %v5140 = vsel %vm708, %v5102, 0.0
      %v5141 = vadd.f32 %v5139, %v5140
      %v5142 = vsel %vm708, %v5103, 0.0
      %v5143 = vadd.f32 %v5141, %v5142
      %v5144 = vsel %vm708, %v5104, 0.0
      %v5145 = vadd.f32 %v5143, %v5144
      %v5146 = vsel %vm708, %v5105, 0.0
      %v5147 = vadd.f32 %v5145, %v5146
      %v5148 = vsel %vm708, %v5106, 0.0
      %v5149 = vadd.f32 %v5147, %v5148
      %v5150 = vsel %vm708, %v5107, 0.0
      %v5151 = vadd.f32 %v5149, %v5150
      %v5152 = vsel %vm708, %v5108, 0.0
      %v5153 = vadd.f32 %v5151, %v5152
      %v5154 = vsel %vm708, %v5109, 0.0
      %v5155 = vadd.f32 %v5153, %v5154
      %v5156 = vsel %vm708, %v5110, 0.0
      %v5157 = vadd.f32 %v5155, %v5156
      %v5158 = vsel %vm708, %v5111, 0.0
      %v5159 = vadd.f32 %v5157, %v5158
      %v5160 = vsel %vm708, %v5112, 0.0
      %v5161 = vadd.f32 %v5159, %v5160
      %v5162 = vsel %vm708, %v5113, 0.0
      %v5163 = vadd.f32 %v5161, %v5162
      %v5164 = vsel %vm708, %v5114, 0.0
      %v5165 = vadd.f32 %v5163, %v5164
      %v5166 = vsel %vm708, %v5115, 0.0
      %v5167 = vadd.f32 %v5165, %v5166
      %v5168 = vsel %vm708, %v5116, 0.0
      %v5169 = vadd.f32 %v5167, %v5168
      %v5170 = vsel %vm708, %v5117, 0.0
      %v5171 = vadd.f32 %v5169, %v5170
      %v5172 = vsel %vm708, %v5118, 0.0
      %v5173 = vadd.f32 %v5171, %v5172
      %v5174 = vsel %vm708, %v5119, 0.0
      %v5175 = vadd.f32 %v5173, %v5174
      %v5176 = vsel %vm708, %v5120, 0.0
      %v5177 = vadd.f32 %v5175, %v5176
      %v5178 = vsel %vm708, %v5121, 0.0
      %v5179 = vadd.f32 %v5177, %v5178
      %v5180 = vsel %vm708, %v5122, 0.0
      %v5181 = vadd.f32 %v5179, %v5180
      %v5182 = vsel %vm708, %v5123, 0.0
      %v5183 = vadd.f32 %v5181, %v5182
      %v5184 = vsel %vm708, %v5124, 0.0
      %v5185 = vadd.f32 %v5183, %v5184
      %v5186 = vsel %vm708, %v5125, 0.0
      %v5187 = vadd.f32 %v5185, %v5186
      %v5188 = vsel %vm708, %v5126, 0.0
      %v5189 = vadd.f32 %v5187, %v5188
      %v5190 = vrot.slane %v5189, 4
      %v5191 = vadd.f32 %v5189, %v5190
      %v5192 = vrot.slane %v5191, 2
      %v5193 = vadd.f32 %v5191, %v5192
      %v5194 = vrot.slane %v5193, 1
      %v5195 = vadd.f32 %v5193, %v5194
      %vm5196 = vcmask 1040384
      %v5197 = vsel %vm5196, %v5094, %v5195
      %vm5198 = vcmask 517120
      %5199 = vst.msk [vmem:[%s182] sm:$0x3] %vm5198, %v5197
      %s5200 = smul.u32 32, %s15
      %p5201 = scmp.lt.s32.totalorder %s5200, 63
      %s5202 = scalar_select %p5201, %s5200, 63
      %s5203 = smul.addr %s5202, 8
      %s5204 = scalar_lea.vmem %s2, %s5203
      %p5205 = scmp.lt.s32.totalorder %s15, 1
      %s5206 = scalar_select %p5205, %s15, 1
      %s5207 = smul.addr %s5206, 2
      %s5208 = scalar_lea.vmem %s3, %s5207
      // Predicated region
      $region29: #{restnet_basic_block_forward.6} parent=27 // pred_check
        %p5209 = pneg %p80
      $region30: #{restnet_basic_block_forward.6} parent=27 // pred_check_branch
        %5211 = sbr.rel (%p5209) target = $region32
      $region31: #{restnet_basic_block_forward.6} parent=27 // pred_region
        %s5212 = smul.u32 32, %s15
      $region32: #{restnet_basic_block_forward.6} parent=27 // pred_fallthru
        _
      // Predicated region
      $region33: #{restnet_basic_block_forward.6} parent=27 // pred_check
        %p5213 = pneg %p106
      $region34: #{restnet_basic_block_forward.6} parent=27 // pred_check_branch
        %5215 = sbr.rel (%p5213) target = $region36
      $region35: #{restnet_basic_block_forward.6} parent=27 // pred_region
        _
      $region36: #{restnet_basic_block_forward.6} parent=27 // pred_fallthru
        _
    $region28: #{restnet_basic_block_forward.6} parent=5 // pred_fallthru
      _
    %p5216 = scmp.le.s32.totalorder 2, %s10
    // Predicated region
    $region37: #{restnet_basic_block_forward.6} parent=5 // pred_check
      %p5217 = pneg %p5216
    $region38: #{restnet_basic_block_forward.6} parent=5 // pred_check_branch
      %5219 = sbr.rel (%p5217) target = $region40
    $region39: #{restnet_basic_block_forward.6} parent=5 // pred_region
      %s5220 = ssub.s32 %s10, 2
      // Predicated region
      $region41: #{restnet_basic_block_forward.6} parent=39 // pred_check
        %p5221 = pneg %p86
      $region42: #{restnet_basic_block_forward.6} parent=39 // pred_check_branch
        %5223 = sbr.rel (%p5221) target = $region44
      $region43: #{restnet_basic_block_forward.6} parent=39 // pred_region
        %s5224 = smul.u32 32, %s16
        %p5225 = scmp.lt.s32.totalorder %s5224, 63
        %s5226 = scalar_select %p5225, %s5224, 63
        %s5227 = smul.addr %s5226, 8
        %s5228 = scalar_lea.vmem %s2, %s5227
      $region44: #{restnet_basic_block_forward.6} parent=39 // pred_fallthru
        _
      // Predicated region
      $region45: #{restnet_basic_block_forward.6} parent=39 // pred_check
        %p5229 = pneg %p112
      $region46: #{restnet_basic_block_forward.6} parent=39 // pred_check_branch
        %5231 = sbr.rel (%p5229) target = $region48
      $region47: #{restnet_basic_block_forward.6} parent=39 // pred_region
        %p5232 = scmp.lt.s32.totalorder %s16, 1
        %s5233 = scalar_select %p5232, %s16, 1
        %s5234 = smul.addr %s5233, 2
        %s5235 = scalar_lea.vmem %s3, %s5234
      $region48: #{restnet_basic_block_forward.6} parent=39 // pred_fallthru
        _
    $region40: #{restnet_basic_block_forward.6} parent=5 // pred_fallthru
      _
  $region6: #{restnet_basic_block_forward.6} parent=0 // loop_footer
    %s14 = sadd.s32 1, %s10
  $region7: #{restnet_basic_block_forward.6} parent=0 // loop_footer_branch
    %9 = sbr.rel target = $region3
  $region8: #{restnet_basic_block_forward.6} parent=0 // loop_exit
    _

</llo_original>
